<compile_context>
chip_gen: v7x
topology: tpu7x:2x2x1
jax: 0.10.0
libtpu: 0.0.40
codegen_flags: <defaults>
</compile_context>

<pallas_src>
import functools

import numpy as np
import jax
import jax.numpy as jnp
from jax import lax
from jax.experimental import pallas as pl
from jax.experimental.pallas import tpu as pltpu

LN_EPS = 1e-5        # nn.LayerNorm eps
NEG_SLOPE = 0.2      # GATConv leaky_relu negative slope
DENOM_FLOOR = 1e-20  # guard for segment-softmax denominators
MASK_NEG = -1e9      # logit for non-own-branch attention columns
PAD_NEG = -1e30      # logit bias for padded class lanes

_F32 = jnp.float32
_BF16 = jnp.bfloat16

# branch order: temporal (edge_type 0), gap (2), proximity (1)
# (matches torch.cat([h_temporal, h_gap, h_proximity], dim=-1))
TYPE_ORDER = (0, 2, 1)


# ----------------------------------------------------------------------------
# in-kernel building blocks (traced inside the single fused Pallas kernel)
# ----------------------------------------------------------------------------
def _mxdot(a, b):
    """MXU matmul with bf16 operands and f32 accumulation."""
    return jnp.dot(a.astype(_BF16), b.astype(_BF16), preferred_element_type=_F32)


def _layer_norm(v, gamma, beta):
    mu = jnp.mean(v, axis=1, keepdims=True)
    d = v - mu
    var = jnp.mean(d * d, axis=1, keepdims=True)
    return d * lax.rsqrt(var + LN_EPS) * gamma + beta


def _transpose_onehot(d, n):
    """[E,N] one-hot dst matrix -> [N,E] scatter matrix, built in-kernel so D^T never
    ships over HBM.  Uses a transposed-RHS (NT) dot_general against an iota identity,
    i.e. the standard q@k^T MXU form -- no transposed-lhs matmul, no transpose op."""
    row = lax.broadcasted_iota(jnp.int32, (n, n), 0)
    col = lax.broadcasted_iota(jnp.int32, (n, n), 1)
    eye = jnp.where(row == col, 1.0, 0.0).astype(_BF16)
    r = lax.dot_general(eye, d.astype(_BF16),
                        dimension_numbers=(((1,), (1,)), ((), ())),
                        preferred_element_type=_F32)
    return r.astype(_BF16)                                    # exact 0/1 values


def _masked_segment_expw(alpha, msk):
    """Mask non-own-branch head columns, shift by the per-column max (segment-invariant,
    cancels in the normalized ratio) and exponentiate."""
    alpha = jnp.where(msk > 0, alpha, MASK_NEG)
    alpha = alpha - jnp.max(alpha, axis=0, keepdims=True)
    return jnp.exp(alpha) * msk                               # [E, 3H]


def _gat_layer(x, g, r_dst, p, he_w):
    """All three PyG GATConv branches of one layer, merged over the edge axis.
    g holds the self-loop-augmented merged graph (fill_value='mean').
    Returns the [N, 3*hidden] h_combined slab (== torch.cat of the 3 branches)."""
    S, D, ea, msk = g["S"][...], g["D"][...], g["ea"][...], g["mask"][...]
    h_wide = _mxdot(x, p["Wlin"][...])                        # [N, 3*hidden]
    a_src = _mxdot(x, p["Msrc"][...])                         # [N, 3H] (host-folded Wlin@att_src)
    a_dst = _mxdot(x, p["Mdst"][...])                         # [N, 3H]
    a_edge = _mxdot(ea, p["Medge"][...])                      # [E, 3H] (folded lin_edge@att_edge)
    alpha = _mxdot(S, a_src) + _mxdot(D, a_dst) + a_edge      # [E, 3H]
    alpha = jnp.where(alpha >= 0, alpha, NEG_SLOPE * alpha)   # LeakyReLU(0.2)
    expw = _masked_segment_expw(alpha, msk)
    denom = jnp.maximum(_mxdot(r_dst, expw), DENOM_FLOOR)     # [N, 3H] per-(dst,branch,head)
    inv = pl.reciprocal(denom, approx=True)                   # EUP slot (~free)
    msg = _mxdot(S, h_wide) * _mxdot(expw, he_w)              # [E, 3*hidden]
    agg = _mxdot(r_dst, msg) * _mxdot(inv, he_w)              # normalize in node space
    return agg + p["bconv"][...]                              # [N, 3*hidden]


def _transformer_layer(x, g, r_dst, p, he_w, hs_w, inv_sqrt_c, hidden3):
    """All three PyG TransformerConv branches (root_weight=True, beta=False), merged."""
    S, D, ea, msk = g["S"][...], g["D"][...], g["ea"][...], g["mask"][...]
    qkvs = _mxdot(x, p["Wqkvs"][...]) + p["bqkvs"][...]       # [N, 12*hidden], one wide matmul
    q = qkvs[:, 0 * hidden3:1 * hidden3]
    k = qkvs[:, 1 * hidden3:2 * hidden3]
    v = qkvs[:, 2 * hidden3:3 * hidden3]
    skip = qkvs[:, 3 * hidden3:4 * hidden3]
    e_emb = _mxdot(ea, p["We"][...])                          # [E, 3*hidden]
    q_dst = _mxdot(D, q)                                      # query at dst
    k_src = _mxdot(S, k) + e_emb                              # key at src + edge emb
    alpha = _mxdot(q_dst * k_src, hs_w) * inv_sqrt_c          # [E, 3H] per-head reduce
    expw = _masked_segment_expw(alpha, msk)
    denom = jnp.maximum(_mxdot(r_dst, expw), DENOM_FLOOR)
    inv = pl.reciprocal(denom, approx=True)
    msg = (_mxdot(S, v) + e_emb) * _mxdot(expw, he_w)         # value + edge emb
    agg = _mxdot(r_dst, msg) * _mxdot(inv, he_w)
    return agg + skip                                         # [N, 3*hidden]


def _gap_attention(x, g, r_dst, p, he1, hs1, inv_sqrt_c, hidden):
    """GapAwareAttention: softmax over ALL gap edges (dim=0), per head."""
    S, D = g["S"][...], g["D"][...]
    qkv = _mxdot(x, p["Wqkv"][...]) + p["bqkv"][...]          # [N, 3*hidden]
    q, k, v = qkv[:, :hidden], qkv[:, hidden:2 * hidden], qkv[:, 2 * hidden:]
    scores = _mxdot(_mxdot(D, q) * _mxdot(S, k), hs1) * inv_sqrt_c   # [E, H]
    scores = scores - jnp.max(scores, axis=0, keepdims=True)
    e = jnp.exp(scores)
    w = e * pl.reciprocal(jnp.sum(e, axis=0, keepdims=True), approx=True)
    msg = _mxdot(S, v) * _mxdot(w, he1)                       # [E, hidden]
    attended = _mxdot(r_dst, msg)                             # [N, hidden]
    return x + _mxdot(attended, p["Wo"][...]) + p["bo"][...]


# ----------------------------------------------------------------------------
# fused forward (single pallas_call)
# ----------------------------------------------------------------------------
@functools.partial(jax.jit, static_argnames=("num_layers", "heads", "num_classes"))
def gap_gnn_forward(x, graphs, params, *, num_layers, heads, num_classes):
    inputs = {"x": x, "graphs": graphs, "params": params}
    flat, treedef = jax.tree_util.tree_flatten(inputs)
    num_nodes = x.shape[0]
    hidden = params["input"]["b"].shape[1]
    hidden3 = 3 * hidden
    cpad = params["classifier"]["b3"].shape[1]
    n_gat = num_layers // 2
    inv_sqrt_c = 1.0 / float(hidden // heads) ** 0.5

    def fused_kernel(*refs):
        out_ref = refs[-1]
        tree = jax.tree_util.tree_unflatten(treedef, refs[:-1])
        P, G = tree["params"], tree["graphs"]
        he_w = P["const"]["HeadExpandW"][...]                 # [3H, 3*hidden] bf16
        hs_w = P["const"]["HeadSumW"][...]                    # [3*hidden, 3H] bf16
        he1 = P["const"]["HeadExpand"][...]                   # [H, hidden]
        hs1 = P["const"]["HeadSum"][...]                      # [hidden, H]

        # [N,E] scatter matrices, rebuilt once per graph variant (D^T not DMA'd).
        r_loop = _transpose_onehot(G["loop"]["D"][...], num_nodes)
        r_raw = _transpose_onehot(G["raw"]["D"][...], num_nodes)
        r_gap = _transpose_onehot(G["gap"]["D"][...], num_nodes)

        # input projection
        h = _mxdot(tree["x"][...], P["input"]["W"][...]) + P["input"]["b"][...]

        # message-passing layers: first half GATConv, second half TransformerConv
        for li in range(num_layers):
            residual = h
            if li < n_gat:
                lp = P["gat"][li]
                h_comb = _gat_layer(h, G["loop"], r_loop, lp, he_w)
            else:
                lp = P["trans"][li - n_gat]
                h_comb = _transformer_layer(h, G["raw"], r_raw, lp, he_w, hs_w,
                                            inv_sqrt_c, hidden3)
            h_fused = jnp.maximum(
                _mxdot(h_comb, lp["Wfuse"][...]) + lp["bfuse"][...], 0.0)
            # TODO(synk): dropout is identity (eval-mode semantics)
            h = _layer_norm(h_fused + residual, lp["ln_g"][...], lp["ln_b"][...])

        # gap-aware attention over gap edges (global softmax over dim 0)
        h = _gap_attention(h, G["gap"], r_gap, P["gap_attn"], he1, hs1,
                           inv_sqrt_c, hidden)

        # classifier MLP + log_softmax over a lane-dense padded class axis
        cp = P["classifier"]
        z = jnp.maximum(_mxdot(h, cp["W1"][...]) + cp["b1"][...], 0.0)
        z = jnp.maximum(_mxdot(z, cp["W2"][...]) + cp["b2"][...], 0.0)
        logits = _mxdot(z, cp["W3"][...]) + cp["b3"][...]     # [N, CPAD]
        logits = logits - jnp.max(logits, axis=1, keepdims=True)
        out_ref[...] = logits - jnp.log(
            jnp.sum(jnp.exp(logits), axis=1, keepdims=True))

    vmem = pl.BlockSpec(memory_space=pltpu.MemorySpace.VMEM)
    in_bytes = sum(int(np.prod(a.shape)) * jnp.dtype(a.dtype).itemsize for a in flat)
    # default scoped VMEM (16 MiB on v5e) is below physical; size it to the footprint,
    # capped at 64 MiB so the same number is safe on v7x.
    vmem_limit = int(min(64 * 2**20, max(32 * 2**20, 6 * in_bytes + (4 << 20))))
    out = pl.pallas_call(
        fused_kernel,
        out_shape=jax.ShapeDtypeStruct((num_nodes, cpad), _F32),
        in_specs=[vmem] * len(flat),
        out_specs=vmem,
        compiler_params=pltpu.CompilerParams(vmem_limit_bytes=vmem_limit),
    )(*flat)
    return out[:, :num_classes]


# ----------------------------------------------------------------------------
# deterministic parameter construction (eval-mode PyTorch-equivalent structure)
# ----------------------------------------------------------------------------
def _glorot(key, shape):
    fan_in, fan_out = shape[-2], shape[-1]
    lim = (6.0 / (fan_in + fan_out)) ** 0.5
    return jax.random.uniform(key, shape, _F32, -lim, lim)


def _linear_bias(key, shape, fan_in):
    lim = 1.0 / (fan_in ** 0.5)
    return jax.random.uniform(key, shape, _F32, -lim, lim)


def _block_reduce(att):
    """att [H, C] -> [H*C, H] block-diagonal per-head attention-reduction matrix."""
    h, c = att.shape
    a = np.zeros((h * c, h), np.float32)
    for i in range(h):
        a[i * c:(i + 1) * c, i] = att[i]
    return a


def make_gat_layer(key, hidden, heads):
    c = hidden // heads
    ks = jax.random.split(key, 7)
    wlin = np.asarray(_glorot(ks[0], (3, hidden, hidden)))
    att_src = np.asarray(_glorot(ks[1], (3, heads, c)))
    att_dst = np.asarray(_glorot(ks[2], (3, heads, c)))
    att_edge = np.asarray(_glorot(ks[3], (3, heads, c)))
    wedge = np.asarray(_glorot(ks[4], (3, 3, hidden)))        # lin_edge (bias-free)
    msrc = np.concatenate([wlin[t] @ _block_reduce(att_src[t]) for t in range(3)], 1)
    mdst = np.concatenate([wlin[t] @ _block_reduce(att_dst[t]) for t in range(3)], 1)
    medge = np.concatenate([wedge[t] @ _block_reduce(att_edge[t]) for t in range(3)], 1)
    return dict(
        Wlin=jnp.asarray(np.concatenate(list(wlin), axis=1), _BF16),   # [hidden, 3*hidden]
        Msrc=jnp.asarray(msrc, _BF16),                                 # [hidden, 3H]
        Mdst=jnp.asarray(mdst, _BF16),
        Medge=jnp.asarray(medge, _BF16),                               # [3, 3H]
        bconv=jnp.zeros((1, 3 * hidden), _F32),                        # GATConv bias init = 0
        Wfuse=_glorot(ks[5], (3 * hidden, hidden)).astype(_BF16),
        bfuse=_linear_bias(ks[6], (1, hidden), 3 * hidden),
        ln_g=jnp.ones((1, hidden), _F32),
        ln_b=jnp.zeros((1, hidden), _F32))


def make_transformer_layer(key, hidden, heads):
    ks = jax.random.split(key, 11)

    def lin3(kw, kb):     # three per-branch [hidden,hidden] linears, packed wide
        w = np.asarray(_glorot(kw, (3, hidden, hidden)))
        b = np.asarray(_linear_bias(kb, (3, 1, hidden), hidden))
        return np.concatenate(list(w), axis=1), np.concatenate(list(b), axis=1)

    wq, bq = lin3(ks[0], ks[1])
    wk, bk = lin3(ks[2], ks[3])
    wv, bv = lin3(ks[4], ks[5])
    wskip, bskip = lin3(ks[6], ks[7])
    we = np.asarray(_glorot(ks[8], (3, 3, hidden)))           # lin_edge (bias-free)
    return dict(
        Wqkvs=jnp.asarray(np.concatenate([wq, wk, wv, wskip], axis=1), _BF16),
        bqkvs=jnp.asarray(np.concatenate([bq, bk, bv, bskip], axis=1), _F32),
        We=jnp.asarray(np.concatenate(list(we), axis=1), _BF16),       # [3, 3*hidden]
        Wfuse=_glorot(ks[9], (3 * hidden, hidden)).astype(_BF16),
        bfuse=_linear_bias(ks[10], (1, hidden), 3 * hidden),
        ln_g=jnp.ones((1, hidden), _F32),
        ln_b=jnp.zeros((1, hidden), _F32))


def make_gap_attention(key, hidden):
    ks = jax.random.split(key, 8)

    def lin(kw, kb):
        return (np.asarray(_glorot(kw, (hidden, hidden))),
                np.asarray(_linear_bias(kb, (1, hidden), hidden)))

    wq, bq = lin(ks[0], ks[1])
    wk, bk = lin(ks[2], ks[3])
    wv, bv = lin(ks[4], ks[5])
    wo, bo = lin(ks[6], ks[7])
    return dict(
        Wqkv=jnp.asarray(np.concatenate([wq, wk, wv], axis=1), _BF16),
        bqkv=jnp.asarray(np.concatenate([bq, bk, bv], axis=1), _F32),
        Wo=jnp.asarray(wo, _BF16), bo=jnp.asarray(bo, _F32))


def make_classifier(key, hidden, num_classes):
    cpad = max(128, 128 * ((num_classes + 127) // 128))       # lane-dense output slab
    ks = jax.random.split(key, 6)
    w3 = np.zeros((hidden, cpad), np.float32)
    w3[:, :num_classes] = np.asarray(_glorot(ks[4], (hidden, num_classes)))
    b3 = np.full((1, cpad), PAD_NEG, np.float32)
    b3[:, :num_classes] = np.asarray(_linear_bias(ks[5], (1, num_classes), hidden))
    return dict(
        W1=_glorot(ks[0], (hidden, 2 * hidden)).astype(_BF16),
        b1=_linear_bias(ks[1], (1, 2 * hidden), hidden),
        W2=_glorot(ks[2], (2 * hidden, hidden)).astype(_BF16),
        b2=_linear_bias(ks[3], (1, hidden), 2 * hidden),
        W3=jnp.asarray(w3, _BF16), b3=jnp.asarray(b3, _F32))


def make_params(key, num_node_features, hidden, heads, num_layers, num_classes):
    n_gat = num_layers // 2
    n_trans = num_layers - n_gat
    c = hidden // heads
    ks = jax.random.split(key, 4 + n_gat + n_trans)
    he1 = np.kron(np.eye(heads), np.ones((1, c))).astype(np.float32)   # [H, hidden]
    hs1 = np.kron(np.eye(heads), np.ones((c, 1))).astype(np.float32)   # [hidden, H]
    he_w = np.kron(np.eye(3), he1).astype(np.float32)                  # [3H, 3*hidden]
    hs_w = np.kron(np.eye(3), hs1).astype(np.float32)                  # [3*hidden, 3H]
    return {
        "input": {"W": _glorot(ks[0], (num_node_features, hidden)).astype(_BF16),
                  "b": _linear_bias(ks[1], (1, hidden), num_node_features)},
        "gat": [make_gat_layer(ks[2 + i], hidden, heads) for i in range(n_gat)],
        "trans": [make_transformer_layer(ks[2 + n_gat + i], hidden, heads)
                  for i in range(n_trans)],
        "gap_attn": make_gap_attention(ks[2 + n_gat + n_trans], hidden),
        "classifier": make_classifier(ks[3 + n_gat + n_trans], hidden, num_classes),
        "const": {"HeadExpand": jnp.asarray(he1, _BF16),
                  "HeadSum": jnp.asarray(hs1, _BF16),
                  "HeadExpandW": jnp.asarray(he_w, _BF16),
                  "HeadSumW": jnp.asarray(hs_w, _BF16)},
    }


# ----------------------------------------------------------------------------
# graph preprocessing (host glue): merged dense bf16 one-hot gather matrices.
# The 3 edge types share one merged edge axis; per-branch softmax separation is
# handled by a [E, 3*heads] branch mask on the attention head columns.
# TODO(synk): gate the one-hot dtype by chip generation (int8 halves bytes on
#             v5e/v6e but v7x's MXU has no int path).
# ----------------------------------------------------------------------------
def _one_hot(idx, n):
    m = np.zeros((len(idx), n), np.float32)
    m[np.arange(len(idx)), idx] = 1.0
    return m


def _with_self_loops(src, dst, ea, num_nodes):
    """GATConv default: remove self loops, add fresh ones with fill_value='mean'."""
    keep = src != dst
    src, dst, ea = src[keep], dst[keep], ea[keep]
    d0 = _one_hot(dst, num_nodes)
    counts = d0.sum(axis=0)
    loop_ea = (d0.T @ ea) / np.maximum(counts, 1.0)[:, None]
    loops = np.arange(num_nodes)
    return (np.concatenate([src, loops]), np.concatenate([dst, loops]),
            np.concatenate([ea, loop_ea], axis=0))


def _merged_graph(per_branch, num_nodes, heads):
    srcs, dsts, eas, masks = [], [], [], []
    for b, (src, dst, ea) in enumerate(per_branch):
        srcs.append(src)
        dsts.append(dst)
        eas.append(ea)
        m = np.zeros((len(src), 3 * heads), np.float32)
        m[:, b * heads:(b + 1) * heads] = 1.0
        masks.append(m)
    src = np.concatenate(srcs)
    dst = np.concatenate(dsts)
    return {"S": jnp.asarray(_one_hot(src, num_nodes), _BF16),
            "D": jnp.asarray(_one_hot(dst, num_nodes), _BF16),
            "ea": jnp.asarray(np.concatenate(eas, axis=0), _F32),
            "mask": jnp.asarray(np.concatenate(masks, axis=0), _F32)}


def build_graphs(src, dst, edge_attr, edge_type, num_nodes, heads):
    src = np.asarray(src)
    dst = np.asarray(dst)
    ea = np.asarray(edge_attr, np.float32)
    et = np.asarray(edge_type)
    raw_b, loop_b, gap_graph = [], [], None
    for b, t in enumerate(TYPE_ORDER):
        m = et == t
        assert m.sum() > 0, "demo requires at least one edge of each type"
        raw_b.append((src[m], dst[m], ea[m]))
        loop_b.append(_with_self_loops(src[m], dst[m], ea[m], num_nodes))
        if t == 2:   # gap edges drive GapAwareAttention
            gap_graph = {"S": jnp.asarray(_one_hot(src[m], num_nodes), _BF16),
                         "D": jnp.asarray(_one_hot(dst[m], num_nodes), _BF16)}
    return {"loop": _merged_graph(loop_b, num_nodes, heads),    # GATConv layers
            "raw": _merged_graph(raw_b, num_nodes, heads),      # TransformerConv layers
            "gap": gap_graph}


# ----------------------------------------------------------------------------
if __name__ == "__main__":
    key = jax.random.PRNGKey(0)
    num_nodes, num_edges, num_node_features = 16, 24, 8
    hidden, heads, num_layers, num_classes = 128, 8, 4, 5   # 2 GAT + 2 Transformer

    k_src, k_off, k_ea, k_x, k_par = jax.random.split(key, 5)
    src = jax.random.randint(k_src, (num_edges,), 0, num_nodes)
    off = jax.random.randint(k_off, (num_edges,), 1, num_nodes)
    dst = (src + off) % num_nodes                     # no self loops
    edge_type = jnp.arange(num_edges) % 3             # 0 temporal / 1 proximity / 2 gap
    edge_attr = jax.random.normal(k_ea, (num_edges, 3), _F32)
    x = jax.random.normal(k_x, (num_nodes, num_node_features), _F32)

    graphs = build_graphs(src, dst, edge_attr, edge_type, num_nodes, heads)
    params = make_params(k_par, num_node_features, hidden, heads, num_layers,
                         num_classes)

    out = gap_gnn_forward(x, graphs, params, num_layers=num_layers, heads=heads,
                          num_classes=num_classes)
    out = jax.block_until_ready(out)

    assert out.shape == (num_nodes, num_classes)
    assert bool(jnp.all(jnp.isfinite(out)))
    # log_softmax rows sum to 1 in probability space
    assert bool(jnp.allclose(jnp.exp(out).sum(axis=1), 1.0, atol=1e-4))
    print("KERNEL_OK")
</pallas_src>

<mosaic_0001>
module attributes {stable_mosaic.version = 11 : i64} {
  func.func @fused_kernel(%arg0: memref<8x16xbf16, #tpu.memory_space<vmem>>, %arg1: memref<8x16xbf16, #tpu.memory_space<vmem>>, %arg2: memref<72x16xbf16, #tpu.memory_space<vmem>>, %arg3: memref<72x16xbf16, #tpu.memory_space<vmem>>, %arg4: memref<72x3xf32, #tpu.memory_space<vmem>>, %arg5: memref<72x24xf32, #tpu.memory_space<vmem>>, %arg6: memref<24x16xbf16, #tpu.memory_space<vmem>>, %arg7: memref<24x16xbf16, #tpu.memory_space<vmem>>, %arg8: memref<24x3xf32, #tpu.memory_space<vmem>>, %arg9: memref<24x24xf32, #tpu.memory_space<vmem>>, %arg10: memref<128x256xbf16, #tpu.memory_space<vmem>>, %arg11: memref<256x128xbf16, #tpu.memory_space<vmem>>, %arg12: memref<128x128xbf16, #tpu.memory_space<vmem>>, %arg13: memref<1x256xf32, #tpu.memory_space<vmem>>, %arg14: memref<1x128xf32, #tpu.memory_space<vmem>>, %arg15: memref<1x128xf32, #tpu.memory_space<vmem>>, %arg16: memref<8x128xbf16, #tpu.memory_space<vmem>>, %arg17: memref<24x384xbf16, #tpu.memory_space<vmem>>, %arg18: memref<128x8xbf16, #tpu.memory_space<vmem>>, %arg19: memref<384x24xbf16, #tpu.memory_space<vmem>>, %arg20: memref<128x128xbf16, #tpu.memory_space<vmem>>, %arg21: memref<128x384xbf16, #tpu.memory_space<vmem>>, %arg22: memref<1x128xf32, #tpu.memory_space<vmem>>, %arg23: memref<1x384xf32, #tpu.memory_space<vmem>>, %arg24: memref<128x24xbf16, #tpu.memory_space<vmem>>, %arg25: memref<3x24xbf16, #tpu.memory_space<vmem>>, %arg26: memref<128x24xbf16, #tpu.memory_space<vmem>>, %arg27: memref<384x128xbf16, #tpu.memory_space<vmem>>, %arg28: memref<128x384xbf16, #tpu.memory_space<vmem>>, %arg29: memref<1x384xf32, #tpu.memory_space<vmem>>, %arg30: memref<1x128xf32, #tpu.memory_space<vmem>>, %arg31: memref<1x128xf32, #tpu.memory_space<vmem>>, %arg32: memref<1x128xf32, #tpu.memory_space<vmem>>, %arg33: memref<128x24xbf16, #tpu.memory_space<vmem>>, %arg34: memref<3x24xbf16, #tpu.memory_space<vmem>>, %arg35: memref<128x24xbf16, #tpu.memory_space<vmem>>, %arg36: memref<384x128xbf16, #tpu.memory_space<vmem>>, %arg37: memref<128x384xbf16, #tpu.memory_space<vmem>>, %arg38: memref<1x384xf32, #tpu.memory_space<vmem>>, %arg39: memref<1x128xf32, #tpu.memory_space<vmem>>, %arg40: memref<1x128xf32, #tpu.memory_space<vmem>>, %arg41: memref<1x128xf32, #tpu.memory_space<vmem>>, %arg42: memref<8x128xbf16, #tpu.memory_space<vmem>>, %arg43: memref<1x128xf32, #tpu.memory_space<vmem>>, %arg44: memref<3x384xbf16, #tpu.memory_space<vmem>>, %arg45: memref<384x128xbf16, #tpu.memory_space<vmem>>, %arg46: memref<128x1536xbf16, #tpu.memory_space<vmem>>, %arg47: memref<1x128xf32, #tpu.memory_space<vmem>>, %arg48: memref<1x1536xf32, #tpu.memory_space<vmem>>, %arg49: memref<1x128xf32, #tpu.memory_space<vmem>>, %arg50: memref<1x128xf32, #tpu.memory_space<vmem>>, %arg51: memref<3x384xbf16, #tpu.memory_space<vmem>>, %arg52: memref<384x128xbf16, #tpu.memory_space<vmem>>, %arg53: memref<128x1536xbf16, #tpu.memory_space<vmem>>, %arg54: memref<1x128xf32, #tpu.memory_space<vmem>>, %arg55: memref<1x1536xf32, #tpu.memory_space<vmem>>, %arg56: memref<1x128xf32, #tpu.memory_space<vmem>>, %arg57: memref<1x128xf32, #tpu.memory_space<vmem>>, %arg58: memref<16x8xf32, #tpu.memory_space<vmem>>, %arg59: memref<16x128xf32, #tpu.memory_space<vmem>>) attributes {dimension_semantics = [], scalar_prefetch = 0 : i64, scratch_operands = 0 : i64, tpu.core_type = #tpu.core_type<tc>} {
    %c0 = arith.constant 0 : index
    %c0_0 = arith.constant 0 : index
    %0 = vector.load %arg17[%c0, %c0_0] : memref<24x384xbf16, #tpu.memory_space<vmem>>, vector<24x384xbf16>
    %c0_1 = arith.constant 0 : index
    %c0_2 = arith.constant 0 : index
    %1 = vector.load %arg19[%c0_1, %c0_2] : memref<384x24xbf16, #tpu.memory_space<vmem>>, vector<384x24xbf16>
    %c0_3 = arith.constant 0 : index
    %c0_4 = arith.constant 0 : index
    %2 = vector.load %arg16[%c0_3, %c0_4] : memref<8x128xbf16, #tpu.memory_space<vmem>>, vector<8x128xbf16>
    %c0_5 = arith.constant 0 : index
    %c0_6 = arith.constant 0 : index
    %3 = vector.load %arg18[%c0_5, %c0_6] : memref<128x8xbf16, #tpu.memory_space<vmem>>, vector<128x8xbf16>
    %c0_7 = arith.constant 0 : index
    %c0_8 = arith.constant 0 : index
    %4 = vector.load %arg2[%c0_7, %c0_8] : memref<72x16xbf16, #tpu.memory_space<vmem>>, vector<72x16xbf16>
    %5 = tpu.iota {dimensions = array<i32: 0>} : vector<16x16xi32>
    %6 = tpu.iota {dimensions = array<i32: 1>} : vector<16x16xi32>
    %7 = arith.cmpi eq, %5, %6 : vector<16x16xi32>
    %cst = arith.constant 1.000000e+00 : f32
    %cst_9 = arith.constant 0.000000e+00 : f32
    %8 = vector.broadcast %cst : f32 to vector<16x16xf32>
    %9 = vector.broadcast %cst_9 : f32 to vector<16x16xf32>
    %10 = arith.select %7, %8, %9 : vector<16x16xi1>, vector<16x16xf32>
    %11 = arith.truncf %10 : vector<16x16xf32> to vector<16x16xbf16>
    %cst_10 = arith.constant dense<0.000000e+00> : vector<16x72xf32>
    %12 = tpu.matmul %11, %4, %cst_10 {dimension_numbers = #tpu.dot_dimension_numbers<[1], [1], [0], [0], [0, 0, 1, 0], [], []>} : vector<16x16xbf16>, vector<72x16xbf16>, vector<16x72xf32> -> vector<16x72xf32>
    %13 = arith.truncf %12 : vector<16x72xf32> to vector<16x72xbf16>
    %c0_11 = arith.constant 0 : index
    %c0_12 = arith.constant 0 : index
    %14 = vector.load %arg6[%c0_11, %c0_12] : memref<24x16xbf16, #tpu.memory_space<vmem>>, vector<24x16xbf16>
    %15 = tpu.iota {dimensions = array<i32: 0>} : vector<16x16xi32>
    %16 = tpu.iota {dimensions = array<i32: 1>} : vector<16x16xi32>
    %17 = arith.cmpi eq, %15, %16 : vector<16x16xi32>
    %cst_13 = arith.constant 1.000000e+00 : f32
    %cst_14 = arith.constant 0.000000e+00 : f32
    %18 = vector.broadcast %cst_13 : f32 to vector<16x16xf32>
    %19 = vector.broadcast %cst_14 : f32 to vector<16x16xf32>
    %20 = arith.select %17, %18, %19 : vector<16x16xi1>, vector<16x16xf32>
    %21 = arith.truncf %20 : vector<16x16xf32> to vector<16x16xbf16>
    %cst_15 = arith.constant dense<0.000000e+00> : vector<16x24xf32>
    %22 = tpu.matmul %21, %14, %cst_15 {dimension_numbers = #tpu.dot_dimension_numbers<[1], [1], [0], [0], [0, 0, 1, 0], [], []>} : vector<16x16xbf16>, vector<24x16xbf16>, vector<16x24xf32> -> vector<16x24xf32>
    %23 = arith.truncf %22 : vector<16x24xf32> to vector<16x24xbf16>
    %c0_16 = arith.constant 0 : index
    %c0_17 = arith.constant 0 : index
    %24 = vector.load %arg0[%c0_16, %c0_17] : memref<8x16xbf16, #tpu.memory_space<vmem>>, vector<8x16xbf16>
    %25 = tpu.iota {dimensions = array<i32: 0>} : vector<16x16xi32>
    %26 = tpu.iota {dimensions = array<i32: 1>} : vector<16x16xi32>
    %27 = arith.cmpi eq, %25, %26 : vector<16x16xi32>
    %cst_18 = arith.constant 1.000000e+00 : f32
    %cst_19 = arith.constant 0.000000e+00 : f32
    %28 = vector.broadcast %cst_18 : f32 to vector<16x16xf32>
    %29 = vector.broadcast %cst_19 : f32 to vector<16x16xf32>
    %30 = arith.select %27, %28, %29 : vector<16x16xi1>, vector<16x16xf32>
    %31 = arith.truncf %30 : vector<16x16xf32> to vector<16x16xbf16>
    %cst_20 = arith.constant dense<0.000000e+00> : vector<16x8xf32>
    %32 = tpu.matmul %31, %24, %cst_20 {dimension_numbers = #tpu.dot_dimension_numbers<[1], [1], [0], [0], [0, 0, 1, 0], [], []>} : vector<16x16xbf16>, vector<8x16xbf16>, vector<16x8xf32> -> vector<16x8xf32>
    %33 = arith.truncf %32 : vector<16x8xf32> to vector<16x8xbf16>
    %c0_21 = arith.constant 0 : index
    %c0_22 = arith.constant 0 : index
    %34 = vector.load %arg58[%c0_21, %c0_22] : memref<16x8xf32, #tpu.memory_space<vmem>>, vector<16x8xf32>
    %c0_23 = arith.constant 0 : index
    %c0_24 = arith.constant 0 : index
    %35 = vector.load %arg42[%c0_23, %c0_24] : memref<8x128xbf16, #tpu.memory_space<vmem>>, vector<8x128xbf16>
    %36 = arith.truncf %34 : vector<16x8xf32> to vector<16x8xbf16>
    %cst_25 = arith.constant dense<0.000000e+00> : vector<16x128xf32>
    %37 = tpu.matmul %36, %35, %cst_25 {dimension_numbers = #tpu.dot_dimension_numbers<[1], [0], [0], [1], [0, 0, 1, 1], [], []>} : vector<16x8xbf16>, vector<8x128xbf16>, vector<16x128xf32> -> vector<16x128xf32>
    %c0_26 = arith.constant 0 : index
    %c0_27 = arith.constant 0 : index
    %38 = vector.load %arg43[%c0_26, %c0_27] : memref<1x128xf32, #tpu.memory_space<vmem>>, vector<1x128xf32>
    %39 = vector.broadcast %38 : vector<1x128xf32> to vector<16x128xf32>
    %40 = arith.addf %37, %39 : vector<16x128xf32>
    %c0_28 = arith.constant 0 : index
    %c0_29 = arith.constant 0 : index
    %41 = vector.load %arg3[%c0_28, %c0_29] : memref<72x16xbf16, #tpu.memory_space<vmem>>, vector<72x16xbf16>
    %c0_30 = arith.constant 0 : index
    %c0_31 = arith.constant 0 : index
    %42 = vector.load %arg2[%c0_30, %c0_31] : memref<72x16xbf16, #tpu.memory_space<vmem>>, vector<72x16xbf16>
    %c0_32 = arith.constant 0 : index
    %c0_33 = arith.constant 0 : index
    %43 = vector.load %arg4[%c0_32, %c0_33] : memref<72x3xf32, #tpu.memory_space<vmem>>, vector<72x3xf32>
    %c0_34 = arith.constant 0 : index
    %c0_35 = arith.constant 0 : index
    %44 = vector.load %arg5[%c0_34, %c0_35] : memref<72x24xf32, #tpu.memory_space<vmem>>, vector<72x24xf32>
    %c0_36 = arith.constant 0 : index
    %c0_37 = arith.constant 0 : index
    %45 = vector.load %arg28[%c0_36, %c0_37] : memref<128x384xbf16, #tpu.memory_space<vmem>>, vector<128x384xbf16>
    %46 = arith.truncf %40 : vector<16x128xf32> to vector<16x128xbf16>
    %cst_38 = arith.constant dense<0.000000e+00> : vector<16x384xf32>
    %47 = tpu.matmul %46, %45, %cst_38 {dimension_numbers = #tpu.dot_dimension_numbers<[1], [0], [0], [1], [0, 0, 1, 1], [], []>} : vector<16x128xbf16>, vector<128x384xbf16>, vector<16x384xf32> -> vector<16x384xf32>
    %c0_39 = arith.constant 0 : index
    %c0_40 = arith.constant 0 : index
    %48 = vector.load %arg26[%c0_39, %c0_40] : memref<128x24xbf16, #tpu.memory_space<vmem>>, vector<128x24xbf16>
    %49 = arith.truncf %40 : vector<16x128xf32> to vector<16x128xbf16>
    %cst_41 = arith.constant dense<0.000000e+00> : vector<16x24xf32>
    %50 = tpu.matmul %49, %48, %cst_41 {dimension_numbers = #tpu.dot_dimension_numbers<[1], [0], [0], [1], [0, 0, 1, 1], [], []>} : vector<16x128xbf16>, vector<128x24xbf16>, vector<16x24xf32> -> vector<16x24xf32>
    %c0_42 = arith.constant 0 : index
    %c0_43 = arith.constant 0 : index
    %51 = vector.load %arg24[%c0_42, %c0_43] : memref<128x24xbf16, #tpu.memory_space<vmem>>, vector<128x24xbf16>
    %52 = arith.truncf %40 : vector<16x128xf32> to vector<16x128xbf16>
    %cst_44 = arith.constant dense<0.000000e+00> : vector<16x24xf32>
    %53 = tpu.matmul %52, %51, %cst_44 {dimension_numbers = #tpu.dot_dimension_numbers<[1], [0], [0], [1], [0, 0, 1, 1], [], []>} : vector<16x128xbf16>, vector<128x24xbf16>, vector<16x24xf32> -> vector<16x24xf32>
    %c0_45 = arith.constant 0 : index
    %c0_46 = arith.constant 0 : index
    %54 = vector.load %arg25[%c0_45, %c0_46] : memref<3x24xbf16, #tpu.memory_space<vmem>>, vector<3x24xbf16>
    %55 = arith.truncf %43 : vector<72x3xf32> to vector<72x3xbf16>
    %cst_47 = arith.constant dense<0.000000e+00> : vector<72x24xf32>
    %56 = tpu.matmul %55, %54, %cst_47 {dimension_numbers = #tpu.dot_dimension_numbers<[1], [0], [0], [1], [0, 0, 1, 1], [], []>} : vector<72x3xbf16>, vector<3x24xbf16>, vector<72x24xf32> -> vector<72x24xf32>
    %57 = arith.truncf %50 : vector<16x24xf32> to vector<16x24xbf16>
    %cst_48 = arith.constant dense<0.000000e+00> : vector<72x24xf32>
    %58 = tpu.matmul %41, %57, %cst_48 {dimension_numbers = #tpu.dot_dimension_numbers<[1], [0], [0], [1], [0, 0, 1, 1], [], []>} : vector<72x16xbf16>, vector<16x24xbf16>, vector<72x24xf32> -> vector<72x24xf32>
    %59 = arith.truncf %53 : vector<16x24xf32> to vector<16x24xbf16>
    %cst_49 = arith.constant dense<0.000000e+00> : vector<72x24xf32>
    %60 = tpu.matmul %42, %59, %cst_49 {dimension_numbers = #tpu.dot_dimension_numbers<[1], [0], [0], [1], [0, 0, 1, 1], [], []>} : vector<72x16xbf16>, vector<16x24xbf16>, vector<72x24xf32> -> vector<72x24xf32>
    %61 = arith.addf %58, %60 : vector<72x24xf32>
    %62 = arith.addf %61, %56 : vector<72x24xf32>
    %cst_50 = arith.constant 0.000000e+00 : f32
    %63 = vector.broadcast %cst_50 : f32 to vector<72x24xf32>
    %64 = arith.cmpf oge, %62, %63 : vector<72x24xf32>
    %cst_51 = arith.constant 2.000000e-01 : f32
    %65 = vector.broadcast %cst_51 : f32 to vector<72x24xf32>
    %66 = arith.mulf %65, %62 : vector<72x24xf32>
    %67 = arith.select %64, %62, %66 : vector<72x24xi1>, vector<72x24xf32>
    %cst_52 = arith.constant 0.000000e+00 : f32
    %68 = vector.broadcast %cst_52 : f32 to vector<72x24xf32>
    %69 = arith.cmpf ogt, %44, %68 : vector<72x24xf32>
    %cst_53 = arith.constant -1.000000e+09 : f32
    %70 = vector.broadcast %cst_53 : f32 to vector<72x24xf32>
    %71 = arith.select %69, %67, %70 : vector<72x24xi1>, vector<72x24xf32>
    %cst_54 = arith.constant dense<0xFF800000> : vector<24xf32>
    %72 = vector.multi_reduction <maximumf>, %71, %cst_54 [0] : vector<72x24xf32> to vector<24xf32>
    %73 = vector.shape_cast %72 : vector<24xf32> to vector<1x24xf32>
    %74 = vector.broadcast %73 : vector<1x24xf32> to vector<72x24xf32>
    %75 = arith.subf %71, %74 : vector<72x24xf32>
    %76 = math.exp %75 : vector<72x24xf32>
    %77 = arith.mulf %76, %44 : vector<72x24xf32>
    %78 = arith.truncf %77 : vector<72x24xf32> to vector<72x24xbf16>
    %cst_55 = arith.constant dense<0.000000e+00> : vector<16x24xf32>
    %79 = tpu.matmul %13, %78, %cst_55 {dimension_numbers = #tpu.dot_dimension_numbers<[1], [0], [0], [1], [0, 0, 1, 1], [], []>} : vector<16x72xbf16>, vector<72x24xbf16>, vector<16x24xf32> -> vector<16x24xf32>
    %cst_56 = arith.constant 9.99999968E-21 : f32
    %80 = vector.broadcast %cst_56 : f32 to vector<16x24xf32>
    %81 = arith.maximumf %79, %80 : vector<16x24xf32>
    %82 = tpu.reciprocal %81 {approx = true} : vector<16x24xf32> -> vector<16x24xf32>
    %83 = arith.truncf %47 : vector<16x384xf32> to vector<16x384xbf16>
    %cst_57 = arith.constant dense<0.000000e+00> : vector<72x384xf32>
    %84 = tpu.matmul %41, %83, %cst_57 {dimension_numbers = #tpu.dot_dimension_numbers<[1], [0], [0], [1], [0, 0, 1, 1], [], []>} : vector<72x16xbf16>, vector<16x384xbf16>, vector<72x384xf32> -> vector<72x384xf32>
    %85 = arith.truncf %77 : vector<72x24xf32> to vector<72x24xbf16>
    %cst_58 = arith.constant dense<0.000000e+00> : vector<72x384xf32>
    %86 = tpu.matmul %85, %0, %cst_58 {dimension_numbers = #tpu.dot_dimension_numbers<[1], [0], [0], [1], [0, 0, 1, 1], [], []>} : vector<72x24xbf16>, vector<24x384xbf16>, vector<72x384xf32> -> vector<72x384xf32>
    %87 = arith.mulf %84, %86 : vector<72x384xf32>
    %88 = arith.truncf %87 : vector<72x384xf32> to vector<72x384xbf16>
    %cst_59 = arith.constant dense<0.000000e+00> : vector<16x384xf32>
    %89 = tpu.matmul %13, %88, %cst_59 {dimension_numbers = #tpu.dot_dimension_numbers<[1], [0], [0], [1], [0, 0, 1, 1], [], []>} : vector<16x72xbf16>, vector<72x384xbf16>, vector<16x384xf32> -> vector<16x384xf32>
    %90 = arith.truncf %82 : vector<16x24xf32> to vector<16x24xbf16>
    %cst_60 = arith.constant dense<0.000000e+00> : vector<16x384xf32>
    %91 = tpu.matmul %90, %0, %cst_60 {dimension_numbers = #tpu.dot_dimension_numbers<[1], [0], [0], [1], [0, 0, 1, 1], [], []>} : vector<16x24xbf16>, vector<24x384xbf16>, vector<16x384xf32> -> vector<16x384xf32>
    %92 = arith.mulf %89, %91 : vector<16x384xf32>
    %c0_61 = arith.constant 0 : index
    %c0_62 = arith.constant 0 : index
    %93 = vector.load %arg29[%c0_61, %c0_62] : memref<1x384xf32, #tpu.memory_space<vmem>>, vector<1x384xf32>
    %94 = vector.broadcast %93 : vector<1x384xf32> to vector<16x384xf32>
    %95 = arith.addf %92, %94 : vector<16x384xf32>
    %c0_63 = arith.constant 0 : index
    %c0_64 = arith.constant 0 : index
    %96 = vector.load %arg27[%c0_63, %c0_64] : memref<384x128xbf16, #tpu.memory_space<vmem>>, vector<384x128xbf16>
    %97 = arith.truncf %95 : vector<16x384xf32> to vector<16x384xbf16>
    %cst_65 = arith.constant dense<0.000000e+00> : vector<16x128xf32>
    %98 = tpu.matmul %97, %96, %cst_65 {dimension_numbers = #tpu.dot_dimension_numbers<[1], [0], [0], [1], [0, 0, 1, 1], [], []>} : vector<16x384xbf16>, vector<384x128xbf16>, vector<16x128xf32> -> vector<16x128xf32>
    %c0_66 = arith.constant 0 : index
    %c0_67 = arith.constant 0 : index
    %99 = vector.load %arg30[%c0_66, %c0_67] : memref<1x128xf32, #tpu.memory_space<vmem>>, vector<1x128xf32>
    %100 = vector.broadcast %99 : vector<1x128xf32> to vector<16x128xf32>
    %101 = arith.addf %98, %100 : vector<16x128xf32>
    %cst_68 = arith.constant 0.000000e+00 : f32
    %102 = vector.broadcast %cst_68 : f32 to vector<16x128xf32>
    %103 = arith.maximumf %101, %102 : vector<16x128xf32>
    %104 = arith.addf %103, %40 : vector<16x128xf32>
    %c0_69 = arith.constant 0 : index
    %c0_70 = arith.constant 0 : index
    %105 = vector.load %arg32[%c0_69, %c0_70] : memref<1x128xf32, #tpu.memory_space<vmem>>, vector<1x128xf32>
    %c0_71 = arith.constant 0 : index
    %c0_72 = arith.constant 0 : index
    %106 = vector.load %arg31[%c0_71, %c0_72] : memref<1x128xf32, #tpu.memory_space<vmem>>, vector<1x128xf32>
    %cst_73 = arith.constant dense<0.000000e+00> : vector<16xf32>
    %107 = vector.multi_reduction <add>, %104, %cst_73 [1] : vector<16x128xf32> to vector<16xf32>
    %108 = vector.shape_cast %107 : vector<16xf32> to vector<16x1xf32>
    %cst_74 = arith.constant 1.280000e+02 : f32
    %109 = vector.broadcast %cst_74 : f32 to vector<16x1xf32>
    %110 = arith.divf %108, %109 : vector<16x1xf32>
    %111 = vector.broadcast %110 : vector<16x1xf32> to vector<16x128xf32>
    %112 = arith.subf %104, %111 : vector<16x128xf32>
    %113 = arith.mulf %112, %112 : vector<16x128xf32>
    %cst_75 = arith.constant dense<0.000000e+00> : vector<16xf32>
    %114 = vector.multi_reduction <add>, %113, %cst_75 [1] : vector<16x128xf32> to vector<16xf32>
    %115 = vector.shape_cast %114 : vector<16xf32> to vector<16x1xf32>
    %cst_76 = arith.constant 1.280000e+02 : f32
    %116 = vector.broadcast %cst_76 : f32 to vector<16x1xf32>
    %117 = arith.divf %115, %116 : vector<16x1xf32>
    %cst_77 = arith.constant 9.99999974E-6 : f32
    %118 = vector.broadcast %cst_77 : f32 to vector<16x1xf32>
    %119 = arith.addf %117, %118 : vector<16x1xf32>
    %120 = math.rsqrt %119 : vector<16x1xf32>
    %121 = vector.broadcast %120 : vector<16x1xf32> to vector<16x128xf32>
    %122 = arith.mulf %112, %121 : vector<16x128xf32>
    %123 = vector.broadcast %105 : vector<1x128xf32> to vector<16x128xf32>
    %124 = arith.mulf %122, %123 : vector<16x128xf32>
    %125 = vector.broadcast %106 : vector<1x128xf32> to vector<16x128xf32>
    %126 = arith.addf %124, %125 : vector<16x128xf32>
    %c0_78 = arith.constant 0 : index
    %c0_79 = arith.constant 0 : index
    %127 = vector.load %arg3[%c0_78, %c0_79] : memref<72x16xbf16, #tpu.memory_space<vmem>>, vector<72x16xbf16>
    %c0_80 = arith.constant 0 : index
    %c0_81 = arith.constant 0 : index
    %128 = vector.load %arg2[%c0_80, %c0_81] : memref<72x16xbf16, #tpu.memory_space<vmem>>, vector<72x16xbf16>
    %c0_82 = arith.constant 0 : index
    %c0_83 = arith.constant 0 : index
    %129 = vector.load %arg4[%c0_82, %c0_83] : memref<72x3xf32, #tpu.memory_space<vmem>>, vector<72x3xf32>
    %c0_84 = arith.constant 0 : index
    %c0_85 = arith.constant 0 : index
    %130 = vector.load %arg5[%c0_84, %c0_85] : memref<72x24xf32, #tpu.memory_space<vmem>>, vector<72x24xf32>
    %c0_86 = arith.constant 0 : index
    %c0_87 = arith.constant 0 : index
    %131 = vector.load %arg37[%c0_86, %c0_87] : memref<128x384xbf16, #tpu.memory_space<vmem>>, vector<128x384xbf16>
    %132 = arith.truncf %126 : vector<16x128xf32> to vector<16x128xbf16>
    %cst_88 = arith.constant dense<0.000000e+00> : vector<16x384xf32>
    %133 = tpu.matmul %132, %131, %cst_88 {dimension_numbers = #tpu.dot_dimension_numbers<[1], [0], [0], [1], [0, 0, 1, 1], [], []>} : vector<16x128xbf16>, vector<128x384xbf16>, vector<16x384xf32> -> vector<16x384xf32>
    %c0_89 = arith.constant 0 : index
    %c0_90 = arith.constant 0 : index
    %134 = vector.load %arg35[%c0_89, %c0_90] : memref<128x24xbf16, #tpu.memory_space<vmem>>, vector<128x24xbf16>
    %135 = arith.truncf %126 : vector<16x128xf32> to vector<16x128xbf16>
    %cst_91 = arith.constant dense<0.000000e+00> : vector<16x24xf32>
    %136 = tpu.matmul %135, %134, %cst_91 {dimension_numbers = #tpu.dot_dimension_numbers<[1], [0], [0], [1], [0, 0, 1, 1], [], []>} : vector<16x128xbf16>, vector<128x24xbf16>, vector<16x24xf32> -> vector<16x24xf32>
    %c0_92 = arith.constant 0 : index
    %c0_93 = arith.constant 0 : index
    %137 = vector.load %arg33[%c0_92, %c0_93] : memref<128x24xbf16, #tpu.memory_space<vmem>>, vector<128x24xbf16>
    %138 = arith.truncf %126 : vector<16x128xf32> to vector<16x128xbf16>
    %cst_94 = arith.constant dense<0.000000e+00> : vector<16x24xf32>
    %139 = tpu.matmul %138, %137, %cst_94 {dimension_numbers = #tpu.dot_dimension_numbers<[1], [0], [0], [1], [0, 0, 1, 1], [], []>} : vector<16x128xbf16>, vector<128x24xbf16>, vector<16x24xf32> -> vector<16x24xf32>
    %c0_95 = arith.constant 0 : index
    %c0_96 = arith.constant 0 : index
    %140 = vector.load %arg34[%c0_95, %c0_96] : memref<3x24xbf16, #tpu.memory_space<vmem>>, vector<3x24xbf16>
    %141 = arith.truncf %129 : vector<72x3xf32> to vector<72x3xbf16>
    %cst_97 = arith.constant dense<0.000000e+00> : vector<72x24xf32>
    %142 = tpu.matmul %141, %140, %cst_97 {dimension_numbers = #tpu.dot_dimension_numbers<[1], [0], [0], [1], [0, 0, 1, 1], [], []>} : vector<72x3xbf16>, vector<3x24xbf16>, vector<72x24xf32> -> vector<72x24xf32>
    %143 = arith.truncf %136 : vector<16x24xf32> to vector<16x24xbf16>
    %cst_98 = arith.constant dense<0.000000e+00> : vector<72x24xf32>
    %144 = tpu.matmul %127, %143, %cst_98 {dimension_numbers = #tpu.dot_dimension_numbers<[1], [0], [0], [1], [0, 0, 1, 1], [], []>} : vector<72x16xbf16>, vector<16x24xbf16>, vector<72x24xf32> -> vector<72x24xf32>
    %145 = arith.truncf %139 : vector<16x24xf32> to vector<16x24xbf16>
    %cst_99 = arith.constant dense<0.000000e+00> : vector<72x24xf32>
    %146 = tpu.matmul %128, %145, %cst_99 {dimension_numbers = #tpu.dot_dimension_numbers<[1], [0], [0], [1], [0, 0, 1, 1], [], []>} : vector<72x16xbf16>, vector<16x24xbf16>, vector<72x24xf32> -> vector<72x24xf32>
    %147 = arith.addf %144, %146 : vector<72x24xf32>
    %148 = arith.addf %147, %142 : vector<72x24xf32>
    %cst_100 = arith.constant 0.000000e+00 : f32
    %149 = vector.broadcast %cst_100 : f32 to vector<72x24xf32>
    %150 = arith.cmpf oge, %148, %149 : vector<72x24xf32>
    %cst_101 = arith.constant 2.000000e-01 : f32
    %151 = vector.broadcast %cst_101 : f32 to vector<72x24xf32>
    %152 = arith.mulf %151, %148 : vector<72x24xf32>
    %153 = arith.select %150, %148, %152 : vector<72x24xi1>, vector<72x24xf32>
    %cst_102 = arith.constant 0.000000e+00 : f32
    %154 = vector.broadcast %cst_102 : f32 to vector<72x24xf32>
    %155 = arith.cmpf ogt, %130, %154 : vector<72x24xf32>
    %cst_103 = arith.constant -1.000000e+09 : f32
    %156 = vector.broadcast %cst_103 : f32 to vector<72x24xf32>
    %157 = arith.select %155, %153, %156 : vector<72x24xi1>, vector<72x24xf32>
    %cst_104 = arith.constant dense<0xFF800000> : vector<24xf32>
    %158 = vector.multi_reduction <maximumf>, %157, %cst_104 [0] : vector<72x24xf32> to vector<24xf32>
    %159 = vector.shape_cast %158 : vector<24xf32> to vector<1x24xf32>
    %160 = vector.broadcast %159 : vector<1x24xf32> to vector<72x24xf32>
    %161 = arith.subf %157, %160 : vector<72x24xf32>
    %162 = math.exp %161 : vector<72x24xf32>
    %163 = arith.mulf %162, %130 : vector<72x24xf32>
    %164 = arith.truncf %163 : vector<72x24xf32> to vector<72x24xbf16>
    %cst_105 = arith.constant dense<0.000000e+00> : vector<16x24xf32>
    %165 = tpu.matmul %13, %164, %cst_105 {dimension_numbers = #tpu.dot_dimension_numbers<[1], [0], [0], [1], [0, 0, 1, 1], [], []>} : vector<16x72xbf16>, vector<72x24xbf16>, vector<16x24xf32> -> vector<16x24xf32>
    %cst_106 = arith.constant 9.99999968E-21 : f32
    %166 = vector.broadcast %cst_106 : f32 to vector<16x24xf32>
    %167 = arith.maximumf %165, %166 : vector<16x24xf32>
    %168 = tpu.reciprocal %167 {approx = true} : vector<16x24xf32> -> vector<16x24xf32>
    %169 = arith.truncf %133 : vector<16x384xf32> to vector<16x384xbf16>
    %cst_107 = arith.constant dense<0.000000e+00> : vector<72x384xf32>
    %170 = tpu.matmul %127, %169, %cst_107 {dimension_numbers = #tpu.dot_dimension_numbers<[1], [0], [0], [1], [0, 0, 1, 1], [], []>} : vector<72x16xbf16>, vector<16x384xbf16>, vector<72x384xf32> -> vector<72x384xf32>
    %171 = arith.truncf %163 : vector<72x24xf32> to vector<72x24xbf16>
    %cst_108 = arith.constant dense<0.000000e+00> : vector<72x384xf32>
    %172 = tpu.matmul %171, %0, %cst_108 {dimension_numbers = #tpu.dot_dimension_numbers<[1], [0], [0], [1], [0, 0, 1, 1], [], []>} : vector<72x24xbf16>, vector<24x384xbf16>, vector<72x384xf32> -> vector<72x384xf32>
    %173 = arith.mulf %170, %172 : vector<72x384xf32>
    %174 = arith.truncf %173 : vector<72x384xf32> to vector<72x384xbf16>
    %cst_109 = arith.constant dense<0.000000e+00> : vector<16x384xf32>
    %175 = tpu.matmul %13, %174, %cst_109 {dimension_numbers = #tpu.dot_dimension_numbers<[1], [0], [0], [1], [0, 0, 1, 1], [], []>} : vector<16x72xbf16>, vector<72x384xbf16>, vector<16x384xf32> -> vector<16x384xf32>
    %176 = arith.truncf %168 : vector<16x24xf32> to vector<16x24xbf16>
    %cst_110 = arith.constant dense<0.000000e+00> : vector<16x384xf32>
    %177 = tpu.matmul %176, %0, %cst_110 {dimension_numbers = #tpu.dot_dimension_numbers<[1], [0], [0], [1], [0, 0, 1, 1], [], []>} : vector<16x24xbf16>, vector<24x384xbf16>, vector<16x384xf32> -> vector<16x384xf32>
    %178 = arith.mulf %175, %177 : vector<16x384xf32>
    %c0_111 = arith.constant 0 : index
    %c0_112 = arith.constant 0 : index
    %179 = vector.load %arg38[%c0_111, %c0_112] : memref<1x384xf32, #tpu.memory_space<vmem>>, vector<1x384xf32>
    %180 = vector.broadcast %179 : vector<1x384xf32> to vector<16x384xf32>
    %181 = arith.addf %178, %180 : vector<16x384xf32>
    %c0_113 = arith.constant 0 : index
    %c0_114 = arith.constant 0 : index
    %182 = vector.load %arg36[%c0_113, %c0_114] : memref<384x128xbf16, #tpu.memory_space<vmem>>, vector<384x128xbf16>
    %183 = arith.truncf %181 : vector<16x384xf32> to vector<16x384xbf16>
    %cst_115 = arith.constant dense<0.000000e+00> : vector<16x128xf32>
    %184 = tpu.matmul %183, %182, %cst_115 {dimension_numbers = #tpu.dot_dimension_numbers<[1], [0], [0], [1], [0, 0, 1, 1], [], []>} : vector<16x384xbf16>, vector<384x128xbf16>, vector<16x128xf32> -> vector<16x128xf32>
    %c0_116 = arith.constant 0 : index
    %c0_117 = arith.constant 0 : index
    %185 = vector.load %arg39[%c0_116, %c0_117] : memref<1x128xf32, #tpu.memory_space<vmem>>, vector<1x128xf32>
    %186 = vector.broadcast %185 : vector<1x128xf32> to vector<16x128xf32>
    %187 = arith.addf %184, %186 : vector<16x128xf32>
    %cst_118 = arith.constant 0.000000e+00 : f32
    %188 = vector.broadcast %cst_118 : f32 to vector<16x128xf32>
    %189 = arith.maximumf %187, %188 : vector<16x128xf32>
    %190 = arith.addf %189, %126 : vector<16x128xf32>
    %c0_119 = arith.constant 0 : index
    %c0_120 = arith.constant 0 : index
    %191 = vector.load %arg41[%c0_119, %c0_120] : memref<1x128xf32, #tpu.memory_space<vmem>>, vector<1x128xf32>
    %c0_121 = arith.constant 0 : index
    %c0_122 = arith.constant 0 : index
    %192 = vector.load %arg40[%c0_121, %c0_122] : memref<1x128xf32, #tpu.memory_space<vmem>>, vector<1x128xf32>
    %cst_123 = arith.constant dense<0.000000e+00> : vector<16xf32>
    %193 = vector.multi_reduction <add>, %190, %cst_123 [1] : vector<16x128xf32> to vector<16xf32>
    %194 = vector.shape_cast %193 : vector<16xf32> to vector<16x1xf32>
    %cst_124 = arith.constant 1.280000e+02 : f32
    %195 = vector.broadcast %cst_124 : f32 to vector<16x1xf32>
    %196 = arith.divf %194, %195 : vector<16x1xf32>
    %197 = vector.broadcast %196 : vector<16x1xf32> to vector<16x128xf32>
    %198 = arith.subf %190, %197 : vector<16x128xf32>
    %199 = arith.mulf %198, %198 : vector<16x128xf32>
    %cst_125 = arith.constant dense<0.000000e+00> : vector<16xf32>
    %200 = vector.multi_reduction <add>, %199, %cst_125 [1] : vector<16x128xf32> to vector<16xf32>
    %201 = vector.shape_cast %200 : vector<16xf32> to vector<16x1xf32>
    %cst_126 = arith.constant 1.280000e+02 : f32
    %202 = vector.broadcast %cst_126 : f32 to vector<16x1xf32>
    %203 = arith.divf %201, %202 : vector<16x1xf32>
    %cst_127 = arith.constant 9.99999974E-6 : f32
    %204 = vector.broadcast %cst_127 : f32 to vector<16x1xf32>
    %205 = arith.addf %203, %204 : vector<16x1xf32>
    %206 = math.rsqrt %205 : vector<16x1xf32>
    %207 = vector.broadcast %206 : vector<16x1xf32> to vector<16x128xf32>
    %208 = arith.mulf %198, %207 : vector<16x128xf32>
    %209 = vector.broadcast %191 : vector<1x128xf32> to vector<16x128xf32>
    %210 = arith.mulf %208, %209 : vector<16x128xf32>
    %211 = vector.broadcast %192 : vector<1x128xf32> to vector<16x128xf32>
    %212 = arith.addf %210, %211 : vector<16x128xf32>
    %c0_128 = arith.constant 0 : index
    %c0_129 = arith.constant 0 : index
    %213 = vector.load %arg7[%c0_128, %c0_129] : memref<24x16xbf16, #tpu.memory_space<vmem>>, vector<24x16xbf16>
    %c0_130 = arith.constant 0 : index
    %c0_131 = arith.constant 0 : index
    %214 = vector.load %arg6[%c0_130, %c0_131] : memref<24x16xbf16, #tpu.memory_space<vmem>>, vector<24x16xbf16>
    %c0_132 = arith.constant 0 : index
    %c0_133 = arith.constant 0 : index
    %215 = vector.load %arg8[%c0_132, %c0_133] : memref<24x3xf32, #tpu.memory_space<vmem>>, vector<24x3xf32>
    %c0_134 = arith.constant 0 : index
    %c0_135 = arith.constant 0 : index
    %216 = vector.load %arg9[%c0_134, %c0_135] : memref<24x24xf32, #tpu.memory_space<vmem>>, vector<24x24xf32>
    %c0_136 = arith.constant 0 : index
    %c0_137 = arith.constant 0 : index
    %217 = vector.load %arg46[%c0_136, %c0_137] : memref<128x1536xbf16, #tpu.memory_space<vmem>>, vector<128x1536xbf16>
    %218 = arith.truncf %212 : vector<16x128xf32> to vector<16x128xbf16>
    %cst_138 = arith.constant dense<0.000000e+00> : vector<16x1536xf32>
    %219 = tpu.matmul %218, %217, %cst_138 {dimension_numbers = #tpu.dot_dimension_numbers<[1], [0], [0], [1], [0, 0, 1, 1], [], []>} : vector<16x128xbf16>, vector<128x1536xbf16>, vector<16x1536xf32> -> vector<16x1536xf32>
    %c0_139 = arith.constant 0 : index
    %c0_140 = arith.constant 0 : index
    %220 = vector.load %arg48[%c0_139, %c0_140] : memref<1x1536xf32, #tpu.memory_space<vmem>>, vector<1x1536xf32>
    %221 = vector.broadcast %220 : vector<1x1536xf32> to vector<16x1536xf32>
    %222 = arith.addf %219, %221 : vector<16x1536xf32>
    %223 = vector.extract_strided_slice %222 {offsets = [0, 0], sizes = [16, 384], strides = [1, 1]} : vector<16x1536xf32> to vector<16x384xf32>
    %224 = vector.extract_strided_slice %222 {offsets = [0, 384], sizes = [16, 384], strides = [1, 1]} : vector<16x1536xf32> to vector<16x384xf32>
    %225 = vector.extract_strided_slice %222 {offsets = [0, 768], sizes = [16, 384], strides = [1, 1]} : vector<16x1536xf32> to vector<16x384xf32>
    %226 = vector.extract_strided_slice %222 {offsets = [0, 1152], sizes = [16, 384], strides = [1, 1]} : vector<16x1536xf32> to vector<16x384xf32>
    %c0_141 = arith.constant 0 : index
    %c0_142 = arith.constant 0 : index
    %227 = vector.load %arg44[%c0_141, %c0_142] : memref<3x384xbf16, #tpu.memory_space<vmem>>, vector<3x384xbf16>
    %228 = arith.truncf %215 : vector<24x3xf32> to vector<24x3xbf16>
    %cst_143 = arith.constant dense<0.000000e+00> : vector<24x384xf32>
    %229 = tpu.matmul %228, %227, %cst_143 {dimension_numbers = #tpu.dot_dimension_numbers<[1], [0], [0], [1], [0, 0, 1, 1], [], []>} : vector<24x3xbf16>, vector<3x384xbf16>, vector<24x384xf32> -> vector<24x384xf32>
    %230 = arith.truncf %223 : vector<16x384xf32> to vector<16x384xbf16>
    %cst_144 = arith.constant dense<0.000000e+00> : vector<24x384xf32>
    %231 = tpu.matmul %214, %230, %cst_144 {dimension_numbers = #tpu.dot_dimension_numbers<[1], [0], [0], [1], [0, 0, 1, 1], [], []>} : vector<24x16xbf16>, vector<16x384xbf16>, vector<24x384xf32> -> vector<24x384xf32>
    %232 = arith.truncf %224 : vector<16x384xf32> to vector<16x384xbf16>
    %cst_145 = arith.constant dense<0.000000e+00> : vector<24x384xf32>
    %233 = tpu.matmul %213, %232, %cst_145 {dimension_numbers = #tpu.dot_dimension_numbers<[1], [0], [0], [1], [0, 0, 1, 1], [], []>} : vector<24x16xbf16>, vector<16x384xbf16>, vector<24x384xf32> -> vector<24x384xf32>
    %234 = arith.addf %233, %229 : vector<24x384xf32>
    %235 = arith.mulf %231, %234 : vector<24x384xf32>
    %236 = arith.truncf %235 : vector<24x384xf32> to vector<24x384xbf16>
    %cst_146 = arith.constant dense<0.000000e+00> : vector<24x24xf32>
    %237 = tpu.matmul %236, %1, %cst_146 {dimension_numbers = #tpu.dot_dimension_numbers<[1], [0], [0], [1], [0, 0, 1, 1], [], []>} : vector<24x384xbf16>, vector<384x24xbf16>, vector<24x24xf32> -> vector<24x24xf32>
    %cst_147 = arith.constant 2.500000e-01 : f32
    %238 = vector.broadcast %cst_147 : f32 to vector<24x24xf32>
    %239 = arith.mulf %237, %238 : vector<24x24xf32>
    %cst_148 = arith.constant 0.000000e+00 : f32
    %240 = vector.broadcast %cst_148 : f32 to vector<24x24xf32>
    %241 = arith.cmpf ogt, %216, %240 : vector<24x24xf32>
    %cst_149 = arith.constant -1.000000e+09 : f32
    %242 = vector.broadcast %cst_149 : f32 to vector<24x24xf32>
    %243 = arith.select %241, %239, %242 : vector<24x24xi1>, vector<24x24xf32>
    %cst_150 = arith.constant dense<0xFF800000> : vector<24xf32>
    %244 = vector.multi_reduction <maximumf>, %243, %cst_150 [0] : vector<24x24xf32> to vector<24xf32>
    %245 = vector.shape_cast %244 : vector<24xf32> to vector<1x24xf32>
    %246 = vector.broadcast %245 : vector<1x24xf32> to vector<24x24xf32>
    %247 = arith.subf %243, %246 : vector<24x24xf32>
    %248 = math.exp %247 : vector<24x24xf32>
    %249 = arith.mulf %248, %216 : vector<24x24xf32>
    %250 = arith.truncf %249 : vector<24x24xf32> to vector<24x24xbf16>
    %cst_151 = arith.constant dense<0.000000e+00> : vector<16x24xf32>
    %251 = tpu.matmul %23, %250, %cst_151 {dimension_numbers = #tpu.dot_dimension_numbers<[1], [0], [0], [1], [0, 0, 1, 1], [], []>} : vector<16x24xbf16>, vector<24x24xbf16>, vector<16x24xf32> -> vector<16x24xf32>
    %cst_152 = arith.constant 9.99999968E-21 : f32
    %252 = vector.broadcast %cst_152 : f32 to vector<16x24xf32>
    %253 = arith.maximumf %251, %252 : vector<16x24xf32>
    %254 = tpu.reciprocal %253 {approx = true} : vector<16x24xf32> -> vector<16x24xf32>
    %255 = arith.truncf %225 : vector<16x384xf32> to vector<16x384xbf16>
    %cst_153 = arith.constant dense<0.000000e+00> : vector<24x384xf32>
    %256 = tpu.matmul %213, %255, %cst_153 {dimension_numbers = #tpu.dot_dimension_numbers<[1], [0], [0], [1], [0, 0, 1, 1], [], []>} : vector<24x16xbf16>, vector<16x384xbf16>, vector<24x384xf32> -> vector<24x384xf32>
    %257 = arith.addf %256, %229 : vector<24x384xf32>
    %258 = arith.truncf %249 : vector<24x24xf32> to vector<24x24xbf16>
    %cst_154 = arith.constant dense<0.000000e+00> : vector<24x384xf32>
    %259 = tpu.matmul %258, %0, %cst_154 {dimension_numbers = #tpu.dot_dimension_numbers<[1], [0], [0], [1], [0, 0, 1, 1], [], []>} : vector<24x24xbf16>, vector<24x384xbf16>, vector<24x384xf32> -> vector<24x384xf32>
    %260 = arith.mulf %257, %259 : vector<24x384xf32>
    %261 = arith.truncf %260 : vector<24x384xf32> to vector<24x384xbf16>
    %cst_155 = arith.constant dense<0.000000e+00> : vector<16x384xf32>
    %262 = tpu.matmul %23, %261, %cst_155 {dimension_numbers = #tpu.dot_dimension_numbers<[1], [0], [0], [1], [0, 0, 1, 1], [], []>} : vector<16x24xbf16>, vector<24x384xbf16>, vector<16x384xf32> -> vector<16x384xf32>
    %263 = arith.truncf %254 : vector<16x24xf32> to vector<16x24xbf16>
    %cst_156 = arith.constant dense<0.000000e+00> : vector<16x384xf32>
    %264 = tpu.matmul %263, %0, %cst_156 {dimension_numbers = #tpu.dot_dimension_numbers<[1], [0], [0], [1], [0, 0, 1, 1], [], []>} : vector<16x24xbf16>, vector<24x384xbf16>, vector<16x384xf32> -> vector<16x384xf32>
    %265 = arith.mulf %262, %264 : vector<16x384xf32>
    %266 = arith.addf %265, %226 : vector<16x384xf32>
    %c0_157 = arith.constant 0 : index
    %c0_158 = arith.constant 0 : index
    %267 = vector.load %arg45[%c0_157, %c0_158] : memref<384x128xbf16, #tpu.memory_space<vmem>>, vector<384x128xbf16>
    %268 = arith.truncf %266 : vector<16x384xf32> to vector<16x384xbf16>
    %cst_159 = arith.constant dense<0.000000e+00> : vector<16x128xf32>
    %269 = tpu.matmul %268, %267, %cst_159 {dimension_numbers = #tpu.dot_dimension_numbers<[1], [0], [0], [1], [0, 0, 1, 1], [], []>} : vector<16x384xbf16>, vector<384x128xbf16>, vector<16x128xf32> -> vector<16x128xf32>
    %c0_160 = arith.constant 0 : index
    %c0_161 = arith.constant 0 : index
    %270 = vector.load %arg47[%c0_160, %c0_161] : memref<1x128xf32, #tpu.memory_space<vmem>>, vector<1x128xf32>
    %271 = vector.broadcast %270 : vector<1x128xf32> to vector<16x128xf32>
    %272 = arith.addf %269, %271 : vector<16x128xf32>
    %cst_162 = arith.constant 0.000000e+00 : f32
    %273 = vector.broadcast %cst_162 : f32 to vector<16x128xf32>
    %274 = arith.maximumf %272, %273 : vector<16x128xf32>
    %275 = arith.addf %274, %212 : vector<16x128xf32>
    %c0_163 = arith.constant 0 : index
    %c0_164 = arith.constant 0 : index
    %276 = vector.load %arg50[%c0_163, %c0_164] : memref<1x128xf32, #tpu.memory_space<vmem>>, vector<1x128xf32>
    %c0_165 = arith.constant 0 : index
    %c0_166 = arith.constant 0 : index
    %277 = vector.load %arg49[%c0_165, %c0_166] : memref<1x128xf32, #tpu.memory_space<vmem>>, vector<1x128xf32>
    %cst_167 = arith.constant dense<0.000000e+00> : vector<16xf32>
    %278 = vector.multi_reduction <add>, %275, %cst_167 [1] : vector<16x128xf32> to vector<16xf32>
    %279 = vector.shape_cast %278 : vector<16xf32> to vector<16x1xf32>
    %cst_168 = arith.constant 1.280000e+02 : f32
    %280 = vector.broadcast %cst_168 : f32 to vector<16x1xf32>
    %281 = arith.divf %279, %280 : vector<16x1xf32>
    %282 = vector.broadcast %281 : vector<16x1xf32> to vector<16x128xf32>
    %283 = arith.subf %275, %282 : vector<16x128xf32>
    %284 = arith.mulf %283, %283 : vector<16x128xf32>
    %cst_169 = arith.constant dense<0.000000e+00> : vector<16xf32>
    %285 = vector.multi_reduction <add>, %284, %cst_169 [1] : vector<16x128xf32> to vector<16xf32>
    %286 = vector.shape_cast %285 : vector<16xf32> to vector<16x1xf32>
    %cst_170 = arith.constant 1.280000e+02 : f32
    %287 = vector.broadcast %cst_170 : f32 to vector<16x1xf32>
    %288 = arith.divf %286, %287 : vector<16x1xf32>
    %cst_171 = arith.constant 9.99999974E-6 : f32
    %289 = vector.broadcast %cst_171 : f32 to vector<16x1xf32>
    %290 = arith.addf %288, %289 : vector<16x1xf32>
    %291 = math.rsqrt %290 : vector<16x1xf32>
    %292 = vector.broadcast %291 : vector<16x1xf32> to vector<16x128xf32>
    %293 = arith.mulf %283, %292 : vector<16x128xf32>
    %294 = vector.broadcast %276 : vector<1x128xf32> to vector<16x128xf32>
    %295 = arith.mulf %293, %294 : vector<16x128xf32>
    %296 = vector.broadcast %277 : vector<1x128xf32> to vector<16x128xf32>
    %297 = arith.addf %295, %296 : vector<16x128xf32>
    %c0_172 = arith.constant 0 : index
    %c0_173 = arith.constant 0 : index
    %298 = vector.load %arg7[%c0_172, %c0_173] : memref<24x16xbf16, #tpu.memory_space<vmem>>, vector<24x16xbf16>
    %c0_174 = arith.constant 0 : index
    %c0_175 = arith.constant 0 : index
    %299 = vector.load %arg6[%c0_174, %c0_175] : memref<24x16xbf16, #tpu.memory_space<vmem>>, vector<24x16xbf16>
    %c0_176 = arith.constant 0 : index
    %c0_177 = arith.constant 0 : index
    %300 = vector.load %arg8[%c0_176, %c0_177] : memref<24x3xf32, #tpu.memory_space<vmem>>, vector<24x3xf32>
    %c0_178 = arith.constant 0 : index
    %c0_179 = arith.constant 0 : index
    %301 = vector.load %arg9[%c0_178, %c0_179] : memref<24x24xf32, #tpu.memory_space<vmem>>, vector<24x24xf32>
    %c0_180 = arith.constant 0 : index
    %c0_181 = arith.constant 0 : index
    %302 = vector.load %arg53[%c0_180, %c0_181] : memref<128x1536xbf16, #tpu.memory_space<vmem>>, vector<128x1536xbf16>
    %303 = arith.truncf %297 : vector<16x128xf32> to vector<16x128xbf16>
    %cst_182 = arith.constant dense<0.000000e+00> : vector<16x1536xf32>
    %304 = tpu.matmul %303, %302, %cst_182 {dimension_numbers = #tpu.dot_dimension_numbers<[1], [0], [0], [1], [0, 0, 1, 1], [], []>} : vector<16x128xbf16>, vector<128x1536xbf16>, vector<16x1536xf32> -> vector<16x1536xf32>
    %c0_183 = arith.constant 0 : index
    %c0_184 = arith.constant 0 : index
    %305 = vector.load %arg55[%c0_183, %c0_184] : memref<1x1536xf32, #tpu.memory_space<vmem>>, vector<1x1536xf32>
    %306 = vector.broadcast %305 : vector<1x1536xf32> to vector<16x1536xf32>
    %307 = arith.addf %304, %306 : vector<16x1536xf32>
    %308 = vector.extract_strided_slice %307 {offsets = [0, 0], sizes = [16, 384], strides = [1, 1]} : vector<16x1536xf32> to vector<16x384xf32>
    %309 = vector.extract_strided_slice %307 {offsets = [0, 384], sizes = [16, 384], strides = [1, 1]} : vector<16x1536xf32> to vector<16x384xf32>
    %310 = vector.extract_strided_slice %307 {offsets = [0, 768], sizes = [16, 384], strides = [1, 1]} : vector<16x1536xf32> to vector<16x384xf32>
    %311 = vector.extract_strided_slice %307 {offsets = [0, 1152], sizes = [16, 384], strides = [1, 1]} : vector<16x1536xf32> to vector<16x384xf32>
    %c0_185 = arith.constant 0 : index
    %c0_186 = arith.constant 0 : index
    %312 = vector.load %arg51[%c0_185, %c0_186] : memref<3x384xbf16, #tpu.memory_space<vmem>>, vector<3x384xbf16>
    %313 = arith.truncf %300 : vector<24x3xf32> to vector<24x3xbf16>
    %cst_187 = arith.constant dense<0.000000e+00> : vector<24x384xf32>
    %314 = tpu.matmul %313, %312, %cst_187 {dimension_numbers = #tpu.dot_dimension_numbers<[1], [0], [0], [1], [0, 0, 1, 1], [], []>} : vector<24x3xbf16>, vector<3x384xbf16>, vector<24x384xf32> -> vector<24x384xf32>
    %315 = arith.truncf %308 : vector<16x384xf32> to vector<16x384xbf16>
    %cst_188 = arith.constant dense<0.000000e+00> : vector<24x384xf32>
    %316 = tpu.matmul %299, %315, %cst_188 {dimension_numbers = #tpu.dot_dimension_numbers<[1], [0], [0], [1], [0, 0, 1, 1], [], []>} : vector<24x16xbf16>, vector<16x384xbf16>, vector<24x384xf32> -> vector<24x384xf32>
    %317 = arith.truncf %309 : vector<16x384xf32> to vector<16x384xbf16>
    %cst_189 = arith.constant dense<0.000000e+00> : vector<24x384xf32>
    %318 = tpu.matmul %298, %317, %cst_189 {dimension_numbers = #tpu.dot_dimension_numbers<[1], [0], [0], [1], [0, 0, 1, 1], [], []>} : vector<24x16xbf16>, vector<16x384xbf16>, vector<24x384xf32> -> vector<24x384xf32>
    %319 = arith.addf %318, %314 : vector<24x384xf32>
    %320 = arith.mulf %316, %319 : vector<24x384xf32>
    %321 = arith.truncf %320 : vector<24x384xf32> to vector<24x384xbf16>
    %cst_190 = arith.constant dense<0.000000e+00> : vector<24x24xf32>
    %322 = tpu.matmul %321, %1, %cst_190 {dimension_numbers = #tpu.dot_dimension_numbers<[1], [0], [0], [1], [0, 0, 1, 1], [], []>} : vector<24x384xbf16>, vector<384x24xbf16>, vector<24x24xf32> -> vector<24x24xf32>
    %cst_191 = arith.constant 2.500000e-01 : f32
    %323 = vector.broadcast %cst_191 : f32 to vector<24x24xf32>
    %324 = arith.mulf %322, %323 : vector<24x24xf32>
    %cst_192 = arith.constant 0.000000e+00 : f32
    %325 = vector.broadcast %cst_192 : f32 to vector<24x24xf32>
    %326 = arith.cmpf ogt, %301, %325 : vector<24x24xf32>
    %cst_193 = arith.constant -1.000000e+09 : f32
    %327 = vector.broadcast %cst_193 : f32 to vector<24x24xf32>
    %328 = arith.select %326, %324, %327 : vector<24x24xi1>, vector<24x24xf32>
    %cst_194 = arith.constant dense<0xFF800000> : vector<24xf32>
    %329 = vector.multi_reduction <maximumf>, %328, %cst_194 [0] : vector<24x24xf32> to vector<24xf32>
    %330 = vector.shape_cast %329 : vector<24xf32> to vector<1x24xf32>
    %331 = vector.broadcast %330 : vector<1x24xf32> to vector<24x24xf32>
    %332 = arith.subf %328, %331 : vector<24x24xf32>
    %333 = math.exp %332 : vector<24x24xf32>
    %334 = arith.mulf %333, %301 : vector<24x24xf32>
    %335 = arith.truncf %334 : vector<24x24xf32> to vector<24x24xbf16>
    %cst_195 = arith.constant dense<0.000000e+00> : vector<16x24xf32>
    %336 = tpu.matmul %23, %335, %cst_195 {dimension_numbers = #tpu.dot_dimension_numbers<[1], [0], [0], [1], [0, 0, 1, 1], [], []>} : vector<16x24xbf16>, vector<24x24xbf16>, vector<16x24xf32> -> vector<16x24xf32>
    %cst_196 = arith.constant 9.99999968E-21 : f32
    %337 = vector.broadcast %cst_196 : f32 to vector<16x24xf32>
    %338 = arith.maximumf %336, %337 : vector<16x24xf32>
    %339 = tpu.reciprocal %338 {approx = true} : vector<16x24xf32> -> vector<16x24xf32>
    %340 = arith.truncf %310 : vector<16x384xf32> to vector<16x384xbf16>
    %cst_197 = arith.constant dense<0.000000e+00> : vector<24x384xf32>
    %341 = tpu.matmul %298, %340, %cst_197 {dimension_numbers = #tpu.dot_dimension_numbers<[1], [0], [0], [1], [0, 0, 1, 1], [], []>} : vector<24x16xbf16>, vector<16x384xbf16>, vector<24x384xf32> -> vector<24x384xf32>
    %342 = arith.addf %341, %314 : vector<24x384xf32>
    %343 = arith.truncf %334 : vector<24x24xf32> to vector<24x24xbf16>
    %cst_198 = arith.constant dense<0.000000e+00> : vector<24x384xf32>
    %344 = tpu.matmul %343, %0, %cst_198 {dimension_numbers = #tpu.dot_dimension_numbers<[1], [0], [0], [1], [0, 0, 1, 1], [], []>} : vector<24x24xbf16>, vector<24x384xbf16>, vector<24x384xf32> -> vector<24x384xf32>
    %345 = arith.mulf %342, %344 : vector<24x384xf32>
    %346 = arith.truncf %345 : vector<24x384xf32> to vector<24x384xbf16>
    %cst_199 = arith.constant dense<0.000000e+00> : vector<16x384xf32>
    %347 = tpu.matmul %23, %346, %cst_199 {dimension_numbers = #tpu.dot_dimension_numbers<[1], [0], [0], [1], [0, 0, 1, 1], [], []>} : vector<16x24xbf16>, vector<24x384xbf16>, vector<16x384xf32> -> vector<16x384xf32>
    %348 = arith.truncf %339 : vector<16x24xf32> to vector<16x24xbf16>
    %cst_200 = arith.constant dense<0.000000e+00> : vector<16x384xf32>
    %349 = tpu.matmul %348, %0, %cst_200 {dimension_numbers = #tpu.dot_dimension_numbers<[1], [0], [0], [1], [0, 0, 1, 1], [], []>} : vector<16x24xbf16>, vector<24x384xbf16>, vector<16x384xf32> -> vector<16x384xf32>
    %350 = arith.mulf %347, %349 : vector<16x384xf32>
    %351 = arith.addf %350, %311 : vector<16x384xf32>
    %c0_201 = arith.constant 0 : index
    %c0_202 = arith.constant 0 : index
    %352 = vector.load %arg52[%c0_201, %c0_202] : memref<384x128xbf16, #tpu.memory_space<vmem>>, vector<384x128xbf16>
    %353 = arith.truncf %351 : vector<16x384xf32> to vector<16x384xbf16>
    %cst_203 = arith.constant dense<0.000000e+00> : vector<16x128xf32>
    %354 = tpu.matmul %353, %352, %cst_203 {dimension_numbers = #tpu.dot_dimension_numbers<[1], [0], [0], [1], [0, 0, 1, 1], [], []>} : vector<16x384xbf16>, vector<384x128xbf16>, vector<16x128xf32> -> vector<16x128xf32>
    %c0_204 = arith.constant 0 : index
    %c0_205 = arith.constant 0 : index
    %355 = vector.load %arg54[%c0_204, %c0_205] : memref<1x128xf32, #tpu.memory_space<vmem>>, vector<1x128xf32>
    %356 = vector.broadcast %355 : vector<1x128xf32> to vector<16x128xf32>
    %357 = arith.addf %354, %356 : vector<16x128xf32>
    %cst_206 = arith.constant 0.000000e+00 : f32
    %358 = vector.broadcast %cst_206 : f32 to vector<16x128xf32>
    %359 = arith.maximumf %357, %358 : vector<16x128xf32>
    %360 = arith.addf %359, %297 : vector<16x128xf32>
    %c0_207 = arith.constant 0 : index
    %c0_208 = arith.constant 0 : index
    %361 = vector.load %arg57[%c0_207, %c0_208] : memref<1x128xf32, #tpu.memory_space<vmem>>, vector<1x128xf32>
    %c0_209 = arith.constant 0 : index
    %c0_210 = arith.constant 0 : index
    %362 = vector.load %arg56[%c0_209, %c0_210] : memref<1x128xf32, #tpu.memory_space<vmem>>, vector<1x128xf32>
    %cst_211 = arith.constant dense<0.000000e+00> : vector<16xf32>
    %363 = vector.multi_reduction <add>, %360, %cst_211 [1] : vector<16x128xf32> to vector<16xf32>
    %364 = vector.shape_cast %363 : vector<16xf32> to vector<16x1xf32>
    %cst_212 = arith.constant 1.280000e+02 : f32
    %365 = vector.broadcast %cst_212 : f32 to vector<16x1xf32>
    %366 = arith.divf %364, %365 : vector<16x1xf32>
    %367 = vector.broadcast %366 : vector<16x1xf32> to vector<16x128xf32>
    %368 = arith.subf %360, %367 : vector<16x128xf32>
    %369 = arith.mulf %368, %368 : vector<16x128xf32>
    %cst_213 = arith.constant dense<0.000000e+00> : vector<16xf32>
    %370 = vector.multi_reduction <add>, %369, %cst_213 [1] : vector<16x128xf32> to vector<16xf32>
    %371 = vector.shape_cast %370 : vector<16xf32> to vector<16x1xf32>
    %cst_214 = arith.constant 1.280000e+02 : f32
    %372 = vector.broadcast %cst_214 : f32 to vector<16x1xf32>
    %373 = arith.divf %371, %372 : vector<16x1xf32>
    %cst_215 = arith.constant 9.99999974E-6 : f32
    %374 = vector.broadcast %cst_215 : f32 to vector<16x1xf32>
    %375 = arith.addf %373, %374 : vector<16x1xf32>
    %376 = math.rsqrt %375 : vector<16x1xf32>
    %377 = vector.broadcast %376 : vector<16x1xf32> to vector<16x128xf32>
    %378 = arith.mulf %368, %377 : vector<16x128xf32>
    %379 = vector.broadcast %361 : vector<1x128xf32> to vector<16x128xf32>
    %380 = arith.mulf %378, %379 : vector<16x128xf32>
    %381 = vector.broadcast %362 : vector<1x128xf32> to vector<16x128xf32>
    %382 = arith.addf %380, %381 : vector<16x128xf32>
    %c0_216 = arith.constant 0 : index
    %c0_217 = arith.constant 0 : index
    %383 = vector.load %arg1[%c0_216, %c0_217] : memref<8x16xbf16, #tpu.memory_space<vmem>>, vector<8x16xbf16>
    %c0_218 = arith.constant 0 : index
    %c0_219 = arith.constant 0 : index
    %384 = vector.load %arg0[%c0_218, %c0_219] : memref<8x16xbf16, #tpu.memory_space<vmem>>, vector<8x16xbf16>
    %c0_220 = arith.constant 0 : index
    %c0_221 = arith.constant 0 : index
    %385 = vector.load %arg21[%c0_220, %c0_221] : memref<128x384xbf16, #tpu.memory_space<vmem>>, vector<128x384xbf16>
    %386 = arith.truncf %382 : vector<16x128xf32> to vector<16x128xbf16>
    %cst_222 = arith.constant dense<0.000000e+00> : vector<16x384xf32>
    %387 = tpu.matmul %386, %385, %cst_222 {dimension_numbers = #tpu.dot_dimension_numbers<[1], [0], [0], [1], [0, 0, 1, 1], [], []>} : vector<16x128xbf16>, vector<128x384xbf16>, vector<16x384xf32> -> vector<16x384xf32>
    %c0_223 = arith.constant 0 : index
    %c0_224 = arith.constant 0 : index
    %388 = vector.load %arg23[%c0_223, %c0_224] : memref<1x384xf32, #tpu.memory_space<vmem>>, vector<1x384xf32>
    %389 = vector.broadcast %388 : vector<1x384xf32> to vector<16x384xf32>
    %390 = arith.addf %387, %389 : vector<16x384xf32>
    %391 = vector.extract_strided_slice %390 {offsets = [0, 0], sizes = [16, 128], strides = [1, 1]} : vector<16x384xf32> to vector<16x128xf32>
    %392 = vector.extract_strided_slice %390 {offsets = [0, 128], sizes = [16, 128], strides = [1, 1]} : vector<16x384xf32> to vector<16x128xf32>
    %393 = vector.extract_strided_slice %390 {offsets = [0, 256], sizes = [16, 128], strides = [1, 1]} : vector<16x384xf32> to vector<16x128xf32>
    %394 = arith.truncf %391 : vector<16x128xf32> to vector<16x128xbf16>
    %cst_225 = arith.constant dense<0.000000e+00> : vector<8x128xf32>
    %395 = tpu.matmul %384, %394, %cst_225 {dimension_numbers = #tpu.dot_dimension_numbers<[1], [0], [0], [1], [0, 0, 1, 1], [], []>} : vector<8x16xbf16>, vector<16x128xbf16>, vector<8x128xf32> -> vector<8x128xf32>
    %396 = arith.truncf %392 : vector<16x128xf32> to vector<16x128xbf16>
    %cst_226 = arith.constant dense<0.000000e+00> : vector<8x128xf32>
    %397 = tpu.matmul %383, %396, %cst_226 {dimension_numbers = #tpu.dot_dimension_numbers<[1], [0], [0], [1], [0, 0, 1, 1], [], []>} : vector<8x16xbf16>, vector<16x128xbf16>, vector<8x128xf32> -> vector<8x128xf32>
    %398 = arith.mulf %395, %397 : vector<8x128xf32>
    %399 = arith.truncf %398 : vector<8x128xf32> to vector<8x128xbf16>
    %cst_227 = arith.constant dense<0.000000e+00> : vector<8x8xf32>
    %400 = tpu.matmul %399, %3, %cst_227 {dimension_numbers = #tpu.dot_dimension_numbers<[1], [0], [0], [1], [0, 0, 1, 1], [], []>} : vector<8x128xbf16>, vector<128x8xbf16>, vector<8x8xf32> -> vector<8x8xf32>
    %cst_228 = arith.constant 2.500000e-01 : f32
    %401 = vector.broadcast %cst_228 : f32 to vector<8x8xf32>
    %402 = arith.mulf %400, %401 : vector<8x8xf32>
    %cst_229 = arith.constant dense<0xFF800000> : vector<8xf32>
    %403 = vector.multi_reduction <maximumf>, %402, %cst_229 [0] : vector<8x8xf32> to vector<8xf32>
    %404 = vector.shape_cast %403 : vector<8xf32> to vector<1x8xf32>
    %405 = vector.broadcast %404 : vector<1x8xf32> to vector<8x8xf32>
    %406 = arith.subf %402, %405 : vector<8x8xf32>
    %407 = math.exp %406 : vector<8x8xf32>
    %cst_230 = arith.constant dense<0.000000e+00> : vector<8xf32>
    %408 = vector.multi_reduction <add>, %407, %cst_230 [0] : vector<8x8xf32> to vector<8xf32>
    %409 = vector.shape_cast %408 : vector<8xf32> to vector<1x8xf32>
    %410 = tpu.reciprocal %409 {approx = true} : vector<1x8xf32> -> vector<1x8xf32>
    %411 = vector.broadcast %410 : vector<1x8xf32> to vector<8x8xf32>
    %412 = arith.mulf %407, %411 : vector<8x8xf32>
    %413 = arith.truncf %393 : vector<16x128xf32> to vector<16x128xbf16>
    %cst_231 = arith.constant dense<0.000000e+00> : vector<8x128xf32>
    %414 = tpu.matmul %383, %413, %cst_231 {dimension_numbers = #tpu.dot_dimension_numbers<[1], [0], [0], [1], [0, 0, 1, 1], [], []>} : vector<8x16xbf16>, vector<16x128xbf16>, vector<8x128xf32> -> vector<8x128xf32>
    %415 = arith.truncf %412 : vector<8x8xf32> to vector<8x8xbf16>
    %cst_232 = arith.constant dense<0.000000e+00> : vector<8x128xf32>
    %416 = tpu.matmul %415, %2, %cst_232 {dimension_numbers = #tpu.dot_dimension_numbers<[1], [0], [0], [1], [0, 0, 1, 1], [], []>} : vector<8x8xbf16>, vector<8x128xbf16>, vector<8x128xf32> -> vector<8x128xf32>
    %417 = arith.mulf %414, %416 : vector<8x128xf32>
    %418 = arith.truncf %417 : vector<8x128xf32> to vector<8x128xbf16>
    %cst_233 = arith.constant dense<0.000000e+00> : vector<16x128xf32>
    %419 = tpu.matmul %33, %418, %cst_233 {dimension_numbers = #tpu.dot_dimension_numbers<[1], [0], [0], [1], [0, 0, 1, 1], [], []>} : vector<16x8xbf16>, vector<8x128xbf16>, vector<16x128xf32> -> vector<16x128xf32>
    %c0_234 = arith.constant 0 : index
    %c0_235 = arith.constant 0 : index
    %420 = vector.load %arg20[%c0_234, %c0_235] : memref<128x128xbf16, #tpu.memory_space<vmem>>, vector<128x128xbf16>
    %421 = arith.truncf %419 : vector<16x128xf32> to vector<16x128xbf16>
    %cst_236 = arith.constant dense<0.000000e+00> : vector<16x128xf32>
    %422 = tpu.matmul %421, %420, %cst_236 {dimension_numbers = #tpu.dot_dimension_numbers<[1], [0], [0], [1], [0, 0, 1, 1], [], []>} : vector<16x128xbf16>, vector<128x128xbf16>, vector<16x128xf32> -> vector<16x128xf32>
    %423 = arith.addf %382, %422 : vector<16x128xf32>
    %c0_237 = arith.constant 0 : index
    %c0_238 = arith.constant 0 : index
    %424 = vector.load %arg22[%c0_237, %c0_238] : memref<1x128xf32, #tpu.memory_space<vmem>>, vector<1x128xf32>
    %425 = vector.broadcast %424 : vector<1x128xf32> to vector<16x128xf32>
    %426 = arith.addf %423, %425 : vector<16x128xf32>
    %c0_239 = arith.constant 0 : index
    %c0_240 = arith.constant 0 : index
    %427 = vector.load %arg10[%c0_239, %c0_240] : memref<128x256xbf16, #tpu.memory_space<vmem>>, vector<128x256xbf16>
    %428 = arith.truncf %426 : vector<16x128xf32> to vector<16x128xbf16>
    %cst_241 = arith.constant dense<0.000000e+00> : vector<16x256xf32>
    %429 = tpu.matmul %428, %427, %cst_241 {dimension_numbers = #tpu.dot_dimension_numbers<[1], [0], [0], [1], [0, 0, 1, 1], [], []>} : vector<16x128xbf16>, vector<128x256xbf16>, vector<16x256xf32> -> vector<16x256xf32>
    %c0_242 = arith.constant 0 : index
    %c0_243 = arith.constant 0 : index
    %430 = vector.load %arg13[%c0_242, %c0_243] : memref<1x256xf32, #tpu.memory_space<vmem>>, vector<1x256xf32>
    %431 = vector.broadcast %430 : vector<1x256xf32> to vector<16x256xf32>
    %432 = arith.addf %429, %431 : vector<16x256xf32>
    %cst_244 = arith.constant 0.000000e+00 : f32
    %433 = vector.broadcast %cst_244 : f32 to vector<16x256xf32>
    %434 = arith.maximumf %432, %433 : vector<16x256xf32>
    %c0_245 = arith.constant 0 : index
    %c0_246 = arith.constant 0 : index
    %435 = vector.load %arg11[%c0_245, %c0_246] : memref<256x128xbf16, #tpu.memory_space<vmem>>, vector<256x128xbf16>
    %436 = arith.truncf %434 : vector<16x256xf32> to vector<16x256xbf16>
    %cst_247 = arith.constant dense<0.000000e+00> : vector<16x128xf32>
    %437 = tpu.matmul %436, %435, %cst_247 {dimension_numbers = #tpu.dot_dimension_numbers<[1], [0], [0], [1], [0, 0, 1, 1], [], []>} : vector<16x256xbf16>, vector<256x128xbf16>, vector<16x128xf32> -> vector<16x128xf32>
    %c0_248 = arith.constant 0 : index
    %c0_249 = arith.constant 0 : index
    %438 = vector.load %arg14[%c0_248, %c0_249] : memref<1x128xf32, #tpu.memory_space<vmem>>, vector<1x128xf32>
    %439 = vector.broadcast %438 : vector<1x128xf32> to vector<16x128xf32>
    %440 = arith.addf %437, %439 : vector<16x128xf32>
    %cst_250 = arith.constant 0.000000e+00 : f32
    %441 = vector.broadcast %cst_250 : f32 to vector<16x128xf32>
    %442 = arith.maximumf %440, %441 : vector<16x128xf32>
    %c0_251 = arith.constant 0 : index
    %c0_252 = arith.constant 0 : index
    %443 = vector.load %arg12[%c0_251, %c0_252] : memref<128x128xbf16, #tpu.memory_space<vmem>>, vector<128x128xbf16>
    %444 = arith.truncf %442 : vector<16x128xf32> to vector<16x128xbf16>
    %cst_253 = arith.constant dense<0.000000e+00> : vector<16x128xf32>
    %445 = tpu.matmul %444, %443, %cst_253 {dimension_numbers = #tpu.dot_dimension_numbers<[1], [0], [0], [1], [0, 0, 1, 1], [], []>} : vector<16x128xbf16>, vector<128x128xbf16>, vector<16x128xf32> -> vector<16x128xf32>
    %c0_254 = arith.constant 0 : index
    %c0_255 = arith.constant 0 : index
    %446 = vector.load %arg15[%c0_254, %c0_255] : memref<1x128xf32, #tpu.memory_space<vmem>>, vector<1x128xf32>
    %447 = vector.broadcast %446 : vector<1x128xf32> to vector<16x128xf32>
    %448 = arith.addf %445, %447 : vector<16x128xf32>
    %cst_256 = arith.constant dense<0xFF800000> : vector<16xf32>
    %449 = vector.multi_reduction <maximumf>, %448, %cst_256 [1] : vector<16x128xf32> to vector<16xf32>
    %450 = vector.shape_cast %449 : vector<16xf32> to vector<16x1xf32>
    %451 = vector.broadcast %450 : vector<16x1xf32> to vector<16x128xf32>
    %452 = arith.subf %448, %451 : vector<16x128xf32>
    %453 = math.exp %452 : vector<16x128xf32>
    %cst_257 = arith.constant dense<0.000000e+00> : vector<16xf32>
    %454 = vector.multi_reduction <add>, %453, %cst_257 [1] : vector<16x128xf32> to vector<16xf32>
    %455 = vector.shape_cast %454 : vector<16xf32> to vector<16x1xf32>
    %456 = math.log %455 : vector<16x1xf32>
    %457 = vector.broadcast %456 : vector<16x1xf32> to vector<16x128xf32>
    %458 = arith.subf %452, %457 : vector<16x128xf32>
    %c0_258 = arith.constant 0 : index
    %c0_259 = arith.constant 0 : index
    %459 = vector.load %arg59[%c0_258, %c0_259] : memref<16x128xf32, #tpu.memory_space<vmem>>, vector<16x128xf32>
    tpu.vector_store %arg59[%c0_258, %c0_259], %458 {strides = array<i32>} : memref<16x128xf32, #tpu.memory_space<vmem>>, vector<16x128xf32>,
    return
  }
}

</mosaic_0001>

<llo_original>
// kernel: gap_gnn_forward.1
$region0: #{gap_gnn_forward.1}
  #allocation0 [shape = 'u32[]', space=smem, size = 0x4, offset = 0x4, fixed_abs, tag = 'smem constant byte address 0x4 - core index']
  #allocation1 [shape = 'u32[144,128]{1,0:T(1,128)}', space=vmem, size = 0x12000, scoped, tag = 'internal scratch']
  %s0 = inlined_call_operand.smem [shape: u32[60], index: -1, kind: input, shape index: {}]
  %s1 = sld [smem:[%s0]]
  %s2 = scalar_lea.smem %s0, 1
  %s3 = sld [smem:[%s2]]
  %s4 = scalar_lea.smem %s0, 2
  %s5 = sld [smem:[%s4]]
  %s6 = scalar_lea.smem %s0, 3
  %s7 = sld [smem:[%s6]]
  %s8 = scalar_lea.smem %s0, 4
  %s9 = sld [smem:[%s8]]
  %s10 = scalar_lea.smem %s0, 5
  %s11 = sld [smem:[%s10]]
  %s12 = scalar_lea.smem %s0, 6
  %s13 = sld [smem:[%s12]]
  %s14 = scalar_lea.smem %s0, 7
  %s15 = sld [smem:[%s14]]
  %s16 = scalar_lea.smem %s0, 8
  %s17 = sld [smem:[%s16]]
  %s18 = scalar_lea.smem %s0, 9
  %s19 = sld [smem:[%s18]]
  %s20 = scalar_lea.smem %s0, 10
  %s21 = sld [smem:[%s20]]
  %s22 = scalar_lea.smem %s0, 11
  %s23 = sld [smem:[%s22]]
  %s24 = scalar_lea.smem %s0, 12
  %s25 = sld [smem:[%s24]]
  %s26 = scalar_lea.smem %s0, 13
  %s27 = sld [smem:[%s26]]
  %s28 = scalar_lea.smem %s0, 14
  %s29 = sld [smem:[%s28]]
  %s30 = scalar_lea.smem %s0, 15
  %s31 = sld [smem:[%s30]]
  %s32 = scalar_lea.smem %s0, 16
  %s33 = sld [smem:[%s32]]
  %s34 = scalar_lea.smem %s0, 17
  %s35 = sld [smem:[%s34]]
  %s36 = scalar_lea.smem %s0, 18
  %s37 = sld [smem:[%s36]]
  %s38 = scalar_lea.smem %s0, 19
  %s39 = sld [smem:[%s38]]
  %s40 = scalar_lea.smem %s0, 20
  %s41 = sld [smem:[%s40]]
  %s42 = scalar_lea.smem %s0, 21
  %s43 = sld [smem:[%s42]]
  %s44 = scalar_lea.smem %s0, 22
  %s45 = sld [smem:[%s44]]
  %s46 = scalar_lea.smem %s0, 23
  %s47 = sld [smem:[%s46]]
  %s48 = scalar_lea.smem %s0, 24
  %s49 = sld [smem:[%s48]]
  %s50 = scalar_lea.smem %s0, 25
  %s51 = sld [smem:[%s50]]
  %s52 = scalar_lea.smem %s0, 26
  %s53 = sld [smem:[%s52]]
  %s54 = scalar_lea.smem %s0, 27
  %s55 = sld [smem:[%s54]]
  %s56 = scalar_lea.smem %s0, 28
  %s57 = sld [smem:[%s56]]
  %s58 = scalar_lea.smem %s0, 29
  %s59 = sld [smem:[%s58]]
  %s60 = scalar_lea.smem %s0, 30
  %s61 = sld [smem:[%s60]]
  %s62 = scalar_lea.smem %s0, 31
  %s63 = sld [smem:[%s62]]
  %s64 = scalar_lea.smem %s0, 32
  %s65 = sld [smem:[%s64]]
  %s66 = scalar_lea.smem %s0, 33
  %s67 = sld [smem:[%s66]]
  %s68 = scalar_lea.smem %s0, 34
  %s69 = sld [smem:[%s68]]
  %s70 = scalar_lea.smem %s0, 35
  %s71 = sld [smem:[%s70]]
  %s72 = scalar_lea.smem %s0, 36
  %s73 = sld [smem:[%s72]]
  %s74 = scalar_lea.smem %s0, 37
  %s75 = sld [smem:[%s74]]
  %s76 = scalar_lea.smem %s0, 38
  %s77 = sld [smem:[%s76]]
  %s78 = scalar_lea.smem %s0, 39
  %s79 = sld [smem:[%s78]]
  %s80 = scalar_lea.smem %s0, 40
  %s81 = sld [smem:[%s80]]
  %s82 = scalar_lea.smem %s0, 41
  %s83 = sld [smem:[%s82]]
  %s84 = scalar_lea.smem %s0, 42
  %s85 = sld [smem:[%s84]]
  %s86 = scalar_lea.smem %s0, 43
  %s87 = sld [smem:[%s86]]
  %s88 = scalar_lea.smem %s0, 44
  %s89 = sld [smem:[%s88]]
  %s90 = scalar_lea.smem %s0, 45
  %s91 = sld [smem:[%s90]]
  %s92 = scalar_lea.smem %s0, 46
  %s93 = sld [smem:[%s92]]
  %s94 = scalar_lea.smem %s0, 47
  %s95 = sld [smem:[%s94]]
  %s96 = scalar_lea.smem %s0, 48
  %s97 = sld [smem:[%s96]]
  %s98 = scalar_lea.smem %s0, 49
  %s99 = sld [smem:[%s98]]
  %s100 = scalar_lea.smem %s0, 50
  %s101 = sld [smem:[%s100]]
  %s102 = scalar_lea.smem %s0, 51
  %s103 = sld [smem:[%s102]]
  %s104 = scalar_lea.smem %s0, 52
  %s105 = sld [smem:[%s104]]
  %s106 = scalar_lea.smem %s0, 53
  %s107 = sld [smem:[%s106]]
  %s108 = scalar_lea.smem %s0, 54
  %s109 = sld [smem:[%s108]]
  %s110 = scalar_lea.smem %s0, 55
  %s111 = sld [smem:[%s110]]
  %s112 = scalar_lea.smem %s0, 56
  %s113 = sld [smem:[%s112]]
  %s114 = scalar_lea.smem %s0, 57
  %s115 = sld [smem:[%s114]]
  %s116 = scalar_lea.smem %s0, 58
  %s117 = sld [smem:[%s116]]
  %s118 = scalar_lea.smem %s0, 59
  %s119 = sld [smem:[%s118]]
  %s120 = sld [smem:[#allocation0]]
  $region386: #{gap_gnn_forward.1} parent=0
    _
  %s122 = ssub.s32 1, %s120
  %s123 = scalar_select 0, %s122, %s120
  $region1: #{gap_gnn_forward.1} parent=0
    #allocation2 [shape = 'u8[2048]{0}', space=vmem, size = 0x800, scoped, tag = 'input window, operand 0, single buffered']
    #allocation3 [shape = 's32[1]{0}', space=sflag, size = 0x4, scoped, tag = 'scoped memory for gap_gnn_forward.1']
    #allocation4 [shape = 'u8[2048]{0}', space=vmem, size = 0x800, scoped, tag = 'input window, operand 1, single buffered']
    #allocation5 [shape = 's32[1]{0}', space=sflag, size = 0x4, scoped, tag = 'scoped memory for gap_gnn_forward.1']
    #allocation6 [shape = 'u8[12288]{0}', space=vmem, size = 0x3000, scoped, tag = 'input window, operand 9, single buffered']
    #allocation7 [shape = 'u8[65536]{0}', space=vmem, size = 0x10000, scoped, tag = 'input window, operand 11, single buffered']
    #allocation8 [shape = 's32[1]{0}', space=sflag, size = 0x4, scoped, tag = 'scoped memory for gap_gnn_forward.1']
    #allocation9 [shape = 'u8[32768]{0}', space=vmem, size = 0x8000, scoped, tag = 'input window, operand 12, single buffered']
    #allocation10 [shape = 'u8[1024]{0}', space=vmem, size = 0x400, scoped, tag = 'input window, operand 13, single buffered']
    #allocation11 [shape = 's32[1]{0}', space=sflag, size = 0x4, scoped, tag = 'scoped memory for gap_gnn_forward.1']
    #allocation12 [shape = 'u8[512]{0}', space=vmem, size = 0x400, scoped, tag = 'input window, operand 14, single buffered']
    #allocation13 [shape = 'u8[512]{0}', space=vmem, size = 0x400, scoped, tag = 'input window, operand 15, single buffered']
    #allocation14 [shape = 's32[1]{0}', space=sflag, size = 0x4, scoped, tag = 'scoped memory for gap_gnn_forward.1']
    #allocation15 [shape = 'u8[2048]{0}', space=vmem, size = 0x800, scoped, tag = 'input window, operand 16, single buffered']
    #allocation16 [shape = 'u8[32768]{0}', space=vmem, size = 0x8000, scoped, tag = 'input window, operand 20, single buffered']
    #allocation17 [shape = 's32[1]{0}', space=sflag, size = 0x4, scoped, tag = 'scoped memory for gap_gnn_forward.1']
    #allocation18 [shape = 'u8[512]{0}', space=vmem, size = 0x400, scoped, tag = 'input window, operand 22, single buffered']
    #allocation19 [shape = 'u8[1024]{0}', space=vmem, size = 0x400, scoped, tag = 'input window, operand 25, single buffered']
    #allocation20 [shape = 's32[1]{0}', space=sflag, size = 0x4, scoped, tag = 'scoped memory for gap_gnn_forward.1']
    #allocation21 [shape = 'u8[98304]{0}', space=vmem, size = 0x18000, scoped, tag = 'input window, operand 27, single buffered']
    #allocation22 [shape = 'u8[98304]{0}', space=vmem, size = 0x18000, scoped, tag = 'input window, operand 28, single buffered']
    #allocation23 [shape = 's32[1]{0}', space=sflag, size = 0x4, scoped, tag = 'scoped memory for gap_gnn_forward.1']
    #allocation24 [shape = 'u8[1536]{0}', space=vmem, size = 0x800, scoped, tag = 'input window, operand 29, single buffered']
    #allocation25 [shape = 'u8[512]{0}', space=vmem, size = 0x400, scoped, tag = 'input window, operand 30, single buffered']
    #allocation26 [shape = 's32[1]{0}', space=sflag, size = 0x4, scoped, tag = 'scoped memory for gap_gnn_forward.1']
    #allocation27 [shape = 'u8[512]{0}', space=vmem, size = 0x400, scoped, tag = 'input window, operand 31, single buffered']
    #allocation28 [shape = 'u8[512]{0}', space=vmem, size = 0x400, scoped, tag = 'input window, operand 32, single buffered']
    #allocation29 [shape = 's32[1]{0}', space=sflag, size = 0x4, scoped, tag = 'scoped memory for gap_gnn_forward.1']
    #allocation30 [shape = 'u8[1024]{0}', space=vmem, size = 0x400, scoped, tag = 'input window, operand 34, single buffered']
    #allocation31 [shape = 'u8[98304]{0}', space=vmem, size = 0x18000, scoped, tag = 'input window, operand 36, single buffered']
    #allocation32 [shape = 's32[1]{0}', space=sflag, size = 0x4, scoped, tag = 'scoped memory for gap_gnn_forward.1']
    #allocation33 [shape = 'u8[98304]{0}', space=vmem, size = 0x18000, scoped, tag = 'input window, operand 37, single buffered']
    #allocation34 [shape = 'u8[1536]{0}', space=vmem, size = 0x800, scoped, tag = 'input window, operand 38, single buffered']
    #allocation35 [shape = 's32[1]{0}', space=sflag, size = 0x4, scoped, tag = 'scoped memory for gap_gnn_forward.1']
    #allocation36 [shape = 'u8[512]{0}', space=vmem, size = 0x400, scoped, tag = 'input window, operand 39, single buffered']
    #allocation37 [shape = 'u8[512]{0}', space=vmem, size = 0x400, scoped, tag = 'input window, operand 40, single buffered']
    #allocation38 [shape = 's32[1]{0}', space=sflag, size = 0x4, scoped, tag = 'scoped memory for gap_gnn_forward.1']
    #allocation39 [shape = 'u8[512]{0}', space=vmem, size = 0x400, scoped, tag = 'input window, operand 41, single buffered']
    #allocation40 [shape = 'u8[2048]{0}', space=vmem, size = 0x800, scoped, tag = 'input window, operand 42, single buffered']
    #allocation41 [shape = 's32[1]{0}', space=sflag, size = 0x4, scoped, tag = 'scoped memory for gap_gnn_forward.1']
    #allocation42 [shape = 'u8[512]{0}', space=vmem, size = 0x400, scoped, tag = 'input window, operand 43, single buffered']
    #allocation43 [shape = 'u8[3072]{0}', space=vmem, size = 0xc00, scoped, tag = 'input window, operand 44, single buffered']
    #allocation44 [shape = 's32[1]{0}', space=sflag, size = 0x4, scoped, tag = 'scoped memory for gap_gnn_forward.1']
    #allocation45 [shape = 'u8[98304]{0}', space=vmem, size = 0x18000, scoped, tag = 'input window, operand 45, single buffered']
    #allocation46 [shape = 'u8[512]{0}', space=vmem, size = 0x400, scoped, tag = 'input window, operand 47, single buffered']
    #allocation47 [shape = 's32[1]{0}', space=sflag, size = 0x4, scoped, tag = 'scoped memory for gap_gnn_forward.1']
    #allocation48 [shape = 'u8[6144]{0}', space=vmem, size = 0x1800, scoped, tag = 'input window, operand 48, single buffered']
    #allocation49 [shape = 'u8[512]{0}', space=vmem, size = 0x400, scoped, tag = 'input window, operand 49, single buffered']
    #allocation50 [shape = 's32[1]{0}', space=sflag, size = 0x4, scoped, tag = 'scoped memory for gap_gnn_forward.1']
    #allocation51 [shape = 'u8[512]{0}', space=vmem, size = 0x400, scoped, tag = 'input window, operand 50, single buffered']
    #allocation52 [shape = 'u8[98304]{0}', space=vmem, size = 0x18000, scoped, tag = 'input window, operand 52, single buffered']
    #allocation53 [shape = 's32[1]{0}', space=sflag, size = 0x4, scoped, tag = 'scoped memory for gap_gnn_forward.1']
    #allocation54 [shape = 'u8[393216]{0}', space=vmem, size = 0x60000, scoped, tag = 'input window, operand 53, single buffered']
    %124 = vsyncpa [#allocation3], 0
    %125 = vsyncpa [#allocation5], 0
    %126 = vsyncpa [#allocation8], 0
    %127 = vsyncpa [#allocation11], 0
    %128 = vsyncpa [#allocation14], 0
    %129 = vsyncpa [#allocation17], 0
    %130 = vsyncpa [#allocation20], 0
    %131 = vsyncpa [#allocation23], 0
    %132 = vsyncpa [#allocation26], 0
    %133 = vsyncpa [#allocation29], 0
    %134 = vsyncpa [#allocation32], 0
    %135 = vsyncpa [#allocation35], 0
    %136 = vsyncpa [#allocation38], 0
    %137 = vsyncpa [#allocation41], 0
    %138 = vsyncpa [#allocation44], 0
    %139 = vsyncpa [#allocation47], 0
    %140 = vsyncpa [#allocation50], 0
    %141 = vsyncpa [#allocation53], 0
    // Predicated region
    $region2: #{gap_gnn_forward.1} parent=1 // pred_check
      _
    $region3: #{gap_gnn_forward.1} parent=1 // pred_check_branch
      %143 = sbr.rel (0) target = $region5
    $region4: #{gap_gnn_forward.1} parent=1 // pred_region
      %s145 = ssub.s32 64, 64
      %146 = vsyncadd [#allocation3], %s145
      %s148 = sshll.u32 [#allocation2], 4
      %s149 = int_to_ptr.vmem [resolvable:$true] %s148
      %151 = dma.hbm_to_vmem [thread:$0]  %s1, 64, %s149, [#allocation3]
    $region5: #{gap_gnn_forward.1} parent=1 // pred_fallthru
      _
    // Predicated region
    $region6: #{gap_gnn_forward.1} parent=1 // pred_check
      _
    $region7: #{gap_gnn_forward.1} parent=1 // pred_check_branch
      %153 = sbr.rel (0) target = $region9
    $region8: #{gap_gnn_forward.1} parent=1 // pred_region
      %s155 = ssub.s32 64, 64
      %156 = vsyncadd [#allocation5], %s155
      %s158 = sshll.u32 [#allocation4], 4
      %s159 = int_to_ptr.vmem [resolvable:$true] %s158
      %161 = dma.hbm_to_vmem [thread:$0]  %s3, 64, %s159, [#allocation5]
    $region9: #{gap_gnn_forward.1} parent=1 // pred_fallthru
      _
    // Predicated region
    $region10: #{gap_gnn_forward.1} parent=1 // pred_check
      _
    $region11: #{gap_gnn_forward.1} parent=1 // pred_check_branch
      %163 = sbr.rel (0) target = $region13
    $region12: #{gap_gnn_forward.1} parent=1 // pred_region
      _
    $region13: #{gap_gnn_forward.1} parent=1 // pred_fallthru
      _
    // Predicated region
    $region14: #{gap_gnn_forward.1} parent=1 // pred_check
      _
    $region15: #{gap_gnn_forward.1} parent=1 // pred_check_branch
      %165 = sbr.rel (0) target = $region17
    $region16: #{gap_gnn_forward.1} parent=1 // pred_region
      _
    $region17: #{gap_gnn_forward.1} parent=1 // pred_fallthru
      _
    // Predicated region
    $region18: #{gap_gnn_forward.1} parent=1 // pred_check
      _
    $region19: #{gap_gnn_forward.1} parent=1 // pred_check_branch
      %167 = sbr.rel (0) target = $region21
    $region20: #{gap_gnn_forward.1} parent=1 // pred_region
      _
    $region21: #{gap_gnn_forward.1} parent=1 // pred_fallthru
      _
    // Predicated region
    $region22: #{gap_gnn_forward.1} parent=1 // pred_check
      _
    $region23: #{gap_gnn_forward.1} parent=1 // pred_check_branch
      %169 = sbr.rel (0) target = $region25
    $region24: #{gap_gnn_forward.1} parent=1 // pred_region
      _
    $region25: #{gap_gnn_forward.1} parent=1 // pred_fallthru
      _
    // Predicated region
    $region26: #{gap_gnn_forward.1} parent=1 // pred_check
      _
    $region27: #{gap_gnn_forward.1} parent=1 // pred_check_branch
      %171 = sbr.rel (0) target = $region29
    $region28: #{gap_gnn_forward.1} parent=1 // pred_region
      _
    $region29: #{gap_gnn_forward.1} parent=1 // pred_fallthru
      _
    // Predicated region
    $region30: #{gap_gnn_forward.1} parent=1 // pred_check
      _
    $region31: #{gap_gnn_forward.1} parent=1 // pred_check_branch
      %173 = sbr.rel (0) target = $region33
    $region32: #{gap_gnn_forward.1} parent=1 // pred_region
      _
    $region33: #{gap_gnn_forward.1} parent=1 // pred_fallthru
      _
    // Predicated region
    $region34: #{gap_gnn_forward.1} parent=1 // pred_check
      _
    $region35: #{gap_gnn_forward.1} parent=1 // pred_check_branch
      %175 = sbr.rel (0) target = $region37
    $region36: #{gap_gnn_forward.1} parent=1 // pred_region
      _
    $region37: #{gap_gnn_forward.1} parent=1 // pred_fallthru
      _
    // Predicated region
    $region38: #{gap_gnn_forward.1} parent=1 // pred_check
      _
    $region39: #{gap_gnn_forward.1} parent=1 // pred_check_branch
      %177 = sbr.rel (0) target = $region41
    $region40: #{gap_gnn_forward.1} parent=1 // pred_region
      %s179 = ssub.s32 384, 384
      %180 = vsyncadd [#allocation5], %s179
      %s181 = sshll.u32 [#allocation6], 4
      %s182 = int_to_ptr.vmem [resolvable:$true] %s181
      %187 = dma.hbm_to_vmem [thread:$0]  %s19, 384, %s182, [#allocation5], 128, 128, 8
    $region41: #{gap_gnn_forward.1} parent=1 // pred_fallthru
      _
    // Predicated region
    $region42: #{gap_gnn_forward.1} parent=1 // pred_check
      _
    $region43: #{gap_gnn_forward.1} parent=1 // pred_check_branch
      %189 = sbr.rel (0) target = $region45
    $region44: #{gap_gnn_forward.1} parent=1 // pred_region
      _
    $region45: #{gap_gnn_forward.1} parent=1 // pred_fallthru
      _
    // Predicated region
    $region46: #{gap_gnn_forward.1} parent=1 // pred_check
      _
    $region47: #{gap_gnn_forward.1} parent=1 // pred_check_branch
      %191 = sbr.rel (0) target = $region49
    $region48: #{gap_gnn_forward.1} parent=1 // pred_region
      %s193 = ssub.s32 2048, 2048
      %194 = vsyncadd [#allocation8], %s193
      %s195 = sshll.u32 [#allocation7], 4
      %s196 = int_to_ptr.vmem [resolvable:$true] %s195
      %201 = dma.hbm_to_vmem [thread:$0]  %s23, 2048, %s196, [#allocation8], 64, 64, 4
    $region49: #{gap_gnn_forward.1} parent=1 // pred_fallthru
      _
    // Predicated region
    $region50: #{gap_gnn_forward.1} parent=1 // pred_check
      _
    $region51: #{gap_gnn_forward.1} parent=1 // pred_check_branch
      %203 = sbr.rel (0) target = $region53
    $region52: #{gap_gnn_forward.1} parent=1 // pred_region
      %s205 = ssub.s32 1024, 1024
      %206 = vsyncadd [#allocation8], %s205
      %s207 = sshll.u32 [#allocation9], 4
      %s208 = int_to_ptr.vmem [resolvable:$true] %s207
      %213 = dma.hbm_to_vmem [thread:$0]  %s25, 1024, %s208, [#allocation8], 64, 64, 4
    $region53: #{gap_gnn_forward.1} parent=1 // pred_fallthru
      _
    // Predicated region
    $region54: #{gap_gnn_forward.1} parent=1 // pred_check
      _
    $region55: #{gap_gnn_forward.1} parent=1 // pred_check_branch
      %215 = sbr.rel (0) target = $region57
    $region56: #{gap_gnn_forward.1} parent=1 // pred_region
      %s217 = ssub.s32 32, 32
      %218 = vsyncadd [#allocation11], %s217
      %s220 = sshll.u32 [#allocation10], 4
      %s221 = int_to_ptr.vmem [resolvable:$true] %s220
      %223 = dma.hbm_to_vmem [thread:$0]  %s27, 32, %s221, [#allocation11]
    $region57: #{gap_gnn_forward.1} parent=1 // pred_fallthru
      _
    // Predicated region
    $region58: #{gap_gnn_forward.1} parent=1 // pred_check
      _
    $region59: #{gap_gnn_forward.1} parent=1 // pred_check_branch
      %225 = sbr.rel (0) target = $region61
    $region60: #{gap_gnn_forward.1} parent=1 // pred_region
      %s227 = ssub.s32 16, 16
      %228 = vsyncadd [#allocation11], %s227
      %s230 = sshll.u32 [#allocation12], 4
      %s231 = int_to_ptr.vmem [resolvable:$true] %s230
      %233 = dma.hbm_to_vmem [thread:$0]  %s29, 16, %s231, [#allocation11]
    $region61: #{gap_gnn_forward.1} parent=1 // pred_fallthru
      _
    // Predicated region
    $region62: #{gap_gnn_forward.1} parent=1 // pred_check
      _
    $region63: #{gap_gnn_forward.1} parent=1 // pred_check_branch
      %235 = sbr.rel (0) target = $region65
    $region64: #{gap_gnn_forward.1} parent=1 // pred_region
      %s237 = ssub.s32 16, 16
      %238 = vsyncadd [#allocation14], %s237
      %s240 = sshll.u32 [#allocation13], 4
      %s241 = int_to_ptr.vmem [resolvable:$true] %s240
      %243 = dma.hbm_to_vmem [thread:$0]  %s31, 16, %s241, [#allocation14]
    $region65: #{gap_gnn_forward.1} parent=1 // pred_fallthru
      _
    // Predicated region
    $region66: #{gap_gnn_forward.1} parent=1 // pred_check
      _
    $region67: #{gap_gnn_forward.1} parent=1 // pred_check_branch
      %245 = sbr.rel (0) target = $region69
    $region68: #{gap_gnn_forward.1} parent=1 // pred_region
      %s247 = ssub.s32 64, 64
      %248 = vsyncadd [#allocation14], %s247
      %s250 = sshll.u32 [#allocation15], 4
      %s251 = int_to_ptr.vmem [resolvable:$true] %s250
      %253 = dma.hbm_to_vmem [thread:$0]  %s33, 64, %s251, [#allocation14]
    $region69: #{gap_gnn_forward.1} parent=1 // pred_fallthru
      _
    // Predicated region
    $region70: #{gap_gnn_forward.1} parent=1 // pred_check
      _
    $region71: #{gap_gnn_forward.1} parent=1 // pred_check_branch
      %255 = sbr.rel (0) target = $region73
    $region72: #{gap_gnn_forward.1} parent=1 // pred_region
      _
    $region73: #{gap_gnn_forward.1} parent=1 // pred_fallthru
      _
    // Predicated region
    $region74: #{gap_gnn_forward.1} parent=1 // pred_check
      _
    $region75: #{gap_gnn_forward.1} parent=1 // pred_check_branch
      %257 = sbr.rel (0) target = $region77
    $region76: #{gap_gnn_forward.1} parent=1 // pred_region
      _
    $region77: #{gap_gnn_forward.1} parent=1 // pred_fallthru
      _
    // Predicated region
    $region78: #{gap_gnn_forward.1} parent=1 // pred_check
      _
    $region79: #{gap_gnn_forward.1} parent=1 // pred_check_branch
      %259 = sbr.rel (0) target = $region81
    $region80: #{gap_gnn_forward.1} parent=1 // pred_region
      _
    $region81: #{gap_gnn_forward.1} parent=1 // pred_fallthru
      _
    // Predicated region
    $region82: #{gap_gnn_forward.1} parent=1 // pred_check
      _
    $region83: #{gap_gnn_forward.1} parent=1 // pred_check_branch
      %261 = sbr.rel (0) target = $region85
    $region84: #{gap_gnn_forward.1} parent=1 // pred_region
      %s263 = ssub.s32 1024, 1024
      %264 = vsyncadd [#allocation17], %s263
      %s265 = sshll.u32 [#allocation16], 4
      %s266 = int_to_ptr.vmem [resolvable:$true] %s265
      %271 = dma.hbm_to_vmem [thread:$0]  %s41, 1024, %s266, [#allocation17], 64, 64, 4
    $region85: #{gap_gnn_forward.1} parent=1 // pred_fallthru
      _
    // Predicated region
    $region86: #{gap_gnn_forward.1} parent=1 // pred_check
      _
    $region87: #{gap_gnn_forward.1} parent=1 // pred_check_branch
      %273 = sbr.rel (0) target = $region89
    $region88: #{gap_gnn_forward.1} parent=1 // pred_region
      _
    $region89: #{gap_gnn_forward.1} parent=1 // pred_fallthru
      _
    // Predicated region
    $region90: #{gap_gnn_forward.1} parent=1 // pred_check
      _
    $region91: #{gap_gnn_forward.1} parent=1 // pred_check_branch
      %275 = sbr.rel (0) target = $region93
    $region92: #{gap_gnn_forward.1} parent=1 // pred_region
      %s277 = ssub.s32 16, 16
      %278 = vsyncadd [#allocation17], %s277
      %s280 = sshll.u32 [#allocation18], 4
      %s281 = int_to_ptr.vmem [resolvable:$true] %s280
      %283 = dma.hbm_to_vmem [thread:$0]  %s45, 16, %s281, [#allocation17]
    $region93: #{gap_gnn_forward.1} parent=1 // pred_fallthru
      _
    // Predicated region
    $region94: #{gap_gnn_forward.1} parent=1 // pred_check
      _
    $region95: #{gap_gnn_forward.1} parent=1 // pred_check_branch
      %285 = sbr.rel (0) target = $region97
    $region96: #{gap_gnn_forward.1} parent=1 // pred_region
      _
    $region97: #{gap_gnn_forward.1} parent=1 // pred_fallthru
      _
    // Predicated region
    $region98: #{gap_gnn_forward.1} parent=1 // pred_check
      _
    $region99: #{gap_gnn_forward.1} parent=1 // pred_check_branch
      %287 = sbr.rel (0) target = $region101
    $region100: #{gap_gnn_forward.1} parent=1 // pred_region
      _
    $region101: #{gap_gnn_forward.1} parent=1 // pred_fallthru
      _
    // Predicated region
    $region102: #{gap_gnn_forward.1} parent=1 // pred_check
      _
    $region103: #{gap_gnn_forward.1} parent=1 // pred_check_branch
      %289 = sbr.rel (0) target = $region105
    $region104: #{gap_gnn_forward.1} parent=1 // pred_region
      %s291 = ssub.s32 32, 32
      %292 = vsyncadd [#allocation20], %s291
      %s294 = sshll.u32 [#allocation19], 4
      %s295 = int_to_ptr.vmem [resolvable:$true] %s294
      %297 = dma.hbm_to_vmem [thread:$0]  %s51, 32, %s295, [#allocation20]
    $region105: #{gap_gnn_forward.1} parent=1 // pred_fallthru
      _
    // Predicated region
    $region106: #{gap_gnn_forward.1} parent=1 // pred_check
      _
    $region107: #{gap_gnn_forward.1} parent=1 // pred_check_branch
      %299 = sbr.rel (0) target = $region109
    $region108: #{gap_gnn_forward.1} parent=1 // pred_region
      _
    $region109: #{gap_gnn_forward.1} parent=1 // pred_fallthru
      _
    // Predicated region
    $region110: #{gap_gnn_forward.1} parent=1 // pred_check
      _
    $region111: #{gap_gnn_forward.1} parent=1 // pred_check_branch
      %301 = sbr.rel (0) target = $region113
    $region112: #{gap_gnn_forward.1} parent=1 // pred_region
      %s303 = ssub.s32 3072, 3072
      %304 = vsyncadd [#allocation20], %s303
      %s305 = sshll.u32 [#allocation21], 4
      %s306 = int_to_ptr.vmem [resolvable:$true] %s305
      %311 = dma.hbm_to_vmem [thread:$0]  %s55, 3072, %s306, [#allocation20], 64, 64, 4
    $region113: #{gap_gnn_forward.1} parent=1 // pred_fallthru
      _
    // Predicated region
    $region114: #{gap_gnn_forward.1} parent=1 // pred_check
      _
    $region115: #{gap_gnn_forward.1} parent=1 // pred_check_branch
      %313 = sbr.rel (0) target = $region117
    $region116: #{gap_gnn_forward.1} parent=1 // pred_region
      %s315 = ssub.s32 3072, 3072
      %316 = vsyncadd [#allocation23], %s315
      %s317 = sshll.u32 [#allocation22], 4
      %s318 = int_to_ptr.vmem [resolvable:$true] %s317
      %323 = dma.hbm_to_vmem [thread:$0]  %s57, 3072, %s318, [#allocation23], 192, 192, 12
    $region117: #{gap_gnn_forward.1} parent=1 // pred_fallthru
      _
    // Predicated region
    $region118: #{gap_gnn_forward.1} parent=1 // pred_check
      _
    $region119: #{gap_gnn_forward.1} parent=1 // pred_check_branch
      %325 = sbr.rel (0) target = $region121
    $region120: #{gap_gnn_forward.1} parent=1 // pred_region
      %s327 = ssub.s32 48, 48
      %328 = vsyncadd [#allocation23], %s327
      %s330 = sshll.u32 [#allocation24], 4
      %s331 = int_to_ptr.vmem [resolvable:$true] %s330
      %333 = dma.hbm_to_vmem [thread:$0]  %s59, 48, %s331, [#allocation23]
    $region121: #{gap_gnn_forward.1} parent=1 // pred_fallthru
      _
    // Predicated region
    $region122: #{gap_gnn_forward.1} parent=1 // pred_check
      _
    $region123: #{gap_gnn_forward.1} parent=1 // pred_check_branch
      %335 = sbr.rel (0) target = $region125
    $region124: #{gap_gnn_forward.1} parent=1 // pred_region
      %s337 = ssub.s32 16, 16
      %338 = vsyncadd [#allocation26], %s337
      %s340 = sshll.u32 [#allocation25], 4
      %s341 = int_to_ptr.vmem [resolvable:$true] %s340
      %343 = dma.hbm_to_vmem [thread:$0]  %s61, 16, %s341, [#allocation26]
    $region125: #{gap_gnn_forward.1} parent=1 // pred_fallthru
      _
    // Predicated region
    $region126: #{gap_gnn_forward.1} parent=1 // pred_check
      _
    $region127: #{gap_gnn_forward.1} parent=1 // pred_check_branch
      %345 = sbr.rel (0) target = $region129
    $region128: #{gap_gnn_forward.1} parent=1 // pred_region
      %s347 = ssub.s32 16, 16
      %348 = vsyncadd [#allocation26], %s347
      %s350 = sshll.u32 [#allocation27], 4
      %s351 = int_to_ptr.vmem [resolvable:$true] %s350
      %353 = dma.hbm_to_vmem [thread:$0]  %s63, 16, %s351, [#allocation26]
    $region129: #{gap_gnn_forward.1} parent=1 // pred_fallthru
      _
    // Predicated region
    $region130: #{gap_gnn_forward.1} parent=1 // pred_check
      _
    $region131: #{gap_gnn_forward.1} parent=1 // pred_check_branch
      %355 = sbr.rel (0) target = $region133
    $region132: #{gap_gnn_forward.1} parent=1 // pred_region
      %s357 = ssub.s32 16, 16
      %358 = vsyncadd [#allocation29], %s357
      %s360 = sshll.u32 [#allocation28], 4
      %s361 = int_to_ptr.vmem [resolvable:$true] %s360
      %363 = dma.hbm_to_vmem [thread:$0]  %s65, 16, %s361, [#allocation29]
    $region133: #{gap_gnn_forward.1} parent=1 // pred_fallthru
      _
    // Predicated region
    $region134: #{gap_gnn_forward.1} parent=1 // pred_check
      _
    $region135: #{gap_gnn_forward.1} parent=1 // pred_check_branch
      %365 = sbr.rel (0) target = $region137
    $region136: #{gap_gnn_forward.1} parent=1 // pred_region
      _
    $region137: #{gap_gnn_forward.1} parent=1 // pred_fallthru
      _
    // Predicated region
    $region138: #{gap_gnn_forward.1} parent=1 // pred_check
      _
    $region139: #{gap_gnn_forward.1} parent=1 // pred_check_branch
      %367 = sbr.rel (0) target = $region141
    $region140: #{gap_gnn_forward.1} parent=1 // pred_region
      %s369 = ssub.s32 32, 32
      %370 = vsyncadd [#allocation29], %s369
      %s372 = sshll.u32 [#allocation30], 4
      %s373 = int_to_ptr.vmem [resolvable:$true] %s372
      %375 = dma.hbm_to_vmem [thread:$0]  %s69, 32, %s373, [#allocation29]
    $region141: #{gap_gnn_forward.1} parent=1 // pred_fallthru
      _
    // Predicated region
    $region142: #{gap_gnn_forward.1} parent=1 // pred_check
      _
    $region143: #{gap_gnn_forward.1} parent=1 // pred_check_branch
      %377 = sbr.rel (0) target = $region145
    $region144: #{gap_gnn_forward.1} parent=1 // pred_region
      _
    $region145: #{gap_gnn_forward.1} parent=1 // pred_fallthru
      _
    // Predicated region
    $region146: #{gap_gnn_forward.1} parent=1 // pred_check
      _
    $region147: #{gap_gnn_forward.1} parent=1 // pred_check_branch
      %379 = sbr.rel (0) target = $region149
    $region148: #{gap_gnn_forward.1} parent=1 // pred_region
      %s381 = ssub.s32 3072, 3072
      %382 = vsyncadd [#allocation32], %s381
      %s383 = sshll.u32 [#allocation31], 4
      %s384 = int_to_ptr.vmem [resolvable:$true] %s383
      %389 = dma.hbm_to_vmem [thread:$0]  %s73, 3072, %s384, [#allocation32], 64, 64, 4
    $region149: #{gap_gnn_forward.1} parent=1 // pred_fallthru
      _
    // Predicated region
    $region150: #{gap_gnn_forward.1} parent=1 // pred_check
      _
    $region151: #{gap_gnn_forward.1} parent=1 // pred_check_branch
      %391 = sbr.rel (0) target = $region153
    $region152: #{gap_gnn_forward.1} parent=1 // pred_region
      %s393 = ssub.s32 3072, 3072
      %394 = vsyncadd [#allocation32], %s393
      %s395 = sshll.u32 [#allocation33], 4
      %s396 = int_to_ptr.vmem [resolvable:$true] %s395
      %401 = dma.hbm_to_vmem [thread:$0]  %s75, 3072, %s396, [#allocation32], 192, 192, 12
    $region153: #{gap_gnn_forward.1} parent=1 // pred_fallthru
      _
    // Predicated region
    $region154: #{gap_gnn_forward.1} parent=1 // pred_check
      _
    $region155: #{gap_gnn_forward.1} parent=1 // pred_check_branch
      %403 = sbr.rel (0) target = $region157
    $region156: #{gap_gnn_forward.1} parent=1 // pred_region
      %s405 = ssub.s32 48, 48
      %406 = vsyncadd [#allocation35], %s405
      %s408 = sshll.u32 [#allocation34], 4
      %s409 = int_to_ptr.vmem [resolvable:$true] %s408
      %411 = dma.hbm_to_vmem [thread:$0]  %s77, 48, %s409, [#allocation35]
    $region157: #{gap_gnn_forward.1} parent=1 // pred_fallthru
      _
    // Predicated region
    $region158: #{gap_gnn_forward.1} parent=1 // pred_check
      _
    $region159: #{gap_gnn_forward.1} parent=1 // pred_check_branch
      %413 = sbr.rel (0) target = $region161
    $region160: #{gap_gnn_forward.1} parent=1 // pred_region
      %s415 = ssub.s32 16, 16
      %416 = vsyncadd [#allocation35], %s415
      %s418 = sshll.u32 [#allocation36], 4
      %s419 = int_to_ptr.vmem [resolvable:$true] %s418
      %421 = dma.hbm_to_vmem [thread:$0]  %s79, 16, %s419, [#allocation35]
    $region161: #{gap_gnn_forward.1} parent=1 // pred_fallthru
      _
    // Predicated region
    $region162: #{gap_gnn_forward.1} parent=1 // pred_check
      _
    $region163: #{gap_gnn_forward.1} parent=1 // pred_check_branch
      %423 = sbr.rel (0) target = $region165
    $region164: #{gap_gnn_forward.1} parent=1 // pred_region
      %s425 = ssub.s32 16, 16
      %426 = vsyncadd [#allocation38], %s425
      %s428 = sshll.u32 [#allocation37], 4
      %s429 = int_to_ptr.vmem [resolvable:$true] %s428
      %431 = dma.hbm_to_vmem [thread:$0]  %s81, 16, %s429, [#allocation38]
    $region165: #{gap_gnn_forward.1} parent=1 // pred_fallthru
      _
    // Predicated region
    $region166: #{gap_gnn_forward.1} parent=1 // pred_check
      _
    $region167: #{gap_gnn_forward.1} parent=1 // pred_check_branch
      %433 = sbr.rel (0) target = $region169
    $region168: #{gap_gnn_forward.1} parent=1 // pred_region
      %s435 = ssub.s32 16, 16
      %436 = vsyncadd [#allocation38], %s435
      %s438 = sshll.u32 [#allocation39], 4
      %s439 = int_to_ptr.vmem [resolvable:$true] %s438
      %441 = dma.hbm_to_vmem [thread:$0]  %s83, 16, %s439, [#allocation38]
    $region169: #{gap_gnn_forward.1} parent=1 // pred_fallthru
      _
    // Predicated region
    $region170: #{gap_gnn_forward.1} parent=1 // pred_check
      _
    $region171: #{gap_gnn_forward.1} parent=1 // pred_check_branch
      %443 = sbr.rel (0) target = $region173
    $region172: #{gap_gnn_forward.1} parent=1 // pred_region
      %s445 = ssub.s32 64, 64
      %446 = vsyncadd [#allocation41], %s445
      %s448 = sshll.u32 [#allocation40], 4
      %s449 = int_to_ptr.vmem [resolvable:$true] %s448
      %451 = dma.hbm_to_vmem [thread:$0]  %s85, 64, %s449, [#allocation41]
    $region173: #{gap_gnn_forward.1} parent=1 // pred_fallthru
      _
    // Predicated region
    $region174: #{gap_gnn_forward.1} parent=1 // pred_check
      _
    $region175: #{gap_gnn_forward.1} parent=1 // pred_check_branch
      %453 = sbr.rel (0) target = $region177
    $region176: #{gap_gnn_forward.1} parent=1 // pred_region
      %s455 = ssub.s32 16, 16
      %456 = vsyncadd [#allocation41], %s455
      %s458 = sshll.u32 [#allocation42], 4
      %s459 = int_to_ptr.vmem [resolvable:$true] %s458
      %461 = dma.hbm_to_vmem [thread:$0]  %s87, 16, %s459, [#allocation41]
    $region177: #{gap_gnn_forward.1} parent=1 // pred_fallthru
      _
    // Predicated region
    $region178: #{gap_gnn_forward.1} parent=1 // pred_check
      _
    $region179: #{gap_gnn_forward.1} parent=1 // pred_check_branch
      %463 = sbr.rel (0) target = $region181
    $region180: #{gap_gnn_forward.1} parent=1 // pred_region
      %s465 = ssub.s32 96, 96
      %466 = vsyncadd [#allocation44], %s465
      %s468 = sshll.u32 [#allocation43], 4
      %s469 = int_to_ptr.vmem [resolvable:$true] %s468
      %471 = dma.hbm_to_vmem [thread:$0]  %s89, 96, %s469, [#allocation44]
    $region181: #{gap_gnn_forward.1} parent=1 // pred_fallthru
      _
    // Predicated region
    $region182: #{gap_gnn_forward.1} parent=1 // pred_check
      _
    $region183: #{gap_gnn_forward.1} parent=1 // pred_check_branch
      %473 = sbr.rel (0) target = $region185
    $region184: #{gap_gnn_forward.1} parent=1 // pred_region
      %s475 = ssub.s32 3072, 3072
      %476 = vsyncadd [#allocation44], %s475
      %s477 = sshll.u32 [#allocation45], 4
      %s478 = int_to_ptr.vmem [resolvable:$true] %s477
      %483 = dma.hbm_to_vmem [thread:$0]  %s91, 3072, %s478, [#allocation44], 64, 64, 4
    $region185: #{gap_gnn_forward.1} parent=1 // pred_fallthru
      _
    // Predicated region
    $region186: #{gap_gnn_forward.1} parent=1 // pred_check
      _
    $region187: #{gap_gnn_forward.1} parent=1 // pred_check_branch
      %485 = sbr.rel (0) target = $region189
    $region188: #{gap_gnn_forward.1} parent=1 // pred_region
      _
    $region189: #{gap_gnn_forward.1} parent=1 // pred_fallthru
      _
    // Predicated region
    $region190: #{gap_gnn_forward.1} parent=1 // pred_check
      _
    $region191: #{gap_gnn_forward.1} parent=1 // pred_check_branch
      %487 = sbr.rel (0) target = $region193
    $region192: #{gap_gnn_forward.1} parent=1 // pred_region
      %s489 = ssub.s32 16, 16
      %490 = vsyncadd [#allocation47], %s489
      %s492 = sshll.u32 [#allocation46], 4
      %s493 = int_to_ptr.vmem [resolvable:$true] %s492
      %495 = dma.hbm_to_vmem [thread:$0]  %s95, 16, %s493, [#allocation47]
    $region193: #{gap_gnn_forward.1} parent=1 // pred_fallthru
      _
    // Predicated region
    $region194: #{gap_gnn_forward.1} parent=1 // pred_check
      _
    $region195: #{gap_gnn_forward.1} parent=1 // pred_check_branch
      %497 = sbr.rel (0) target = $region197
    $region196: #{gap_gnn_forward.1} parent=1 // pred_region
      %s499 = ssub.s32 192, 192
      %500 = vsyncadd [#allocation47], %s499
      %s502 = sshll.u32 [#allocation48], 4
      %s503 = int_to_ptr.vmem [resolvable:$true] %s502
      %505 = dma.hbm_to_vmem [thread:$0]  %s97, 192, %s503, [#allocation47]
    $region197: #{gap_gnn_forward.1} parent=1 // pred_fallthru
      _
    // Predicated region
    $region198: #{gap_gnn_forward.1} parent=1 // pred_check
      _
    $region199: #{gap_gnn_forward.1} parent=1 // pred_check_branch
      %507 = sbr.rel (0) target = $region201
    $region200: #{gap_gnn_forward.1} parent=1 // pred_region
      %s509 = ssub.s32 16, 16
      %510 = vsyncadd [#allocation50], %s509
      %s512 = sshll.u32 [#allocation49], 4
      %s513 = int_to_ptr.vmem [resolvable:$true] %s512
      %515 = dma.hbm_to_vmem [thread:$0]  %s99, 16, %s513, [#allocation50]
    $region201: #{gap_gnn_forward.1} parent=1 // pred_fallthru
      _
    // Predicated region
    $region202: #{gap_gnn_forward.1} parent=1 // pred_check
      _
    $region203: #{gap_gnn_forward.1} parent=1 // pred_check_branch
      %517 = sbr.rel (0) target = $region205
    $region204: #{gap_gnn_forward.1} parent=1 // pred_region
      %s519 = ssub.s32 16, 16
      %520 = vsyncadd [#allocation50], %s519
      %s522 = sshll.u32 [#allocation51], 4
      %s523 = int_to_ptr.vmem [resolvable:$true] %s522
      %525 = dma.hbm_to_vmem [thread:$0]  %s101, 16, %s523, [#allocation50]
    $region205: #{gap_gnn_forward.1} parent=1 // pred_fallthru
      _
    // Predicated region
    $region206: #{gap_gnn_forward.1} parent=1 // pred_check
      _
    $region207: #{gap_gnn_forward.1} parent=1 // pred_check_branch
      %527 = sbr.rel (0) target = $region209
    $region208: #{gap_gnn_forward.1} parent=1 // pred_region
      _
    $region209: #{gap_gnn_forward.1} parent=1 // pred_fallthru
      _
    // Predicated region
    $region210: #{gap_gnn_forward.1} parent=1 // pred_check
      _
    $region211: #{gap_gnn_forward.1} parent=1 // pred_check_branch
      %529 = sbr.rel (0) target = $region213
    $region212: #{gap_gnn_forward.1} parent=1 // pred_region
      %s531 = ssub.s32 3072, 3072
      %532 = vsyncadd [#allocation53], %s531
      %s533 = sshll.u32 [#allocation52], 4
      %s534 = int_to_ptr.vmem [resolvable:$true] %s533
      %539 = dma.hbm_to_vmem [thread:$0]  %s105, 3072, %s534, [#allocation53], 64, 64, 4
    $region213: #{gap_gnn_forward.1} parent=1 // pred_fallthru
      _
    // Predicated region
    $region214: #{gap_gnn_forward.1} parent=1 // pred_check
      _
    $region215: #{gap_gnn_forward.1} parent=1 // pred_check_branch
      %541 = sbr.rel (0) target = $region217
    $region216: #{gap_gnn_forward.1} parent=1 // pred_region
      %s543 = ssub.s32 12288, 12288
      %544 = vsyncadd [#allocation53], %s543
      %s545 = sshll.u32 [#allocation54], 4
      %s546 = int_to_ptr.vmem [resolvable:$true] %s545
      %551 = dma.hbm_to_vmem [thread:$0]  %s107, 12288, %s546, [#allocation53], 768, 768, 48
    $region217: #{gap_gnn_forward.1} parent=1 // pred_fallthru
      _
    // Predicated region
    $region218: #{gap_gnn_forward.1} parent=1 // pred_check
      _
    $region219: #{gap_gnn_forward.1} parent=1 // pred_check_branch
      %553 = sbr.rel (0) target = $region221
    $region220: #{gap_gnn_forward.1} parent=1 // pred_region
      _
    $region221: #{gap_gnn_forward.1} parent=1 // pred_fallthru
      _
    // Predicated region
    $region222: #{gap_gnn_forward.1} parent=1 // pred_check
      _
    $region223: #{gap_gnn_forward.1} parent=1 // pred_check_branch
      %555 = sbr.rel (0) target = $region225
    $region224: #{gap_gnn_forward.1} parent=1 // pred_region
      _
    $region225: #{gap_gnn_forward.1} parent=1 // pred_fallthru
      _
    // Predicated region
    $region226: #{gap_gnn_forward.1} parent=1 // pred_check
      _
    $region227: #{gap_gnn_forward.1} parent=1 // pred_check_branch
      %557 = sbr.rel (0) target = $region229
    $region228: #{gap_gnn_forward.1} parent=1 // pred_region
      _
    $region229: #{gap_gnn_forward.1} parent=1 // pred_fallthru
      _
    // Predicated region
    $region230: #{gap_gnn_forward.1} parent=1 // pred_check
      _
    $region231: #{gap_gnn_forward.1} parent=1 // pred_check_branch
      %559 = sbr.rel (0) target = $region233
    $region232: #{gap_gnn_forward.1} parent=1 // pred_region
      _
    $region233: #{gap_gnn_forward.1} parent=1 // pred_fallthru
      _
    // Predicated region
    $region234: #{gap_gnn_forward.1} parent=1 // pred_check
      _
    $region235: #{gap_gnn_forward.1} parent=1 // pred_check_branch
      %561 = sbr.rel (0) target = $region237
    $region236: #{gap_gnn_forward.1} parent=1 // pred_region
      _
    $region237: #{gap_gnn_forward.1} parent=1 // pred_fallthru
      _
    // Predicated region
    $region238: #{gap_gnn_forward.1} parent=1 // pred_check
      _
    $region239: #{gap_gnn_forward.1} parent=1 // pred_check_branch
      %563 = sbr.rel (0) target = $region241
    $region240: #{gap_gnn_forward.1} parent=1 // pred_region
      %564 = dma.done [#allocation3], 64
    $region241: #{gap_gnn_forward.1} parent=1 // pred_fallthru
      _
    // Predicated region
    $region242: #{gap_gnn_forward.1} parent=1 // pred_check
      _
    $region243: #{gap_gnn_forward.1} parent=1 // pred_check_branch
      %566 = sbr.rel (0) target = $region245
    $region244: #{gap_gnn_forward.1} parent=1 // pred_region
      %567 = dma.done [#allocation5], 64
    $region245: #{gap_gnn_forward.1} parent=1 // pred_fallthru
      _
    // Predicated region
    $region246: #{gap_gnn_forward.1} parent=1 // pred_check
      _
    $region247: #{gap_gnn_forward.1} parent=1 // pred_check_branch
      %569 = sbr.rel (0) target = $region249
    $region248: #{gap_gnn_forward.1} parent=1 // pred_region
      %570 = dma.done [#allocation5], 384
    $region249: #{gap_gnn_forward.1} parent=1 // pred_fallthru
      _
    // Predicated region
    $region250: #{gap_gnn_forward.1} parent=1 // pred_check
      _
    $region251: #{gap_gnn_forward.1} parent=1 // pred_check_branch
      %572 = sbr.rel (0) target = $region253
    $region252: #{gap_gnn_forward.1} parent=1 // pred_region
      %573 = dma.done [#allocation8], 2048
    $region253: #{gap_gnn_forward.1} parent=1 // pred_fallthru
      _
    // Predicated region
    $region254: #{gap_gnn_forward.1} parent=1 // pred_check
      _
    $region255: #{gap_gnn_forward.1} parent=1 // pred_check_branch
      %575 = sbr.rel (0) target = $region257
    $region256: #{gap_gnn_forward.1} parent=1 // pred_region
      %576 = dma.done [#allocation8], 1024
    $region257: #{gap_gnn_forward.1} parent=1 // pred_fallthru
      _
    // Predicated region
    $region258: #{gap_gnn_forward.1} parent=1 // pred_check
      _
    $region259: #{gap_gnn_forward.1} parent=1 // pred_check_branch
      %578 = sbr.rel (0) target = $region261
    $region260: #{gap_gnn_forward.1} parent=1 // pred_region
      %579 = dma.done [#allocation11], 32
    $region261: #{gap_gnn_forward.1} parent=1 // pred_fallthru
      _
    // Predicated region
    $region262: #{gap_gnn_forward.1} parent=1 // pred_check
      _
    $region263: #{gap_gnn_forward.1} parent=1 // pred_check_branch
      %581 = sbr.rel (0) target = $region265
    $region264: #{gap_gnn_forward.1} parent=1 // pred_region
      %582 = dma.done [#allocation11], 16
    $region265: #{gap_gnn_forward.1} parent=1 // pred_fallthru
      _
    // Predicated region
    $region266: #{gap_gnn_forward.1} parent=1 // pred_check
      _
    $region267: #{gap_gnn_forward.1} parent=1 // pred_check_branch
      %584 = sbr.rel (0) target = $region269
    $region268: #{gap_gnn_forward.1} parent=1 // pred_region
      %585 = dma.done [#allocation14], 16
    $region269: #{gap_gnn_forward.1} parent=1 // pred_fallthru
      _
    // Predicated region
    $region270: #{gap_gnn_forward.1} parent=1 // pred_check
      _
    $region271: #{gap_gnn_forward.1} parent=1 // pred_check_branch
      %587 = sbr.rel (0) target = $region273
    $region272: #{gap_gnn_forward.1} parent=1 // pred_region
      %588 = dma.done [#allocation14], 64
    $region273: #{gap_gnn_forward.1} parent=1 // pred_fallthru
      _
    // Predicated region
    $region274: #{gap_gnn_forward.1} parent=1 // pred_check
      _
    $region275: #{gap_gnn_forward.1} parent=1 // pred_check_branch
      %590 = sbr.rel (0) target = $region277
    $region276: #{gap_gnn_forward.1} parent=1 // pred_region
      %591 = dma.done [#allocation17], 1024
    $region277: #{gap_gnn_forward.1} parent=1 // pred_fallthru
      _
    // Predicated region
    $region278: #{gap_gnn_forward.1} parent=1 // pred_check
      _
    $region279: #{gap_gnn_forward.1} parent=1 // pred_check_branch
      %593 = sbr.rel (0) target = $region281
    $region280: #{gap_gnn_forward.1} parent=1 // pred_region
      %594 = dma.done [#allocation17], 16
    $region281: #{gap_gnn_forward.1} parent=1 // pred_fallthru
      _
    // Predicated region
    $region282: #{gap_gnn_forward.1} parent=1 // pred_check
      _
    $region283: #{gap_gnn_forward.1} parent=1 // pred_check_branch
      %596 = sbr.rel (0) target = $region285
    $region284: #{gap_gnn_forward.1} parent=1 // pred_region
      %597 = dma.done [#allocation20], 32
    $region285: #{gap_gnn_forward.1} parent=1 // pred_fallthru
      _
    // Predicated region
    $region286: #{gap_gnn_forward.1} parent=1 // pred_check
      _
    $region287: #{gap_gnn_forward.1} parent=1 // pred_check_branch
      %599 = sbr.rel (0) target = $region289
    $region288: #{gap_gnn_forward.1} parent=1 // pred_region
      %600 = dma.done [#allocation20], 3072
    $region289: #{gap_gnn_forward.1} parent=1 // pred_fallthru
      _
    // Predicated region
    $region290: #{gap_gnn_forward.1} parent=1 // pred_check
      _
    $region291: #{gap_gnn_forward.1} parent=1 // pred_check_branch
      %602 = sbr.rel (0) target = $region293
    $region292: #{gap_gnn_forward.1} parent=1 // pred_region
      %603 = dma.done [#allocation23], 3072
    $region293: #{gap_gnn_forward.1} parent=1 // pred_fallthru
      _
    // Predicated region
    $region294: #{gap_gnn_forward.1} parent=1 // pred_check
      _
    $region295: #{gap_gnn_forward.1} parent=1 // pred_check_branch
      %605 = sbr.rel (0) target = $region297
    $region296: #{gap_gnn_forward.1} parent=1 // pred_region
      %606 = dma.done [#allocation23], 48
    $region297: #{gap_gnn_forward.1} parent=1 // pred_fallthru
      _
    // Predicated region
    $region298: #{gap_gnn_forward.1} parent=1 // pred_check
      _
    $region299: #{gap_gnn_forward.1} parent=1 // pred_check_branch
      %608 = sbr.rel (0) target = $region301
    $region300: #{gap_gnn_forward.1} parent=1 // pred_region
      %609 = dma.done [#allocation26], 16
    $region301: #{gap_gnn_forward.1} parent=1 // pred_fallthru
      _
    // Predicated region
    $region302: #{gap_gnn_forward.1} parent=1 // pred_check
      _
    $region303: #{gap_gnn_forward.1} parent=1 // pred_check_branch
      %611 = sbr.rel (0) target = $region305
    $region304: #{gap_gnn_forward.1} parent=1 // pred_region
      %612 = dma.done [#allocation26], 16
    $region305: #{gap_gnn_forward.1} parent=1 // pred_fallthru
      _
    // Predicated region
    $region306: #{gap_gnn_forward.1} parent=1 // pred_check
      _
    $region307: #{gap_gnn_forward.1} parent=1 // pred_check_branch
      %614 = sbr.rel (0) target = $region309
    $region308: #{gap_gnn_forward.1} parent=1 // pred_region
      %615 = dma.done [#allocation29], 16
    $region309: #{gap_gnn_forward.1} parent=1 // pred_fallthru
      _
    // Predicated region
    $region310: #{gap_gnn_forward.1} parent=1 // pred_check
      _
    $region311: #{gap_gnn_forward.1} parent=1 // pred_check_branch
      %617 = sbr.rel (0) target = $region313
    $region312: #{gap_gnn_forward.1} parent=1 // pred_region
      %618 = dma.done [#allocation29], 32
    $region313: #{gap_gnn_forward.1} parent=1 // pred_fallthru
      _
    // Predicated region
    $region314: #{gap_gnn_forward.1} parent=1 // pred_check
      _
    $region315: #{gap_gnn_forward.1} parent=1 // pred_check_branch
      %620 = sbr.rel (0) target = $region317
    $region316: #{gap_gnn_forward.1} parent=1 // pred_region
      %621 = dma.done [#allocation32], 3072
    $region317: #{gap_gnn_forward.1} parent=1 // pred_fallthru
      _
    // Predicated region
    $region318: #{gap_gnn_forward.1} parent=1 // pred_check
      _
    $region319: #{gap_gnn_forward.1} parent=1 // pred_check_branch
      %623 = sbr.rel (0) target = $region321
    $region320: #{gap_gnn_forward.1} parent=1 // pred_region
      %624 = dma.done [#allocation32], 3072
    $region321: #{gap_gnn_forward.1} parent=1 // pred_fallthru
      _
    // Predicated region
    $region322: #{gap_gnn_forward.1} parent=1 // pred_check
      _
    $region323: #{gap_gnn_forward.1} parent=1 // pred_check_branch
      %626 = sbr.rel (0) target = $region325
    $region324: #{gap_gnn_forward.1} parent=1 // pred_region
      %627 = dma.done [#allocation35], 48
    $region325: #{gap_gnn_forward.1} parent=1 // pred_fallthru
      _
    // Predicated region
    $region326: #{gap_gnn_forward.1} parent=1 // pred_check
      _
    $region327: #{gap_gnn_forward.1} parent=1 // pred_check_branch
      %629 = sbr.rel (0) target = $region329
    $region328: #{gap_gnn_forward.1} parent=1 // pred_region
      %630 = dma.done [#allocation35], 16
    $region329: #{gap_gnn_forward.1} parent=1 // pred_fallthru
      _
    // Predicated region
    $region330: #{gap_gnn_forward.1} parent=1 // pred_check
      _
    $region331: #{gap_gnn_forward.1} parent=1 // pred_check_branch
      %632 = sbr.rel (0) target = $region333
    $region332: #{gap_gnn_forward.1} parent=1 // pred_region
      %633 = dma.done [#allocation38], 16
    $region333: #{gap_gnn_forward.1} parent=1 // pred_fallthru
      _
    // Predicated region
    $region334: #{gap_gnn_forward.1} parent=1 // pred_check
      _
    $region335: #{gap_gnn_forward.1} parent=1 // pred_check_branch
      %635 = sbr.rel (0) target = $region337
    $region336: #{gap_gnn_forward.1} parent=1 // pred_region
      %636 = dma.done [#allocation38], 16
    $region337: #{gap_gnn_forward.1} parent=1 // pred_fallthru
      _
    // Predicated region
    $region338: #{gap_gnn_forward.1} parent=1 // pred_check
      _
    $region339: #{gap_gnn_forward.1} parent=1 // pred_check_branch
      %638 = sbr.rel (0) target = $region341
    $region340: #{gap_gnn_forward.1} parent=1 // pred_region
      %639 = dma.done [#allocation41], 64
    $region341: #{gap_gnn_forward.1} parent=1 // pred_fallthru
      _
    // Predicated region
    $region342: #{gap_gnn_forward.1} parent=1 // pred_check
      _
    $region343: #{gap_gnn_forward.1} parent=1 // pred_check_branch
      %641 = sbr.rel (0) target = $region345
    $region344: #{gap_gnn_forward.1} parent=1 // pred_region
      %642 = dma.done [#allocation41], 16
    $region345: #{gap_gnn_forward.1} parent=1 // pred_fallthru
      _
    // Predicated region
    $region346: #{gap_gnn_forward.1} parent=1 // pred_check
      _
    $region347: #{gap_gnn_forward.1} parent=1 // pred_check_branch
      %644 = sbr.rel (0) target = $region349
    $region348: #{gap_gnn_forward.1} parent=1 // pred_region
      %645 = dma.done [#allocation44], 96
    $region349: #{gap_gnn_forward.1} parent=1 // pred_fallthru
      _
    // Predicated region
    $region350: #{gap_gnn_forward.1} parent=1 // pred_check
      _
    $region351: #{gap_gnn_forward.1} parent=1 // pred_check_branch
      %647 = sbr.rel (0) target = $region353
    $region352: #{gap_gnn_forward.1} parent=1 // pred_region
      %648 = dma.done [#allocation44], 3072
    $region353: #{gap_gnn_forward.1} parent=1 // pred_fallthru
      _
    // Predicated region
    $region354: #{gap_gnn_forward.1} parent=1 // pred_check
      _
    $region355: #{gap_gnn_forward.1} parent=1 // pred_check_branch
      %650 = sbr.rel (0) target = $region357
    $region356: #{gap_gnn_forward.1} parent=1 // pred_region
      %651 = dma.done [#allocation47], 16
    $region357: #{gap_gnn_forward.1} parent=1 // pred_fallthru
      _
    // Predicated region
    $region358: #{gap_gnn_forward.1} parent=1 // pred_check
      _
    $region359: #{gap_gnn_forward.1} parent=1 // pred_check_branch
      %653 = sbr.rel (0) target = $region361
    $region360: #{gap_gnn_forward.1} parent=1 // pred_region
      %654 = dma.done [#allocation47], 192
    $region361: #{gap_gnn_forward.1} parent=1 // pred_fallthru
      _
    // Predicated region
    $region362: #{gap_gnn_forward.1} parent=1 // pred_check
      _
    $region363: #{gap_gnn_forward.1} parent=1 // pred_check_branch
      %656 = sbr.rel (0) target = $region365
    $region364: #{gap_gnn_forward.1} parent=1 // pred_region
      %657 = dma.done [#allocation50], 16
    $region365: #{gap_gnn_forward.1} parent=1 // pred_fallthru
      _
    // Predicated region
    $region366: #{gap_gnn_forward.1} parent=1 // pred_check
      _
    $region367: #{gap_gnn_forward.1} parent=1 // pred_check_branch
      %659 = sbr.rel (0) target = $region369
    $region368: #{gap_gnn_forward.1} parent=1 // pred_region
      %660 = dma.done [#allocation50], 16
    $region369: #{gap_gnn_forward.1} parent=1 // pred_fallthru
      _
    // Predicated region
    $region370: #{gap_gnn_forward.1} parent=1 // pred_check
      _
    $region371: #{gap_gnn_forward.1} parent=1 // pred_check_branch
      %662 = sbr.rel (0) target = $region373
    $region372: #{gap_gnn_forward.1} parent=1 // pred_region
      %663 = dma.done [#allocation53], 3072
    $region373: #{gap_gnn_forward.1} parent=1 // pred_fallthru
      _
    // Predicated region
    $region374: #{gap_gnn_forward.1} parent=1 // pred_check
      _
    $region375: #{gap_gnn_forward.1} parent=1 // pred_check_branch
      %665 = sbr.rel (0) target = $region377
    $region376: #{gap_gnn_forward.1} parent=1 // pred_region
      %666 = dma.done [#allocation53], 12288
    $region377: #{gap_gnn_forward.1} parent=1 // pred_fallthru
      _
    %v668 = vld [vmem:[%s35] sm:$0xff]
    %v669 = vld [vmem:[%s35 + $0x8] sm:$0xf]
    %v670 = vld [vmem:[%s35 + $0xc] sm:$0xff]
    %v671 = vld [vmem:[%s35 + $0x14] sm:$0xf]
    %v672 = vld [vmem:[%s35 + $0x18] sm:$0xff]
    %v673 = vld [vmem:[%s35 + $0x20] sm:$0xf]
    %v674 = vld [vmem:[%s39] sm:$0xf]
    %v675 = vld [vmem:[%s39 + $0x4] sm:$0xf]
    %v676 = vld [vmem:[%s39 + $0x8] sm:$0xf]
    %v677 = vld [vmem:[%s39 + $0xc] sm:$0xf]
    %v678 = vld [vmem:[%s39 + $0x10] sm:$0xf]
    %v679 = vld [vmem:[%s39 + $0x14] sm:$0xf]
    %v680 = vld [vmem:[%s39 + $0x18] sm:$0xf]
    %v681 = vld [vmem:[%s39 + $0x1c] sm:$0xf]
    %v682 = vld [vmem:[%s39 + $0x20] sm:$0xf]
    %v683 = vld [vmem:[%s39 + $0x24] sm:$0xf]
    %v684 = vld [vmem:[%s39 + $0x28] sm:$0xf]
    %v685 = vld [vmem:[%s39 + $0x2c] sm:$0xf]
    %v686 = vld [vmem:[%s39 + $0x30] sm:$0xf]
    %v687 = vld [vmem:[%s39 + $0x34] sm:$0xf]
    %v688 = vld [vmem:[%s39 + $0x38] sm:$0xf]
    %v689 = vld [vmem:[%s39 + $0x3c] sm:$0xf]
    %v690 = vld [vmem:[%s39 + $0x40] sm:$0xf]
    %v691 = vld [vmem:[%s39 + $0x44] sm:$0xf]
    %v692 = vld [vmem:[%s39 + $0x48] sm:$0xf]
    %v693 = vld [vmem:[%s39 + $0x4c] sm:$0xf]
    %v694 = vld [vmem:[%s39 + $0x50] sm:$0xf]
    %v695 = vld [vmem:[%s39 + $0x54] sm:$0xf]
    %v696 = vld [vmem:[%s39 + $0x58] sm:$0xf]
    %v697 = vld [vmem:[%s39 + $0x5c] sm:$0xf]
    %v698 = vld [vmem:[%s39 + $0x60] sm:$0xf]
    %v699 = vld [vmem:[%s39 + $0x64] sm:$0xf]
    %v700 = vld [vmem:[%s39 + $0x68] sm:$0xf]
    %v701 = vld [vmem:[%s39 + $0x6c] sm:$0xf]
    %v702 = vld [vmem:[%s39 + $0x70] sm:$0xf]
    %v703 = vld [vmem:[%s39 + $0x74] sm:$0xf]
    %v704 = vld [vmem:[%s39 + $0x78] sm:$0xf]
    %v705 = vld [vmem:[%s39 + $0x7c] sm:$0xf]
    %v706 = vld [vmem:[%s39 + $0x80] sm:$0xf]
    %v707 = vld [vmem:[%s39 + $0x84] sm:$0xf]
    %v708 = vld [vmem:[%s39 + $0x88] sm:$0xf]
    %v709 = vld [vmem:[%s39 + $0x8c] sm:$0xf]
    %v710 = vld [vmem:[%s39 + $0x90] sm:$0xf]
    %v711 = vld [vmem:[%s39 + $0x94] sm:$0xf]
    %v712 = vld [vmem:[%s39 + $0x98] sm:$0xf]
    %v713 = vld [vmem:[%s39 + $0x9c] sm:$0xf]
    %v714 = vld [vmem:[%s39 + $0xa0] sm:$0xf]
    %v715 = vld [vmem:[%s39 + $0xa4] sm:$0xf]
    %v716 = vld [vmem:[%s39 + $0xa8] sm:$0xf]
    %v717 = vld [vmem:[%s39 + $0xac] sm:$0xf]
    %v718 = vld [vmem:[%s39 + $0xb0] sm:$0xf]
    %v719 = vld [vmem:[%s39 + $0xb4] sm:$0xf]
    %v720 = vld [vmem:[%s39 + $0xb8] sm:$0xf]
    %v721 = vld [vmem:[%s39 + $0xbc] sm:$0xf]
    %v722 = vld [vmem:[#allocation15] sm:$0xf]
    %v723 = vld [vmem:[%s37] sm:$0xf]
    %v724 = vld [vmem:[%s37 + $0x4] sm:$0xf]
    %v725 = vld [vmem:[%s37 + $0x8] sm:$0xf]
    %v726 = vld [vmem:[%s37 + $0xc] sm:$0xf]
    %v727 = vld [vmem:[%s37 + $0x10] sm:$0xf]
    %v728 = vld [vmem:[%s37 + $0x14] sm:$0xf]
    %v729 = vld [vmem:[%s37 + $0x18] sm:$0xf]
    %v730 = vld [vmem:[%s37 + $0x1c] sm:$0xf]
    %v731 = vld [vmem:[%s37 + $0x20] sm:$0xf]
    %v732 = vld [vmem:[%s37 + $0x24] sm:$0xf]
    %v733 = vld [vmem:[%s37 + $0x28] sm:$0xf]
    %v734 = vld [vmem:[%s37 + $0x2c] sm:$0xf]
    %v735 = vld [vmem:[%s37 + $0x30] sm:$0xf]
    %v736 = vld [vmem:[%s37 + $0x34] sm:$0xf]
    %v737 = vld [vmem:[%s37 + $0x38] sm:$0xf]
    %v738 = vld [vmem:[%s37 + $0x3c] sm:$0xf]
    %v739 = vld [vmem:[%s5] sm:$0xf]
    %v740 = vld [vmem:[%s5 + $0x4] sm:$0xf]
    %v741 = vld [vmem:[%s5 + $0x8] sm:$0xf]
    %v742 = vld [vmem:[%s5 + $0xc] sm:$0xf]
    %v743 = vld [vmem:[%s5 + $0x10] sm:$0xf]
    %v744 = vld [vmem:[%s5 + $0x14] sm:$0xf]
    %v745 = vld [vmem:[%s5 + $0x18] sm:$0xf]
    %v746 = vld [vmem:[%s5 + $0x1c] sm:$0xf]
    %v747 = vld [vmem:[%s5 + $0x20] sm:$0xf]
    %v748 = vlaneseq
    %v749 = vshrl.u32 %v748, 7
    %v750 = vadd.s32 %v749, 8
    %v751 = vlaneseq
    %v752 = vand.u32 %v751, 127
    %vm753 = vcmp.eq.s32.totalorder %v749, %v752
    %vm754 = vcmp.eq.s32.totalorder %v750, %v752
    %v755 = vsel %vm753, 1.0, 0.0
    %v756 = vsel %vm754, 1.0, 0.0
    %v757 = vpack.c.bf16 %v756, %v755
    %v767 = vunpack.c.l.b16 %v739
    %v768 = vunpack.c.l.b16 %v740
    %v769 = vunpack.c.l.b16 %v741
    %v770 = vunpack.c.l.b16 %v742
    %v771 = vunpack.c.l.b16 %v743
    %v772 = vunpack.c.l.b16 %v744
    %v773 = vunpack.c.l.b16 %v745
    %v774 = vunpack.c.l.b16 %v746
    %v775 = vunpack.c.l.b16 %v747
    %v776 = vpack.c.b16 %v768, %v767
    %v777 = vpack.c.b16 %v770, %v769
    %v778 = vpack.c.b16 %v772, %v771
    %v779 = vpack.c.b16 %v774, %v773
    %v780 = vpack.c.b16 %v775, %v775
    %vm781 = vcmask 130048
    %v783 = vsel %vm781, %v757, 0
    %v786 = vsel %vm781, %v776, 0
    %v789 = vsel %vm781, %v777, 0
    %v792 = vsel %vm781, %v778, 0
    %v795 = vsel %vm781, %v779, 0
    %v798 = vsel %vm781, %v780, 0
    %800 = vmatprep.subr.bf16.mxu0 0
    %801 = vmatpush1.bf16.xpose.msra.mxu0 %v786
    %802 = vmatprep.subr.bf16.mxu0 0
    %803 = vmatpush1.bf16.xpose.msra.mxu0 %v789
    %804 = vmatprep.subr.bf16.mxu0 0
    %805 = vmatpush1.bf16.xpose.msra.mxu0 %v792
    %806 = vmatprep.subr.bf16.mxu0 0
    %807 = vmatpush1.bf16.xpose.msra.mxu0 %v795
    %808 = vmatprep.subr.bf16.mxu0 0
    %809 = vmatpush1.bf16.xpose.msra.mxu0 %v798
    %810 = vmatprep.subr.bf16.mxu0 0
    %811 = vmatpush1.bf16.xpose.msra.mxu0 0
    %812 = vmatprep.subr.bf16.mxu0 0
    %813 = vmatpush1.bf16.xpose.msra.mxu0 0
    %814 = vmatprep.subr.bf16.mxu0 0
    %815 = vmatpush1.bf16.xpose.msra.mxu0 0
    %816 = vmatprep.subr.bf16.mxu0 0
    %817 = vmatpush1.bf16.xpose.msra.mxu0 0
    %818 = vmatprep.subr.bf16.mxu0 0
    %819 = vmatpush1.bf16.xpose.msra.mxu0 0
    %820 = vmatprep.subr.bf16.mxu0 0
    %821 = vmatpush1.bf16.xpose.msra.mxu0 0
    %822 = vmatprep.subr.bf16.mxu0 0
    %823 = vmatpush1.bf16.xpose.msra.mxu0 0
    %824 = vmatprep.subr.bf16.mxu0 0
    %825 = vmatpush1.bf16.xpose.msra.mxu0 0
    %826 = vmatprep.subr.bf16.mxu0 0
    %827 = vmatpush1.bf16.xpose.msra.mxu0 0
    %828 = vmatprep.subr.bf16.mxu0 0
    %829 = vmatpush1.bf16.xpose.msra.mxu0 0
    %830 = vmatprep.subr.bf16.mxu0 0
    %831 = vmatpush1.bf16.xpose.msra.mxu0 0
    %832 = vmatprep.mubr.bf16.mxu0 0
    %833 = vmatmul.mubr.bf16.gmra.mrb[0].mxu0 %v783
    %v834 = vpop.f32.mrb[0].mxu0
    %v835 = vadd.f32 0.0, %v834
    %v836 = vpop.f32.mrb[0].mxu0
    %v837 = vpop.f32.mrb[0].mxu0
    %v838 = vadd.f32 0.0, %v837
    %v839 = vpop.f32.mrb[0].mxu0
    %840 = vdwg.mxu0
    %v841 = vpack.c.bf16 %v838, %v835
    %v842 = vld [vmem:[%s13] sm:$0xf]
    %v843 = vld [vmem:[%s13 + $0x4] sm:$0xf]
    %v844 = vld [vmem:[%s13 + $0x8] sm:$0xf]
    %v848 = vunpack.c.l.b16 %v842
    %v849 = vunpack.c.l.b16 %v843
    %v850 = vunpack.c.l.b16 %v844
    %v851 = vpack.c.b16 %v849, %v848
    %v852 = vpack.c.b16 %v850, %v850
    %v854 = vsel %vm781, %v851, 0
    %v857 = vsel %vm781, %v852, 0
    %859 = vmatprep.subr.bf16.mxu0 0
    %860 = vmatpush1.bf16.xpose.msra.mxu0 %v854
    %861 = vmatprep.subr.bf16.mxu0 0
    %862 = vmatpush1.bf16.xpose.msra.mxu0 %v857
    %863 = vmatprep.subr.bf16.mxu0 0
    %864 = vmatpush1.bf16.xpose.msra.mxu0 0
    %865 = vmatprep.subr.bf16.mxu0 0
    %866 = vmatpush1.bf16.xpose.msra.mxu0 0
    %867 = vmatprep.subr.bf16.mxu0 0
    %868 = vmatpush1.bf16.xpose.msra.mxu0 0
    %869 = vmatprep.subr.bf16.mxu0 0
    %870 = vmatpush1.bf16.xpose.msra.mxu0 0
    %871 = vmatprep.subr.bf16.mxu0 0
    %872 = vmatpush1.bf16.xpose.msra.mxu0 0
    %873 = vmatprep.subr.bf16.mxu0 0
    %874 = vmatpush1.bf16.xpose.msra.mxu0 0
    %875 = vmatprep.subr.bf16.mxu0 0
    %876 = vmatpush1.bf16.xpose.msra.mxu0 0
    %877 = vmatprep.subr.bf16.mxu0 0
    %878 = vmatpush1.bf16.xpose.msra.mxu0 0
    %879 = vmatprep.subr.bf16.mxu0 0
    %880 = vmatpush1.bf16.xpose.msra.mxu0 0
    %881 = vmatprep.subr.bf16.mxu0 0
    %882 = vmatpush1.bf16.xpose.msra.mxu0 0
    %883 = vmatprep.subr.bf16.mxu0 0
    %884 = vmatpush1.bf16.xpose.msra.mxu0 0
    %885 = vmatprep.subr.bf16.mxu0 0
    %886 = vmatpush1.bf16.xpose.msra.mxu0 0
    %887 = vmatprep.subr.bf16.mxu0 0
    %888 = vmatpush1.bf16.xpose.msra.mxu0 0
    %889 = vmatprep.subr.bf16.mxu0 0
    %890 = vmatpush1.bf16.xpose.msra.mxu0 0
    %891 = vmatprep.mubr.bf16.mxu0 0
    %892 = vmatmul.mubr.bf16.gmra.mrb[0].mxu0 %v783
    %v893 = vpop.f32.mrb[0].mxu0
    %v894 = vadd.f32 0.0, %v893
    %v895 = vpop.f32.mrb[0].mxu0
    %v896 = vpop.f32.mrb[0].mxu0
    %v897 = vadd.f32 0.0, %v896
    %v898 = vpop.f32.mrb[0].mxu0
    %899 = vdwg.mxu0
    %v900 = vpack.c.bf16 %v897, %v894
    %v901 = vld [vmem:[#allocation2] sm:$0xf]
    %v903 = vsel %vm781, %v901, 0
    %905 = vmatprep.subr.bf16.mxu0 0
    %906 = vmatpush1.bf16.xpose.msra.mxu0 %v903
    %907 = vmatprep.subr.bf16.mxu0 0
    %908 = vmatpush1.bf16.xpose.msra.mxu0 0
    %909 = vmatprep.subr.bf16.mxu0 0
    %910 = vmatpush1.bf16.xpose.msra.mxu0 0
    %911 = vmatprep.subr.bf16.mxu0 0
    %912 = vmatpush1.bf16.xpose.msra.mxu0 0
    %913 = vmatprep.subr.bf16.mxu0 0
    %914 = vmatpush1.bf16.xpose.msra.mxu0 0
    %915 = vmatprep.subr.bf16.mxu0 0
    %916 = vmatpush1.bf16.xpose.msra.mxu0 0
    %917 = vmatprep.subr.bf16.mxu0 0
    %918 = vmatpush1.bf16.xpose.msra.mxu0 0
    %919 = vmatprep.subr.bf16.mxu0 0
    %920 = vmatpush1.bf16.xpose.msra.mxu0 0
    %921 = vmatprep.subr.bf16.mxu0 0
    %922 = vmatpush1.bf16.xpose.msra.mxu0 0
    %923 = vmatprep.subr.bf16.mxu0 0
    %924 = vmatpush1.bf16.xpose.msra.mxu0 0
    %925 = vmatprep.subr.bf16.mxu0 0
    %926 = vmatpush1.bf16.xpose.msra.mxu0 0
    %927 = vmatprep.subr.bf16.mxu0 0
    %928 = vmatpush1.bf16.xpose.msra.mxu0 0
    %929 = vmatprep.subr.bf16.mxu0 0
    %930 = vmatpush1.bf16.xpose.msra.mxu0 0
    %931 = vmatprep.subr.bf16.mxu0 0
    %932 = vmatpush1.bf16.xpose.msra.mxu0 0
    %933 = vmatprep.subr.bf16.mxu0 0
    %934 = vmatpush1.bf16.xpose.msra.mxu0 0
    %935 = vmatprep.subr.bf16.mxu0 0
    %936 = vmatpush1.bf16.xpose.msra.mxu0 0
    %937 = vmatprep.mubr.bf16.mxu0 0
    %938 = vmatmul.mubr.bf16.gmra.mrb[0].mxu0 %v783
    %v939 = vpop.f32.mrb[0].mxu0
    %v940 = vadd.f32 0.0, %v939
    %v941 = vpop.f32.mrb[0].mxu0
    %v942 = vpop.f32.mrb[0].mxu0
    %v943 = vadd.f32 0.0, %v942
    %v944 = vpop.f32.mrb[0].mxu0
    %945 = vdwg.mxu0
    %v946 = vpack.c.bf16 %v943, %v940
    %v947 = vld [vmem:[%s117] sm:$0xff]
    %v948 = vld [vmem:[%s117 + $0x8] sm:$0xff]
    %v949 = vld [vmem:[#allocation40] sm:$0xf]
    %v950 = vpack.c.bf16 %v948, %v947
    %v951 = vld [vmem:[#allocation42] sm:$0x1]
    %v953 = vlaneseq
    %v954 = vshrl.u32 %v953, 7
    %v955 = vsub.s32 0, %v954
    %v956 = vrot.slane %v951, %v955
    %vm958 = vcmask 64512
    %v960 = vsel %vm958, %v950, 0
    %vm962 = vcmask 1043456
    %v964 = vsel %vm962, %v949, 0
    %966 = vmatprep.subr.bf16.mxu0 0
    %967 = vmatpush1.bf16.msra.mxu0 %v964
    %968 = vmatprep.subr.bf16.mxu0 0
    %969 = vmatpush1.bf16.msra.mxu0 0
    %970 = vmatprep.subr.bf16.mxu0 0
    %971 = vmatpush1.bf16.msra.mxu0 0
    %972 = vmatprep.subr.bf16.mxu0 0
    %973 = vmatpush1.bf16.msra.mxu0 0
    %974 = vmatprep.subr.bf16.mxu0 0
    %975 = vmatpush1.bf16.msra.mxu0 0
    %976 = vmatprep.subr.bf16.mxu0 0
    %977 = vmatpush1.bf16.msra.mxu0 0
    %978 = vmatprep.subr.bf16.mxu0 0
    %979 = vmatpush1.bf16.msra.mxu0 0
    %980 = vmatprep.subr.bf16.mxu0 0
    %981 = vmatpush1.bf16.msra.mxu0 0
    %982 = vmatprep.subr.bf16.mxu0 0
    %983 = vmatpush1.bf16.msra.mxu0 0
    %984 = vmatprep.subr.bf16.mxu0 0
    %985 = vmatpush1.bf16.msra.mxu0 0
    %986 = vmatprep.subr.bf16.mxu0 0
    %987 = vmatpush1.bf16.msra.mxu0 0
    %988 = vmatprep.subr.bf16.mxu0 0
    %989 = vmatpush1.bf16.msra.mxu0 0
    %990 = vmatprep.subr.bf16.mxu0 0
    %991 = vmatpush1.bf16.msra.mxu0 0
    %992 = vmatprep.subr.bf16.mxu0 0
    %993 = vmatpush1.bf16.msra.mxu0 0
    %994 = vmatprep.subr.bf16.mxu0 0
    %995 = vmatpush1.bf16.msra.mxu0 0
    %996 = vmatprep.subr.bf16.mxu0 0
    %997 = vmatpush1.bf16.msra.mxu0 0
    %998 = vmatprep.mubr.bf16.mxu0 0
    %999 = vmatmul.mubr.bf16.gmra.mrb[0].mxu0 %v960
    %v1000 = vpop.f32.mrb[0].mxu0
    %v1001 = vadd.f32 %v956, %v1000
    %v1002 = vpop.f32.mrb[0].mxu0
    %v1003 = vpop.f32.mrb[0].mxu0
    %v1004 = vadd.f32 %v956, %v1003
    %v1005 = vpop.f32.mrb[0].mxu0
    %1006 = vdwg.mxu0
    %v1007 = vld [vmem:[%s7] sm:$0xf]
    %v1008 = vld [vmem:[%s7 + $0x4] sm:$0xf]
    %v1009 = vld [vmem:[%s7 + $0x8] sm:$0xf]
    %v1010 = vld [vmem:[%s7 + $0xc] sm:$0xf]
    %v1011 = vld [vmem:[%s7 + $0x10] sm:$0xf]
    %v1012 = vld [vmem:[%s7 + $0x14] sm:$0xf]
    %v1013 = vld [vmem:[%s7 + $0x18] sm:$0xf]
    %v1014 = vld [vmem:[%s7 + $0x1c] sm:$0xf]
    %v1015 = vld [vmem:[%s7 + $0x20] sm:$0xf]
    %v1016 = vld [vmem:[%s9] sm:$0xff]
    %v1017 = vld [vmem:[%s9 + $0x8] sm:$0xff]
    %v1018 = vld [vmem:[%s9 + $0x10] sm:$0xff]
    %v1019 = vld [vmem:[%s9 + $0x18] sm:$0xff]
    %v1020 = vld [vmem:[%s9 + $0x20] sm:$0xff]
    %v1021 = vld [vmem:[%s9 + $0x28] sm:$0xff]
    %v1022 = vld [vmem:[%s9 + $0x30] sm:$0xff]
    %v1023 = vld [vmem:[%s9 + $0x38] sm:$0xff]
    %v1024 = vld [vmem:[%s9 + $0x40] sm:$0xff]
    %v1025 = vld [vmem:[%s11] sm:$0xff]
    %v1026 = vld [vmem:[%s11 + $0x8] sm:$0xff]
    %v1027 = vld [vmem:[%s11 + $0x10] sm:$0xff]
    %v1028 = vld [vmem:[%s11 + $0x18] sm:$0xff]
    %v1029 = vld [vmem:[%s11 + $0x20] sm:$0xff]
    %v1030 = vld [vmem:[%s11 + $0x28] sm:$0xff]
    %v1031 = vld [vmem:[%s11 + $0x30] sm:$0xff]
    %v1032 = vld [vmem:[%s11 + $0x38] sm:$0xff]
    %v1033 = vld [vmem:[%s11 + $0x40] sm:$0xff]
    %v1034 = vld [vmem:[#allocation22] sm:$0xff]
    %v1035 = vld [vmem:[#allocation22 + $0x8] sm:$0xf]
    %v1036 = vld [vmem:[#allocation22 + $0xc] sm:$0xff]
    %v1037 = vld [vmem:[#allocation22 + $0x14] sm:$0xf]
    %v1038 = vld [vmem:[#allocation22 + $0x18] sm:$0xff]
    %v1039 = vld [vmem:[#allocation22 + $0x20] sm:$0xf]
    %v1040 = vld [vmem:[#allocation22 + $0x24] sm:$0xff]
    %v1041 = vld [vmem:[#allocation22 + $0x2c] sm:$0xf]
    %v1042 = vld [vmem:[#allocation22 + $0x30] sm:$0xff]
    %v1043 = vld [vmem:[#allocation22 + $0x38] sm:$0xf]
    %v1044 = vld [vmem:[#allocation22 + $0x3c] sm:$0xff]
    %v1045 = vld [vmem:[#allocation22 + $0x44] sm:$0xf]
    %v1046 = vld [vmem:[#allocation22 + $0x48] sm:$0xff]
    %v1047 = vld [vmem:[#allocation22 + $0x50] sm:$0xf]
    %v1048 = vld [vmem:[#allocation22 + $0x54] sm:$0xff]
    %v1049 = vld [vmem:[#allocation22 + $0x5c] sm:$0xf]
    %v1050 = vld [vmem:[#allocation22 + $0x60] sm:$0xff]
    %v1051 = vld [vmem:[#allocation22 + $0x68] sm:$0xf]
    %v1052 = vld [vmem:[#allocation22 + $0x6c] sm:$0xff]
    %v1053 = vld [vmem:[#allocation22 + $0x74] sm:$0xf]
    %v1054 = vld [vmem:[#allocation22 + $0x78] sm:$0xff]
    %v1055 = vld [vmem:[#allocation22 + $0x80] sm:$0xf]
    %v1056 = vld [vmem:[#allocation22 + $0x84] sm:$0xff]
    %v1057 = vld [vmem:[#allocation22 + $0x8c] sm:$0xf]
    %v1058 = vld [vmem:[#allocation22 + $0x90] sm:$0xff]
    %v1059 = vld [vmem:[#allocation22 + $0x98] sm:$0xf]
    %v1060 = vld [vmem:[#allocation22 + $0x9c] sm:$0xff]
    %v1061 = vld [vmem:[#allocation22 + $0xa4] sm:$0xf]
    %v1062 = vld [vmem:[#allocation22 + $0xa8] sm:$0xff]
    %v1063 = vld [vmem:[#allocation22 + $0xb0] sm:$0xf]
    %v1064 = vld [vmem:[#allocation22 + $0xb4] sm:$0xff]
    %v1065 = vld [vmem:[#allocation22 + $0xbc] sm:$0xf]
    %v1066 = vpack.c.bf16 %v1004, %v1001
    %v1099 = vunpack.c.l.b16 %v1034
    %v1100 = vunpack.c.h.b16 %v1034
    %v1101 = vunpack.c.l.b16 %v1035
    %v1102 = vunpack.c.l.b16 %v1036
    %v1103 = vunpack.c.h.b16 %v1036
    %v1104 = vunpack.c.l.b16 %v1037
    %v1105 = vunpack.c.l.b16 %v1038
    %v1106 = vunpack.c.h.b16 %v1038
    %v1107 = vunpack.c.l.b16 %v1039
    %v1108 = vunpack.c.l.b16 %v1040
    %v1109 = vunpack.c.h.b16 %v1040
    %v1110 = vunpack.c.l.b16 %v1041
    %v1111 = vunpack.c.l.b16 %v1042
    %v1112 = vunpack.c.h.b16 %v1042
    %v1113 = vunpack.c.l.b16 %v1043
    %v1114 = vunpack.c.l.b16 %v1044
    %v1115 = vunpack.c.h.b16 %v1044
    %v1116 = vunpack.c.l.b16 %v1045
    %v1117 = vunpack.c.l.b16 %v1046
    %v1118 = vunpack.c.h.b16 %v1046
    %v1119 = vunpack.c.l.b16 %v1047
    %v1120 = vunpack.c.l.b16 %v1048
    %v1121 = vunpack.c.h.b16 %v1048
    %v1122 = vunpack.c.l.b16 %v1049
    %v1123 = vunpack.c.l.b16 %v1050
    %v1124 = vunpack.c.h.b16 %v1050
    %v1125 = vunpack.c.l.b16 %v1051
    %v1126 = vunpack.c.l.b16 %v1052
    %v1127 = vunpack.c.h.b16 %v1052
    %v1128 = vunpack.c.l.b16 %v1053
    %v1129 = vunpack.c.l.b16 %v1054
    %v1130 = vunpack.c.h.b16 %v1054
    %v1131 = vunpack.c.l.b16 %v1055
    %v1132 = vunpack.c.l.b16 %v1056
    %v1133 = vunpack.c.h.b16 %v1056
    %v1134 = vunpack.c.l.b16 %v1057
    %v1135 = vunpack.c.l.b16 %v1058
    %v1136 = vunpack.c.h.b16 %v1058
    %v1137 = vunpack.c.l.b16 %v1059
    %v1138 = vunpack.c.l.b16 %v1060
    %v1139 = vunpack.c.h.b16 %v1060
    %v1140 = vunpack.c.l.b16 %v1061
    %v1141 = vunpack.c.l.b16 %v1062
    %v1142 = vunpack.c.h.b16 %v1062
    %v1143 = vunpack.c.l.b16 %v1063
    %v1144 = vunpack.c.l.b16 %v1064
    %v1145 = vunpack.c.h.b16 %v1064
    %v1146 = vunpack.c.l.b16 %v1065
    %v1147 = vpack.c.b16 %v1102, %v1099
    %v1148 = vpack.c.b16 %v1103, %v1100
    %v1149 = vpack.c.b16 %v1104, %v1101
    %v1150 = vpack.c.b16 %v1108, %v1105
    %v1151 = vpack.c.b16 %v1109, %v1106
    %v1152 = vpack.c.b16 %v1110, %v1107
    %v1153 = vpack.c.b16 %v1114, %v1111
    %v1154 = vpack.c.b16 %v1115, %v1112
    %v1155 = vpack.c.b16 %v1116, %v1113
    %v1156 = vpack.c.b16 %v1120, %v1117
    %v1157 = vpack.c.b16 %v1121, %v1118
    %v1158 = vpack.c.b16 %v1122, %v1119
    %v1159 = vpack.c.b16 %v1126, %v1123
    %v1160 = vpack.c.b16 %v1127, %v1124
    %v1161 = vpack.c.b16 %v1128, %v1125
    %v1162 = vpack.c.b16 %v1132, %v1129
    %v1163 = vpack.c.b16 %v1133, %v1130
    %v1164 = vpack.c.b16 %v1134, %v1131
    %v1165 = vpack.c.b16 %v1138, %v1135
    %v1166 = vpack.c.b16 %v1139, %v1136
    %v1167 = vpack.c.b16 %v1140, %v1137
    %v1168 = vpack.c.b16 %v1144, %v1141
    %v1169 = vpack.c.b16 %v1145, %v1142
    %v1170 = vpack.c.b16 %v1146, %v1143
    %1195 = vmatprep.subr.bf16.mxu0 %v1148
    %1196 = vmatpush1.bf16.msra.mxu0 %v1147
    %1197 = vmatprep.subr.bf16.mxu0 %v1151
    %1198 = vmatpush1.bf16.msra.mxu0 %v1150
    %1199 = vmatprep.subr.bf16.mxu0 %v1154
    %1200 = vmatpush1.bf16.msra.mxu0 %v1153
    %1201 = vmatprep.subr.bf16.mxu0 %v1157
    %1202 = vmatpush1.bf16.msra.mxu0 %v1156
    %1203 = vmatprep.subr.bf16.mxu0 %v1160
    %1204 = vmatpush1.bf16.msra.mxu0 %v1159
    %1205 = vmatprep.subr.bf16.mxu0 %v1163
    %1206 = vmatpush1.bf16.msra.mxu0 %v1162
    %1207 = vmatprep.subr.bf16.mxu0 %v1166
    %1208 = vmatpush1.bf16.msra.mxu0 %v1165
    %1209 = vmatprep.subr.bf16.mxu0 %v1169
    %1210 = vmatpush1.bf16.msra.mxu0 %v1168
    %1211 = vmatprep.subr.bf16.mxu0 0
    %1212 = vmatpush1.bf16.msra.mxu0 0
    %1213 = vmatprep.subr.bf16.mxu0 0
    %1214 = vmatpush1.bf16.msra.mxu0 0
    %1215 = vmatprep.subr.bf16.mxu0 0
    %1216 = vmatpush1.bf16.msra.mxu0 0
    %1217 = vmatprep.subr.bf16.mxu0 0
    %1218 = vmatpush1.bf16.msra.mxu0 0
    %1219 = vmatprep.subr.bf16.mxu0 0
    %1220 = vmatpush1.bf16.msra.mxu0 0
    %1221 = vmatprep.subr.bf16.mxu0 0
    %1222 = vmatpush1.bf16.msra.mxu0 0
    %1223 = vmatprep.subr.bf16.mxu0 0
    %1224 = vmatpush1.bf16.msra.mxu0 0
    %1225 = vmatprep.subr.bf16.mxu0 0
    %1226 = vmatpush1.bf16.msra.mxu0 0
    %1227 = vmatprep.mubr.bf16.mxu0 0
    %1228 = vmatmul.mubr.bf16.gmra.mrb[0].mxu0 %v1066
    %v1229 = vpop.f32.mrb[0].mxu0
    %v1230 = vadd.f32 0.0, %v1229
    %v1231 = vpop.f32.mrb[0].mxu0
    %v1232 = vadd.f32 0.0, %v1231
    %v1233 = vpop.f32.mrb[0].mxu0
    %v1234 = vadd.f32 0.0, %v1233
    %v1235 = vpop.f32.mrb[0].mxu0
    %v1236 = vadd.f32 0.0, %v1235
    %1237 = vdwg.mxu0
    %1238 = vmatprep.subr.bf16.mxu0 0
    %1239 = vmatpush1.bf16.msra.mxu0 %v1149
    %1240 = vmatprep.subr.bf16.mxu0 0
    %1241 = vmatpush1.bf16.msra.mxu0 %v1152
    %1242 = vmatprep.subr.bf16.mxu0 0
    %1243 = vmatpush1.bf16.msra.mxu0 %v1155
    %1244 = vmatprep.subr.bf16.mxu0 0
    %1245 = vmatpush1.bf16.msra.mxu0 %v1158
    %1246 = vmatprep.subr.bf16.mxu0 0
    %1247 = vmatpush1.bf16.msra.mxu0 %v1161
    %1248 = vmatprep.subr.bf16.mxu0 0
    %1249 = vmatpush1.bf16.msra.mxu0 %v1164
    %1250 = vmatprep.subr.bf16.mxu0 0
    %1251 = vmatpush1.bf16.msra.mxu0 %v1167
    %1252 = vmatprep.subr.bf16.mxu0 0
    %1253 = vmatpush1.bf16.msra.mxu0 %v1170
    %1254 = vmatprep.subr.bf16.mxu0 0
    %1255 = vmatpush1.bf16.msra.mxu0 0
    %1256 = vmatprep.subr.bf16.mxu0 0
    %1257 = vmatpush1.bf16.msra.mxu0 0
    %1258 = vmatprep.subr.bf16.mxu0 0
    %1259 = vmatpush1.bf16.msra.mxu0 0
    %1260 = vmatprep.subr.bf16.mxu0 0
    %1261 = vmatpush1.bf16.msra.mxu0 0
    %1262 = vmatprep.subr.bf16.mxu0 0
    %1263 = vmatpush1.bf16.msra.mxu0 0
    %1264 = vmatprep.subr.bf16.mxu0 0
    %1265 = vmatpush1.bf16.msra.mxu0 0
    %1266 = vmatprep.subr.bf16.mxu0 0
    %1267 = vmatpush1.bf16.msra.mxu0 0
    %1268 = vmatprep.subr.bf16.mxu0 0
    %1269 = vmatpush1.bf16.msra.mxu0 0
    %1270 = vmatprep.mubr.bf16.mxu0 0
    %1271 = vmatmul.mubr.bf16.gmra.mrb[0].mxu0 %v1066
    %v1272 = vpop.f32.mrb[0].mxu0
    %v1273 = vadd.f32 0.0, %v1272
    %v1274 = vpop.f32.mrb[0].mxu0
    %v1275 = vpop.f32.mrb[0].mxu0
    %v1276 = vadd.f32 0.0, %v1275
    %v1277 = vpop.f32.mrb[0].mxu0
    %1278 = vdwg.mxu0
    %v1279 = vld [vmem:[%s53] sm:$0xf]
    %v1280 = vld [vmem:[%s53 + $0x4] sm:$0xf]
    %v1281 = vld [vmem:[%s53 + $0x8] sm:$0xf]
    %v1282 = vld [vmem:[%s53 + $0xc] sm:$0xf]
    %v1283 = vld [vmem:[%s53 + $0x10] sm:$0xf]
    %v1284 = vld [vmem:[%s53 + $0x14] sm:$0xf]
    %v1285 = vld [vmem:[%s53 + $0x18] sm:$0xf]
    %v1286 = vld [vmem:[%s53 + $0x1c] sm:$0xf]
    %v1287 = vld [vmem:[%s53 + $0x20] sm:$0xf]
    %v1288 = vld [vmem:[%s53 + $0x24] sm:$0xf]
    %v1289 = vld [vmem:[%s53 + $0x28] sm:$0xf]
    %v1290 = vld [vmem:[%s53 + $0x2c] sm:$0xf]
    %v1291 = vld [vmem:[%s53 + $0x30] sm:$0xf]
    %v1292 = vld [vmem:[%s53 + $0x34] sm:$0xf]
    %v1293 = vld [vmem:[%s53 + $0x38] sm:$0xf]
    %v1294 = vld [vmem:[%s53 + $0x3c] sm:$0xf]
    %v1311 = vunpack.c.l.b16 %v1279
    %v1312 = vunpack.c.l.b16 %v1280
    %v1313 = vunpack.c.l.b16 %v1281
    %v1314 = vunpack.c.l.b16 %v1282
    %v1315 = vunpack.c.l.b16 %v1283
    %v1316 = vunpack.c.l.b16 %v1284
    %v1317 = vunpack.c.l.b16 %v1285
    %v1318 = vunpack.c.l.b16 %v1286
    %v1319 = vunpack.c.l.b16 %v1287
    %v1320 = vunpack.c.l.b16 %v1288
    %v1321 = vunpack.c.l.b16 %v1289
    %v1322 = vunpack.c.l.b16 %v1290
    %v1323 = vunpack.c.l.b16 %v1291
    %v1324 = vunpack.c.l.b16 %v1292
    %v1325 = vunpack.c.l.b16 %v1293
    %v1326 = vunpack.c.l.b16 %v1294
    %v1327 = vpack.c.b16 %v1312, %v1311
    %v1328 = vpack.c.b16 %v1314, %v1313
    %v1329 = vpack.c.b16 %v1316, %v1315
    %v1330 = vpack.c.b16 %v1318, %v1317
    %v1331 = vpack.c.b16 %v1320, %v1319
    %v1332 = vpack.c.b16 %v1322, %v1321
    %v1333 = vpack.c.b16 %v1324, %v1323
    %v1334 = vpack.c.b16 %v1326, %v1325
    %1343 = vmatprep.subr.bf16.mxu0 0
    %1344 = vmatpush1.bf16.msra.mxu0 %v1327
    %1345 = vmatprep.subr.bf16.mxu0 0
    %1346 = vmatpush1.bf16.msra.mxu0 %v1328
    %1347 = vmatprep.subr.bf16.mxu0 0
    %1348 = vmatpush1.bf16.msra.mxu0 %v1329
    %1349 = vmatprep.subr.bf16.mxu0 0
    %1350 = vmatpush1.bf16.msra.mxu0 %v1330
    %1351 = vmatprep.subr.bf16.mxu0 0
    %1352 = vmatpush1.bf16.msra.mxu0 %v1331
    %1353 = vmatprep.subr.bf16.mxu0 0
    %1354 = vmatpush1.bf16.msra.mxu0 %v1332
    %1355 = vmatprep.subr.bf16.mxu0 0
    %1356 = vmatpush1.bf16.msra.mxu0 %v1333
    %1357 = vmatprep.subr.bf16.mxu0 0
    %1358 = vmatpush1.bf16.msra.mxu0 %v1334
    %1359 = vmatprep.subr.bf16.mxu0 0
    %1360 = vmatpush1.bf16.msra.mxu0 0
    %1361 = vmatprep.subr.bf16.mxu0 0
    %1362 = vmatpush1.bf16.msra.mxu0 0
    %1363 = vmatprep.subr.bf16.mxu0 0
    %1364 = vmatpush1.bf16.msra.mxu0 0
    %1365 = vmatprep.subr.bf16.mxu0 0
    %1366 = vmatpush1.bf16.msra.mxu0 0
    %1367 = vmatprep.subr.bf16.mxu0 0
    %1368 = vmatpush1.bf16.msra.mxu0 0
    %1369 = vmatprep.subr.bf16.mxu0 0
    %1370 = vmatpush1.bf16.msra.mxu0 0
    %1371 = vmatprep.subr.bf16.mxu0 0
    %1372 = vmatpush1.bf16.msra.mxu0 0
    %1373 = vmatprep.subr.bf16.mxu0 0
    %1374 = vmatpush1.bf16.msra.mxu0 0
    %1375 = vmatprep.mubr.bf16.mxu0 0
    %1376 = vmatmul.mubr.bf16.gmra.mrb[0].mxu0 %v1066
    %v1377 = vpop.f32.mrb[0].mxu0
    %v1378 = vadd.f32 0.0, %v1377
    %v1379 = vpop.f32.mrb[0].mxu0
    %v1380 = vpop.f32.mrb[0].mxu0
    %v1381 = vadd.f32 0.0, %v1380
    %v1382 = vpop.f32.mrb[0].mxu0
    %1383 = vdwg.mxu0
    %v1384 = vld [vmem:[%s49] sm:$0xf]
    %v1385 = vld [vmem:[%s49 + $0x4] sm:$0xf]
    %v1386 = vld [vmem:[%s49 + $0x8] sm:$0xf]
    %v1387 = vld [vmem:[%s49 + $0xc] sm:$0xf]
    %v1388 = vld [vmem:[%s49 + $0x10] sm:$0xf]
    %v1389 = vld [vmem:[%s49 + $0x14] sm:$0xf]
    %v1390 = vld [vmem:[%s49 + $0x18] sm:$0xf]
    %v1391 = vld [vmem:[%s49 + $0x1c] sm:$0xf]
    %v1392 = vld [vmem:[%s49 + $0x20] sm:$0xf]
    %v1393 = vld [vmem:[%s49 + $0x24] sm:$0xf]
    %v1394 = vld [vmem:[%s49 + $0x28] sm:$0xf]
    %v1395 = vld [vmem:[%s49 + $0x2c] sm:$0xf]
    %v1396 = vld [vmem:[%s49 + $0x30] sm:$0xf]
    %v1397 = vld [vmem:[%s49 + $0x34] sm:$0xf]
    %v1398 = vld [vmem:[%s49 + $0x38] sm:$0xf]
    %v1399 = vld [vmem:[%s49 + $0x3c] sm:$0xf]
    %v1416 = vunpack.c.l.b16 %v1384
    %v1417 = vunpack.c.l.b16 %v1385
    %v1418 = vunpack.c.l.b16 %v1386
    %v1419 = vunpack.c.l.b16 %v1387
    %v1420 = vunpack.c.l.b16 %v1388
    %v1421 = vunpack.c.l.b16 %v1389
    %v1422 = vunpack.c.l.b16 %v1390
    %v1423 = vunpack.c.l.b16 %v1391
    %v1424 = vunpack.c.l.b16 %v1392
    %v1425 = vunpack.c.l.b16 %v1393
    %v1426 = vunpack.c.l.b16 %v1394
    %v1427 = vunpack.c.l.b16 %v1395
    %v1428 = vunpack.c.l.b16 %v1396
    %v1429 = vunpack.c.l.b16 %v1397
    %v1430 = vunpack.c.l.b16 %v1398
    %v1431 = vunpack.c.l.b16 %v1399
    %v1432 = vpack.c.b16 %v1417, %v1416
    %v1433 = vpack.c.b16 %v1419, %v1418
    %v1434 = vpack.c.b16 %v1421, %v1420
    %v1435 = vpack.c.b16 %v1423, %v1422
    %v1436 = vpack.c.b16 %v1425, %v1424
    %v1437 = vpack.c.b16 %v1427, %v1426
    %v1438 = vpack.c.b16 %v1429, %v1428
    %v1439 = vpack.c.b16 %v1431, %v1430
    %1448 = vmatprep.subr.bf16.mxu0 0
    %1449 = vmatpush1.bf16.msra.mxu0 %v1432
    %1450 = vmatprep.subr.bf16.mxu0 0
    %1451 = vmatpush1.bf16.msra.mxu0 %v1433
    %1452 = vmatprep.subr.bf16.mxu0 0
    %1453 = vmatpush1.bf16.msra.mxu0 %v1434
    %1454 = vmatprep.subr.bf16.mxu0 0
    %1455 = vmatpush1.bf16.msra.mxu0 %v1435
    %1456 = vmatprep.subr.bf16.mxu0 0
    %1457 = vmatpush1.bf16.msra.mxu0 %v1436
    %1458 = vmatprep.subr.bf16.mxu0 0
    %1459 = vmatpush1.bf16.msra.mxu0 %v1437
    %1460 = vmatprep.subr.bf16.mxu0 0
    %1461 = vmatpush1.bf16.msra.mxu0 %v1438
    %1462 = vmatprep.subr.bf16.mxu0 0
    %1463 = vmatpush1.bf16.msra.mxu0 %v1439
    %1464 = vmatprep.subr.bf16.mxu0 0
    %1465 = vmatpush1.bf16.msra.mxu0 0
    %1466 = vmatprep.subr.bf16.mxu0 0
    %1467 = vmatpush1.bf16.msra.mxu0 0
    %1468 = vmatprep.subr.bf16.mxu0 0
    %1469 = vmatpush1.bf16.msra.mxu0 0
    %1470 = vmatprep.subr.bf16.mxu0 0
    %1471 = vmatpush1.bf16.msra.mxu0 0
    %1472 = vmatprep.subr.bf16.mxu0 0
    %1473 = vmatpush1.bf16.msra.mxu0 0
    %1474 = vmatprep.subr.bf16.mxu0 0
    %1475 = vmatpush1.bf16.msra.mxu0 0
    %1476 = vmatprep.subr.bf16.mxu0 0
    %1477 = vmatpush1.bf16.msra.mxu0 0
    %1478 = vmatprep.subr.bf16.mxu0 0
    %1479 = vmatpush1.bf16.msra.mxu0 0
    %1480 = vmatprep.mubr.bf16.mxu0 0
    %1481 = vmatmul.mubr.bf16.gmra.mrb[0].mxu0 %v1066
    %v1482 = vpop.f32.mrb[0].mxu0
    %v1483 = vadd.f32 0.0, %v1482
    %v1484 = vpop.f32.mrb[0].mxu0
    %v1485 = vpop.f32.mrb[0].mxu0
    %v1486 = vadd.f32 0.0, %v1485
    %v1487 = vpop.f32.mrb[0].mxu0
    %1488 = vdwg.mxu0
    %v1489 = vld [vmem:[#allocation19] sm:$0x3]
    %v1490 = vpack.c.bf16 %v1017, %v1016
    %v1491 = vpack.c.bf16 %v1019, %v1018
    %v1492 = vpack.c.bf16 %v1021, %v1020
    %v1493 = vpack.c.bf16 %v1023, %v1022
    %v1494 = vpack.c.bf16 %v1024, %v1024
    %vm1495 = vcmask 23552
    %v1497 = vsel %vm1495, %v1490, 0
    %v1500 = vsel %vm1495, %v1491, 0
    %v1503 = vsel %vm1495, %v1492, 0
    %v1506 = vsel %vm1495, %v1493, 0
    %v1509 = vsel %vm1495, %v1494, 0
    %vm1511 = vcmask 1040384
    %vm1512 = vcmask 1041408
    %v1513 = vsel %vm1511, 4294967295, 65535
    %v1514 = vsel %vm1512, %v1513, 0
    %v1516 = vand.u32 %v1489, %v1514
    %1518 = vmatprep.subr.bf16.mxu0 0
    %1519 = vmatpush1.bf16.msra.mxu0 %v1516
    %1520 = vmatprep.subr.bf16.mxu0 0
    %1521 = vmatpush1.bf16.msra.mxu0 0
    %1522 = vmatprep.subr.bf16.mxu0 0
    %1523 = vmatpush1.bf16.msra.mxu0 0
    %1524 = vmatprep.subr.bf16.mxu0 0
    %1525 = vmatpush1.bf16.msra.mxu0 0
    %1526 = vmatprep.subr.bf16.mxu0 0
    %1527 = vmatpush1.bf16.msra.mxu0 0
    %1528 = vmatprep.subr.bf16.mxu0 0
    %1529 = vmatpush1.bf16.msra.mxu0 0
    %1530 = vmatprep.subr.bf16.mxu0 0
    %1531 = vmatpush1.bf16.msra.mxu0 0
    %1532 = vmatprep.subr.bf16.mxu0 0
    %1533 = vmatpush1.bf16.msra.mxu0 0
    %1534 = vmatprep.subr.bf16.mxu0 0
    %1535 = vmatpush1.bf16.msra.mxu0 0
    %1536 = vmatprep.subr.bf16.mxu0 0
    %1537 = vmatpush1.bf16.msra.mxu0 0
    %1538 = vmatprep.subr.bf16.mxu0 0
    %1539 = vmatpush1.bf16.msra.mxu0 0
    %1540 = vmatprep.subr.bf16.mxu0 0
    %1541 = vmatpush1.bf16.msra.mxu0 0
    %1542 = vmatprep.subr.bf16.mxu0 0
    %1543 = vmatpush1.bf16.msra.mxu0 0
    %1544 = vmatprep.subr.bf16.mxu0 0
    %1545 = vmatpush1.bf16.msra.mxu0 0
    %1546 = vmatprep.subr.bf16.mxu0 0
    %1547 = vmatpush1.bf16.msra.mxu0 0
    %1548 = vmatprep.subr.bf16.mxu0 0
    %1549 = vmatpush1.bf16.msra.mxu0 0
    %1550 = vmatprep.mubr.bf16.mxu0 0
    %1551 = vmatmul.mubr.bf16.gmra.mrb[0].mxu0 %v1497
    %v1552 = vpop.f32.mrb[0].mxu0
    %v1553 = vadd.f32 0.0, %v1552
    %v1554 = vpop.f32.mrb[0].mxu0
    %v1555 = vpop.f32.mrb[0].mxu0
    %v1556 = vadd.f32 0.0, %v1555
    %v1557 = vpop.f32.mrb[0].mxu0
    %1558 = vmatprep.mubr.bf16.mxu0 0
    %1559 = vmatmul.mubr.bf16.gmra.mrb[0].mxu0 %v1500
    %v1560 = vpop.f32.mrb[0].mxu0
    %v1561 = vadd.f32 0.0, %v1560
    %v1562 = vpop.f32.mrb[0].mxu0
    %v1563 = vpop.f32.mrb[0].mxu0
    %v1564 = vadd.f32 0.0, %v1563
    %v1565 = vpop.f32.mrb[0].mxu0
    %1566 = vmatprep.mubr.bf16.mxu0 0
    %1567 = vmatmul.mubr.bf16.gmra.mrb[0].mxu0 %v1503
    %v1568 = vpop.f32.mrb[0].mxu0
    %v1569 = vadd.f32 0.0, %v1568
    %v1570 = vpop.f32.mrb[0].mxu0
    %v1571 = vpop.f32.mrb[0].mxu0
    %v1572 = vadd.f32 0.0, %v1571
    %v1573 = vpop.f32.mrb[0].mxu0
    %1574 = vmatprep.mubr.bf16.mxu0 0
    %1575 = vmatmul.mubr.bf16.gmra.mrb[0].mxu0 %v1506
    %v1576 = vpop.f32.mrb[0].mxu0
    %v1577 = vadd.f32 0.0, %v1576
    %v1578 = vpop.f32.mrb[0].mxu0
    %v1579 = vpop.f32.mrb[0].mxu0
    %v1580 = vadd.f32 0.0, %v1579
    %v1581 = vpop.f32.mrb[0].mxu0
    %1582 = vmatprep.mubr.bf16.mxu0 0
    %1583 = vmatmul.mubr.bf16.gmra.mrb[0].mxu0 %v1509
    %v1584 = vpop.f32.mrb[0].mxu0
    %v1585 = vadd.f32 0.0, %v1584
    %v1586 = vpop.f32.mrb[0].mxu0
    %v1587 = vpop.f32.mrb[0].mxu0
    %v1588 = vpop.f32.mrb[0].mxu0
    %1589 = vdwg.mxu0
    %v1590 = vpack.c.bf16 %v1381, %v1378
    %v1591 = vpack.c.bf16 %v1486, %v1483
    %1592 = vmatprep.subr.bf16.mxu0 0
    %1593 = vmatpush1.bf16.msra.mxu0 %v1591
    %1594 = vmatprep.subr.bf16.mxu0 0
    %1595 = vmatpush1.bf16.msra.mxu0 0
    %1596 = vmatprep.subr.bf16.mxu0 0
    %1597 = vmatpush1.bf16.msra.mxu0 0
    %1598 = vmatprep.subr.bf16.mxu0 0
    %1599 = vmatpush1.bf16.msra.mxu0 0
    %1600 = vmatprep.subr.bf16.mxu0 0
    %1601 = vmatpush1.bf16.msra.mxu0 0
    %1602 = vmatprep.subr.bf16.mxu0 0
    %1603 = vmatpush1.bf16.msra.mxu0 0
    %1604 = vmatprep.subr.bf16.mxu0 0
    %1605 = vmatpush1.bf16.msra.mxu0 0
    %1606 = vmatprep.subr.bf16.mxu0 0
    %1607 = vmatpush1.bf16.msra.mxu0 0
    %1608 = vmatprep.subr.bf16.mxu0 0
    %1609 = vmatpush1.bf16.msra.mxu0 0
    %1610 = vmatprep.subr.bf16.mxu0 0
    %1611 = vmatpush1.bf16.msra.mxu0 0
    %1612 = vmatprep.subr.bf16.mxu0 0
    %1613 = vmatpush1.bf16.msra.mxu0 0
    %1614 = vmatprep.subr.bf16.mxu0 0
    %1615 = vmatpush1.bf16.msra.mxu0 0
    %1616 = vmatprep.subr.bf16.mxu0 0
    %1617 = vmatpush1.bf16.msra.mxu0 0
    %1618 = vmatprep.subr.bf16.mxu0 0
    %1619 = vmatpush1.bf16.msra.mxu0 0
    %1620 = vmatprep.subr.bf16.mxu0 0
    %1621 = vmatpush1.bf16.msra.mxu0 0
    %1622 = vmatprep.subr.bf16.mxu0 0
    %1623 = vmatpush1.bf16.msra.mxu0 0
    %1624 = vmatprep.mubr.bf16.mxu0 0
    %1625 = vmatmul.mubr.bf16.gmra.mrb[0].mxu0 %v786
    %v1626 = vpop.f32.mrb[0].mxu0
    %v1627 = vadd.f32 0.0, %v1626
    %v1628 = vpop.f32.mrb[0].mxu0
    %v1629 = vpop.f32.mrb[0].mxu0
    %v1630 = vadd.f32 0.0, %v1629
    %v1631 = vpop.f32.mrb[0].mxu0
    %1632 = vmatprep.mubr.bf16.mxu0 0
    %1633 = vmatmul.mubr.bf16.gmra.mrb[0].mxu0 %v789
    %v1634 = vpop.f32.mrb[0].mxu0
    %v1635 = vadd.f32 0.0, %v1634
    %v1636 = vpop.f32.mrb[0].mxu0
    %v1637 = vpop.f32.mrb[0].mxu0
    %v1638 = vadd.f32 0.0, %v1637
    %v1639 = vpop.f32.mrb[0].mxu0
    %1640 = vmatprep.mubr.bf16.mxu0 0
    %1641 = vmatmul.mubr.bf16.gmra.mrb[0].mxu0 %v792
    %v1642 = vpop.f32.mrb[0].mxu0
    %v1643 = vadd.f32 0.0, %v1642
    %v1644 = vpop.f32.mrb[0].mxu0
    %v1645 = vpop.f32.mrb[0].mxu0
    %v1646 = vadd.f32 0.0, %v1645
    %v1647 = vpop.f32.mrb[0].mxu0
    %1648 = vmatprep.mubr.bf16.mxu0 0
    %1649 = vmatmul.mubr.bf16.gmra.mrb[0].mxu0 %v795
    %v1650 = vpop.f32.mrb[0].mxu0
    %v1651 = vadd.f32 0.0, %v1650
    %v1652 = vpop.f32.mrb[0].mxu0
    %v1653 = vpop.f32.mrb[0].mxu0
    %v1654 = vadd.f32 0.0, %v1653
    %v1655 = vpop.f32.mrb[0].mxu0
    %1656 = vmatprep.mubr.bf16.mxu0 0
    %1657 = vmatmul.mubr.bf16.gmra.mrb[0].mxu0 %v798
    %v1658 = vpop.f32.mrb[0].mxu0
    %v1659 = vadd.f32 0.0, %v1658
    %v1660 = vpop.f32.mrb[0].mxu0
    %v1661 = vpop.f32.mrb[0].mxu0
    %v1662 = vpop.f32.mrb[0].mxu0
    %1663 = vdwg.mxu0
    %v1673 = vunpack.c.l.b16 %v1007
    %v1674 = vunpack.c.l.b16 %v1008
    %v1675 = vunpack.c.l.b16 %v1009
    %v1676 = vunpack.c.l.b16 %v1010
    %v1677 = vunpack.c.l.b16 %v1011
    %v1678 = vunpack.c.l.b16 %v1012
    %v1679 = vunpack.c.l.b16 %v1013
    %v1680 = vunpack.c.l.b16 %v1014
    %v1681 = vunpack.c.l.b16 %v1015
    %v1682 = vpack.c.b16 %v1674, %v1673
    %v1683 = vpack.c.b16 %v1676, %v1675
    %v1684 = vpack.c.b16 %v1678, %v1677
    %v1685 = vpack.c.b16 %v1680, %v1679
    %v1686 = vpack.c.b16 %v1681, %v1681
    %v1688 = vsel %vm781, %v1682, 0
    %v1691 = vsel %vm781, %v1683, 0
    %v1694 = vsel %vm781, %v1684, 0
    %v1697 = vsel %vm781, %v1685, 0
    %v1700 = vsel %vm781, %v1686, 0
    %1702 = vmatprep.subr.bf16.mxu0 0
    %1703 = vmatpush1.bf16.msra.mxu0 %v1590
    %1704 = vmatprep.subr.bf16.mxu0 0
    %1705 = vmatpush1.bf16.msra.mxu0 0
    %1706 = vmatprep.subr.bf16.mxu0 0
    %1707 = vmatpush1.bf16.msra.mxu0 0
    %1708 = vmatprep.subr.bf16.mxu0 0
    %1709 = vmatpush1.bf16.msra.mxu0 0
    %1710 = vmatprep.subr.bf16.mxu0 0
    %1711 = vmatpush1.bf16.msra.mxu0 0
    %1712 = vmatprep.subr.bf16.mxu0 0
    %1713 = vmatpush1.bf16.msra.mxu0 0
    %1714 = vmatprep.subr.bf16.mxu0 0
    %1715 = vmatpush1.bf16.msra.mxu0 0
    %1716 = vmatprep.subr.bf16.mxu0 0
    %1717 = vmatpush1.bf16.msra.mxu0 0
    %1718 = vmatprep.subr.bf16.mxu0 0
    %1719 = vmatpush1.bf16.msra.mxu0 0
    %1720 = vmatprep.subr.bf16.mxu0 0
    %1721 = vmatpush1.bf16.msra.mxu0 0
    %1722 = vmatprep.subr.bf16.mxu0 0
    %1723 = vmatpush1.bf16.msra.mxu0 0
    %1724 = vmatprep.subr.bf16.mxu0 0
    %1725 = vmatpush1.bf16.msra.mxu0 0
    %1726 = vmatprep.subr.bf16.mxu0 0
    %1727 = vmatpush1.bf16.msra.mxu0 0
    %1728 = vmatprep.subr.bf16.mxu0 0
    %1729 = vmatpush1.bf16.msra.mxu0 0
    %1730 = vmatprep.subr.bf16.mxu0 0
    %1731 = vmatpush1.bf16.msra.mxu0 0
    %1732 = vmatprep.subr.bf16.mxu0 0
    %1733 = vmatpush1.bf16.msra.mxu0 0
    %1734 = vmatprep.mubr.bf16.mxu0 0
    %1735 = vmatmul.mubr.bf16.gmra.mrb[0].mxu0 %v1688
    %v1736 = vpop.f32.mrb[0].mxu0
    %v1737 = vadd.f32 %v1627, %v1736
    %v1738 = vpop.f32.mrb[0].mxu0
    %v1739 = vpop.f32.mrb[0].mxu0
    %v1740 = vadd.f32 %v1630, %v1739
    %v1741 = vpop.f32.mrb[0].mxu0
    %1742 = vmatprep.mubr.bf16.mxu0 0
    %1743 = vmatmul.mubr.bf16.gmra.mrb[0].mxu0 %v1691
    %v1744 = vpop.f32.mrb[0].mxu0
    %v1745 = vadd.f32 %v1635, %v1744
    %v1746 = vpop.f32.mrb[0].mxu0
    %v1747 = vpop.f32.mrb[0].mxu0
    %v1748 = vadd.f32 %v1638, %v1747
    %v1749 = vpop.f32.mrb[0].mxu0
    %1750 = vmatprep.mubr.bf16.mxu0 0
    %1751 = vmatmul.mubr.bf16.gmra.mrb[0].mxu0 %v1694
    %v1752 = vpop.f32.mrb[0].mxu0
    %v1753 = vadd.f32 %v1643, %v1752
    %v1754 = vpop.f32.mrb[0].mxu0
    %v1755 = vpop.f32.mrb[0].mxu0
    %v1756 = vadd.f32 %v1646, %v1755
    %v1757 = vpop.f32.mrb[0].mxu0
    %1758 = vmatprep.mubr.bf16.mxu0 0
    %1759 = vmatmul.mubr.bf16.gmra.mrb[0].mxu0 %v1697
    %v1760 = vpop.f32.mrb[0].mxu0
    %v1761 = vadd.f32 %v1651, %v1760
    %v1762 = vpop.f32.mrb[0].mxu0
    %v1763 = vpop.f32.mrb[0].mxu0
    %v1764 = vadd.f32 %v1654, %v1763
    %v1765 = vpop.f32.mrb[0].mxu0
    %1766 = vmatprep.mubr.bf16.mxu0 0
    %1767 = vmatmul.mubr.bf16.gmra.mrb[0].mxu0 %v1700
    %v1768 = vpop.f32.mrb[0].mxu0
    %v1769 = vadd.f32 %v1659, %v1768
    %v1770 = vpop.f32.mrb[0].mxu0
    %v1771 = vpop.f32.mrb[0].mxu0
    %v1772 = vpop.f32.mrb[0].mxu0
    %1773 = vdwg.mxu0
    %v1774 = vadd.f32 %v1737, %v1553
    %v1775 = vadd.f32 %v1740, %v1556
    %v1776 = vadd.f32 %v1745, %v1561
    %v1777 = vadd.f32 %v1748, %v1564
    %v1778 = vadd.f32 %v1753, %v1569
    %v1779 = vadd.f32 %v1756, %v1572
    %v1780 = vadd.f32 %v1761, %v1577
    %v1781 = vadd.f32 %v1764, %v1580
    %v1782 = vadd.f32 %v1769, %v1585
    %vm1783 = vcmp.ge.f32.partialorder %v1774, 0.0
    %vm1784 = vcmp.ge.f32.partialorder %v1775, 0.0
    %vm1785 = vcmp.ge.f32.partialorder %v1776, 0.0
    %vm1786 = vcmp.ge.f32.partialorder %v1777, 0.0
    %vm1787 = vcmp.ge.f32.partialorder %v1778, 0.0
    %vm1788 = vcmp.ge.f32.partialorder %v1779, 0.0
    %vm1789 = vcmp.ge.f32.partialorder %v1780, 0.0
    %vm1790 = vcmp.ge.f32.partialorder %v1781, 0.0
    %vm1791 = vcmp.ge.f32.partialorder %v1782, 0.0
    %v1792 = vmul.f32 %v1774, 0.2
    %v1793 = vmul.f32 %v1775, 0.2
    %v1794 = vmul.f32 %v1776, 0.2
    %v1795 = vmul.f32 %v1777, 0.2
    %v1796 = vmul.f32 %v1778, 0.2
    %v1797 = vmul.f32 %v1779, 0.2
    %v1798 = vmul.f32 %v1780, 0.2
    %v1799 = vmul.f32 %v1781, 0.2
    %v1800 = vmul.f32 %v1782, 0.2
    %v1801 = vsel %vm1783, %v1774, %v1792
    %v1802 = vsel %vm1784, %v1775, %v1793
    %v1803 = vsel %vm1785, %v1776, %v1794
    %v1804 = vsel %vm1786, %v1777, %v1795
    %v1805 = vsel %vm1787, %v1778, %v1796
    %v1806 = vsel %vm1788, %v1779, %v1797
    %v1807 = vsel %vm1789, %v1780, %v1798
    %v1808 = vsel %vm1790, %v1781, %v1799
    %v1809 = vsel %vm1791, %v1782, %v1800
    %vm1810 = vcmp.gt.f32.partialorder %v1025, 0.0
    %vm1811 = vcmp.gt.f32.partialorder %v1026, 0.0
    %vm1812 = vcmp.gt.f32.partialorder %v1027, 0.0
    %vm1813 = vcmp.gt.f32.partialorder %v1028, 0.0
    %vm1814 = vcmp.gt.f32.partialorder %v1029, 0.0
    %vm1815 = vcmp.gt.f32.partialorder %v1030, 0.0
    %vm1816 = vcmp.gt.f32.partialorder %v1031, 0.0
    %vm1817 = vcmp.gt.f32.partialorder %v1032, 0.0
    %vm1818 = vcmp.gt.f32.partialorder %v1033, 0.0
    %v1819 = vsel %vm1810, %v1801, -1e+09
    %v1820 = vsel %vm1811, %v1802, -1e+09
    %v1821 = vsel %vm1812, %v1803, -1e+09
    %v1822 = vsel %vm1813, %v1804, -1e+09
    %v1823 = vsel %vm1814, %v1805, -1e+09
    %v1824 = vsel %vm1815, %v1806, -1e+09
    %v1825 = vsel %vm1816, %v1807, -1e+09
    %v1826 = vsel %vm1817, %v1808, -1e+09
    %v1827 = vsel %vm1818, %v1809, -1e+09
    %vm1828 = vcmask 195584
    %v1829 = vsel %vm1828, %v1819, -inf
    %v1830 = vsel %vm1828, %v1820, -inf
    %v1831 = vsel %vm1828, %v1821, -inf
    %v1832 = vsel %vm1828, %v1822, -inf
    %v1833 = vsel %vm1828, %v1823, -inf
    %v1834 = vmax.f32 %v1829, %v1833
    %v1835 = vsel %vm1828, %v1824, -inf
    %v1836 = vmax.f32 %v1830, %v1835
    %v1837 = vsel %vm1828, %v1825, -inf
    %v1838 = vmax.f32 %v1831, %v1837
    %v1839 = vsel %vm1828, %v1826, -inf
    %v1840 = vmax.f32 %v1832, %v1839
    %v1841 = vsel %vm1828, %v1827, -inf
    %v1842 = vmax.f32 %v1834, %v1841
    %v1843 = vmax.f32 %v1842, %v1836
    %v1844 = vmax.f32 %v1838, %v1840
    %v1845 = vmax.f32 %v1843, %v1844
    %v1846 = vrot.slane %v1845, 4
    %v1847 = vmax.f32 %v1845, %v1846
    %v1848 = vrot.slane %v1847, 2
    %v1849 = vmax.f32 %v1847, %v1848
    %v1850 = vrot.slane %v1849, 1
    %v1851 = vmax.f32 %v1849, %v1850
    %v1852 = vsub.f32 %v1819, %v1851
    %v1853 = vsub.f32 %v1820, %v1851
    %v1854 = vsub.f32 %v1821, %v1851
    %v1855 = vsub.f32 %v1822, %v1851
    %v1856 = vsub.f32 %v1823, %v1851
    %v1857 = vsub.f32 %v1824, %v1851
    %v1858 = vsub.f32 %v1825, %v1851
    %v1859 = vsub.f32 %v1826, %v1851
    %v1860 = vsub.f32 %v1827, %v1851
    %v1861 = vmul.f32 %v1852, 1.442695
    %v1862 = vpow.pop %v1861
    %v1863 = vmul.f32 %v1853, 1.442695
    %v1864 = vpow.pop %v1863
    %v1865 = vmul.f32 %v1854, 1.442695
    %v1866 = vpow.pop %v1865
    %v1867 = vmul.f32 %v1855, 1.442695
    %v1868 = vpow.pop %v1867
    %v1869 = vmul.f32 %v1856, 1.442695
    %v1870 = vpow.pop %v1869
    %v1871 = vmul.f32 %v1857, 1.442695
    %v1872 = vpow.pop %v1871
    %v1873 = vmul.f32 %v1858, 1.442695
    %v1874 = vpow.pop %v1873
    %v1875 = vmul.f32 %v1859, 1.442695
    %v1876 = vpow.pop %v1875
    %v1877 = vmul.f32 %v1860, 1.442695
    %v1878 = vpow.pop %v1877
    %v1879 = vmul.f32 %v1862, %v1025
    %v1880 = vmul.f32 %v1864, %v1026
    %v1881 = vmul.f32 %v1866, %v1027
    %v1882 = vmul.f32 %v1868, %v1028
    %v1883 = vmul.f32 %v1870, %v1029
    %v1884 = vmul.f32 %v1872, %v1030
    %v1885 = vmul.f32 %v1874, %v1031
    %v1886 = vmul.f32 %v1876, %v1032
    %v1887 = vmul.f32 %v1878, %v1033
    %v1888 = vpack.c.bf16 %v1880, %v1879
    %v1889 = vpack.c.bf16 %v1882, %v1881
    %v1890 = vpack.c.bf16 %v1884, %v1883
    %v1891 = vpack.c.bf16 %v1886, %v1885
    %v1892 = vpack.c.bf16 %v1887, %v1887
    %vm1893 = vcmask 588800
    %v1895 = vsel %vm1893, %v841, 0
    %v1898 = vsel %vm962, %v1892, 0
    %1900 = vmatprep.subr.bf16.mxu0 0
    %1901 = vmatpush1.bf16.msra.mxu0 %v1888
    %1902 = vmatprep.subr.bf16.mxu0 0
    %1903 = vmatpush1.bf16.msra.mxu0 %v1889
    %1904 = vmatprep.subr.bf16.mxu0 0
    %1905 = vmatpush1.bf16.msra.mxu0 %v1890
    %1906 = vmatprep.subr.bf16.mxu0 0
    %1907 = vmatpush1.bf16.msra.mxu0 %v1891
    %1908 = vmatprep.subr.bf16.mxu0 0
    %1909 = vmatpush1.bf16.msra.mxu0 %v1898
    %1910 = vmatprep.subr.bf16.mxu0 0
    %1911 = vmatpush1.bf16.msra.mxu0 0
    %1912 = vmatprep.subr.bf16.mxu0 0
    %1913 = vmatpush1.bf16.msra.mxu0 0
    %1914 = vmatprep.subr.bf16.mxu0 0
    %1915 = vmatpush1.bf16.msra.mxu0 0
    %1916 = vmatprep.subr.bf16.mxu0 0
    %1917 = vmatpush1.bf16.msra.mxu0 0
    %1918 = vmatprep.subr.bf16.mxu0 0
    %1919 = vmatpush1.bf16.msra.mxu0 0
    %1920 = vmatprep.subr.bf16.mxu0 0
    %1921 = vmatpush1.bf16.msra.mxu0 0
    %1922 = vmatprep.subr.bf16.mxu0 0
    %1923 = vmatpush1.bf16.msra.mxu0 0
    %1924 = vmatprep.subr.bf16.mxu0 0
    %1925 = vmatpush1.bf16.msra.mxu0 0
    %1926 = vmatprep.subr.bf16.mxu0 0
    %1927 = vmatpush1.bf16.msra.mxu0 0
    %1928 = vmatprep.subr.bf16.mxu0 0
    %1929 = vmatpush1.bf16.msra.mxu0 0
    %1930 = vmatprep.subr.bf16.mxu0 0
    %1931 = vmatpush1.bf16.msra.mxu0 0
    %1932 = vmatprep.mubr.bf16.mxu0 0
    %1933 = vmatmul.mubr.bf16.gmra.mrb[0].mxu0 %v1895
    %v1934 = vpop.f32.mrb[0].mxu0
    %v1935 = vadd.f32 0.0, %v1934
    %v1936 = vpop.f32.mrb[0].mxu0
    %v1937 = vpop.f32.mrb[0].mxu0
    %v1938 = vadd.f32 0.0, %v1937
    %v1939 = vpop.f32.mrb[0].mxu0
    %1940 = vdwg.mxu0
    %v1941 = vmax.f32 %v1935, 1e-20
    %v1942 = vmax.f32 %v1938, 1e-20
    %v1943 = vrcp.pop %v1941
    %v1944 = vrcp.pop %v1942
    %v1945 = vpack.c.bf16 %v1234, %v1230
    %v1946 = vpack.c.bf16 %v1236, %v1232
    %v1947 = vpack.c.bf16 %v1276, %v1273
    %1948 = vmatprep.subr.bf16.mxu0 %v1946
    %1949 = vmatpush1.bf16.msra.mxu0 %v1945
    %1950 = vmatprep.subr.bf16.mxu0 0
    %1951 = vmatpush1.bf16.msra.mxu0 0
    %1952 = vmatprep.subr.bf16.mxu0 0
    %1953 = vmatpush1.bf16.msra.mxu0 0
    %1954 = vmatprep.subr.bf16.mxu0 0
    %1955 = vmatpush1.bf16.msra.mxu0 0
    %1956 = vmatprep.subr.bf16.mxu0 0
    %1957 = vmatpush1.bf16.msra.mxu0 0
    %1958 = vmatprep.subr.bf16.mxu0 0
    %1959 = vmatpush1.bf16.msra.mxu0 0
    %1960 = vmatprep.subr.bf16.mxu0 0
    %1961 = vmatpush1.bf16.msra.mxu0 0
    %1962 = vmatprep.subr.bf16.mxu0 0
    %1963 = vmatpush1.bf16.msra.mxu0 0
    %1964 = vmatprep.subr.bf16.mxu0 0
    %1965 = vmatpush1.bf16.msra.mxu0 0
    %1966 = vmatprep.subr.bf16.mxu0 0
    %1967 = vmatpush1.bf16.msra.mxu0 0
    %1968 = vmatprep.subr.bf16.mxu0 0
    %1969 = vmatpush1.bf16.msra.mxu0 0
    %1970 = vmatprep.subr.bf16.mxu0 0
    %1971 = vmatpush1.bf16.msra.mxu0 0
    %1972 = vmatprep.subr.bf16.mxu0 0
    %1973 = vmatpush1.bf16.msra.mxu0 0
    %1974 = vmatprep.subr.bf16.mxu0 0
    %1975 = vmatpush1.bf16.msra.mxu0 0
    %1976 = vmatprep.subr.bf16.mxu0 0
    %1977 = vmatpush1.bf16.msra.mxu0 0
    %1978 = vmatprep.subr.bf16.mxu0 0
    %1979 = vmatpush1.bf16.msra.mxu0 0
    %1980 = vmatprep.mubr.bf16.mxu0 0
    %1981 = vmatmul.mubr.bf16.gmra.mrb[0].mxu0 %v1688
    %v1982 = vpop.f32.mrb[0].mxu0
    %v1983 = vadd.f32 0.0, %v1982
    %v1984 = vpop.f32.mrb[0].mxu0
    %v1985 = vadd.f32 0.0, %v1984
    %v1986 = vpop.f32.mrb[0].mxu0
    %v1987 = vadd.f32 0.0, %v1986
    %v1988 = vpop.f32.mrb[0].mxu0
    %v1989 = vadd.f32 0.0, %v1988
    %1990 = vmatprep.mubr.bf16.mxu0 0
    %1991 = vmatmul.mubr.bf16.gmra.mrb[0].mxu0 %v1691
    %v1992 = vpop.f32.mrb[0].mxu0
    %v1993 = vadd.f32 0.0, %v1992
    %v1994 = vpop.f32.mrb[0].mxu0
    %v1995 = vadd.f32 0.0, %v1994
    %v1996 = vpop.f32.mrb[0].mxu0
    %v1997 = vadd.f32 0.0, %v1996
    %v1998 = vpop.f32.mrb[0].mxu0
    %v1999 = vadd.f32 0.0, %v1998
    %2000 = vmatprep.mubr.bf16.mxu0 0
    %2001 = vmatmul.mubr.bf16.gmra.mrb[0].mxu0 %v1694
    %v2002 = vpop.f32.mrb[0].mxu0
    %v2003 = vadd.f32 0.0, %v2002
    %v2004 = vpop.f32.mrb[0].mxu0
    %v2005 = vadd.f32 0.0, %v2004
    %v2006 = vpop.f32.mrb[0].mxu0
    %v2007 = vadd.f32 0.0, %v2006
    %v2008 = vpop.f32.mrb[0].mxu0
    %v2009 = vadd.f32 0.0, %v2008
    %2010 = vmatprep.mubr.bf16.mxu0 0
    %2011 = vmatmul.mubr.bf16.gmra.mrb[0].mxu0 %v1697
    %v2012 = vpop.f32.mrb[0].mxu0
    %v2013 = vadd.f32 0.0, %v2012
    %v2014 = vpop.f32.mrb[0].mxu0
    %v2015 = vadd.f32 0.0, %v2014
    %v2016 = vpop.f32.mrb[0].mxu0
    %v2017 = vadd.f32 0.0, %v2016
    %v2018 = vpop.f32.mrb[0].mxu0
    %v2019 = vadd.f32 0.0, %v2018
    %2020 = vmatprep.mubr.bf16.mxu0 0
    %2021 = vmatmul.mubr.bf16.gmra.mrb[0].mxu0 %v1700
    %v2022 = vpop.f32.mrb[0].mxu0
    %v2023 = vadd.f32 0.0, %v2022
    %v2024 = vpop.f32.mrb[0].mxu0
    %v2025 = vadd.f32 0.0, %v2024
    %v2026 = vpop.f32.mrb[0].mxu0
    %v2027 = vpop.f32.mrb[0].mxu0
    %2028 = vdwg.mxu0
    %2029 = vmatprep.subr.bf16.mxu0 0
    %2030 = vmatpush1.bf16.msra.mxu0 %v1947
    %2031 = vmatprep.subr.bf16.mxu0 0
    %2032 = vmatpush1.bf16.msra.mxu0 0
    %2033 = vmatprep.subr.bf16.mxu0 0
    %2034 = vmatpush1.bf16.msra.mxu0 0
    %2035 = vmatprep.subr.bf16.mxu0 0
    %2036 = vmatpush1.bf16.msra.mxu0 0
    %2037 = vmatprep.subr.bf16.mxu0 0
    %2038 = vmatpush1.bf16.msra.mxu0 0
    %2039 = vmatprep.subr.bf16.mxu0 0
    %2040 = vmatpush1.bf16.msra.mxu0 0
    %2041 = vmatprep.subr.bf16.mxu0 0
    %2042 = vmatpush1.bf16.msra.mxu0 0
    %2043 = vmatprep.subr.bf16.mxu0 0
    %2044 = vmatpush1.bf16.msra.mxu0 0
    %2045 = vmatprep.subr.bf16.mxu0 0
    %2046 = vmatpush1.bf16.msra.mxu0 0
    %2047 = vmatprep.subr.bf16.mxu0 0
    %2048 = vmatpush1.bf16.msra.mxu0 0
    %2049 = vmatprep.subr.bf16.mxu0 0
    %2050 = vmatpush1.bf16.msra.mxu0 0
    %2051 = vmatprep.subr.bf16.mxu0 0
    %2052 = vmatpush1.bf16.msra.mxu0 0
    %2053 = vmatprep.subr.bf16.mxu0 0
    %2054 = vmatpush1.bf16.msra.mxu0 0
    %2055 = vmatprep.subr.bf16.mxu0 0
    %2056 = vmatpush1.bf16.msra.mxu0 0
    %2057 = vmatprep.subr.bf16.mxu0 0
    %2058 = vmatpush1.bf16.msra.mxu0 0
    %2059 = vmatprep.subr.bf16.mxu0 0
    %2060 = vmatpush1.bf16.msra.mxu0 0
    %2061 = vmatprep.mubr.bf16.mxu0 0
    %2062 = vmatmul.mubr.bf16.gmra.mrb[0].mxu0 %v1688
    %v2063 = vpop.f32.mrb[0].mxu0
    %v2064 = vadd.f32 0.0, %v2063
    %v2065 = vpop.f32.mrb[0].mxu0
    %v2066 = vpop.f32.mrb[0].mxu0
    %v2067 = vadd.f32 0.0, %v2066
    %v2068 = vpop.f32.mrb[0].mxu0
    %2069 = vmatprep.mubr.bf16.mxu0 0
    %2070 = vmatmul.mubr.bf16.gmra.mrb[0].mxu0 %v1691
    %v2071 = vpop.f32.mrb[0].mxu0
    %v2072 = vadd.f32 0.0, %v2071
    %v2073 = vpop.f32.mrb[0].mxu0
    %v2074 = vpop.f32.mrb[0].mxu0
    %v2075 = vadd.f32 0.0, %v2074
    %v2076 = vpop.f32.mrb[0].mxu0
    %2077 = vmatprep.mubr.bf16.mxu0 0
    %2078 = vmatmul.mubr.bf16.gmra.mrb[0].mxu0 %v1694
    %v2079 = vpop.f32.mrb[0].mxu0
    %v2080 = vadd.f32 0.0, %v2079
    %v2081 = vpop.f32.mrb[0].mxu0
    %v2082 = vpop.f32.mrb[0].mxu0
    %v2083 = vadd.f32 0.0, %v2082
    %v2084 = vpop.f32.mrb[0].mxu0
    %2085 = vmatprep.mubr.bf16.mxu0 0
    %2086 = vmatmul.mubr.bf16.gmra.mrb[0].mxu0 %v1697
    %v2087 = vpop.f32.mrb[0].mxu0
    %v2088 = vadd.f32 0.0, %v2087
    %v2089 = vpop.f32.mrb[0].mxu0
    %v2090 = vpop.f32.mrb[0].mxu0
    %v2091 = vadd.f32 0.0, %v2090
    %v2092 = vpop.f32.mrb[0].mxu0
    %2093 = vmatprep.mubr.bf16.mxu0 0
    %2094 = vmatmul.mubr.bf16.gmra.mrb[0].mxu0 %v1700
    %v2095 = vpop.f32.mrb[0].mxu0
    %v2096 = vadd.f32 0.0, %v2095
    %v2097 = vpop.f32.mrb[0].mxu0
    %v2098 = vpop.f32.mrb[0].mxu0
    %v2099 = vpop.f32.mrb[0].mxu0
    %2100 = vdwg.mxu0
    %v2107 = vunpack.c.l.b16 %v668
    %v2108 = vunpack.c.h.b16 %v668
    %v2109 = vunpack.c.l.b16 %v669
    %v2110 = vunpack.c.l.b16 %v670
    %v2111 = vunpack.c.h.b16 %v670
    %v2112 = vunpack.c.l.b16 %v671
    %v2113 = vunpack.c.l.b16 %v672
    %v2114 = vunpack.c.h.b16 %v672
    %v2115 = vunpack.c.l.b16 %v673
    %v2116 = vpack.c.b16 %v2110, %v2107
    %v2117 = vpack.c.b16 %v2111, %v2108
    %v2118 = vpack.c.b16 %v2112, %v2109
    %v2119 = vpack.c.b16 %v2113, %v2113
    %v2120 = vpack.c.b16 %v2114, %v2114
    %v2121 = vpack.c.b16 %v2115, %v2115
    %v2126 = vsel %vm1828, %v1888, 0
    %v2129 = vsel %vm1828, %v1889, 0
    %v2132 = vsel %vm1828, %v1890, 0
    %v2135 = vsel %vm1828, %v1891, 0
    %v2137 = vsel %vm1828, %v1892, 0
    %v2140 = vsel %vm962, %v2119, 0
    %v2143 = vsel %vm962, %v2120, 0
    %v2146 = vsel %vm962, %v2121, 0
    %2148 = vmatprep.subr.bf16.mxu0 %v2117
    %2149 = vmatpush1.bf16.msra.mxu0 %v2116
    %2150 = vmatprep.subr.bf16.mxu0 %v2143
    %2151 = vmatpush1.bf16.msra.mxu0 %v2140
    %2152 = vmatprep.subr.bf16.mxu0 0
    %2153 = vmatpush1.bf16.msra.mxu0 0
    %2154 = vmatprep.subr.bf16.mxu0 0
    %2155 = vmatpush1.bf16.msra.mxu0 0
    %2156 = vmatprep.subr.bf16.mxu0 0
    %2157 = vmatpush1.bf16.msra.mxu0 0
    %2158 = vmatprep.subr.bf16.mxu0 0
    %2159 = vmatpush1.bf16.msra.mxu0 0
    %2160 = vmatprep.subr.bf16.mxu0 0
    %2161 = vmatpush1.bf16.msra.mxu0 0
    %2162 = vmatprep.subr.bf16.mxu0 0
    %2163 = vmatpush1.bf16.msra.mxu0 0
    %2164 = vmatprep.subr.bf16.mxu0 0
    %2165 = vmatpush1.bf16.msra.mxu0 0
    %2166 = vmatprep.subr.bf16.mxu0 0
    %2167 = vmatpush1.bf16.msra.mxu0 0
    %2168 = vmatprep.subr.bf16.mxu0 0
    %2169 = vmatpush1.bf16.msra.mxu0 0
    %2170 = vmatprep.subr.bf16.mxu0 0
    %2171 = vmatpush1.bf16.msra.mxu0 0
    %2172 = vmatprep.subr.bf16.mxu0 0
    %2173 = vmatpush1.bf16.msra.mxu0 0
    %2174 = vmatprep.subr.bf16.mxu0 0
    %2175 = vmatpush1.bf16.msra.mxu0 0
    %2176 = vmatprep.subr.bf16.mxu0 0
    %2177 = vmatpush1.bf16.msra.mxu0 0
    %2178 = vmatprep.subr.bf16.mxu0 0
    %2179 = vmatpush1.bf16.msra.mxu0 0
    %2180 = vmatprep.mubr.bf16.mxu0 0
    %2181 = vmatmul.mubr.bf16.gmra.mrb[0].mxu0 %v2126
    %v2182 = vpop.f32.mrb[0].mxu0
    %v2183 = vadd.f32 0.0, %v2182
    %v2184 = vpop.f32.mrb[0].mxu0
    %v2185 = vadd.f32 0.0, %v2184
    %v2186 = vpop.f32.mrb[0].mxu0
    %v2187 = vadd.f32 0.0, %v2186
    %v2188 = vpop.f32.mrb[0].mxu0
    %v2189 = vadd.f32 0.0, %v2188
    %2190 = vmatprep.mubr.bf16.mxu0 0
    %2191 = vmatmul.mubr.bf16.gmra.mrb[0].mxu0 %v2129
    %v2192 = vpop.f32.mrb[0].mxu0
    %v2193 = vadd.f32 0.0, %v2192
    %v2194 = vpop.f32.mrb[0].mxu0
    %v2195 = vadd.f32 0.0, %v2194
    %v2196 = vpop.f32.mrb[0].mxu0
    %v2197 = vadd.f32 0.0, %v2196
    %v2198 = vpop.f32.mrb[0].mxu0
    %v2199 = vadd.f32 0.0, %v2198
    %2200 = vmatprep.mubr.bf16.mxu0 0
    %2201 = vmatmul.mubr.bf16.gmra.mrb[0].mxu0 %v2132
    %v2202 = vpop.f32.mrb[0].mxu0
    %v2203 = vadd.f32 0.0, %v2202
    %v2204 = vpop.f32.mrb[0].mxu0
    %v2205 = vadd.f32 0.0, %v2204
    %v2206 = vpop.f32.mrb[0].mxu0
    %v2207 = vadd.f32 0.0, %v2206
    %v2208 = vpop.f32.mrb[0].mxu0
    %v2209 = vadd.f32 0.0, %v2208
    %2210 = vmatprep.mubr.bf16.mxu0 0
    %2211 = vmatmul.mubr.bf16.gmra.mrb[0].mxu0 %v2135
    %v2212 = vpop.f32.mrb[0].mxu0
    %v2213 = vadd.f32 0.0, %v2212
    %v2214 = vpop.f32.mrb[0].mxu0
    %v2215 = vadd.f32 0.0, %v2214
    %v2216 = vpop.f32.mrb[0].mxu0
    %v2217 = vadd.f32 0.0, %v2216
    %v2218 = vpop.f32.mrb[0].mxu0
    %v2219 = vadd.f32 0.0, %v2218
    %2220 = vmatprep.mubr.bf16.mxu0 0
    %2221 = vmatmul.mubr.bf16.gmra.mrb[0].mxu0 %v2137
    %v2222 = vpop.f32.mrb[0].mxu0
    %v2223 = vadd.f32 0.0, %v2222
    %v2224 = vpop.f32.mrb[0].mxu0
    %v2225 = vadd.f32 0.0, %v2224
    %v2226 = vpop.f32.mrb[0].mxu0
    %v2227 = vpop.f32.mrb[0].mxu0
    %2228 = vdwg.mxu0
    %2229 = vmatprep.subr.bf16.mxu0 0
    %2230 = vmatpush1.bf16.msra.mxu0 %v2118
    %2231 = vmatprep.subr.bf16.mxu0 0
    %2232 = vmatpush1.bf16.msra.mxu0 %v2146
    %2233 = vmatprep.subr.bf16.mxu0 0
    %2234 = vmatpush1.bf16.msra.mxu0 0
    %2235 = vmatprep.subr.bf16.mxu0 0
    %2236 = vmatpush1.bf16.msra.mxu0 0
    %2237 = vmatprep.subr.bf16.mxu0 0
    %2238 = vmatpush1.bf16.msra.mxu0 0
    %2239 = vmatprep.subr.bf16.mxu0 0
    %2240 = vmatpush1.bf16.msra.mxu0 0
    %2241 = vmatprep.subr.bf16.mxu0 0
    %2242 = vmatpush1.bf16.msra.mxu0 0
    %2243 = vmatprep.subr.bf16.mxu0 0
    %2244 = vmatpush1.bf16.msra.mxu0 0
    %2245 = vmatprep.subr.bf16.mxu0 0
    %2246 = vmatpush1.bf16.msra.mxu0 0
    %2247 = vmatprep.subr.bf16.mxu0 0
    %2248 = vmatpush1.bf16.msra.mxu0 0
    %2249 = vmatprep.subr.bf16.mxu0 0
    %2250 = vmatpush1.bf16.msra.mxu0 0
    %2251 = vmatprep.subr.bf16.mxu0 0
    %2252 = vmatpush1.bf16.msra.mxu0 0
    %2253 = vmatprep.subr.bf16.mxu0 0
    %2254 = vmatpush1.bf16.msra.mxu0 0
    %2255 = vmatprep.subr.bf16.mxu0 0
    %2256 = vmatpush1.bf16.msra.mxu0 0
    %2257 = vmatprep.subr.bf16.mxu0 0
    %2258 = vmatpush1.bf16.msra.mxu0 0
    %2259 = vmatprep.subr.bf16.mxu0 0
    %2260 = vmatpush1.bf16.msra.mxu0 0
    %2261 = vmatprep.mubr.bf16.mxu0 0
    %2262 = vmatmul.mubr.bf16.gmra.mrb[0].mxu0 %v2126
    %v2263 = vpop.f32.mrb[0].mxu0
    %v2264 = vadd.f32 0.0, %v2263
    %v2265 = vpop.f32.mrb[0].mxu0
    %v2266 = vpop.f32.mrb[0].mxu0
    %v2267 = vadd.f32 0.0, %v2266
    %v2268 = vpop.f32.mrb[0].mxu0
    %2269 = vmatprep.mubr.bf16.mxu0 0
    %2270 = vmatmul.mubr.bf16.gmra.mrb[0].mxu0 %v2129
    %v2271 = vpop.f32.mrb[0].mxu0
    %v2272 = vadd.f32 0.0, %v2271
    %v2273 = vpop.f32.mrb[0].mxu0
    %v2274 = vpop.f32.mrb[0].mxu0
    %v2275 = vadd.f32 0.0, %v2274
    %v2276 = vpop.f32.mrb[0].mxu0
    %2277 = vmatprep.mubr.bf16.mxu0 0
    %2278 = vmatmul.mubr.bf16.gmra.mrb[0].mxu0 %v2132
    %v2279 = vpop.f32.mrb[0].mxu0
    %v2280 = vadd.f32 0.0, %v2279
    %v2281 = vpop.f32.mrb[0].mxu0
    %v2282 = vpop.f32.mrb[0].mxu0
    %v2283 = vadd.f32 0.0, %v2282
    %v2284 = vpop.f32.mrb[0].mxu0
    %2285 = vmatprep.mubr.bf16.mxu0 0
    %2286 = vmatmul.mubr.bf16.gmra.mrb[0].mxu0 %v2135
    %v2287 = vpop.f32.mrb[0].mxu0
    %v2288 = vadd.f32 0.0, %v2287
    %v2289 = vpop.f32.mrb[0].mxu0
    %v2290 = vpop.f32.mrb[0].mxu0
    %v2291 = vadd.f32 0.0, %v2290
    %v2292 = vpop.f32.mrb[0].mxu0
    %2293 = vmatprep.mubr.bf16.mxu0 0
    %2294 = vmatmul.mubr.bf16.gmra.mrb[0].mxu0 %v2137
    %v2295 = vpop.f32.mrb[0].mxu0
    %v2296 = vadd.f32 0.0, %v2295
    %v2297 = vpop.f32.mrb[0].mxu0
    %v2298 = vpop.f32.mrb[0].mxu0
    %v2299 = vpop.f32.mrb[0].mxu0
    %2300 = vdwg.mxu0
    %v2301 = vmul.f32 %v1983, %v2183
    %v2302 = vmul.f32 %v1985, %v2185
    %v2303 = vmul.f32 %v2064, %v2264
    %v2304 = vmul.f32 %v1987, %v2187
    %v2305 = vmul.f32 %v1989, %v2189
    %v2306 = vmul.f32 %v2067, %v2267
    %v2307 = vmul.f32 %v1993, %v2193
    %v2308 = vmul.f32 %v1995, %v2195
    %v2309 = vmul.f32 %v2072, %v2272
    %v2310 = vmul.f32 %v1997, %v2197
    %v2311 = vmul.f32 %v1999, %v2199
    %v2312 = vmul.f32 %v2075, %v2275
    %v2313 = vmul.f32 %v2003, %v2203
    %v2314 = vmul.f32 %v2005, %v2205
    %v2315 = vmul.f32 %v2080, %v2280
    %v2316 = vmul.f32 %v2007, %v2207
    %v2317 = vmul.f32 %v2009, %v2209
    %v2318 = vmul.f32 %v2083, %v2283
    %v2319 = vmul.f32 %v2013, %v2213
    %v2320 = vmul.f32 %v2015, %v2215
    %v2321 = vmul.f32 %v2088, %v2288
    %v2322 = vmul.f32 %v2017, %v2217
    %v2323 = vmul.f32 %v2019, %v2219
    %v2324 = vmul.f32 %v2091, %v2291
    %v2325 = vmul.f32 %v2023, %v2223
    %v2326 = vmul.f32 %v2025, %v2225
    %v2327 = vmul.f32 %v2096, %v2296
    %v2328 = vpack.c.bf16 %v2304, %v2301
    %v2329 = vpack.c.bf16 %v2305, %v2302
    %v2330 = vpack.c.bf16 %v2306, %v2303
    %v2331 = vpack.c.bf16 %v2310, %v2307
    %v2332 = vpack.c.bf16 %v2311, %v2308
    %v2333 = vpack.c.bf16 %v2312, %v2309
    %v2334 = vpack.c.bf16 %v2316, %v2313
    %v2335 = vpack.c.bf16 %v2317, %v2314
    %v2336 = vpack.c.bf16 %v2318, %v2315
    %v2337 = vpack.c.bf16 %v2322, %v2319
    %v2338 = vpack.c.bf16 %v2323, %v2320
    %v2339 = vpack.c.bf16 %v2324, %v2321
    %v2340 = vpack.c.bf16 %v2325, %v2325
    %v2341 = vpack.c.bf16 %v2326, %v2326
    %v2342 = vpack.c.bf16 %v2327, %v2327
    %v2344 = vsel %vm962, %v2340, 0
    %v2347 = vsel %vm962, %v2341, 0
    %v2350 = vsel %vm962, %v2342, 0
    %2352 = vmatprep.subr.bf16.mxu0 %v2329
    %2353 = vmatpush1.bf16.msra.mxu0 %v2328
    %2354 = vmatprep.subr.bf16.mxu0 %v2332
    %2355 = vmatpush1.bf16.msra.mxu0 %v2331
    %2356 = vmatprep.subr.bf16.mxu0 %v2335
    %2357 = vmatpush1.bf16.msra.mxu0 %v2334
    %2358 = vmatprep.subr.bf16.mxu0 %v2338
    %2359 = vmatpush1.bf16.msra.mxu0 %v2337
    %2360 = vmatprep.subr.bf16.mxu0 %v2347
    %2361 = vmatpush1.bf16.msra.mxu0 %v2344
    %2362 = vmatprep.subr.bf16.mxu0 0
    %2363 = vmatpush1.bf16.msra.mxu0 0
    %2364 = vmatprep.subr.bf16.mxu0 0
    %2365 = vmatpush1.bf16.msra.mxu0 0
    %2366 = vmatprep.subr.bf16.mxu0 0
    %2367 = vmatpush1.bf16.msra.mxu0 0
    %2368 = vmatprep.subr.bf16.mxu0 0
    %2369 = vmatpush1.bf16.msra.mxu0 0
    %2370 = vmatprep.subr.bf16.mxu0 0
    %2371 = vmatpush1.bf16.msra.mxu0 0
    %2372 = vmatprep.subr.bf16.mxu0 0
    %2373 = vmatpush1.bf16.msra.mxu0 0
    %2374 = vmatprep.subr.bf16.mxu0 0
    %2375 = vmatpush1.bf16.msra.mxu0 0
    %2376 = vmatprep.subr.bf16.mxu0 0
    %2377 = vmatpush1.bf16.msra.mxu0 0
    %2378 = vmatprep.subr.bf16.mxu0 0
    %2379 = vmatpush1.bf16.msra.mxu0 0
    %2380 = vmatprep.subr.bf16.mxu0 0
    %2381 = vmatpush1.bf16.msra.mxu0 0
    %2382 = vmatprep.subr.bf16.mxu0 0
    %2383 = vmatpush1.bf16.msra.mxu0 0
    %2384 = vmatprep.mubr.bf16.mxu0 0
    %2385 = vmatmul.mubr.bf16.gmra.mrb[0].mxu0 %v1895
    %v2386 = vpop.f32.mrb[0].mxu0
    %v2387 = vadd.f32 0.0, %v2386
    %v2388 = vpop.f32.mrb[0].mxu0
    %v2389 = vadd.f32 0.0, %v2388
    %v2390 = vpop.f32.mrb[0].mxu0
    %v2391 = vadd.f32 0.0, %v2390
    %v2392 = vpop.f32.mrb[0].mxu0
    %v2393 = vadd.f32 0.0, %v2392
    %2394 = vdwg.mxu0
    %2395 = vmatprep.subr.bf16.mxu0 0
    %2396 = vmatpush1.bf16.msra.mxu0 %v2330
    %2397 = vmatprep.subr.bf16.mxu0 0
    %2398 = vmatpush1.bf16.msra.mxu0 %v2333
    %2399 = vmatprep.subr.bf16.mxu0 0
    %2400 = vmatpush1.bf16.msra.mxu0 %v2336
    %2401 = vmatprep.subr.bf16.mxu0 0
    %2402 = vmatpush1.bf16.msra.mxu0 %v2339
    %2403 = vmatprep.subr.bf16.mxu0 0
    %2404 = vmatpush1.bf16.msra.mxu0 %v2350
    %2405 = vmatprep.subr.bf16.mxu0 0
    %2406 = vmatpush1.bf16.msra.mxu0 0
    %2407 = vmatprep.subr.bf16.mxu0 0
    %2408 = vmatpush1.bf16.msra.mxu0 0
    %2409 = vmatprep.subr.bf16.mxu0 0
    %2410 = vmatpush1.bf16.msra.mxu0 0
    %2411 = vmatprep.subr.bf16.mxu0 0
    %2412 = vmatpush1.bf16.msra.mxu0 0
    %2413 = vmatprep.subr.bf16.mxu0 0
    %2414 = vmatpush1.bf16.msra.mxu0 0
    %2415 = vmatprep.subr.bf16.mxu0 0
    %2416 = vmatpush1.bf16.msra.mxu0 0
    %2417 = vmatprep.subr.bf16.mxu0 0
    %2418 = vmatpush1.bf16.msra.mxu0 0
    %2419 = vmatprep.subr.bf16.mxu0 0
    %2420 = vmatpush1.bf16.msra.mxu0 0
    %2421 = vmatprep.subr.bf16.mxu0 0
    %2422 = vmatpush1.bf16.msra.mxu0 0
    %2423 = vmatprep.subr.bf16.mxu0 0
    %2424 = vmatpush1.bf16.msra.mxu0 0
    %2425 = vmatprep.subr.bf16.mxu0 0
    %2426 = vmatpush1.bf16.msra.mxu0 0
    %2427 = vmatprep.mubr.bf16.mxu0 0
    %2428 = vmatmul.mubr.bf16.gmra.mrb[0].mxu0 %v1895
    %v2429 = vpop.f32.mrb[0].mxu0
    %v2430 = vadd.f32 0.0, %v2429
    %v2431 = vpop.f32.mrb[0].mxu0
    %v2432 = vpop.f32.mrb[0].mxu0
    %v2433 = vadd.f32 0.0, %v2432
    %v2434 = vpop.f32.mrb[0].mxu0
    %2435 = vdwg.mxu0
    %v2436 = vpack.c.bf16 %v1944, %v1943
    %v2438 = vsel %vm1828, %v2436, 0
    %2440 = vmatprep.subr.bf16.mxu0 %v2117
    %2441 = vmatpush1.bf16.msra.mxu0 %v2116
    %2442 = vmatprep.subr.bf16.mxu0 %v2143
    %2443 = vmatpush1.bf16.msra.mxu0 %v2140
    %2444 = vmatprep.subr.bf16.mxu0 0
    %2445 = vmatpush1.bf16.msra.mxu0 0
    %2446 = vmatprep.subr.bf16.mxu0 0
    %2447 = vmatpush1.bf16.msra.mxu0 0
    %2448 = vmatprep.subr.bf16.mxu0 0
    %2449 = vmatpush1.bf16.msra.mxu0 0
    %2450 = vmatprep.subr.bf16.mxu0 0
    %2451 = vmatpush1.bf16.msra.mxu0 0
    %2452 = vmatprep.subr.bf16.mxu0 0
    %2453 = vmatpush1.bf16.msra.mxu0 0
    %2454 = vmatprep.subr.bf16.mxu0 0
    %2455 = vmatpush1.bf16.msra.mxu0 0
    %2456 = vmatprep.subr.bf16.mxu0 0
    %2457 = vmatpush1.bf16.msra.mxu0 0
    %2458 = vmatprep.subr.bf16.mxu0 0
    %2459 = vmatpush1.bf16.msra.mxu0 0
    %2460 = vmatprep.subr.bf16.mxu0 0
    %2461 = vmatpush1.bf16.msra.mxu0 0
    %2462 = vmatprep.subr.bf16.mxu0 0
    %2463 = vmatpush1.bf16.msra.mxu0 0
    %2464 = vmatprep.subr.bf16.mxu0 0
    %2465 = vmatpush1.bf16.msra.mxu0 0
    %2466 = vmatprep.subr.bf16.mxu0 0
    %2467 = vmatpush1.bf16.msra.mxu0 0
    %2468 = vmatprep.subr.bf16.mxu0 0
    %2469 = vmatpush1.bf16.msra.mxu0 0
    %2470 = vmatprep.subr.bf16.mxu0 0
    %2471 = vmatpush1.bf16.msra.mxu0 0
    %2472 = vmatprep.mubr.bf16.mxu0 0
    %2473 = vmatmul.mubr.bf16.gmra.mrb[0].mxu0 %v2438
    %v2474 = vpop.f32.mrb[0].mxu0
    %v2475 = vadd.f32 0.0, %v2474
    %v2476 = vpop.f32.mrb[0].mxu0
    %v2477 = vadd.f32 0.0, %v2476
    %v2478 = vpop.f32.mrb[0].mxu0
    %v2479 = vadd.f32 0.0, %v2478
    %v2480 = vpop.f32.mrb[0].mxu0
    %v2481 = vadd.f32 0.0, %v2480
    %2482 = vdwg.mxu0
    %2483 = vmatprep.subr.bf16.mxu0 0
    %2484 = vmatpush1.bf16.msra.mxu0 %v2118
    %2485 = vmatprep.subr.bf16.mxu0 0
    %2486 = vmatpush1.bf16.msra.mxu0 %v2146
    %2487 = vmatprep.subr.bf16.mxu0 0
    %2488 = vmatpush1.bf16.msra.mxu0 0
    %2489 = vmatprep.subr.bf16.mxu0 0
    %2490 = vmatpush1.bf16.msra.mxu0 0
    %2491 = vmatprep.subr.bf16.mxu0 0
    %2492 = vmatpush1.bf16.msra.mxu0 0
    %2493 = vmatprep.subr.bf16.mxu0 0
    %2494 = vmatpush1.bf16.msra.mxu0 0
    %2495 = vmatprep.subr.bf16.mxu0 0
    %2496 = vmatpush1.bf16.msra.mxu0 0
    %2497 = vmatprep.subr.bf16.mxu0 0
    %2498 = vmatpush1.bf16.msra.mxu0 0
    %2499 = vmatprep.subr.bf16.mxu0 0
    %2500 = vmatpush1.bf16.msra.mxu0 0
    %2501 = vmatprep.subr.bf16.mxu0 0
    %2502 = vmatpush1.bf16.msra.mxu0 0
    %2503 = vmatprep.subr.bf16.mxu0 0
    %2504 = vmatpush1.bf16.msra.mxu0 0
    %2505 = vmatprep.subr.bf16.mxu0 0
    %2506 = vmatpush1.bf16.msra.mxu0 0
    %2507 = vmatprep.subr.bf16.mxu0 0
    %2508 = vmatpush1.bf16.msra.mxu0 0
    %2509 = vmatprep.subr.bf16.mxu0 0
    %2510 = vmatpush1.bf16.msra.mxu0 0
    %2511 = vmatprep.subr.bf16.mxu0 0
    %2512 = vmatpush1.bf16.msra.mxu0 0
    %2513 = vmatprep.subr.bf16.mxu0 0
    %2514 = vmatpush1.bf16.msra.mxu0 0
    %2515 = vmatprep.mubr.bf16.mxu0 0
    %2516 = vmatmul.mubr.bf16.gmra.mrb[0].mxu0 %v2438
    %v2517 = vpop.f32.mrb[0].mxu0
    %v2518 = vadd.f32 0.0, %v2517
    %v2519 = vpop.f32.mrb[0].mxu0
    %v2520 = vpop.f32.mrb[0].mxu0
    %v2521 = vadd.f32 0.0, %v2520
    %v2522 = vpop.f32.mrb[0].mxu0
    %2523 = vdwg.mxu0
    %v2524 = vmul.f32 %v2387, %v2475
    %v2525 = vmul.f32 %v2389, %v2477
    %v2526 = vmul.f32 %v2430, %v2518
    %v2527 = vmul.f32 %v2391, %v2479
    %v2528 = vmul.f32 %v2393, %v2481
    %v2529 = vmul.f32 %v2433, %v2521
    %v2530 = vld [vmem:[#allocation24] sm:$0x7]
    %v2532 = vlaneseq
    %v2533 = vshrl.u32 %v2532, 7
    %v2534 = vsub.s32 0, %v2533
    %v2535 = vrot.slane %v2530, %v2534
    %v2536 = vlaneseq
    %v2537 = vshrl.u32 %v2536, 7
    %v2538 = vsub.s32 1, %v2537
    %v2539 = vrot.slane %v2530, %v2538
    %v2540 = vlaneseq
    %v2541 = vshrl.u32 %v2540, 7
    %v2542 = vsub.s32 2, %v2541
    %v2543 = vrot.slane %v2530, %v2542
    %v2547 = vadd.f32 %v2524, %v2535
    %v2548 = vadd.f32 %v2525, %v2539
    %v2549 = vadd.f32 %v2526, %v2543
    %v2550 = vadd.f32 %v2527, %v2535
    %v2551 = vadd.f32 %v2528, %v2539
    %v2552 = vadd.f32 %v2529, %v2543
    %v2553 = vld [vmem:[#allocation21] sm:$0xf]
    %v2554 = vld [vmem:[#allocation21 + $0x4] sm:$0xf]
    %v2555 = vld [vmem:[#allocation21 + $0x8] sm:$0xf]
    %v2556 = vld [vmem:[#allocation21 + $0xc] sm:$0xf]
    %v2557 = vld [vmem:[#allocation21 + $0x10] sm:$0xf]
    %v2558 = vld [vmem:[#allocation21 + $0x14] sm:$0xf]
    %v2559 = vld [vmem:[#allocation21 + $0x18] sm:$0xf]
    %v2560 = vld [vmem:[#allocation21 + $0x1c] sm:$0xf]
    %v2561 = vld [vmem:[#allocation21 + $0x20] sm:$0xf]
    %v2562 = vld [vmem:[#allocation21 + $0x24] sm:$0xf]
    %v2563 = vld [vmem:[#allocation21 + $0x28] sm:$0xf]
    %v2564 = vld [vmem:[#allocation21 + $0x2c] sm:$0xf]
    %v2565 = vld [vmem:[#allocation21 + $0x30] sm:$0xf]
    %v2566 = vld [vmem:[#allocation21 + $0x34] sm:$0xf]
    %v2567 = vld [vmem:[#allocation21 + $0x38] sm:$0xf]
    %v2568 = vld [vmem:[#allocation21 + $0x3c] sm:$0xf]
    %v2569 = vld [vmem:[#allocation21 + $0x40] sm:$0xf]
    %v2570 = vld [vmem:[#allocation21 + $0x44] sm:$0xf]
    %v2571 = vld [vmem:[#allocation21 + $0x48] sm:$0xf]
    %v2572 = vld [vmem:[#allocation21 + $0x4c] sm:$0xf]
    %v2573 = vld [vmem:[#allocation21 + $0x50] sm:$0xf]
    %v2574 = vld [vmem:[#allocation21 + $0x54] sm:$0xf]
    %v2575 = vld [vmem:[#allocation21 + $0x58] sm:$0xf]
    %v2576 = vld [vmem:[#allocation21 + $0x5c] sm:$0xf]
    %v2577 = vld [vmem:[#allocation21 + $0x60] sm:$0xf]
    %v2578 = vld [vmem:[#allocation21 + $0x64] sm:$0xf]
    %v2579 = vld [vmem:[#allocation21 + $0x68] sm:$0xf]
    %v2580 = vld [vmem:[#allocation21 + $0x6c] sm:$0xf]
    %v2581 = vld [vmem:[#allocation21 + $0x70] sm:$0xf]
    %v2582 = vld [vmem:[#allocation21 + $0x74] sm:$0xf]
    %v2583 = vld [vmem:[#allocation21 + $0x78] sm:$0xf]
    %v2584 = vld [vmem:[#allocation21 + $0x7c] sm:$0xf]
    %v2585 = vld [vmem:[#allocation21 + $0x80] sm:$0xf]
    %v2586 = vld [vmem:[#allocation21 + $0x84] sm:$0xf]
    %v2587 = vld [vmem:[#allocation21 + $0x88] sm:$0xf]
    %v2588 = vld [vmem:[#allocation21 + $0x8c] sm:$0xf]
    %v2589 = vld [vmem:[#allocation21 + $0x90] sm:$0xf]
    %v2590 = vld [vmem:[#allocation21 + $0x94] sm:$0xf]
    %v2591 = vld [vmem:[#allocation21 + $0x98] sm:$0xf]
    %v2592 = vld [vmem:[#allocation21 + $0x9c] sm:$0xf]
    %v2593 = vld [vmem:[#allocation21 + $0xa0] sm:$0xf]
    %v2594 = vld [vmem:[#allocation21 + $0xa4] sm:$0xf]
    %v2595 = vld [vmem:[#allocation21 + $0xa8] sm:$0xf]
    %v2596 = vld [vmem:[#allocation21 + $0xac] sm:$0xf]
    %v2597 = vld [vmem:[#allocation21 + $0xb0] sm:$0xf]
    %v2598 = vld [vmem:[#allocation21 + $0xb4] sm:$0xf]
    %v2599 = vld [vmem:[#allocation21 + $0xb8] sm:$0xf]
    %v2600 = vld [vmem:[#allocation21 + $0xbc] sm:$0xf]
    %v2601 = vpack.c.bf16 %v2550, %v2547
    %v2602 = vpack.c.bf16 %v2551, %v2548
    %v2603 = vpack.c.bf16 %v2552, %v2549
    %v2604 = vld [vmem:[#allocation25] sm:$0x1]
    %v2606 = vlaneseq
    %v2607 = vshrl.u32 %v2606, 7
    %v2608 = vsub.s32 0, %v2607
    %v2609 = vrot.slane %v2604, %v2608
    %v2659 = vunpack.c.l.b16 %v2553
    %v2660 = vunpack.c.l.b16 %v2554
    %v2661 = vunpack.c.l.b16 %v2555
    %v2662 = vunpack.c.l.b16 %v2556
    %v2663 = vunpack.c.l.b16 %v2557
    %v2664 = vunpack.c.l.b16 %v2558
    %v2665 = vunpack.c.l.b16 %v2559
    %v2666 = vunpack.c.l.b16 %v2560
    %v2667 = vunpack.c.l.b16 %v2561
    %v2668 = vunpack.c.l.b16 %v2562
    %v2669 = vunpack.c.l.b16 %v2563
    %v2670 = vunpack.c.l.b16 %v2564
    %v2671 = vunpack.c.l.b16 %v2565
    %v2672 = vunpack.c.l.b16 %v2566
    %v2673 = vunpack.c.l.b16 %v2567
    %v2674 = vunpack.c.l.b16 %v2568
    %v2675 = vunpack.c.l.b16 %v2569
    %v2676 = vunpack.c.l.b16 %v2570
    %v2677 = vunpack.c.l.b16 %v2571
    %v2678 = vunpack.c.l.b16 %v2572
    %v2679 = vunpack.c.l.b16 %v2573
    %v2680 = vunpack.c.l.b16 %v2574
    %v2681 = vunpack.c.l.b16 %v2575
    %v2682 = vunpack.c.l.b16 %v2576
    %v2683 = vunpack.c.l.b16 %v2577
    %v2684 = vunpack.c.l.b16 %v2578
    %v2685 = vunpack.c.l.b16 %v2579
    %v2686 = vunpack.c.l.b16 %v2580
    %v2687 = vunpack.c.l.b16 %v2581
    %v2688 = vunpack.c.l.b16 %v2582
    %v2689 = vunpack.c.l.b16 %v2583
    %v2690 = vunpack.c.l.b16 %v2584
    %v2691 = vunpack.c.l.b16 %v2585
    %v2692 = vunpack.c.l.b16 %v2586
    %v2693 = vunpack.c.l.b16 %v2587
    %v2694 = vunpack.c.l.b16 %v2588
    %v2695 = vunpack.c.l.b16 %v2589
    %v2696 = vunpack.c.l.b16 %v2590
    %v2697 = vunpack.c.l.b16 %v2591
    %v2698 = vunpack.c.l.b16 %v2592
    %v2699 = vunpack.c.l.b16 %v2593
    %v2700 = vunpack.c.l.b16 %v2594
    %v2701 = vunpack.c.l.b16 %v2595
    %v2702 = vunpack.c.l.b16 %v2596
    %v2703 = vunpack.c.l.b16 %v2597
    %v2704 = vunpack.c.l.b16 %v2598
    %v2705 = vunpack.c.l.b16 %v2599
    %v2706 = vunpack.c.l.b16 %v2600
    %v2707 = vpack.c.b16 %v2660, %v2659
    %v2708 = vpack.c.b16 %v2662, %v2661
    %v2709 = vpack.c.b16 %v2664, %v2663
    %v2710 = vpack.c.b16 %v2666, %v2665
    %v2711 = vpack.c.b16 %v2668, %v2667
    %v2712 = vpack.c.b16 %v2670, %v2669
    %v2713 = vpack.c.b16 %v2672, %v2671
    %v2714 = vpack.c.b16 %v2674, %v2673
    %v2715 = vpack.c.b16 %v2676, %v2675
    %v2716 = vpack.c.b16 %v2678, %v2677
    %v2717 = vpack.c.b16 %v2680, %v2679
    %v2718 = vpack.c.b16 %v2682, %v2681
    %v2719 = vpack.c.b16 %v2684, %v2683
    %v2720 = vpack.c.b16 %v2686, %v2685
    %v2721 = vpack.c.b16 %v2688, %v2687
    %v2722 = vpack.c.b16 %v2690, %v2689
    %v2723 = vpack.c.b16 %v2692, %v2691
    %v2724 = vpack.c.b16 %v2694, %v2693
    %v2725 = vpack.c.b16 %v2696, %v2695
    %v2726 = vpack.c.b16 %v2698, %v2697
    %v2727 = vpack.c.b16 %v2700, %v2699
    %v2728 = vpack.c.b16 %v2702, %v2701
    %v2729 = vpack.c.b16 %v2704, %v2703
    %v2730 = vpack.c.b16 %v2706, %v2705
    %2755 = vmatprep.subr.bf16.mxu0 0
    %2756 = vmatpush1.bf16.msra.mxu0 %v2707
    %2757 = vmatprep.subr.bf16.mxu0 0
    %2758 = vmatpush1.bf16.msra.mxu0 %v2708
    %2759 = vmatprep.subr.bf16.mxu0 0
    %2760 = vmatpush1.bf16.msra.mxu0 %v2709
    %2761 = vmatprep.subr.bf16.mxu0 0
    %2762 = vmatpush1.bf16.msra.mxu0 %v2710
    %2763 = vmatprep.subr.bf16.mxu0 0
    %2764 = vmatpush1.bf16.msra.mxu0 %v2711
    %2765 = vmatprep.subr.bf16.mxu0 0
    %2766 = vmatpush1.bf16.msra.mxu0 %v2712
    %2767 = vmatprep.subr.bf16.mxu0 0
    %2768 = vmatpush1.bf16.msra.mxu0 %v2713
    %2769 = vmatprep.subr.bf16.mxu0 0
    %2770 = vmatpush1.bf16.msra.mxu0 %v2714
    %2771 = vmatprep.subr.bf16.mxu0 0
    %2772 = vmatpush1.bf16.msra.mxu0 %v2715
    %2773 = vmatprep.subr.bf16.mxu0 0
    %2774 = vmatpush1.bf16.msra.mxu0 %v2716
    %2775 = vmatprep.subr.bf16.mxu0 0
    %2776 = vmatpush1.bf16.msra.mxu0 %v2717
    %2777 = vmatprep.subr.bf16.mxu0 0
    %2778 = vmatpush1.bf16.msra.mxu0 %v2718
    %2779 = vmatprep.subr.bf16.mxu0 0
    %2780 = vmatpush1.bf16.msra.mxu0 %v2719
    %2781 = vmatprep.subr.bf16.mxu0 0
    %2782 = vmatpush1.bf16.msra.mxu0 %v2720
    %2783 = vmatprep.subr.bf16.mxu0 0
    %2784 = vmatpush1.bf16.msra.mxu0 %v2721
    %2785 = vmatprep.subr.bf16.mxu0 0
    %2786 = vmatpush1.bf16.msra.mxu0 %v2722
    %2787 = vmatprep.mubr.bf16.mxu0 %v2602
    %2788 = vmatmul.mubr.bf16.gmra.mrb[0].mxu0 %v2601
    %v2789 = vpop.f32.mrb[0].mxu0
    %v2790 = vadd.f32 %v2609, %v2789
    %v2791 = vpop.f32.mrb[0].mxu0
    %v2792 = vpop.f32.mrb[0].mxu0
    %v2793 = vadd.f32 %v2609, %v2792
    %v2794 = vpop.f32.mrb[0].mxu0
    %2795 = vdwg.mxu0
    %2796 = vmatprep.subr.bf16.mxu0 0
    %2797 = vmatpush1.bf16.msra.mxu0 %v2723
    %2798 = vmatprep.subr.bf16.mxu0 0
    %2799 = vmatpush1.bf16.msra.mxu0 %v2724
    %2800 = vmatprep.subr.bf16.mxu0 0
    %2801 = vmatpush1.bf16.msra.mxu0 %v2725
    %2802 = vmatprep.subr.bf16.mxu0 0
    %2803 = vmatpush1.bf16.msra.mxu0 %v2726
    %2804 = vmatprep.subr.bf16.mxu0 0
    %2805 = vmatpush1.bf16.msra.mxu0 %v2727
    %2806 = vmatprep.subr.bf16.mxu0 0
    %2807 = vmatpush1.bf16.msra.mxu0 %v2728
    %2808 = vmatprep.subr.bf16.mxu0 0
    %2809 = vmatpush1.bf16.msra.mxu0 %v2729
    %2810 = vmatprep.subr.bf16.mxu0 0
    %2811 = vmatpush1.bf16.msra.mxu0 %v2730
    %2812 = vmatprep.subr.bf16.mxu0 0
    %2813 = vmatpush1.bf16.msra.mxu0 0
    %2814 = vmatprep.subr.bf16.mxu0 0
    %2815 = vmatpush1.bf16.msra.mxu0 0
    %2816 = vmatprep.subr.bf16.mxu0 0
    %2817 = vmatpush1.bf16.msra.mxu0 0
    %2818 = vmatprep.subr.bf16.mxu0 0
    %2819 = vmatpush1.bf16.msra.mxu0 0
    %2820 = vmatprep.subr.bf16.mxu0 0
    %2821 = vmatpush1.bf16.msra.mxu0 0
    %2822 = vmatprep.subr.bf16.mxu0 0
    %2823 = vmatpush1.bf16.msra.mxu0 0
    %2824 = vmatprep.subr.bf16.mxu0 0
    %2825 = vmatpush1.bf16.msra.mxu0 0
    %2826 = vmatprep.subr.bf16.mxu0 0
    %2827 = vmatpush1.bf16.msra.mxu0 0
    %2828 = vmatprep.mubr.bf16.mxu0 0
    %2829 = vmatmul.mubr.bf16.gmra.mrb[0].mxu0 %v2603
    %v2830 = vpop.f32.mrb[0].mxu0
    %v2831 = vadd.f32 %v2790, %v2830
    %v2832 = vpop.f32.mrb[0].mxu0
    %v2833 = vpop.f32.mrb[0].mxu0
    %v2834 = vadd.f32 %v2793, %v2833
    %v2835 = vpop.f32.mrb[0].mxu0
    %2836 = vdwg.mxu0
    %v2837 = vmax.f32 %v2831, 0.0
    %v2838 = vmax.f32 %v2834, 0.0
    %v2839 = vadd.f32 %v2837, %v1001
    %v2840 = vadd.f32 %v2838, %v1004
    %v2841 = vld [vmem:[#allocation28] sm:$0x1]
    %v2842 = vld [vmem:[#allocation27] sm:$0x1]
    %2843 = vadd.xlane.f32.xlu0 %v2839
    %v2844 = vpop.xlane.xlu0 %2843
    %2845 = vadd.xlane.f32.xlu0 %v2840
    %v2846 = vpop.xlane.xlu0 %2845
    %v2847 = vrcp.pop 128.0
    %v2848 = vmul.f32 %v2844, %v2847
    %v2849 = vmul.f32 %v2846, %v2847
    %v2850 = vsub.f32 %v2839, %v2848
    %v2851 = vsub.f32 %v2840, %v2849
    %v2852 = vmul.f32 %v2850, %v2850
    %v2853 = vmul.f32 %v2851, %v2851
    %2854 = vadd.xlane.f32.xlu0 %v2852
    %v2855 = vpop.xlane.xlu0 %2854
    %2856 = vadd.xlane.f32.xlu0 %v2853
    %v2857 = vpop.xlane.xlu0 %2856
    %v2858 = vmul.f32 %v2855, %v2847
    %v2859 = vmul.f32 %v2857, %v2847
    %v2860 = vadd.f32 %v2858, 1e-05
    %v2861 = vadd.f32 %v2859, 1e-05
    %v2862 = vrsqrt.pop %v2860
    %v2863 = vrsqrt.pop %v2861
    %v2864 = vmul.f32 %v2850, %v2862
    %v2865 = vmul.f32 %v2851, %v2863
    %v2867 = vlaneseq
    %v2868 = vshrl.u32 %v2867, 7
    %v2869 = vsub.s32 0, %v2868
    %v2870 = vrot.slane %v2841, %v2869
    %v2872 = vmul.f32 %v2864, %v2870
    %v2873 = vmul.f32 %v2865, %v2870
    %v2875 = vlaneseq
    %v2876 = vshrl.u32 %v2875, 7
    %v2877 = vsub.s32 0, %v2876
    %v2878 = vrot.slane %v2842, %v2877
    %v2880 = vadd.f32 %v2872, %v2878
    %v2881 = vadd.f32 %v2873, %v2878
    %v2882 = vld [vmem:[#allocation33] sm:$0xff]
    %v2883 = vld [vmem:[#allocation33 + $0x8] sm:$0xf]
    %v2884 = vld [vmem:[#allocation33 + $0xc] sm:$0xff]
    %v2885 = vld [vmem:[#allocation33 + $0x14] sm:$0xf]
    %v2886 = vld [vmem:[#allocation33 + $0x18] sm:$0xff]
    %v2887 = vld [vmem:[#allocation33 + $0x20] sm:$0xf]
    %v2888 = vld [vmem:[#allocation33 + $0x24] sm:$0xff]
    %v2889 = vld [vmem:[#allocation33 + $0x2c] sm:$0xf]
    %v2890 = vld [vmem:[#allocation33 + $0x30] sm:$0xff]
    %v2891 = vld [vmem:[#allocation33 + $0x38] sm:$0xf]
    %v2892 = vld [vmem:[#allocation33 + $0x3c] sm:$0xff]
    %v2893 = vld [vmem:[#allocation33 + $0x44] sm:$0xf]
    %v2894 = vld [vmem:[#allocation33 + $0x48] sm:$0xff]
    %v2895 = vld [vmem:[#allocation33 + $0x50] sm:$0xf]
    %v2896 = vld [vmem:[#allocation33 + $0x54] sm:$0xff]
    %v2897 = vld [vmem:[#allocation33 + $0x5c] sm:$0xf]
    %v2898 = vld [vmem:[#allocation33 + $0x60] sm:$0xff]
    %v2899 = vld [vmem:[#allocation33 + $0x68] sm:$0xf]
    %v2900 = vld [vmem:[#allocation33 + $0x6c] sm:$0xff]
    %v2901 = vld [vmem:[#allocation33 + $0x74] sm:$0xf]
    %v2902 = vld [vmem:[#allocation33 + $0x78] sm:$0xff]
    %v2903 = vld [vmem:[#allocation33 + $0x80] sm:$0xf]
    %v2904 = vld [vmem:[#allocation33 + $0x84] sm:$0xff]
    %v2905 = vld [vmem:[#allocation33 + $0x8c] sm:$0xf]
    %v2906 = vld [vmem:[#allocation33 + $0x90] sm:$0xff]
    %v2907 = vld [vmem:[#allocation33 + $0x98] sm:$0xf]
    %v2908 = vld [vmem:[#allocation33 + $0x9c] sm:$0xff]
    %v2909 = vld [vmem:[#allocation33 + $0xa4] sm:$0xf]
    %v2910 = vld [vmem:[#allocation33 + $0xa8] sm:$0xff]
    %v2911 = vld [vmem:[#allocation33 + $0xb0] sm:$0xf]
    %v2912 = vld [vmem:[#allocation33 + $0xb4] sm:$0xff]
    %v2913 = vld [vmem:[#allocation33 + $0xbc] sm:$0xf]
    %v2914 = vpack.c.bf16 %v2881, %v2880
    %v2947 = vunpack.c.l.b16 %v2882
    %v2948 = vunpack.c.h.b16 %v2882
    %v2949 = vunpack.c.l.b16 %v2883
    %v2950 = vunpack.c.l.b16 %v2884
    %v2951 = vunpack.c.h.b16 %v2884
    %v2952 = vunpack.c.l.b16 %v2885
    %v2953 = vunpack.c.l.b16 %v2886
    %v2954 = vunpack.c.h.b16 %v2886
    %v2955 = vunpack.c.l.b16 %v2887
    %v2956 = vunpack.c.l.b16 %v2888
    %v2957 = vunpack.c.h.b16 %v2888
    %v2958 = vunpack.c.l.b16 %v2889
    %v2959 = vunpack.c.l.b16 %v2890
    %v2960 = vunpack.c.h.b16 %v2890
    %v2961 = vunpack.c.l.b16 %v2891
    %v2962 = vunpack.c.l.b16 %v2892
    %v2963 = vunpack.c.h.b16 %v2892
    %v2964 = vunpack.c.l.b16 %v2893
    %v2965 = vunpack.c.l.b16 %v2894
    %v2966 = vunpack.c.h.b16 %v2894
    %v2967 = vunpack.c.l.b16 %v2895
    %v2968 = vunpack.c.l.b16 %v2896
    %v2969 = vunpack.c.h.b16 %v2896
    %v2970 = vunpack.c.l.b16 %v2897
    %v2971 = vunpack.c.l.b16 %v2898
    %v2972 = vunpack.c.h.b16 %v2898
    %v2973 = vunpack.c.l.b16 %v2899
    %v2974 = vunpack.c.l.b16 %v2900
    %v2975 = vunpack.c.h.b16 %v2900
    %v2976 = vunpack.c.l.b16 %v2901
    %v2977 = vunpack.c.l.b16 %v2902
    %v2978 = vunpack.c.h.b16 %v2902
    %v2979 = vunpack.c.l.b16 %v2903
    %v2980 = vunpack.c.l.b16 %v2904
    %v2981 = vunpack.c.h.b16 %v2904
    %v2982 = vunpack.c.l.b16 %v2905
    %v2983 = vunpack.c.l.b16 %v2906
    %v2984 = vunpack.c.h.b16 %v2906
    %v2985 = vunpack.c.l.b16 %v2907
    %v2986 = vunpack.c.l.b16 %v2908
    %v2987 = vunpack.c.h.b16 %v2908
    %v2988 = vunpack.c.l.b16 %v2909
    %v2989 = vunpack.c.l.b16 %v2910
    %v2990 = vunpack.c.h.b16 %v2910
    %v2991 = vunpack.c.l.b16 %v2911
    %v2992 = vunpack.c.l.b16 %v2912
    %v2993 = vunpack.c.h.b16 %v2912
    %v2994 = vunpack.c.l.b16 %v2913
    %v2995 = vpack.c.b16 %v2950, %v2947
    %v2996 = vpack.c.b16 %v2951, %v2948
    %v2997 = vpack.c.b16 %v2952, %v2949
    %v2998 = vpack.c.b16 %v2956, %v2953
    %v2999 = vpack.c.b16 %v2957, %v2954
    %v3000 = vpack.c.b16 %v2958, %v2955
    %v3001 = vpack.c.b16 %v2962, %v2959
    %v3002 = vpack.c.b16 %v2963, %v2960
    %v3003 = vpack.c.b16 %v2964, %v2961
    %v3004 = vpack.c.b16 %v2968, %v2965
    %v3005 = vpack.c.b16 %v2969, %v2966
    %v3006 = vpack.c.b16 %v2970, %v2967
    %v3007 = vpack.c.b16 %v2974, %v2971
    %v3008 = vpack.c.b16 %v2975, %v2972
    %v3009 = vpack.c.b16 %v2976, %v2973
    %v3010 = vpack.c.b16 %v2980, %v2977
    %v3011 = vpack.c.b16 %v2981, %v2978
    %v3012 = vpack.c.b16 %v2982, %v2979
    %v3013 = vpack.c.b16 %v2986, %v2983
    %v3014 = vpack.c.b16 %v2987, %v2984
    %v3015 = vpack.c.b16 %v2988, %v2985
    %v3016 = vpack.c.b16 %v2992, %v2989
    %v3017 = vpack.c.b16 %v2993, %v2990
    %v3018 = vpack.c.b16 %v2994, %v2991
    %3043 = vmatprep.subr.bf16.mxu0 %v2996
    %3044 = vmatpush1.bf16.msra.mxu0 %v2995
    %3045 = vmatprep.subr.bf16.mxu0 %v2999
    %3046 = vmatpush1.bf16.msra.mxu0 %v2998
    %3047 = vmatprep.subr.bf16.mxu0 %v3002
    %3048 = vmatpush1.bf16.msra.mxu0 %v3001
    %3049 = vmatprep.subr.bf16.mxu0 %v3005
    %3050 = vmatpush1.bf16.msra.mxu0 %v3004
    %3051 = vmatprep.subr.bf16.mxu0 %v3008
    %3052 = vmatpush1.bf16.msra.mxu0 %v3007
    %3053 = vmatprep.subr.bf16.mxu0 %v3011
    %3054 = vmatpush1.bf16.msra.mxu0 %v3010
    %3055 = vmatprep.subr.bf16.mxu0 %v3014
    %3056 = vmatpush1.bf16.msra.mxu0 %v3013
    %3057 = vmatprep.subr.bf16.mxu0 %v3017
    %3058 = vmatpush1.bf16.msra.mxu0 %v3016
    %3059 = vmatprep.subr.bf16.mxu0 0
    %3060 = vmatpush1.bf16.msra.mxu0 0
    %3061 = vmatprep.subr.bf16.mxu0 0
    %3062 = vmatpush1.bf16.msra.mxu0 0
    %3063 = vmatprep.subr.bf16.mxu0 0
    %3064 = vmatpush1.bf16.msra.mxu0 0
    %3065 = vmatprep.subr.bf16.mxu0 0
    %3066 = vmatpush1.bf16.msra.mxu0 0
    %3067 = vmatprep.subr.bf16.mxu0 0
    %3068 = vmatpush1.bf16.msra.mxu0 0
    %3069 = vmatprep.subr.bf16.mxu0 0
    %3070 = vmatpush1.bf16.msra.mxu0 0
    %3071 = vmatprep.subr.bf16.mxu0 0
    %3072 = vmatpush1.bf16.msra.mxu0 0
    %3073 = vmatprep.subr.bf16.mxu0 0
    %3074 = vmatpush1.bf16.msra.mxu0 0
    %3075 = vmatprep.mubr.bf16.mxu0 0
    %3076 = vmatmul.mubr.bf16.gmra.mrb[0].mxu0 %v2914
    %v3077 = vpop.f32.mrb[0].mxu0
    %v3078 = vadd.f32 0.0, %v3077
    %v3079 = vpop.f32.mrb[0].mxu0
    %v3080 = vadd.f32 0.0, %v3079
    %v3081 = vpop.f32.mrb[0].mxu0
    %v3082 = vadd.f32 0.0, %v3081
    %v3083 = vpop.f32.mrb[0].mxu0
    %v3084 = vadd.f32 0.0, %v3083
    %3085 = vdwg.mxu0
    %3086 = vmatprep.subr.bf16.mxu0 0
    %3087 = vmatpush1.bf16.msra.mxu0 %v2997
    %3088 = vmatprep.subr.bf16.mxu0 0
    %3089 = vmatpush1.bf16.msra.mxu0 %v3000
    %3090 = vmatprep.subr.bf16.mxu0 0
    %3091 = vmatpush1.bf16.msra.mxu0 %v3003
    %3092 = vmatprep.subr.bf16.mxu0 0
    %3093 = vmatpush1.bf16.msra.mxu0 %v3006
    %3094 = vmatprep.subr.bf16.mxu0 0
    %3095 = vmatpush1.bf16.msra.mxu0 %v3009
    %3096 = vmatprep.subr.bf16.mxu0 0
    %3097 = vmatpush1.bf16.msra.mxu0 %v3012
    %3098 = vmatprep.subr.bf16.mxu0 0
    %3099 = vmatpush1.bf16.msra.mxu0 %v3015
    %3100 = vmatprep.subr.bf16.mxu0 0
    %3101 = vmatpush1.bf16.msra.mxu0 %v3018
    %3102 = vmatprep.subr.bf16.mxu0 0
    %3103 = vmatpush1.bf16.msra.mxu0 0
    %3104 = vmatprep.subr.bf16.mxu0 0
    %3105 = vmatpush1.bf16.msra.mxu0 0
    %3106 = vmatprep.subr.bf16.mxu0 0
    %3107 = vmatpush1.bf16.msra.mxu0 0
    %3108 = vmatprep.subr.bf16.mxu0 0
    %3109 = vmatpush1.bf16.msra.mxu0 0
    %3110 = vmatprep.subr.bf16.mxu0 0
    %3111 = vmatpush1.bf16.msra.mxu0 0
    %3112 = vmatprep.subr.bf16.mxu0 0
    %3113 = vmatpush1.bf16.msra.mxu0 0
    %3114 = vmatprep.subr.bf16.mxu0 0
    %3115 = vmatpush1.bf16.msra.mxu0 0
    %3116 = vmatprep.subr.bf16.mxu0 0
    %3117 = vmatpush1.bf16.msra.mxu0 0
    %3118 = vmatprep.mubr.bf16.mxu0 0
    %3119 = vmatmul.mubr.bf16.gmra.mrb[0].mxu0 %v2914
    %v3120 = vpop.f32.mrb[0].mxu0
    %v3121 = vadd.f32 0.0, %v3120
    %v3122 = vpop.f32.mrb[0].mxu0
    %v3123 = vpop.f32.mrb[0].mxu0
    %v3124 = vadd.f32 0.0, %v3123
    %v3125 = vpop.f32.mrb[0].mxu0
    %3126 = vdwg.mxu0
    %v3127 = vld [vmem:[%s71] sm:$0xf]
    %v3128 = vld [vmem:[%s71 + $0x4] sm:$0xf]
    %v3129 = vld [vmem:[%s71 + $0x8] sm:$0xf]
    %v3130 = vld [vmem:[%s71 + $0xc] sm:$0xf]
    %v3131 = vld [vmem:[%s71 + $0x10] sm:$0xf]
    %v3132 = vld [vmem:[%s71 + $0x14] sm:$0xf]
    %v3133 = vld [vmem:[%s71 + $0x18] sm:$0xf]
    %v3134 = vld [vmem:[%s71 + $0x1c] sm:$0xf]
    %v3135 = vld [vmem:[%s71 + $0x20] sm:$0xf]
    %v3136 = vld [vmem:[%s71 + $0x24] sm:$0xf]
    %v3137 = vld [vmem:[%s71 + $0x28] sm:$0xf]
    %v3138 = vld [vmem:[%s71 + $0x2c] sm:$0xf]
    %v3139 = vld [vmem:[%s71 + $0x30] sm:$0xf]
    %v3140 = vld [vmem:[%s71 + $0x34] sm:$0xf]
    %v3141 = vld [vmem:[%s71 + $0x38] sm:$0xf]
    %v3142 = vld [vmem:[%s71 + $0x3c] sm:$0xf]
    %v3159 = vunpack.c.l.b16 %v3127
    %v3160 = vunpack.c.l.b16 %v3128
    %v3161 = vunpack.c.l.b16 %v3129
    %v3162 = vunpack.c.l.b16 %v3130
    %v3163 = vunpack.c.l.b16 %v3131
    %v3164 = vunpack.c.l.b16 %v3132
    %v3165 = vunpack.c.l.b16 %v3133
    %v3166 = vunpack.c.l.b16 %v3134
    %v3167 = vunpack.c.l.b16 %v3135
    %v3168 = vunpack.c.l.b16 %v3136
    %v3169 = vunpack.c.l.b16 %v3137
    %v3170 = vunpack.c.l.b16 %v3138
    %v3171 = vunpack.c.l.b16 %v3139
    %v3172 = vunpack.c.l.b16 %v3140
    %v3173 = vunpack.c.l.b16 %v3141
    %v3174 = vunpack.c.l.b16 %v3142
    %v3175 = vpack.c.b16 %v3160, %v3159
    %v3176 = vpack.c.b16 %v3162, %v3161
    %v3177 = vpack.c.b16 %v3164, %v3163
    %v3178 = vpack.c.b16 %v3166, %v3165
    %v3179 = vpack.c.b16 %v3168, %v3167
    %v3180 = vpack.c.b16 %v3170, %v3169
    %v3181 = vpack.c.b16 %v3172, %v3171
    %v3182 = vpack.c.b16 %v3174, %v3173
    %3191 = vmatprep.subr.bf16.mxu0 0
    %3192 = vmatpush1.bf16.msra.mxu0 %v3175
    %3193 = vmatprep.subr.bf16.mxu0 0
    %3194 = vmatpush1.bf16.msra.mxu0 %v3176
    %3195 = vmatprep.subr.bf16.mxu0 0
    %3196 = vmatpush1.bf16.msra.mxu0 %v3177
    %3197 = vmatprep.subr.bf16.mxu0 0
    %3198 = vmatpush1.bf16.msra.mxu0 %v3178
    %3199 = vmatprep.subr.bf16.mxu0 0
    %3200 = vmatpush1.bf16.msra.mxu0 %v3179
    %3201 = vmatprep.subr.bf16.mxu0 0
    %3202 = vmatpush1.bf16.msra.mxu0 %v3180
    %3203 = vmatprep.subr.bf16.mxu0 0
    %3204 = vmatpush1.bf16.msra.mxu0 %v3181
    %3205 = vmatprep.subr.bf16.mxu0 0
    %3206 = vmatpush1.bf16.msra.mxu0 %v3182
    %3207 = vmatprep.subr.bf16.mxu0 0
    %3208 = vmatpush1.bf16.msra.mxu0 0
    %3209 = vmatprep.subr.bf16.mxu0 0
    %3210 = vmatpush1.bf16.msra.mxu0 0
    %3211 = vmatprep.subr.bf16.mxu0 0
    %3212 = vmatpush1.bf16.msra.mxu0 0
    %3213 = vmatprep.subr.bf16.mxu0 0
    %3214 = vmatpush1.bf16.msra.mxu0 0
    %3215 = vmatprep.subr.bf16.mxu0 0
    %3216 = vmatpush1.bf16.msra.mxu0 0
    %3217 = vmatprep.subr.bf16.mxu0 0
    %3218 = vmatpush1.bf16.msra.mxu0 0
    %3219 = vmatprep.subr.bf16.mxu0 0
    %3220 = vmatpush1.bf16.msra.mxu0 0
    %3221 = vmatprep.subr.bf16.mxu0 0
    %3222 = vmatpush1.bf16.msra.mxu0 0
    %3223 = vmatprep.mubr.bf16.mxu0 0
    %3224 = vmatmul.mubr.bf16.gmra.mrb[0].mxu0 %v2914
    %v3225 = vpop.f32.mrb[0].mxu0
    %v3226 = vadd.f32 0.0, %v3225
    %v3227 = vpop.f32.mrb[0].mxu0
    %v3228 = vpop.f32.mrb[0].mxu0
    %v3229 = vadd.f32 0.0, %v3228
    %v3230 = vpop.f32.mrb[0].mxu0
    %3231 = vdwg.mxu0
    %v3232 = vld [vmem:[%s67] sm:$0xf]
    %v3233 = vld [vmem:[%s67 + $0x4] sm:$0xf]
    %v3234 = vld [vmem:[%s67 + $0x8] sm:$0xf]
    %v3235 = vld [vmem:[%s67 + $0xc] sm:$0xf]
    %v3236 = vld [vmem:[%s67 + $0x10] sm:$0xf]
    %v3237 = vld [vmem:[%s67 + $0x14] sm:$0xf]
    %v3238 = vld [vmem:[%s67 + $0x18] sm:$0xf]
    %v3239 = vld [vmem:[%s67 + $0x1c] sm:$0xf]
    %v3240 = vld [vmem:[%s67 + $0x20] sm:$0xf]
    %v3241 = vld [vmem:[%s67 + $0x24] sm:$0xf]
    %v3242 = vld [vmem:[%s67 + $0x28] sm:$0xf]
    %v3243 = vld [vmem:[%s67 + $0x2c] sm:$0xf]
    %v3244 = vld [vmem:[%s67 + $0x30] sm:$0xf]
    %v3245 = vld [vmem:[%s67 + $0x34] sm:$0xf]
    %v3246 = vld [vmem:[%s67 + $0x38] sm:$0xf]
    %v3247 = vld [vmem:[%s67 + $0x3c] sm:$0xf]
    %v3264 = vunpack.c.l.b16 %v3232
    %v3265 = vunpack.c.l.b16 %v3233
    %v3266 = vunpack.c.l.b16 %v3234
    %v3267 = vunpack.c.l.b16 %v3235
    %v3268 = vunpack.c.l.b16 %v3236
    %v3269 = vunpack.c.l.b16 %v3237
    %v3270 = vunpack.c.l.b16 %v3238
    %v3271 = vunpack.c.l.b16 %v3239
    %v3272 = vunpack.c.l.b16 %v3240
    %v3273 = vunpack.c.l.b16 %v3241
    %v3274 = vunpack.c.l.b16 %v3242
    %v3275 = vunpack.c.l.b16 %v3243
    %v3276 = vunpack.c.l.b16 %v3244
    %v3277 = vunpack.c.l.b16 %v3245
    %v3278 = vunpack.c.l.b16 %v3246
    %v3279 = vunpack.c.l.b16 %v3247
    %v3280 = vpack.c.b16 %v3265, %v3264
    %v3281 = vpack.c.b16 %v3267, %v3266
    %v3282 = vpack.c.b16 %v3269, %v3268
    %v3283 = vpack.c.b16 %v3271, %v3270
    %v3284 = vpack.c.b16 %v3273, %v3272
    %v3285 = vpack.c.b16 %v3275, %v3274
    %v3286 = vpack.c.b16 %v3277, %v3276
    %v3287 = vpack.c.b16 %v3279, %v3278
    %3296 = vmatprep.subr.bf16.mxu0 0
    %3297 = vmatpush1.bf16.msra.mxu0 %v3280
    %3298 = vmatprep.subr.bf16.mxu0 0
    %3299 = vmatpush1.bf16.msra.mxu0 %v3281
    %3300 = vmatprep.subr.bf16.mxu0 0
    %3301 = vmatpush1.bf16.msra.mxu0 %v3282
    %3302 = vmatprep.subr.bf16.mxu0 0
    %3303 = vmatpush1.bf16.msra.mxu0 %v3283
    %3304 = vmatprep.subr.bf16.mxu0 0
    %3305 = vmatpush1.bf16.msra.mxu0 %v3284
    %3306 = vmatprep.subr.bf16.mxu0 0
    %3307 = vmatpush1.bf16.msra.mxu0 %v3285
    %3308 = vmatprep.subr.bf16.mxu0 0
    %3309 = vmatpush1.bf16.msra.mxu0 %v3286
    %3310 = vmatprep.subr.bf16.mxu0 0
    %3311 = vmatpush1.bf16.msra.mxu0 %v3287
    %3312 = vmatprep.subr.bf16.mxu0 0
    %3313 = vmatpush1.bf16.msra.mxu0 0
    %3314 = vmatprep.subr.bf16.mxu0 0
    %3315 = vmatpush1.bf16.msra.mxu0 0
    %3316 = vmatprep.subr.bf16.mxu0 0
    %3317 = vmatpush1.bf16.msra.mxu0 0
    %3318 = vmatprep.subr.bf16.mxu0 0
    %3319 = vmatpush1.bf16.msra.mxu0 0
    %3320 = vmatprep.subr.bf16.mxu0 0
    %3321 = vmatpush1.bf16.msra.mxu0 0
    %3322 = vmatprep.subr.bf16.mxu0 0
    %3323 = vmatpush1.bf16.msra.mxu0 0
    %3324 = vmatprep.subr.bf16.mxu0 0
    %3325 = vmatpush1.bf16.msra.mxu0 0
    %3326 = vmatprep.subr.bf16.mxu0 0
    %3327 = vmatpush1.bf16.msra.mxu0 0
    %3328 = vmatprep.mubr.bf16.mxu0 0
    %3329 = vmatmul.mubr.bf16.gmra.mrb[0].mxu0 %v2914
    %v3330 = vpop.f32.mrb[0].mxu0
    %v3331 = vadd.f32 0.0, %v3330
    %v3332 = vpop.f32.mrb[0].mxu0
    %v3333 = vpop.f32.mrb[0].mxu0
    %v3334 = vadd.f32 0.0, %v3333
    %v3335 = vpop.f32.mrb[0].mxu0
    %3336 = vdwg.mxu0
    %v3337 = vld [vmem:[#allocation30] sm:$0x3]
    %v3339 = vand.u32 %v3337, %v1514
    %3341 = vmatprep.subr.bf16.mxu0 0
    %3342 = vmatpush1.bf16.msra.mxu0 %v3339
    %3343 = vmatprep.subr.bf16.mxu0 0
    %3344 = vmatpush1.bf16.msra.mxu0 0
    %3345 = vmatprep.subr.bf16.mxu0 0
    %3346 = vmatpush1.bf16.msra.mxu0 0
    %3347 = vmatprep.subr.bf16.mxu0 0
    %3348 = vmatpush1.bf16.msra.mxu0 0
    %3349 = vmatprep.subr.bf16.mxu0 0
    %3350 = vmatpush1.bf16.msra.mxu0 0
    %3351 = vmatprep.subr.bf16.mxu0 0
    %3352 = vmatpush1.bf16.msra.mxu0 0
    %3353 = vmatprep.subr.bf16.mxu0 0
    %3354 = vmatpush1.bf16.msra.mxu0 0
    %3355 = vmatprep.subr.bf16.mxu0 0
    %3356 = vmatpush1.bf16.msra.mxu0 0
    %3357 = vmatprep.subr.bf16.mxu0 0
    %3358 = vmatpush1.bf16.msra.mxu0 0
    %3359 = vmatprep.subr.bf16.mxu0 0
    %3360 = vmatpush1.bf16.msra.mxu0 0
    %3361 = vmatprep.subr.bf16.mxu0 0
    %3362 = vmatpush1.bf16.msra.mxu0 0
    %3363 = vmatprep.subr.bf16.mxu0 0
    %3364 = vmatpush1.bf16.msra.mxu0 0
    %3365 = vmatprep.subr.bf16.mxu0 0
    %3366 = vmatpush1.bf16.msra.mxu0 0
    %3367 = vmatprep.subr.bf16.mxu0 0
    %3368 = vmatpush1.bf16.msra.mxu0 0
    %3369 = vmatprep.subr.bf16.mxu0 0
    %3370 = vmatpush1.bf16.msra.mxu0 0
    %3371 = vmatprep.subr.bf16.mxu0 0
    %3372 = vmatpush1.bf16.msra.mxu0 0
    %3373 = vmatprep.mubr.bf16.mxu0 0
    %3374 = vmatmul.mubr.bf16.gmra.mrb[0].mxu0 %v1497
    %v3375 = vpop.f32.mrb[0].mxu0
    %v3376 = vadd.f32 0.0, %v3375
    %v3377 = vpop.f32.mrb[0].mxu0
    %v3378 = vpop.f32.mrb[0].mxu0
    %v3379 = vadd.f32 0.0, %v3378
    %v3380 = vpop.f32.mrb[0].mxu0
    %3381 = vmatprep.mubr.bf16.mxu0 0
    %3382 = vmatmul.mubr.bf16.gmra.mrb[0].mxu0 %v1500
    %v3383 = vpop.f32.mrb[0].mxu0
    %v3384 = vadd.f32 0.0, %v3383
    %v3385 = vpop.f32.mrb[0].mxu0
    %v3386 = vpop.f32.mrb[0].mxu0
    %v3387 = vadd.f32 0.0, %v3386
    %v3388 = vpop.f32.mrb[0].mxu0
    %3389 = vmatprep.mubr.bf16.mxu0 0
    %3390 = vmatmul.mubr.bf16.gmra.mrb[0].mxu0 %v1503
    %v3391 = vpop.f32.mrb[0].mxu0
    %v3392 = vadd.f32 0.0, %v3391
    %v3393 = vpop.f32.mrb[0].mxu0
    %v3394 = vpop.f32.mrb[0].mxu0
    %v3395 = vadd.f32 0.0, %v3394
    %v3396 = vpop.f32.mrb[0].mxu0
    %3397 = vmatprep.mubr.bf16.mxu0 0
    %3398 = vmatmul.mubr.bf16.gmra.mrb[0].mxu0 %v1506
    %v3399 = vpop.f32.mrb[0].mxu0
    %v3400 = vadd.f32 0.0, %v3399
    %v3401 = vpop.f32.mrb[0].mxu0
    %v3402 = vpop.f32.mrb[0].mxu0
    %v3403 = vadd.f32 0.0, %v3402
    %v3404 = vpop.f32.mrb[0].mxu0
    %3405 = vmatprep.mubr.bf16.mxu0 0
    %3406 = vmatmul.mubr.bf16.gmra.mrb[0].mxu0 %v1509
    %v3407 = vpop.f32.mrb[0].mxu0
    %v3408 = vadd.f32 0.0, %v3407
    %v3409 = vpop.f32.mrb[0].mxu0
    %v3410 = vpop.f32.mrb[0].mxu0
    %v3411 = vpop.f32.mrb[0].mxu0
    %3412 = vdwg.mxu0
    %v3413 = vpack.c.bf16 %v3229, %v3226
    %v3414 = vpack.c.bf16 %v3334, %v3331
    %3415 = vmatprep.subr.bf16.mxu0 0
    %3416 = vmatpush1.bf16.msra.mxu0 %v3414
    %3417 = vmatprep.subr.bf16.mxu0 0
    %3418 = vmatpush1.bf16.msra.mxu0 0
    %3419 = vmatprep.subr.bf16.mxu0 0
    %3420 = vmatpush1.bf16.msra.mxu0 0
    %3421 = vmatprep.subr.bf16.mxu0 0
    %3422 = vmatpush1.bf16.msra.mxu0 0
    %3423 = vmatprep.subr.bf16.mxu0 0
    %3424 = vmatpush1.bf16.msra.mxu0 0
    %3425 = vmatprep.subr.bf16.mxu0 0
    %3426 = vmatpush1.bf16.msra.mxu0 0
    %3427 = vmatprep.subr.bf16.mxu0 0
    %3428 = vmatpush1.bf16.msra.mxu0 0
    %3429 = vmatprep.subr.bf16.mxu0 0
    %3430 = vmatpush1.bf16.msra.mxu0 0
    %3431 = vmatprep.subr.bf16.mxu0 0
    %3432 = vmatpush1.bf16.msra.mxu0 0
    %3433 = vmatprep.subr.bf16.mxu0 0
    %3434 = vmatpush1.bf16.msra.mxu0 0
    %3435 = vmatprep.subr.bf16.mxu0 0
    %3436 = vmatpush1.bf16.msra.mxu0 0
    %3437 = vmatprep.subr.bf16.mxu0 0
    %3438 = vmatpush1.bf16.msra.mxu0 0
    %3439 = vmatprep.subr.bf16.mxu0 0
    %3440 = vmatpush1.bf16.msra.mxu0 0
    %3441 = vmatprep.subr.bf16.mxu0 0
    %3442 = vmatpush1.bf16.msra.mxu0 0
    %3443 = vmatprep.subr.bf16.mxu0 0
    %3444 = vmatpush1.bf16.msra.mxu0 0
    %3445 = vmatprep.subr.bf16.mxu0 0
    %3446 = vmatpush1.bf16.msra.mxu0 0
    %3447 = vmatprep.mubr.bf16.mxu0 0
    %3448 = vmatmul.mubr.bf16.gmra.mrb[0].mxu0 %v786
    %v3449 = vpop.f32.mrb[0].mxu0
    %v3450 = vadd.f32 0.0, %v3449
    %v3451 = vpop.f32.mrb[0].mxu0
    %v3452 = vpop.f32.mrb[0].mxu0
    %v3453 = vadd.f32 0.0, %v3452
    %v3454 = vpop.f32.mrb[0].mxu0
    %3455 = vmatprep.mubr.bf16.mxu0 0
    %3456 = vmatmul.mubr.bf16.gmra.mrb[0].mxu0 %v789
    %v3457 = vpop.f32.mrb[0].mxu0
    %v3458 = vadd.f32 0.0, %v3457
    %v3459 = vpop.f32.mrb[0].mxu0
    %v3460 = vpop.f32.mrb[0].mxu0
    %v3461 = vadd.f32 0.0, %v3460
    %v3462 = vpop.f32.mrb[0].mxu0
    %3463 = vmatprep.mubr.bf16.mxu0 0
    %3464 = vmatmul.mubr.bf16.gmra.mrb[0].mxu0 %v792
    %v3465 = vpop.f32.mrb[0].mxu0
    %v3466 = vadd.f32 0.0, %v3465
    %v3467 = vpop.f32.mrb[0].mxu0
    %v3468 = vpop.f32.mrb[0].mxu0
    %v3469 = vadd.f32 0.0, %v3468
    %v3470 = vpop.f32.mrb[0].mxu0
    %3471 = vmatprep.mubr.bf16.mxu0 0
    %3472 = vmatmul.mubr.bf16.gmra.mrb[0].mxu0 %v795
    %v3473 = vpop.f32.mrb[0].mxu0
    %v3474 = vadd.f32 0.0, %v3473
    %v3475 = vpop.f32.mrb[0].mxu0
    %v3476 = vpop.f32.mrb[0].mxu0
    %v3477 = vadd.f32 0.0, %v3476
    %v3478 = vpop.f32.mrb[0].mxu0
    %3479 = vmatprep.mubr.bf16.mxu0 0
    %3480 = vmatmul.mubr.bf16.gmra.mrb[0].mxu0 %v798
    %v3481 = vpop.f32.mrb[0].mxu0
    %v3482 = vadd.f32 0.0, %v3481
    %v3483 = vpop.f32.mrb[0].mxu0
    %v3484 = vpop.f32.mrb[0].mxu0
    %v3485 = vpop.f32.mrb[0].mxu0
    %3486 = vdwg.mxu0
    %3487 = vmatprep.subr.bf16.mxu0 0
    %3488 = vmatpush1.bf16.msra.mxu0 %v3413
    %3489 = vmatprep.subr.bf16.mxu0 0
    %3490 = vmatpush1.bf16.msra.mxu0 0
    %3491 = vmatprep.subr.bf16.mxu0 0
    %3492 = vmatpush1.bf16.msra.mxu0 0
    %3493 = vmatprep.subr.bf16.mxu0 0
    %3494 = vmatpush1.bf16.msra.mxu0 0
    %3495 = vmatprep.subr.bf16.mxu0 0
    %3496 = vmatpush1.bf16.msra.mxu0 0
    %3497 = vmatprep.subr.bf16.mxu0 0
    %3498 = vmatpush1.bf16.msra.mxu0 0
    %3499 = vmatprep.subr.bf16.mxu0 0
    %3500 = vmatpush1.bf16.msra.mxu0 0
    %3501 = vmatprep.subr.bf16.mxu0 0
    %3502 = vmatpush1.bf16.msra.mxu0 0
    %3503 = vmatprep.subr.bf16.mxu0 0
    %3504 = vmatpush1.bf16.msra.mxu0 0
    %3505 = vmatprep.subr.bf16.mxu0 0
    %3506 = vmatpush1.bf16.msra.mxu0 0
    %3507 = vmatprep.subr.bf16.mxu0 0
    %3508 = vmatpush1.bf16.msra.mxu0 0
    %3509 = vmatprep.subr.bf16.mxu0 0
    %3510 = vmatpush1.bf16.msra.mxu0 0
    %3511 = vmatprep.subr.bf16.mxu0 0
    %3512 = vmatpush1.bf16.msra.mxu0 0
    %3513 = vmatprep.subr.bf16.mxu0 0
    %3514 = vmatpush1.bf16.msra.mxu0 0
    %3515 = vmatprep.subr.bf16.mxu0 0
    %3516 = vmatpush1.bf16.msra.mxu0 0
    %3517 = vmatprep.subr.bf16.mxu0 0
    %3518 = vmatpush1.bf16.msra.mxu0 0
    %3519 = vmatprep.mubr.bf16.mxu0 0
    %3520 = vmatmul.mubr.bf16.gmra.mrb[0].mxu0 %v1688
    %v3521 = vpop.f32.mrb[0].mxu0
    %v3522 = vadd.f32 %v3450, %v3521
    %v3523 = vpop.f32.mrb[0].mxu0
    %v3524 = vpop.f32.mrb[0].mxu0
    %v3525 = vadd.f32 %v3453, %v3524
    %v3526 = vpop.f32.mrb[0].mxu0
    %3527 = vmatprep.mubr.bf16.mxu0 0
    %3528 = vmatmul.mubr.bf16.gmra.mrb[0].mxu0 %v1691
    %v3529 = vpop.f32.mrb[0].mxu0
    %v3530 = vadd.f32 %v3458, %v3529
    %v3531 = vpop.f32.mrb[0].mxu0
    %v3532 = vpop.f32.mrb[0].mxu0
    %v3533 = vadd.f32 %v3461, %v3532
    %v3534 = vpop.f32.mrb[0].mxu0
    %3535 = vmatprep.mubr.bf16.mxu0 0
    %3536 = vmatmul.mubr.bf16.gmra.mrb[0].mxu0 %v1694
    %v3537 = vpop.f32.mrb[0].mxu0
    %v3538 = vadd.f32 %v3466, %v3537
    %v3539 = vpop.f32.mrb[0].mxu0
    %v3540 = vpop.f32.mrb[0].mxu0
    %v3541 = vadd.f32 %v3469, %v3540
    %v3542 = vpop.f32.mrb[0].mxu0
    %3543 = vmatprep.mubr.bf16.mxu0 0
    %3544 = vmatmul.mubr.bf16.gmra.mrb[0].mxu0 %v1697
    %v3545 = vpop.f32.mrb[0].mxu0
    %v3546 = vadd.f32 %v3474, %v3545
    %v3547 = vpop.f32.mrb[0].mxu0
    %v3548 = vpop.f32.mrb[0].mxu0
    %v3549 = vadd.f32 %v3477, %v3548
    %v3550 = vpop.f32.mrb[0].mxu0
    %3551 = vmatprep.mubr.bf16.mxu0 0
    %3552 = vmatmul.mubr.bf16.gmra.mrb[0].mxu0 %v1700
    %v3553 = vpop.f32.mrb[0].mxu0
    %v3554 = vadd.f32 %v3482, %v3553
    %v3555 = vpop.f32.mrb[0].mxu0
    %v3556 = vpop.f32.mrb[0].mxu0
    %v3557 = vpop.f32.mrb[0].mxu0
    %3558 = vdwg.mxu0
    %v3559 = vadd.f32 %v3522, %v3376
    %v3560 = vadd.f32 %v3525, %v3379
    %v3561 = vadd.f32 %v3530, %v3384
    %v3562 = vadd.f32 %v3533, %v3387
    %v3563 = vadd.f32 %v3538, %v3392
    %v3564 = vadd.f32 %v3541, %v3395
    %v3565 = vadd.f32 %v3546, %v3400
    %v3566 = vadd.f32 %v3549, %v3403
    %v3567 = vadd.f32 %v3554, %v3408
    %vm3568 = vcmp.ge.f32.partialorder %v3559, 0.0
    %vm3569 = vcmp.ge.f32.partialorder %v3560, 0.0
    %vm3570 = vcmp.ge.f32.partialorder %v3561, 0.0
    %vm3571 = vcmp.ge.f32.partialorder %v3562, 0.0
    %vm3572 = vcmp.ge.f32.partialorder %v3563, 0.0
    %vm3573 = vcmp.ge.f32.partialorder %v3564, 0.0
    %vm3574 = vcmp.ge.f32.partialorder %v3565, 0.0
    %vm3575 = vcmp.ge.f32.partialorder %v3566, 0.0
    %vm3576 = vcmp.ge.f32.partialorder %v3567, 0.0
    %v3577 = vmul.f32 %v3559, 0.2
    %v3578 = vmul.f32 %v3560, 0.2
    %v3579 = vmul.f32 %v3561, 0.2
    %v3580 = vmul.f32 %v3562, 0.2
    %v3581 = vmul.f32 %v3563, 0.2
    %v3582 = vmul.f32 %v3564, 0.2
    %v3583 = vmul.f32 %v3565, 0.2
    %v3584 = vmul.f32 %v3566, 0.2
    %v3585 = vmul.f32 %v3567, 0.2
    %v3586 = vsel %vm3568, %v3559, %v3577
    %v3587 = vsel %vm3569, %v3560, %v3578
    %v3588 = vsel %vm3570, %v3561, %v3579
    %v3589 = vsel %vm3571, %v3562, %v3580
    %v3590 = vsel %vm3572, %v3563, %v3581
    %v3591 = vsel %vm3573, %v3564, %v3582
    %v3592 = vsel %vm3574, %v3565, %v3583
    %v3593 = vsel %vm3575, %v3566, %v3584
    %v3594 = vsel %vm3576, %v3567, %v3585
    %v3595 = vsel %vm1810, %v3586, -1e+09
    %v3596 = vsel %vm1811, %v3587, -1e+09
    %v3597 = vsel %vm1812, %v3588, -1e+09
    %v3598 = vsel %vm1813, %v3589, -1e+09
    %v3599 = vsel %vm1814, %v3590, -1e+09
    %v3600 = vsel %vm1815, %v3591, -1e+09
    %v3601 = vsel %vm1816, %v3592, -1e+09
    %v3602 = vsel %vm1817, %v3593, -1e+09
    %v3603 = vsel %vm1818, %v3594, -1e+09
    %v3604 = vsel %vm1828, %v3595, -inf
    %v3605 = vsel %vm1828, %v3596, -inf
    %v3606 = vsel %vm1828, %v3597, -inf
    %v3607 = vsel %vm1828, %v3598, -inf
    %v3608 = vsel %vm1828, %v3599, -inf
    %v3609 = vmax.f32 %v3604, %v3608
    %v3610 = vsel %vm1828, %v3600, -inf
    %v3611 = vmax.f32 %v3605, %v3610
    %v3612 = vsel %vm1828, %v3601, -inf
    %v3613 = vmax.f32 %v3606, %v3612
    %v3614 = vsel %vm1828, %v3602, -inf
    %v3615 = vmax.f32 %v3607, %v3614
    %v3616 = vsel %vm1828, %v3603, -inf
    %v3617 = vmax.f32 %v3609, %v3616
    %v3618 = vmax.f32 %v3617, %v3611
    %v3619 = vmax.f32 %v3613, %v3615
    %v3620 = vmax.f32 %v3618, %v3619
    %v3621 = vrot.slane %v3620, 4
    %v3622 = vmax.f32 %v3620, %v3621
    %v3623 = vrot.slane %v3622, 2
    %v3624 = vmax.f32 %v3622, %v3623
    %v3625 = vrot.slane %v3624, 1
    %v3626 = vmax.f32 %v3624, %v3625
    %v3627 = vsub.f32 %v3595, %v3626
    %v3628 = vsub.f32 %v3596, %v3626
    %v3629 = vsub.f32 %v3597, %v3626
    %v3630 = vsub.f32 %v3598, %v3626
    %v3631 = vsub.f32 %v3599, %v3626
    %v3632 = vsub.f32 %v3600, %v3626
    %v3633 = vsub.f32 %v3601, %v3626
    %v3634 = vsub.f32 %v3602, %v3626
    %v3635 = vsub.f32 %v3603, %v3626
    %v3636 = vmul.f32 %v3627, 1.442695
    %v3637 = vpow.pop %v3636
    %v3638 = vmul.f32 %v3628, 1.442695
    %v3639 = vpow.pop %v3638
    %v3640 = vmul.f32 %v3629, 1.442695
    %v3641 = vpow.pop %v3640
    %v3642 = vmul.f32 %v3630, 1.442695
    %v3643 = vpow.pop %v3642
    %v3644 = vmul.f32 %v3631, 1.442695
    %v3645 = vpow.pop %v3644
    %v3646 = vmul.f32 %v3632, 1.442695
    %v3647 = vpow.pop %v3646
    %v3648 = vmul.f32 %v3633, 1.442695
    %v3649 = vpow.pop %v3648
    %v3650 = vmul.f32 %v3634, 1.442695
    %v3651 = vpow.pop %v3650
    %v3652 = vmul.f32 %v3635, 1.442695
    %v3653 = vpow.pop %v3652
    %v3654 = vmul.f32 %v3637, %v1025
    %v3655 = vmul.f32 %v3639, %v1026
    %v3656 = vmul.f32 %v3641, %v1027
    %v3657 = vmul.f32 %v3643, %v1028
    %v3658 = vmul.f32 %v3645, %v1029
    %v3659 = vmul.f32 %v3647, %v1030
    %v3660 = vmul.f32 %v3649, %v1031
    %v3661 = vmul.f32 %v3651, %v1032
    %v3662 = vmul.f32 %v3653, %v1033
    %v3663 = vpack.c.bf16 %v3655, %v3654
    %v3664 = vpack.c.bf16 %v3657, %v3656
    %v3665 = vpack.c.bf16 %v3659, %v3658
    %v3666 = vpack.c.bf16 %v3661, %v3660
    %v3667 = vpack.c.bf16 %v3662, %v3662
    %v3669 = vsel %vm962, %v3667, 0
    %3671 = vmatprep.subr.bf16.mxu0 0
    %3672 = vmatpush1.bf16.msra.mxu0 %v3663
    %3673 = vmatprep.subr.bf16.mxu0 0
    %3674 = vmatpush1.bf16.msra.mxu0 %v3664
    %3675 = vmatprep.subr.bf16.mxu0 0
    %3676 = vmatpush1.bf16.msra.mxu0 %v3665
    %3677 = vmatprep.subr.bf16.mxu0 0
    %3678 = vmatpush1.bf16.msra.mxu0 %v3666
    %3679 = vmatprep.subr.bf16.mxu0 0
    %3680 = vmatpush1.bf16.msra.mxu0 %v3669
    %3681 = vmatprep.subr.bf16.mxu0 0
    %3682 = vmatpush1.bf16.msra.mxu0 0
    %3683 = vmatprep.subr.bf16.mxu0 0
    %3684 = vmatpush1.bf16.msra.mxu0 0
    %3685 = vmatprep.subr.bf16.mxu0 0
    %3686 = vmatpush1.bf16.msra.mxu0 0
    %3687 = vmatprep.subr.bf16.mxu0 0
    %3688 = vmatpush1.bf16.msra.mxu0 0
    %3689 = vmatprep.subr.bf16.mxu0 0
    %3690 = vmatpush1.bf16.msra.mxu0 0
    %3691 = vmatprep.subr.bf16.mxu0 0
    %3692 = vmatpush1.bf16.msra.mxu0 0
    %3693 = vmatprep.subr.bf16.mxu0 0
    %3694 = vmatpush1.bf16.msra.mxu0 0
    %3695 = vmatprep.subr.bf16.mxu0 0
    %3696 = vmatpush1.bf16.msra.mxu0 0
    %3697 = vmatprep.subr.bf16.mxu0 0
    %3698 = vmatpush1.bf16.msra.mxu0 0
    %3699 = vmatprep.subr.bf16.mxu0 0
    %3700 = vmatpush1.bf16.msra.mxu0 0
    %3701 = vmatprep.subr.bf16.mxu0 0
    %3702 = vmatpush1.bf16.msra.mxu0 0
    %3703 = vmatprep.mubr.bf16.mxu0 0
    %3704 = vmatmul.mubr.bf16.gmra.mrb[0].mxu0 %v1895
    %v3705 = vpop.f32.mrb[0].mxu0
    %v3706 = vadd.f32 0.0, %v3705
    %v3707 = vpop.f32.mrb[0].mxu0
    %v3708 = vpop.f32.mrb[0].mxu0
    %v3709 = vadd.f32 0.0, %v3708
    %v3710 = vpop.f32.mrb[0].mxu0
    %3711 = vdwg.mxu0
    %v3712 = vmax.f32 %v3706, 1e-20
    %v3713 = vmax.f32 %v3709, 1e-20
    %v3714 = vrcp.pop %v3712
    %v3715 = vrcp.pop %v3713
    %v3716 = vpack.c.bf16 %v3082, %v3078
    %v3717 = vpack.c.bf16 %v3084, %v3080
    %v3718 = vpack.c.bf16 %v3124, %v3121
    %3719 = vmatprep.subr.bf16.mxu0 %v3717
    %3720 = vmatpush1.bf16.msra.mxu0 %v3716
    %3721 = vmatprep.subr.bf16.mxu0 0
    %3722 = vmatpush1.bf16.msra.mxu0 0
    %3723 = vmatprep.subr.bf16.mxu0 0
    %3724 = vmatpush1.bf16.msra.mxu0 0
    %3725 = vmatprep.subr.bf16.mxu0 0
    %3726 = vmatpush1.bf16.msra.mxu0 0
    %3727 = vmatprep.subr.bf16.mxu0 0
    %3728 = vmatpush1.bf16.msra.mxu0 0
    %3729 = vmatprep.subr.bf16.mxu0 0
    %3730 = vmatpush1.bf16.msra.mxu0 0
    %3731 = vmatprep.subr.bf16.mxu0 0
    %3732 = vmatpush1.bf16.msra.mxu0 0
    %3733 = vmatprep.subr.bf16.mxu0 0
    %3734 = vmatpush1.bf16.msra.mxu0 0
    %3735 = vmatprep.subr.bf16.mxu0 0
    %3736 = vmatpush1.bf16.msra.mxu0 0
    %3737 = vmatprep.subr.bf16.mxu0 0
    %3738 = vmatpush1.bf16.msra.mxu0 0
    %3739 = vmatprep.subr.bf16.mxu0 0
    %3740 = vmatpush1.bf16.msra.mxu0 0
    %3741 = vmatprep.subr.bf16.mxu0 0
    %3742 = vmatpush1.bf16.msra.mxu0 0
    %3743 = vmatprep.subr.bf16.mxu0 0
    %3744 = vmatpush1.bf16.msra.mxu0 0
    %3745 = vmatprep.subr.bf16.mxu0 0
    %3746 = vmatpush1.bf16.msra.mxu0 0
    %3747 = vmatprep.subr.bf16.mxu0 0
    %3748 = vmatpush1.bf16.msra.mxu0 0
    %3749 = vmatprep.subr.bf16.mxu0 0
    %3750 = vmatpush1.bf16.msra.mxu0 0
    %3751 = vmatprep.mubr.bf16.mxu0 0
    %3752 = vmatmul.mubr.bf16.gmra.mrb[0].mxu0 %v1688
    %v3753 = vpop.f32.mrb[0].mxu0
    %v3754 = vadd.f32 0.0, %v3753
    %v3755 = vpop.f32.mrb[0].mxu0
    %v3756 = vadd.f32 0.0, %v3755
    %v3757 = vpop.f32.mrb[0].mxu0
    %v3758 = vadd.f32 0.0, %v3757
    %v3759 = vpop.f32.mrb[0].mxu0
    %v3760 = vadd.f32 0.0, %v3759
    %3761 = vmatprep.mubr.bf16.mxu0 0
    %3762 = vmatmul.mubr.bf16.gmra.mrb[0].mxu0 %v1691
    %v3763 = vpop.f32.mrb[0].mxu0
    %v3764 = vadd.f32 0.0, %v3763
    %v3765 = vpop.f32.mrb[0].mxu0
    %v3766 = vadd.f32 0.0, %v3765
    %v3767 = vpop.f32.mrb[0].mxu0
    %v3768 = vadd.f32 0.0, %v3767
    %v3769 = vpop.f32.mrb[0].mxu0
    %v3770 = vadd.f32 0.0, %v3769
    %3771 = vmatprep.mubr.bf16.mxu0 0
    %3772 = vmatmul.mubr.bf16.gmra.mrb[0].mxu0 %v1694
    %v3773 = vpop.f32.mrb[0].mxu0
    %v3774 = vadd.f32 0.0, %v3773
    %v3775 = vpop.f32.mrb[0].mxu0
    %v3776 = vadd.f32 0.0, %v3775
    %v3777 = vpop.f32.mrb[0].mxu0
    %v3778 = vadd.f32 0.0, %v3777
    %v3779 = vpop.f32.mrb[0].mxu0
    %v3780 = vadd.f32 0.0, %v3779
    %3781 = vmatprep.mubr.bf16.mxu0 0
    %3782 = vmatmul.mubr.bf16.gmra.mrb[0].mxu0 %v1697
    %v3783 = vpop.f32.mrb[0].mxu0
    %v3784 = vadd.f32 0.0, %v3783
    %v3785 = vpop.f32.mrb[0].mxu0
    %v3786 = vadd.f32 0.0, %v3785
    %v3787 = vpop.f32.mrb[0].mxu0
    %v3788 = vadd.f32 0.0, %v3787
    %v3789 = vpop.f32.mrb[0].mxu0
    %v3790 = vadd.f32 0.0, %v3789
    %3791 = vmatprep.mubr.bf16.mxu0 0
    %3792 = vmatmul.mubr.bf16.gmra.mrb[0].mxu0 %v1700
    %v3793 = vpop.f32.mrb[0].mxu0
    %v3794 = vadd.f32 0.0, %v3793
    %v3795 = vpop.f32.mrb[0].mxu0
    %v3796 = vadd.f32 0.0, %v3795
    %v3797 = vpop.f32.mrb[0].mxu0
    %v3798 = vpop.f32.mrb[0].mxu0
    %3799 = vdwg.mxu0
    %3800 = vmatprep.subr.bf16.mxu0 0
    %3801 = vmatpush1.bf16.msra.mxu0 %v3718
    %3802 = vmatprep.subr.bf16.mxu0 0
    %3803 = vmatpush1.bf16.msra.mxu0 0
    %3804 = vmatprep.subr.bf16.mxu0 0
    %3805 = vmatpush1.bf16.msra.mxu0 0
    %3806 = vmatprep.subr.bf16.mxu0 0
    %3807 = vmatpush1.bf16.msra.mxu0 0
    %3808 = vmatprep.subr.bf16.mxu0 0
    %3809 = vmatpush1.bf16.msra.mxu0 0
    %3810 = vmatprep.subr.bf16.mxu0 0
    %3811 = vmatpush1.bf16.msra.mxu0 0
    %3812 = vmatprep.subr.bf16.mxu0 0
    %3813 = vmatpush1.bf16.msra.mxu0 0
    %3814 = vmatprep.subr.bf16.mxu0 0
    %3815 = vmatpush1.bf16.msra.mxu0 0
    %3816 = vmatprep.subr.bf16.mxu0 0
    %3817 = vmatpush1.bf16.msra.mxu0 0
    %3818 = vmatprep.subr.bf16.mxu0 0
    %3819 = vmatpush1.bf16.msra.mxu0 0
    %3820 = vmatprep.subr.bf16.mxu0 0
    %3821 = vmatpush1.bf16.msra.mxu0 0
    %3822 = vmatprep.subr.bf16.mxu0 0
    %3823 = vmatpush1.bf16.msra.mxu0 0
    %3824 = vmatprep.subr.bf16.mxu0 0
    %3825 = vmatpush1.bf16.msra.mxu0 0
    %3826 = vmatprep.subr.bf16.mxu0 0
    %3827 = vmatpush1.bf16.msra.mxu0 0
    %3828 = vmatprep.subr.bf16.mxu0 0
    %3829 = vmatpush1.bf16.msra.mxu0 0
    %3830 = vmatprep.subr.bf16.mxu0 0
    %3831 = vmatpush1.bf16.msra.mxu0 0
    %3832 = vmatprep.mubr.bf16.mxu0 0
    %3833 = vmatmul.mubr.bf16.gmra.mrb[0].mxu0 %v1688
    %v3834 = vpop.f32.mrb[0].mxu0
    %v3835 = vadd.f32 0.0, %v3834
    %v3836 = vpop.f32.mrb[0].mxu0
    %v3837 = vpop.f32.mrb[0].mxu0
    %v3838 = vadd.f32 0.0, %v3837
    %v3839 = vpop.f32.mrb[0].mxu0
    %3840 = vmatprep.mubr.bf16.mxu0 0
    %3841 = vmatmul.mubr.bf16.gmra.mrb[0].mxu0 %v1691
    %v3842 = vpop.f32.mrb[0].mxu0
    %v3843 = vadd.f32 0.0, %v3842
    %v3844 = vpop.f32.mrb[0].mxu0
    %v3845 = vpop.f32.mrb[0].mxu0
    %v3846 = vadd.f32 0.0, %v3845
    %v3847 = vpop.f32.mrb[0].mxu0
    %3848 = vmatprep.mubr.bf16.mxu0 0
    %3849 = vmatmul.mubr.bf16.gmra.mrb[0].mxu0 %v1694
    %v3850 = vpop.f32.mrb[0].mxu0
    %v3851 = vadd.f32 0.0, %v3850
    %v3852 = vpop.f32.mrb[0].mxu0
    %v3853 = vpop.f32.mrb[0].mxu0
    %v3854 = vadd.f32 0.0, %v3853
    %v3855 = vpop.f32.mrb[0].mxu0
    %3856 = vmatprep.mubr.bf16.mxu0 0
    %3857 = vmatmul.mubr.bf16.gmra.mrb[0].mxu0 %v1697
    %v3858 = vpop.f32.mrb[0].mxu0
    %v3859 = vadd.f32 0.0, %v3858
    %v3860 = vpop.f32.mrb[0].mxu0
    %v3861 = vpop.f32.mrb[0].mxu0
    %v3862 = vadd.f32 0.0, %v3861
    %v3863 = vpop.f32.mrb[0].mxu0
    %3864 = vmatprep.mubr.bf16.mxu0 0
    %3865 = vmatmul.mubr.bf16.gmra.mrb[0].mxu0 %v1700
    %v3866 = vpop.f32.mrb[0].mxu0
    %v3867 = vadd.f32 0.0, %v3866
    %v3868 = vpop.f32.mrb[0].mxu0
    %v3869 = vpop.f32.mrb[0].mxu0
    %v3870 = vpop.f32.mrb[0].mxu0
    %3871 = vdwg.mxu0
    %v3873 = vsel %vm1828, %v3663, 0
    %v3876 = vsel %vm1828, %v3664, 0
    %v3879 = vsel %vm1828, %v3665, 0
    %v3882 = vsel %vm1828, %v3666, 0
    %v3884 = vsel %vm1828, %v3667, 0
    %3886 = vmatprep.subr.bf16.mxu0 %v2117
    %3887 = vmatpush1.bf16.msra.mxu0 %v2116
    %3888 = vmatprep.subr.bf16.mxu0 %v2143
    %3889 = vmatpush1.bf16.msra.mxu0 %v2140
    %3890 = vmatprep.subr.bf16.mxu0 0
    %3891 = vmatpush1.bf16.msra.mxu0 0
    %3892 = vmatprep.subr.bf16.mxu0 0
    %3893 = vmatpush1.bf16.msra.mxu0 0
    %3894 = vmatprep.subr.bf16.mxu0 0
    %3895 = vmatpush1.bf16.msra.mxu0 0
    %3896 = vmatprep.subr.bf16.mxu0 0
    %3897 = vmatpush1.bf16.msra.mxu0 0
    %3898 = vmatprep.subr.bf16.mxu0 0
    %3899 = vmatpush1.bf16.msra.mxu0 0
    %3900 = vmatprep.subr.bf16.mxu0 0
    %3901 = vmatpush1.bf16.msra.mxu0 0
    %3902 = vmatprep.subr.bf16.mxu0 0
    %3903 = vmatpush1.bf16.msra.mxu0 0
    %3904 = vmatprep.subr.bf16.mxu0 0
    %3905 = vmatpush1.bf16.msra.mxu0 0
    %3906 = vmatprep.subr.bf16.mxu0 0
    %3907 = vmatpush1.bf16.msra.mxu0 0
    %3908 = vmatprep.subr.bf16.mxu0 0
    %3909 = vmatpush1.bf16.msra.mxu0 0
    %3910 = vmatprep.subr.bf16.mxu0 0
    %3911 = vmatpush1.bf16.msra.mxu0 0
    %3912 = vmatprep.subr.bf16.mxu0 0
    %3913 = vmatpush1.bf16.msra.mxu0 0
    %3914 = vmatprep.subr.bf16.mxu0 0
    %3915 = vmatpush1.bf16.msra.mxu0 0
    %3916 = vmatprep.subr.bf16.mxu0 0
    %3917 = vmatpush1.bf16.msra.mxu0 0
    %3918 = vmatprep.mubr.bf16.mxu0 0
    %3919 = vmatmul.mubr.bf16.gmra.mrb[0].mxu0 %v3873
    %v3920 = vpop.f32.mrb[0].mxu0
    %v3921 = vadd.f32 0.0, %v3920
    %v3922 = vpop.f32.mrb[0].mxu0
    %v3923 = vadd.f32 0.0, %v3922
    %v3924 = vpop.f32.mrb[0].mxu0
    %v3925 = vadd.f32 0.0, %v3924
    %v3926 = vpop.f32.mrb[0].mxu0
    %v3927 = vadd.f32 0.0, %v3926
    %3928 = vmatprep.mubr.bf16.mxu0 0
    %3929 = vmatmul.mubr.bf16.gmra.mrb[0].mxu0 %v3876
    %v3930 = vpop.f32.mrb[0].mxu0
    %v3931 = vadd.f32 0.0, %v3930
    %v3932 = vpop.f32.mrb[0].mxu0
    %v3933 = vadd.f32 0.0, %v3932
    %v3934 = vpop.f32.mrb[0].mxu0
    %v3935 = vadd.f32 0.0, %v3934
    %v3936 = vpop.f32.mrb[0].mxu0
    %v3937 = vadd.f32 0.0, %v3936
    %3938 = vmatprep.mubr.bf16.mxu0 0
    %3939 = vmatmul.mubr.bf16.gmra.mrb[0].mxu0 %v3879
    %v3940 = vpop.f32.mrb[0].mxu0
    %v3941 = vadd.f32 0.0, %v3940
    %v3942 = vpop.f32.mrb[0].mxu0
    %v3943 = vadd.f32 0.0, %v3942
    %v3944 = vpop.f32.mrb[0].mxu0
    %v3945 = vadd.f32 0.0, %v3944
    %v3946 = vpop.f32.mrb[0].mxu0
    %v3947 = vadd.f32 0.0, %v3946
    %3948 = vmatprep.mubr.bf16.mxu0 0
    %3949 = vmatmul.mubr.bf16.gmra.mrb[0].mxu0 %v3882
    %v3950 = vpop.f32.mrb[0].mxu0
    %v3951 = vadd.f32 0.0, %v3950
    %v3952 = vpop.f32.mrb[0].mxu0
    %v3953 = vadd.f32 0.0, %v3952
    %v3954 = vpop.f32.mrb[0].mxu0
    %v3955 = vadd.f32 0.0, %v3954
    %v3956 = vpop.f32.mrb[0].mxu0
    %v3957 = vadd.f32 0.0, %v3956
    %3958 = vmatprep.mubr.bf16.mxu0 0
    %3959 = vmatmul.mubr.bf16.gmra.mrb[0].mxu0 %v3884
    %v3960 = vpop.f32.mrb[0].mxu0
    %v3961 = vadd.f32 0.0, %v3960
    %v3962 = vpop.f32.mrb[0].mxu0
    %v3963 = vadd.f32 0.0, %v3962
    %v3964 = vpop.f32.mrb[0].mxu0
    %v3965 = vpop.f32.mrb[0].mxu0
    %3966 = vdwg.mxu0
    %3967 = vmatprep.subr.bf16.mxu0 0
    %3968 = vmatpush1.bf16.msra.mxu0 %v2118
    %3969 = vmatprep.subr.bf16.mxu0 0
    %3970 = vmatpush1.bf16.msra.mxu0 %v2146
    %3971 = vmatprep.subr.bf16.mxu0 0
    %3972 = vmatpush1.bf16.msra.mxu0 0
    %3973 = vmatprep.subr.bf16.mxu0 0
    %3974 = vmatpush1.bf16.msra.mxu0 0
    %3975 = vmatprep.subr.bf16.mxu0 0
    %3976 = vmatpush1.bf16.msra.mxu0 0
    %3977 = vmatprep.subr.bf16.mxu0 0
    %3978 = vmatpush1.bf16.msra.mxu0 0
    %3979 = vmatprep.subr.bf16.mxu0 0
    %3980 = vmatpush1.bf16.msra.mxu0 0
    %3981 = vmatprep.subr.bf16.mxu0 0
    %3982 = vmatpush1.bf16.msra.mxu0 0
    %3983 = vmatprep.subr.bf16.mxu0 0
    %3984 = vmatpush1.bf16.msra.mxu0 0
    %3985 = vmatprep.subr.bf16.mxu0 0
    %3986 = vmatpush1.bf16.msra.mxu0 0
    %3987 = vmatprep.subr.bf16.mxu0 0
    %3988 = vmatpush1.bf16.msra.mxu0 0
    %3989 = vmatprep.subr.bf16.mxu0 0
    %3990 = vmatpush1.bf16.msra.mxu0 0
    %3991 = vmatprep.subr.bf16.mxu0 0
    %3992 = vmatpush1.bf16.msra.mxu0 0
    %3993 = vmatprep.subr.bf16.mxu0 0
    %3994 = vmatpush1.bf16.msra.mxu0 0
    %3995 = vmatprep.subr.bf16.mxu0 0
    %3996 = vmatpush1.bf16.msra.mxu0 0
    %3997 = vmatprep.subr.bf16.mxu0 0
    %3998 = vmatpush1.bf16.msra.mxu0 0
    %3999 = vmatprep.mubr.bf16.mxu0 0
    %4000 = vmatmul.mubr.bf16.gmra.mrb[0].mxu0 %v3873
    %v4001 = vpop.f32.mrb[0].mxu0
    %v4002 = vadd.f32 0.0, %v4001
    %v4003 = vpop.f32.mrb[0].mxu0
    %v4004 = vpop.f32.mrb[0].mxu0
    %v4005 = vadd.f32 0.0, %v4004
    %v4006 = vpop.f32.mrb[0].mxu0
    %4007 = vmatprep.mubr.bf16.mxu0 0
    %4008 = vmatmul.mubr.bf16.gmra.mrb[0].mxu0 %v3876
    %v4009 = vpop.f32.mrb[0].mxu0
    %v4010 = vadd.f32 0.0, %v4009
    %v4011 = vpop.f32.mrb[0].mxu0
    %v4012 = vpop.f32.mrb[0].mxu0
    %v4013 = vadd.f32 0.0, %v4012
    %v4014 = vpop.f32.mrb[0].mxu0
    %4015 = vmatprep.mubr.bf16.mxu0 0
    %4016 = vmatmul.mubr.bf16.gmra.mrb[0].mxu0 %v3879
    %v4017 = vpop.f32.mrb[0].mxu0
    %v4018 = vadd.f32 0.0, %v4017
    %v4019 = vpop.f32.mrb[0].mxu0
    %v4020 = vpop.f32.mrb[0].mxu0
    %v4021 = vadd.f32 0.0, %v4020
    %v4022 = vpop.f32.mrb[0].mxu0
    %4023 = vmatprep.mubr.bf16.mxu0 0
    %4024 = vmatmul.mubr.bf16.gmra.mrb[0].mxu0 %v3882
    %v4025 = vpop.f32.mrb[0].mxu0
    %v4026 = vadd.f32 0.0, %v4025
    %v4027 = vpop.f32.mrb[0].mxu0
    %v4028 = vpop.f32.mrb[0].mxu0
    %v4029 = vadd.f32 0.0, %v4028
    %v4030 = vpop.f32.mrb[0].mxu0
    %4031 = vmatprep.mubr.bf16.mxu0 0
    %4032 = vmatmul.mubr.bf16.gmra.mrb[0].mxu0 %v3884
    %v4033 = vpop.f32.mrb[0].mxu0
    %v4034 = vadd.f32 0.0, %v4033
    %v4035 = vpop.f32.mrb[0].mxu0
    %v4036 = vpop.f32.mrb[0].mxu0
    %v4037 = vpop.f32.mrb[0].mxu0
    %4038 = vdwg.mxu0
    %v4039 = vmul.f32 %v3754, %v3921
    %v4040 = vmul.f32 %v3756, %v3923
    %v4041 = vmul.f32 %v3835, %v4002
    %v4042 = vmul.f32 %v3758, %v3925
    %v4043 = vmul.f32 %v3760, %v3927
    %v4044 = vmul.f32 %v3838, %v4005
    %v4045 = vmul.f32 %v3764, %v3931
    %v4046 = vmul.f32 %v3766, %v3933
    %v4047 = vmul.f32 %v3843, %v4010
    %v4048 = vmul.f32 %v3768, %v3935
    %v4049 = vmul.f32 %v3770, %v3937
    %v4050 = vmul.f32 %v3846, %v4013
    %v4051 = vmul.f32 %v3774, %v3941
    %v4052 = vmul.f32 %v3776, %v3943
    %v4053 = vmul.f32 %v3851, %v4018
    %v4054 = vmul.f32 %v3778, %v3945
    %v4055 = vmul.f32 %v3780, %v3947
    %v4056 = vmul.f32 %v3854, %v4021
    %v4057 = vmul.f32 %v3784, %v3951
    %v4058 = vmul.f32 %v3786, %v3953
    %v4059 = vmul.f32 %v3859, %v4026
    %v4060 = vmul.f32 %v3788, %v3955
    %v4061 = vmul.f32 %v3790, %v3957
    %v4062 = vmul.f32 %v3862, %v4029
    %v4063 = vmul.f32 %v3794, %v3961
    %v4064 = vmul.f32 %v3796, %v3963
    %v4065 = vmul.f32 %v3867, %v4034
    %v4066 = vpack.c.bf16 %v4042, %v4039
    %v4067 = vpack.c.bf16 %v4043, %v4040
    %v4068 = vpack.c.bf16 %v4044, %v4041
    %v4069 = vpack.c.bf16 %v4048, %v4045
    %v4070 = vpack.c.bf16 %v4049, %v4046
    %v4071 = vpack.c.bf16 %v4050, %v4047
    %v4072 = vpack.c.bf16 %v4054, %v4051
    %v4073 = vpack.c.bf16 %v4055, %v4052
    %v4074 = vpack.c.bf16 %v4056, %v4053
    %v4075 = vpack.c.bf16 %v4060, %v4057
    %v4076 = vpack.c.bf16 %v4061, %v4058
    %v4077 = vpack.c.bf16 %v4062, %v4059
    %v4078 = vpack.c.bf16 %v4063, %v4063
    %v4079 = vpack.c.bf16 %v4064, %v4064
    %v4080 = vpack.c.bf16 %v4065, %v4065
    %v4082 = vsel %vm962, %v4078, 0
    %v4085 = vsel %vm962, %v4079, 0
    %v4088 = vsel %vm962, %v4080, 0
    %4090 = vmatprep.subr.bf16.mxu0 %v4067
    %4091 = vmatpush1.bf16.msra.mxu0 %v4066
    %4092 = vmatprep.subr.bf16.mxu0 %v4070
    %4093 = vmatpush1.bf16.msra.mxu0 %v4069
    %4094 = vmatprep.subr.bf16.mxu0 %v4073
    %4095 = vmatpush1.bf16.msra.mxu0 %v4072
    %4096 = vmatprep.subr.bf16.mxu0 %v4076
    %4097 = vmatpush1.bf16.msra.mxu0 %v4075
    %4098 = vmatprep.subr.bf16.mxu0 %v4085
    %4099 = vmatpush1.bf16.msra.mxu0 %v4082
    %4100 = vmatprep.subr.bf16.mxu0 0
    %4101 = vmatpush1.bf16.msra.mxu0 0
    %4102 = vmatprep.subr.bf16.mxu0 0
    %4103 = vmatpush1.bf16.msra.mxu0 0
    %4104 = vmatprep.subr.bf16.mxu0 0
    %4105 = vmatpush1.bf16.msra.mxu0 0
    %4106 = vmatprep.subr.bf16.mxu0 0
    %4107 = vmatpush1.bf16.msra.mxu0 0
    %4108 = vmatprep.subr.bf16.mxu0 0
    %4109 = vmatpush1.bf16.msra.mxu0 0
    %4110 = vmatprep.subr.bf16.mxu0 0
    %4111 = vmatpush1.bf16.msra.mxu0 0
    %4112 = vmatprep.subr.bf16.mxu0 0
    %4113 = vmatpush1.bf16.msra.mxu0 0
    %4114 = vmatprep.subr.bf16.mxu0 0
    %4115 = vmatpush1.bf16.msra.mxu0 0
    %4116 = vmatprep.subr.bf16.mxu0 0
    %4117 = vmatpush1.bf16.msra.mxu0 0
    %4118 = vmatprep.subr.bf16.mxu0 0
    %4119 = vmatpush1.bf16.msra.mxu0 0
    %4120 = vmatprep.subr.bf16.mxu0 0
    %4121 = vmatpush1.bf16.msra.mxu0 0
    %4122 = vmatprep.mubr.bf16.mxu0 0
    %4123 = vmatmul.mubr.bf16.gmra.mrb[0].mxu0 %v1895
    %v4124 = vpop.f32.mrb[0].mxu0
    %v4125 = vadd.f32 0.0, %v4124
    %v4126 = vpop.f32.mrb[0].mxu0
    %v4127 = vadd.f32 0.0, %v4126
    %v4128 = vpop.f32.mrb[0].mxu0
    %v4129 = vadd.f32 0.0, %v4128
    %v4130 = vpop.f32.mrb[0].mxu0
    %v4131 = vadd.f32 0.0, %v4130
    %4132 = vdwg.mxu0
    %4133 = vmatprep.subr.bf16.mxu0 0
    %4134 = vmatpush1.bf16.msra.mxu0 %v4068
    %4135 = vmatprep.subr.bf16.mxu0 0
    %4136 = vmatpush1.bf16.msra.mxu0 %v4071
    %4137 = vmatprep.subr.bf16.mxu0 0
    %4138 = vmatpush1.bf16.msra.mxu0 %v4074
    %4139 = vmatprep.subr.bf16.mxu0 0
    %4140 = vmatpush1.bf16.msra.mxu0 %v4077
    %4141 = vmatprep.subr.bf16.mxu0 0
    %4142 = vmatpush1.bf16.msra.mxu0 %v4088
    %4143 = vmatprep.subr.bf16.mxu0 0
    %4144 = vmatpush1.bf16.msra.mxu0 0
    %4145 = vmatprep.subr.bf16.mxu0 0
    %4146 = vmatpush1.bf16.msra.mxu0 0
    %4147 = vmatprep.subr.bf16.mxu0 0
    %4148 = vmatpush1.bf16.msra.mxu0 0
    %4149 = vmatprep.subr.bf16.mxu0 0
    %4150 = vmatpush1.bf16.msra.mxu0 0
    %4151 = vmatprep.subr.bf16.mxu0 0
    %4152 = vmatpush1.bf16.msra.mxu0 0
    %4153 = vmatprep.subr.bf16.mxu0 0
    %4154 = vmatpush1.bf16.msra.mxu0 0
    %4155 = vmatprep.subr.bf16.mxu0 0
    %4156 = vmatpush1.bf16.msra.mxu0 0
    %4157 = vmatprep.subr.bf16.mxu0 0
    %4158 = vmatpush1.bf16.msra.mxu0 0
    %4159 = vmatprep.subr.bf16.mxu0 0
    %4160 = vmatpush1.bf16.msra.mxu0 0
    %4161 = vmatprep.subr.bf16.mxu0 0
    %4162 = vmatpush1.bf16.msra.mxu0 0
    %4163 = vmatprep.subr.bf16.mxu0 0
    %4164 = vmatpush1.bf16.msra.mxu0 0
    %4165 = vmatprep.mubr.bf16.mxu0 0
    %4166 = vmatmul.mubr.bf16.gmra.mrb[0].mxu0 %v1895
    %v4167 = vpop.f32.mrb[0].mxu0
    %v4168 = vadd.f32 0.0, %v4167
    %v4169 = vpop.f32.mrb[0].mxu0
    %v4170 = vpop.f32.mrb[0].mxu0
    %v4171 = vadd.f32 0.0, %v4170
    %v4172 = vpop.f32.mrb[0].mxu0
    %4173 = vdwg.mxu0
    %v4174 = vpack.c.bf16 %v3715, %v3714
    %v4176 = vsel %vm1828, %v4174, 0
    %4178 = vmatprep.subr.bf16.mxu0 %v2117
    %4179 = vmatpush1.bf16.msra.mxu0 %v2116
    %4180 = vmatprep.subr.bf16.mxu0 %v2143
    %4181 = vmatpush1.bf16.msra.mxu0 %v2140
    %4182 = vmatprep.subr.bf16.mxu0 0
    %4183 = vmatpush1.bf16.msra.mxu0 0
    %4184 = vmatprep.subr.bf16.mxu0 0
    %4185 = vmatpush1.bf16.msra.mxu0 0
    %4186 = vmatprep.subr.bf16.mxu0 0
    %4187 = vmatpush1.bf16.msra.mxu0 0
    %4188 = vmatprep.subr.bf16.mxu0 0
    %4189 = vmatpush1.bf16.msra.mxu0 0
    %4190 = vmatprep.subr.bf16.mxu0 0
    %4191 = vmatpush1.bf16.msra.mxu0 0
    %4192 = vmatprep.subr.bf16.mxu0 0
    %4193 = vmatpush1.bf16.msra.mxu0 0
    %4194 = vmatprep.subr.bf16.mxu0 0
    %4195 = vmatpush1.bf16.msra.mxu0 0
    %4196 = vmatprep.subr.bf16.mxu0 0
    %4197 = vmatpush1.bf16.msra.mxu0 0
    %4198 = vmatprep.subr.bf16.mxu0 0
    %4199 = vmatpush1.bf16.msra.mxu0 0
    %4200 = vmatprep.subr.bf16.mxu0 0
    %4201 = vmatpush1.bf16.msra.mxu0 0
    %4202 = vmatprep.subr.bf16.mxu0 0
    %4203 = vmatpush1.bf16.msra.mxu0 0
    %4204 = vmatprep.subr.bf16.mxu0 0
    %4205 = vmatpush1.bf16.msra.mxu0 0
    %4206 = vmatprep.subr.bf16.mxu0 0
    %4207 = vmatpush1.bf16.msra.mxu0 0
    %4208 = vmatprep.subr.bf16.mxu0 0
    %4209 = vmatpush1.bf16.msra.mxu0 0
    %4210 = vmatprep.mubr.bf16.mxu0 0
    %4211 = vmatmul.mubr.bf16.gmra.mrb[0].mxu0 %v4176
    %v4212 = vpop.f32.mrb[0].mxu0
    %v4213 = vadd.f32 0.0, %v4212
    %v4214 = vpop.f32.mrb[0].mxu0
    %v4215 = vadd.f32 0.0, %v4214
    %v4216 = vpop.f32.mrb[0].mxu0
    %v4217 = vadd.f32 0.0, %v4216
    %v4218 = vpop.f32.mrb[0].mxu0
    %v4219 = vadd.f32 0.0, %v4218
    %4220 = vdwg.mxu0
    %4221 = vmatprep.subr.bf16.mxu0 0
    %4222 = vmatpush1.bf16.msra.mxu0 %v2118
    %4223 = vmatprep.subr.bf16.mxu0 0
    %4224 = vmatpush1.bf16.msra.mxu0 %v2146
    %4225 = vmatprep.subr.bf16.mxu0 0
    %4226 = vmatpush1.bf16.msra.mxu0 0
    %4227 = vmatprep.subr.bf16.mxu0 0
    %4228 = vmatpush1.bf16.msra.mxu0 0
    %4229 = vmatprep.subr.bf16.mxu0 0
    %4230 = vmatpush1.bf16.msra.mxu0 0
    %4231 = vmatprep.subr.bf16.mxu0 0
    %4232 = vmatpush1.bf16.msra.mxu0 0
    %4233 = vmatprep.subr.bf16.mxu0 0
    %4234 = vmatpush1.bf16.msra.mxu0 0
    %4235 = vmatprep.subr.bf16.mxu0 0
    %4236 = vmatpush1.bf16.msra.mxu0 0
    %4237 = vmatprep.subr.bf16.mxu0 0
    %4238 = vmatpush1.bf16.msra.mxu0 0
    %4239 = vmatprep.subr.bf16.mxu0 0
    %4240 = vmatpush1.bf16.msra.mxu0 0
    %4241 = vmatprep.subr.bf16.mxu0 0
    %4242 = vmatpush1.bf16.msra.mxu0 0
    %4243 = vmatprep.subr.bf16.mxu0 0
    %4244 = vmatpush1.bf16.msra.mxu0 0
    %4245 = vmatprep.subr.bf16.mxu0 0
    %4246 = vmatpush1.bf16.msra.mxu0 0
    %4247 = vmatprep.subr.bf16.mxu0 0
    %4248 = vmatpush1.bf16.msra.mxu0 0
    %4249 = vmatprep.subr.bf16.mxu0 0
    %4250 = vmatpush1.bf16.msra.mxu0 0
    %4251 = vmatprep.subr.bf16.mxu0 0
    %4252 = vmatpush1.bf16.msra.mxu0 0
    %4253 = vmatprep.mubr.bf16.mxu0 0
    %4254 = vmatmul.mubr.bf16.gmra.mrb[0].mxu0 %v4176
    %v4255 = vpop.f32.mrb[0].mxu0
    %v4256 = vadd.f32 0.0, %v4255
    %v4257 = vpop.f32.mrb[0].mxu0
    %v4258 = vpop.f32.mrb[0].mxu0
    %v4259 = vadd.f32 0.0, %v4258
    %v4260 = vpop.f32.mrb[0].mxu0
    %4261 = vdwg.mxu0
    %v4262 = vmul.f32 %v4125, %v4213
    %v4263 = vmul.f32 %v4127, %v4215
    %v4264 = vmul.f32 %v4168, %v4256
    %v4265 = vmul.f32 %v4129, %v4217
    %v4266 = vmul.f32 %v4131, %v4219
    %v4267 = vmul.f32 %v4171, %v4259
    %v4268 = vld [vmem:[#allocation34] sm:$0x7]
    %v4270 = vlaneseq
    %v4271 = vshrl.u32 %v4270, 7
    %v4272 = vsub.s32 0, %v4271
    %v4273 = vrot.slane %v4268, %v4272
    %v4274 = vlaneseq
    %v4275 = vshrl.u32 %v4274, 7
    %v4276 = vsub.s32 1, %v4275
    %v4277 = vrot.slane %v4268, %v4276
    %v4278 = vlaneseq
    %v4279 = vshrl.u32 %v4278, 7
    %v4280 = vsub.s32 2, %v4279
    %v4281 = vrot.slane %v4268, %v4280
    %v4285 = vadd.f32 %v4262, %v4273
    %v4286 = vadd.f32 %v4263, %v4277
    %v4287 = vadd.f32 %v4264, %v4281
    %v4288 = vadd.f32 %v4265, %v4273
    %v4289 = vadd.f32 %v4266, %v4277
    %v4290 = vadd.f32 %v4267, %v4281
    %v4291 = vld [vmem:[#allocation31] sm:$0xf]
    %v4292 = vld [vmem:[#allocation31 + $0x4] sm:$0xf]
    %v4293 = vld [vmem:[#allocation31 + $0x8] sm:$0xf]
    %v4294 = vld [vmem:[#allocation31 + $0xc] sm:$0xf]
    %v4295 = vld [vmem:[#allocation31 + $0x10] sm:$0xf]
    %v4296 = vld [vmem:[#allocation31 + $0x14] sm:$0xf]
    %v4297 = vld [vmem:[#allocation31 + $0x18] sm:$0xf]
    %v4298 = vld [vmem:[#allocation31 + $0x1c] sm:$0xf]
    %v4299 = vld [vmem:[#allocation31 + $0x20] sm:$0xf]
    %v4300 = vld [vmem:[#allocation31 + $0x24] sm:$0xf]
    %v4301 = vld [vmem:[#allocation31 + $0x28] sm:$0xf]
    %v4302 = vld [vmem:[#allocation31 + $0x2c] sm:$0xf]
    %v4303 = vld [vmem:[#allocation31 + $0x30] sm:$0xf]
    %v4304 = vld [vmem:[#allocation31 + $0x34] sm:$0xf]
    %v4305 = vld [vmem:[#allocation31 + $0x38] sm:$0xf]
    %v4306 = vld [vmem:[#allocation31 + $0x3c] sm:$0xf]
    %v4307 = vld [vmem:[#allocation31 + $0x40] sm:$0xf]
    %v4308 = vld [vmem:[#allocation31 + $0x44] sm:$0xf]
    %v4309 = vld [vmem:[#allocation31 + $0x48] sm:$0xf]
    %v4310 = vld [vmem:[#allocation31 + $0x4c] sm:$0xf]
    %v4311 = vld [vmem:[#allocation31 + $0x50] sm:$0xf]
    %v4312 = vld [vmem:[#allocation31 + $0x54] sm:$0xf]
    %v4313 = vld [vmem:[#allocation31 + $0x58] sm:$0xf]
    %v4314 = vld [vmem:[#allocation31 + $0x5c] sm:$0xf]
    %v4315 = vld [vmem:[#allocation31 + $0x60] sm:$0xf]
    %v4316 = vld [vmem:[#allocation31 + $0x64] sm:$0xf]
    %v4317 = vld [vmem:[#allocation31 + $0x68] sm:$0xf]
    %v4318 = vld [vmem:[#allocation31 + $0x6c] sm:$0xf]
    %v4319 = vld [vmem:[#allocation31 + $0x70] sm:$0xf]
    %v4320 = vld [vmem:[#allocation31 + $0x74] sm:$0xf]
    %v4321 = vld [vmem:[#allocation31 + $0x78] sm:$0xf]
    %v4322 = vld [vmem:[#allocation31 + $0x7c] sm:$0xf]
    %v4323 = vld [vmem:[#allocation31 + $0x80] sm:$0xf]
    %v4324 = vld [vmem:[#allocation31 + $0x84] sm:$0xf]
    %v4325 = vld [vmem:[#allocation31 + $0x88] sm:$0xf]
    %v4326 = vld [vmem:[#allocation31 + $0x8c] sm:$0xf]
    %v4327 = vld [vmem:[#allocation31 + $0x90] sm:$0xf]
    %v4328 = vld [vmem:[#allocation31 + $0x94] sm:$0xf]
    %v4329 = vld [vmem:[#allocation31 + $0x98] sm:$0xf]
    %v4330 = vld [vmem:[#allocation31 + $0x9c] sm:$0xf]
    %v4331 = vld [vmem:[#allocation31 + $0xa0] sm:$0xf]
    %v4332 = vld [vmem:[#allocation31 + $0xa4] sm:$0xf]
    %v4333 = vld [vmem:[#allocation31 + $0xa8] sm:$0xf]
    %v4334 = vld [vmem:[#allocation31 + $0xac] sm:$0xf]
    %v4335 = vld [vmem:[#allocation31 + $0xb0] sm:$0xf]
    %v4336 = vld [vmem:[#allocation31 + $0xb4] sm:$0xf]
    %v4337 = vld [vmem:[#allocation31 + $0xb8] sm:$0xf]
    %v4338 = vld [vmem:[#allocation31 + $0xbc] sm:$0xf]
    %v4339 = vpack.c.bf16 %v4288, %v4285
    %v4340 = vpack.c.bf16 %v4289, %v4286
    %v4341 = vpack.c.bf16 %v4290, %v4287
    %v4342 = vld [vmem:[#allocation36] sm:$0x1]
    %v4344 = vlaneseq
    %v4345 = vshrl.u32 %v4344, 7
    %v4346 = vsub.s32 0, %v4345
    %v4347 = vrot.slane %v4342, %v4346
    %v4397 = vunpack.c.l.b16 %v4291
    %v4398 = vunpack.c.l.b16 %v4292
    %v4399 = vunpack.c.l.b16 %v4293
    %v4400 = vunpack.c.l.b16 %v4294
    %v4401 = vunpack.c.l.b16 %v4295
    %v4402 = vunpack.c.l.b16 %v4296
    %v4403 = vunpack.c.l.b16 %v4297
    %v4404 = vunpack.c.l.b16 %v4298
    %v4405 = vunpack.c.l.b16 %v4299
    %v4406 = vunpack.c.l.b16 %v4300
    %v4407 = vunpack.c.l.b16 %v4301
    %v4408 = vunpack.c.l.b16 %v4302
    %v4409 = vunpack.c.l.b16 %v4303
    %v4410 = vunpack.c.l.b16 %v4304
    %v4411 = vunpack.c.l.b16 %v4305
    %v4412 = vunpack.c.l.b16 %v4306
    %v4413 = vunpack.c.l.b16 %v4307
    %v4414 = vunpack.c.l.b16 %v4308
    %v4415 = vunpack.c.l.b16 %v4309
    %v4416 = vunpack.c.l.b16 %v4310
    %v4417 = vunpack.c.l.b16 %v4311
    %v4418 = vunpack.c.l.b16 %v4312
    %v4419 = vunpack.c.l.b16 %v4313
    %v4420 = vunpack.c.l.b16 %v4314
    %v4421 = vunpack.c.l.b16 %v4315
    %v4422 = vunpack.c.l.b16 %v4316
    %v4423 = vunpack.c.l.b16 %v4317
    %v4424 = vunpack.c.l.b16 %v4318
    %v4425 = vunpack.c.l.b16 %v4319
    %v4426 = vunpack.c.l.b16 %v4320
    %v4427 = vunpack.c.l.b16 %v4321
    %v4428 = vunpack.c.l.b16 %v4322
    %v4429 = vunpack.c.l.b16 %v4323
    %v4430 = vunpack.c.l.b16 %v4324
    %v4431 = vunpack.c.l.b16 %v4325
    %v4432 = vunpack.c.l.b16 %v4326
    %v4433 = vunpack.c.l.b16 %v4327
    %v4434 = vunpack.c.l.b16 %v4328
    %v4435 = vunpack.c.l.b16 %v4329
    %v4436 = vunpack.c.l.b16 %v4330
    %v4437 = vunpack.c.l.b16 %v4331
    %v4438 = vunpack.c.l.b16 %v4332
    %v4439 = vunpack.c.l.b16 %v4333
    %v4440 = vunpack.c.l.b16 %v4334
    %v4441 = vunpack.c.l.b16 %v4335
    %v4442 = vunpack.c.l.b16 %v4336
    %v4443 = vunpack.c.l.b16 %v4337
    %v4444 = vunpack.c.l.b16 %v4338
    %v4445 = vpack.c.b16 %v4398, %v4397
    %v4446 = vpack.c.b16 %v4400, %v4399
    %v4447 = vpack.c.b16 %v4402, %v4401
    %v4448 = vpack.c.b16 %v4404, %v4403
    %v4449 = vpack.c.b16 %v4406, %v4405
    %v4450 = vpack.c.b16 %v4408, %v4407
    %v4451 = vpack.c.b16 %v4410, %v4409
    %v4452 = vpack.c.b16 %v4412, %v4411
    %v4453 = vpack.c.b16 %v4414, %v4413
    %v4454 = vpack.c.b16 %v4416, %v4415
    %v4455 = vpack.c.b16 %v4418, %v4417
    %v4456 = vpack.c.b16 %v4420, %v4419
    %v4457 = vpack.c.b16 %v4422, %v4421
    %v4458 = vpack.c.b16 %v4424, %v4423
    %v4459 = vpack.c.b16 %v4426, %v4425
    %v4460 = vpack.c.b16 %v4428, %v4427
    %v4461 = vpack.c.b16 %v4430, %v4429
    %v4462 = vpack.c.b16 %v4432, %v4431
    %v4463 = vpack.c.b16 %v4434, %v4433
    %v4464 = vpack.c.b16 %v4436, %v4435
    %v4465 = vpack.c.b16 %v4438, %v4437
    %v4466 = vpack.c.b16 %v4440, %v4439
    %v4467 = vpack.c.b16 %v4442, %v4441
    %v4468 = vpack.c.b16 %v4444, %v4443
    %4493 = vmatprep.subr.bf16.mxu0 0
    %4494 = vmatpush1.bf16.msra.mxu0 %v4445
    %4495 = vmatprep.subr.bf16.mxu0 0
    %4496 = vmatpush1.bf16.msra.mxu0 %v4446
    %4497 = vmatprep.subr.bf16.mxu0 0
    %4498 = vmatpush1.bf16.msra.mxu0 %v4447
    %4499 = vmatprep.subr.bf16.mxu0 0
    %4500 = vmatpush1.bf16.msra.mxu0 %v4448
    %4501 = vmatprep.subr.bf16.mxu0 0
    %4502 = vmatpush1.bf16.msra.mxu0 %v4449
    %4503 = vmatprep.subr.bf16.mxu0 0
    %4504 = vmatpush1.bf16.msra.mxu0 %v4450
    %4505 = vmatprep.subr.bf16.mxu0 0
    %4506 = vmatpush1.bf16.msra.mxu0 %v4451
    %4507 = vmatprep.subr.bf16.mxu0 0
    %4508 = vmatpush1.bf16.msra.mxu0 %v4452
    %4509 = vmatprep.subr.bf16.mxu0 0
    %4510 = vmatpush1.bf16.msra.mxu0 %v4453
    %4511 = vmatprep.subr.bf16.mxu0 0
    %4512 = vmatpush1.bf16.msra.mxu0 %v4454
    %4513 = vmatprep.subr.bf16.mxu0 0
    %4514 = vmatpush1.bf16.msra.mxu0 %v4455
    %4515 = vmatprep.subr.bf16.mxu0 0
    %4516 = vmatpush1.bf16.msra.mxu0 %v4456
    %4517 = vmatprep.subr.bf16.mxu0 0
    %4518 = vmatpush1.bf16.msra.mxu0 %v4457
    %4519 = vmatprep.subr.bf16.mxu0 0
    %4520 = vmatpush1.bf16.msra.mxu0 %v4458
    %4521 = vmatprep.subr.bf16.mxu0 0
    %4522 = vmatpush1.bf16.msra.mxu0 %v4459
    %4523 = vmatprep.subr.bf16.mxu0 0
    %4524 = vmatpush1.bf16.msra.mxu0 %v4460
    %4525 = vmatprep.mubr.bf16.mxu0 %v4340
    %4526 = vmatmul.mubr.bf16.gmra.mrb[0].mxu0 %v4339
    %v4527 = vpop.f32.mrb[0].mxu0
    %v4528 = vadd.f32 %v4347, %v4527
    %v4529 = vpop.f32.mrb[0].mxu0
    %v4530 = vpop.f32.mrb[0].mxu0
    %v4531 = vadd.f32 %v4347, %v4530
    %v4532 = vpop.f32.mrb[0].mxu0
    %4533 = vdwg.mxu0
    %4534 = vmatprep.subr.bf16.mxu0 0
    %4535 = vmatpush1.bf16.msra.mxu0 %v4461
    %4536 = vmatprep.subr.bf16.mxu0 0
    %4537 = vmatpush1.bf16.msra.mxu0 %v4462
    %4538 = vmatprep.subr.bf16.mxu0 0
    %4539 = vmatpush1.bf16.msra.mxu0 %v4463
    %4540 = vmatprep.subr.bf16.mxu0 0
    %4541 = vmatpush1.bf16.msra.mxu0 %v4464
    %4542 = vmatprep.subr.bf16.mxu0 0
    %4543 = vmatpush1.bf16.msra.mxu0 %v4465
    %4544 = vmatprep.subr.bf16.mxu0 0
    %4545 = vmatpush1.bf16.msra.mxu0 %v4466
    %4546 = vmatprep.subr.bf16.mxu0 0
    %4547 = vmatpush1.bf16.msra.mxu0 %v4467
    %4548 = vmatprep.subr.bf16.mxu0 0
    %4549 = vmatpush1.bf16.msra.mxu0 %v4468
    %4550 = vmatprep.subr.bf16.mxu0 0
    %4551 = vmatpush1.bf16.msra.mxu0 0
    %4552 = vmatprep.subr.bf16.mxu0 0
    %4553 = vmatpush1.bf16.msra.mxu0 0
    %4554 = vmatprep.subr.bf16.mxu0 0
    %4555 = vmatpush1.bf16.msra.mxu0 0
    %4556 = vmatprep.subr.bf16.mxu0 0
    %4557 = vmatpush1.bf16.msra.mxu0 0
    %4558 = vmatprep.subr.bf16.mxu0 0
    %4559 = vmatpush1.bf16.msra.mxu0 0
    %4560 = vmatprep.subr.bf16.mxu0 0
    %4561 = vmatpush1.bf16.msra.mxu0 0
    %4562 = vmatprep.subr.bf16.mxu0 0
    %4563 = vmatpush1.bf16.msra.mxu0 0
    %4564 = vmatprep.subr.bf16.mxu0 0
    %4565 = vmatpush1.bf16.msra.mxu0 0
    %4566 = vmatprep.mubr.bf16.mxu0 0
    %4567 = vmatmul.mubr.bf16.gmra.mrb[0].mxu0 %v4341
    %v4568 = vpop.f32.mrb[0].mxu0
    %v4569 = vadd.f32 %v4528, %v4568
    %v4570 = vpop.f32.mrb[0].mxu0
    %v4571 = vpop.f32.mrb[0].mxu0
    %v4572 = vadd.f32 %v4531, %v4571
    %v4573 = vpop.f32.mrb[0].mxu0
    %4574 = vdwg.mxu0
    %v4575 = vmax.f32 %v4569, 0.0
    %v4576 = vmax.f32 %v4572, 0.0
    %v4577 = vadd.f32 %v4575, %v2880
    %v4578 = vadd.f32 %v4576, %v2881
    %v4579 = vld [vmem:[#allocation39] sm:$0x1]
    %v4580 = vld [vmem:[#allocation37] sm:$0x1]
    %4581 = vadd.xlane.f32.xlu0 %v4577
    %v4582 = vpop.xlane.xlu0 %4581
    %4583 = vadd.xlane.f32.xlu0 %v4578
    %v4584 = vpop.xlane.xlu0 %4583
    %v4585 = vmul.f32 %v4582, %v2847
    %v4586 = vmul.f32 %v4584, %v2847
    %v4587 = vsub.f32 %v4577, %v4585
    %v4588 = vsub.f32 %v4578, %v4586
    %v4589 = vmul.f32 %v4587, %v4587
    %v4590 = vmul.f32 %v4588, %v4588
    %4591 = vadd.xlane.f32.xlu0 %v4589
    %v4592 = vpop.xlane.xlu0 %4591
    %4593 = vadd.xlane.f32.xlu0 %v4590
    %v4594 = vpop.xlane.xlu0 %4593
    %v4595 = vmul.f32 %v4592, %v2847
    %v4596 = vmul.f32 %v4594, %v2847
    %v4597 = vadd.f32 %v4595, 1e-05
    %v4598 = vadd.f32 %v4596, 1e-05
    %v4599 = vrsqrt.pop %v4597
    %v4600 = vrsqrt.pop %v4598
    %v4601 = vmul.f32 %v4587, %v4599
    %v4602 = vmul.f32 %v4588, %v4600
    %v4604 = vlaneseq
    %v4605 = vshrl.u32 %v4604, 7
    %v4606 = vsub.s32 0, %v4605
    %v4607 = vrot.slane %v4579, %v4606
    %v4609 = vmul.f32 %v4601, %v4607
    %v4610 = vmul.f32 %v4602, %v4607
    %v4612 = vlaneseq
    %v4613 = vshrl.u32 %v4612, 7
    %v4614 = vsub.s32 0, %v4613
    %v4615 = vrot.slane %v4580, %v4614
    %v4617 = vadd.f32 %v4609, %v4615
    %v4618 = vadd.f32 %v4610, %v4615
    %v4619 = vld [vmem:[%s15] sm:$0xf]
    %v4620 = vld [vmem:[%s15 + $0x4] sm:$0xf]
    %v4621 = vld [vmem:[%s15 + $0x8] sm:$0xf]
    %v4622 = vld [vmem:[%s17] sm:$0xff]
    %v4623 = vld [vmem:[%s17 + $0x8] sm:$0xff]
    %v4624 = vld [vmem:[%s17 + $0x10] sm:$0xff]
    %v4625 = vld [vmem:[#allocation6] sm:$0xff]
    %v4626 = vld [vmem:[#allocation6 + $0x8] sm:$0xff]
    %v4627 = vld [vmem:[#allocation6 + $0x10] sm:$0xff]
    %v4628 = vld [vmem:[%s93] sm:$0xff]
    %v4629 = vld [vmem:[%s93 + $0x8] sm:$0xff]
    %v4630 = vld [vmem:[%s93 + $0x10] sm:$0xff]
    %v4631 = vld [vmem:[%s93 + $0x18] sm:$0xff]
    %v4632 = vld [vmem:[%s93 + $0x20] sm:$0xff]
    %v4633 = vld [vmem:[%s93 + $0x28] sm:$0xff]
    %v4634 = vld [vmem:[%s93 + $0x30] sm:$0xff]
    %v4635 = vld [vmem:[%s93 + $0x38] sm:$0xff]
    %v4636 = vld [vmem:[%s93 + $0x40] sm:$0xff]
    %v4637 = vld [vmem:[%s93 + $0x48] sm:$0xff]
    %v4638 = vld [vmem:[%s93 + $0x50] sm:$0xff]
    %v4639 = vld [vmem:[%s93 + $0x58] sm:$0xff]
    %v4640 = vld [vmem:[%s93 + $0x60] sm:$0xff]
    %v4641 = vld [vmem:[%s93 + $0x68] sm:$0xff]
    %v4642 = vld [vmem:[%s93 + $0x70] sm:$0xff]
    %v4643 = vld [vmem:[%s93 + $0x78] sm:$0xff]
    %v4644 = vld [vmem:[%s93 + $0x80] sm:$0xff]
    %v4645 = vld [vmem:[%s93 + $0x88] sm:$0xff]
    %v4646 = vld [vmem:[%s93 + $0x90] sm:$0xff]
    %v4647 = vld [vmem:[%s93 + $0x98] sm:$0xff]
    %v4648 = vld [vmem:[%s93 + $0xa0] sm:$0xff]
    %v4649 = vld [vmem:[%s93 + $0xa8] sm:$0xff]
    %v4650 = vld [vmem:[%s93 + $0xb0] sm:$0xff]
    %v4651 = vld [vmem:[%s93 + $0xb8] sm:$0xff]
    %v4652 = vld [vmem:[%s93 + $0xc0] sm:$0xff]
    %v4653 = vld [vmem:[%s93 + $0xc8] sm:$0xff]
    %v4654 = vld [vmem:[%s93 + $0xd0] sm:$0xff]
    %v4655 = vld [vmem:[%s93 + $0xd8] sm:$0xff]
    %v4656 = vld [vmem:[%s93 + $0xe0] sm:$0xff]
    %v4657 = vld [vmem:[%s93 + $0xe8] sm:$0xff]
    %v4658 = vld [vmem:[%s93 + $0xf0] sm:$0xff]
    %v4659 = vld [vmem:[%s93 + $0xf8] sm:$0xff]
    %v4660 = vld [vmem:[%s93 + $0x100] sm:$0xff]
    %v4661 = vld [vmem:[%s93 + $0x108] sm:$0xff]
    %v4662 = vld [vmem:[%s93 + $0x110] sm:$0xff]
    %v4663 = vld [vmem:[%s93 + $0x118] sm:$0xff]
    %v4664 = vld [vmem:[%s93 + $0x120] sm:$0xff]
    %v4665 = vld [vmem:[%s93 + $0x128] sm:$0xff]
    %v4666 = vld [vmem:[%s93 + $0x130] sm:$0xff]
    %v4667 = vld [vmem:[%s93 + $0x138] sm:$0xff]
    %v4668 = vld [vmem:[%s93 + $0x140] sm:$0xff]
    %v4669 = vld [vmem:[%s93 + $0x148] sm:$0xff]
    %v4670 = vld [vmem:[%s93 + $0x150] sm:$0xff]
    %v4671 = vld [vmem:[%s93 + $0x158] sm:$0xff]
    %v4672 = vld [vmem:[%s93 + $0x160] sm:$0xff]
    %v4673 = vld [vmem:[%s93 + $0x168] sm:$0xff]
    %v4674 = vld [vmem:[%s93 + $0x170] sm:$0xff]
    %v4675 = vld [vmem:[%s93 + $0x178] sm:$0xff]
    %v4676 = vld [vmem:[%s93 + $0x180] sm:$0xff]
    %v4677 = vld [vmem:[%s93 + $0x188] sm:$0xff]
    %v4678 = vld [vmem:[%s93 + $0x190] sm:$0xff]
    %v4679 = vld [vmem:[%s93 + $0x198] sm:$0xff]
    %v4680 = vld [vmem:[%s93 + $0x1a0] sm:$0xff]
    %v4681 = vld [vmem:[%s93 + $0x1a8] sm:$0xff]
    %v4682 = vld [vmem:[%s93 + $0x1b0] sm:$0xff]
    %v4683 = vld [vmem:[%s93 + $0x1b8] sm:$0xff]
    %v4684 = vld [vmem:[%s93 + $0x1c0] sm:$0xff]
    %v4685 = vld [vmem:[%s93 + $0x1c8] sm:$0xff]
    %v4686 = vld [vmem:[%s93 + $0x1d0] sm:$0xff]
    %v4687 = vld [vmem:[%s93 + $0x1d8] sm:$0xff]
    %v4688 = vld [vmem:[%s93 + $0x1e0] sm:$0xff]
    %v4689 = vld [vmem:[%s93 + $0x1e8] sm:$0xff]
    %v4690 = vld [vmem:[%s93 + $0x1f0] sm:$0xff]
    %v4691 = vld [vmem:[%s93 + $0x1f8] sm:$0xff]
    %v4692 = vld [vmem:[%s93 + $0x200] sm:$0xff]
    %v4693 = vld [vmem:[%s93 + $0x208] sm:$0xff]
    %v4694 = vld [vmem:[%s93 + $0x210] sm:$0xff]
    %v4695 = vld [vmem:[%s93 + $0x218] sm:$0xff]
    %v4696 = vld [vmem:[%s93 + $0x220] sm:$0xff]
    %v4697 = vld [vmem:[%s93 + $0x228] sm:$0xff]
    %v4698 = vld [vmem:[%s93 + $0x230] sm:$0xff]
    %v4699 = vld [vmem:[%s93 + $0x238] sm:$0xff]
    %v4700 = vld [vmem:[%s93 + $0x240] sm:$0xff]
    %v4701 = vld [vmem:[%s93 + $0x248] sm:$0xff]
    %v4702 = vld [vmem:[%s93 + $0x250] sm:$0xff]
    %v4703 = vld [vmem:[%s93 + $0x258] sm:$0xff]
    %v4704 = vld [vmem:[%s93 + $0x260] sm:$0xff]
    %v4705 = vld [vmem:[%s93 + $0x268] sm:$0xff]
    %v4706 = vld [vmem:[%s93 + $0x270] sm:$0xff]
    %v4707 = vld [vmem:[%s93 + $0x278] sm:$0xff]
    %v4708 = vld [vmem:[%s93 + $0x280] sm:$0xff]
    %v4709 = vld [vmem:[%s93 + $0x288] sm:$0xff]
    %v4710 = vld [vmem:[%s93 + $0x290] sm:$0xff]
    %v4711 = vld [vmem:[%s93 + $0x298] sm:$0xff]
    %v4712 = vld [vmem:[%s93 + $0x2a0] sm:$0xff]
    %v4713 = vld [vmem:[%s93 + $0x2a8] sm:$0xff]
    %v4714 = vld [vmem:[%s93 + $0x2b0] sm:$0xff]
    %v4715 = vld [vmem:[%s93 + $0x2b8] sm:$0xff]
    %v4716 = vld [vmem:[%s93 + $0x2c0] sm:$0xff]
    %v4717 = vld [vmem:[%s93 + $0x2c8] sm:$0xff]
    %v4718 = vld [vmem:[%s93 + $0x2d0] sm:$0xff]
    %v4719 = vld [vmem:[%s93 + $0x2d8] sm:$0xff]
    %v4720 = vld [vmem:[%s93 + $0x2e0] sm:$0xff]
    %v4721 = vld [vmem:[%s93 + $0x2e8] sm:$0xff]
    %v4722 = vld [vmem:[%s93 + $0x2f0] sm:$0xff]
    %v4723 = vld [vmem:[%s93 + $0x2f8] sm:$0xff]
    %v4724 = vpack.c.bf16 %v4618, %v4617
    %v4725 = vld [vmem:[#allocation48] sm:$0xff]
    %v4726 = vld [vmem:[#allocation48 + $0x8] sm:$0xf]
    %v4729 = vlaneseq
    %v4730 = vshrl.u32 %v4729, 7
    %v4731 = vsub.s32 0, %v4730
    %v4732 = vrot.slane %v4725, %v4731
    %v4733 = vlaneseq
    %v4734 = vshrl.u32 %v4733, 7
    %v4735 = vsub.s32 1, %v4734
    %v4736 = vrot.slane %v4725, %v4735
    %v4737 = vlaneseq
    %v4738 = vshrl.u32 %v4737, 7
    %v4739 = vsub.s32 2, %v4738
    %v4740 = vrot.slane %v4725, %v4739
    %v4741 = vlaneseq
    %v4742 = vshrl.u32 %v4741, 7
    %v4743 = vsub.s32 3, %v4742
    %v4744 = vrot.slane %v4725, %v4743
    %v4745 = vlaneseq
    %v4746 = vshrl.u32 %v4745, 7
    %v4747 = vsub.s32 4, %v4746
    %v4748 = vrot.slane %v4725, %v4747
    %v4749 = vlaneseq
    %v4750 = vshrl.u32 %v4749, 7
    %v4751 = vsub.s32 5, %v4750
    %v4752 = vrot.slane %v4725, %v4751
    %v4753 = vlaneseq
    %v4754 = vshrl.u32 %v4753, 7
    %v4755 = vsub.s32 6, %v4754
    %v4756 = vrot.slane %v4725, %v4755
    %v4757 = vlaneseq
    %v4758 = vshrl.u32 %v4757, 7
    %v4759 = vsub.s32 7, %v4758
    %v4760 = vrot.slane %v4725, %v4759
    %v4761 = vlaneseq
    %v4762 = vshrl.u32 %v4761, 7
    %v4763 = vsub.s32 0, %v4762
    %v4764 = vrot.slane %v4726, %v4763
    %v4765 = vlaneseq
    %v4766 = vshrl.u32 %v4765, 7
    %v4767 = vsub.s32 1, %v4766
    %v4768 = vrot.slane %v4726, %v4767
    %v4769 = vlaneseq
    %v4770 = vshrl.u32 %v4769, 7
    %v4771 = vsub.s32 2, %v4770
    %v4772 = vrot.slane %v4726, %v4771
    %v4773 = vlaneseq
    %v4774 = vshrl.u32 %v4773, 7
    %v4775 = vsub.s32 3, %v4774
    %v4776 = vrot.slane %v4726, %v4775
    %v4885 = vunpack.c.l.b16 %v4628
    %v4886 = vunpack.c.h.b16 %v4628
    %v4887 = vunpack.c.l.b16 %v4629
    %v4888 = vunpack.c.h.b16 %v4629
    %v4889 = vunpack.c.l.b16 %v4630
    %v4890 = vunpack.c.h.b16 %v4630
    %v4891 = vunpack.c.l.b16 %v4631
    %v4892 = vunpack.c.h.b16 %v4631
    %v4893 = vunpack.c.l.b16 %v4632
    %v4894 = vunpack.c.h.b16 %v4632
    %v4895 = vunpack.c.l.b16 %v4633
    %v4896 = vunpack.c.h.b16 %v4633
    %v4897 = vunpack.c.l.b16 %v4634
    %v4898 = vunpack.c.h.b16 %v4634
    %v4899 = vunpack.c.l.b16 %v4635
    %v4900 = vunpack.c.h.b16 %v4635
    %v4901 = vunpack.c.l.b16 %v4636
    %v4902 = vunpack.c.h.b16 %v4636
    %v4903 = vunpack.c.l.b16 %v4637
    %v4904 = vunpack.c.h.b16 %v4637
    %v4905 = vunpack.c.l.b16 %v4638
    %v4906 = vunpack.c.h.b16 %v4638
    %v4907 = vunpack.c.l.b16 %v4639
    %v4908 = vunpack.c.h.b16 %v4639
    %v4909 = vunpack.c.l.b16 %v4640
    %v4910 = vunpack.c.h.b16 %v4640
    %v4911 = vunpack.c.l.b16 %v4641
    %v4912 = vunpack.c.h.b16 %v4641
    %v4913 = vunpack.c.l.b16 %v4642
    %v4914 = vunpack.c.h.b16 %v4642
    %v4915 = vunpack.c.l.b16 %v4643
    %v4916 = vunpack.c.h.b16 %v4643
    %v4917 = vunpack.c.l.b16 %v4644
    %v4918 = vunpack.c.h.b16 %v4644
    %v4919 = vunpack.c.l.b16 %v4645
    %v4920 = vunpack.c.h.b16 %v4645
    %v4921 = vunpack.c.l.b16 %v4646
    %v4922 = vunpack.c.h.b16 %v4646
    %v4923 = vunpack.c.l.b16 %v4647
    %v4924 = vunpack.c.h.b16 %v4647
    %v4925 = vunpack.c.l.b16 %v4648
    %v4926 = vunpack.c.h.b16 %v4648
    %v4927 = vunpack.c.l.b16 %v4649
    %v4928 = vunpack.c.h.b16 %v4649
    %v4929 = vunpack.c.l.b16 %v4650
    %v4930 = vunpack.c.h.b16 %v4650
    %v4931 = vunpack.c.l.b16 %v4651
    %v4932 = vunpack.c.h.b16 %v4651
    %v4933 = vunpack.c.l.b16 %v4652
    %v4934 = vunpack.c.h.b16 %v4652
    %v4935 = vunpack.c.l.b16 %v4653
    %v4936 = vunpack.c.h.b16 %v4653
    %v4937 = vunpack.c.l.b16 %v4654
    %v4938 = vunpack.c.h.b16 %v4654
    %v4939 = vunpack.c.l.b16 %v4655
    %v4940 = vunpack.c.h.b16 %v4655
    %v4941 = vunpack.c.l.b16 %v4656
    %v4942 = vunpack.c.h.b16 %v4656
    %v4943 = vunpack.c.l.b16 %v4657
    %v4944 = vunpack.c.h.b16 %v4657
    %v4945 = vunpack.c.l.b16 %v4658
    %v4946 = vunpack.c.h.b16 %v4658
    %v4947 = vunpack.c.l.b16 %v4659
    %v4948 = vunpack.c.h.b16 %v4659
    %v4949 = vunpack.c.l.b16 %v4660
    %v4950 = vunpack.c.h.b16 %v4660
    %v4951 = vunpack.c.l.b16 %v4661
    %v4952 = vunpack.c.h.b16 %v4661
    %v4953 = vunpack.c.l.b16 %v4662
    %v4954 = vunpack.c.h.b16 %v4662
    %v4955 = vunpack.c.l.b16 %v4663
    %v4956 = vunpack.c.h.b16 %v4663
    %v4957 = vunpack.c.l.b16 %v4664
    %v4958 = vunpack.c.h.b16 %v4664
    %v4959 = vunpack.c.l.b16 %v4665
    %v4960 = vunpack.c.h.b16 %v4665
    %v4961 = vunpack.c.l.b16 %v4666
    %v4962 = vunpack.c.h.b16 %v4666
    %v4963 = vunpack.c.l.b16 %v4667
    %v4964 = vunpack.c.h.b16 %v4667
    %v4965 = vunpack.c.l.b16 %v4668
    %v4966 = vunpack.c.h.b16 %v4668
    %v4967 = vunpack.c.l.b16 %v4669
    %v4968 = vunpack.c.h.b16 %v4669
    %v4969 = vunpack.c.l.b16 %v4670
    %v4970 = vunpack.c.h.b16 %v4670
    %v4971 = vunpack.c.l.b16 %v4671
    %v4972 = vunpack.c.h.b16 %v4671
    %v4973 = vunpack.c.l.b16 %v4672
    %v4974 = vunpack.c.h.b16 %v4672
    %v4975 = vunpack.c.l.b16 %v4673
    %v4976 = vunpack.c.h.b16 %v4673
    %v4977 = vunpack.c.l.b16 %v4674
    %v4978 = vunpack.c.h.b16 %v4674
    %v4979 = vunpack.c.l.b16 %v4675
    %v4980 = vunpack.c.h.b16 %v4675
    %v4981 = vunpack.c.l.b16 %v4676
    %v4982 = vunpack.c.h.b16 %v4676
    %v4983 = vunpack.c.l.b16 %v4677
    %v4984 = vunpack.c.h.b16 %v4677
    %v4985 = vunpack.c.l.b16 %v4678
    %v4986 = vunpack.c.h.b16 %v4678
    %v4987 = vunpack.c.l.b16 %v4679
    %v4988 = vunpack.c.h.b16 %v4679
    %v4989 = vunpack.c.l.b16 %v4680
    %v4990 = vunpack.c.h.b16 %v4680
    %v4991 = vunpack.c.l.b16 %v4681
    %v4992 = vunpack.c.h.b16 %v4681
    %v4993 = vunpack.c.l.b16 %v4682
    %v4994 = vunpack.c.h.b16 %v4682
    %v4995 = vunpack.c.l.b16 %v4683
    %v4996 = vunpack.c.h.b16 %v4683
    %v4997 = vunpack.c.l.b16 %v4684
    %v4998 = vunpack.c.h.b16 %v4684
    %v4999 = vunpack.c.l.b16 %v4685
    %v5000 = vunpack.c.h.b16 %v4685
    %v5001 = vunpack.c.l.b16 %v4686
    %v5002 = vunpack.c.h.b16 %v4686
    %v5003 = vunpack.c.l.b16 %v4687
    %v5004 = vunpack.c.h.b16 %v4687
    %v5005 = vunpack.c.l.b16 %v4688
    %v5006 = vunpack.c.h.b16 %v4688
    %v5007 = vunpack.c.l.b16 %v4689
    %v5008 = vunpack.c.h.b16 %v4689
    %v5009 = vunpack.c.l.b16 %v4690
    %v5010 = vunpack.c.h.b16 %v4690
    %v5011 = vunpack.c.l.b16 %v4691
    %v5012 = vunpack.c.h.b16 %v4691
    %v5013 = vunpack.c.l.b16 %v4692
    %v5014 = vunpack.c.h.b16 %v4692
    %v5015 = vunpack.c.l.b16 %v4693
    %v5016 = vunpack.c.h.b16 %v4693
    %v5017 = vunpack.c.l.b16 %v4694
    %v5018 = vunpack.c.h.b16 %v4694
    %v5019 = vunpack.c.l.b16 %v4695
    %v5020 = vunpack.c.h.b16 %v4695
    %v5021 = vunpack.c.l.b16 %v4696
    %v5022 = vunpack.c.h.b16 %v4696
    %v5023 = vunpack.c.l.b16 %v4697
    %v5024 = vunpack.c.h.b16 %v4697
    %v5025 = vunpack.c.l.b16 %v4698
    %v5026 = vunpack.c.h.b16 %v4698
    %v5027 = vunpack.c.l.b16 %v4699
    %v5028 = vunpack.c.h.b16 %v4699
    %v5029 = vunpack.c.l.b16 %v4700
    %v5030 = vunpack.c.h.b16 %v4700
    %v5031 = vunpack.c.l.b16 %v4701
    %v5032 = vunpack.c.h.b16 %v4701
    %v5033 = vunpack.c.l.b16 %v4702
    %v5034 = vunpack.c.h.b16 %v4702
    %v5035 = vunpack.c.l.b16 %v4703
    %v5036 = vunpack.c.h.b16 %v4703
    %v5037 = vunpack.c.l.b16 %v4704
    %v5038 = vunpack.c.h.b16 %v4704
    %v5039 = vunpack.c.l.b16 %v4705
    %v5040 = vunpack.c.h.b16 %v4705
    %v5041 = vunpack.c.l.b16 %v4706
    %v5042 = vunpack.c.h.b16 %v4706
    %v5043 = vunpack.c.l.b16 %v4707
    %v5044 = vunpack.c.h.b16 %v4707
    %v5045 = vunpack.c.l.b16 %v4708
    %v5046 = vunpack.c.h.b16 %v4708
    %v5047 = vunpack.c.l.b16 %v4709
    %v5048 = vunpack.c.h.b16 %v4709
    %v5049 = vunpack.c.l.b16 %v4710
    %v5050 = vunpack.c.h.b16 %v4710
    %v5051 = vunpack.c.l.b16 %v4711
    %v5052 = vunpack.c.h.b16 %v4711
    %v5053 = vunpack.c.l.b16 %v4712
    %v5054 = vunpack.c.h.b16 %v4712
    %v5055 = vunpack.c.l.b16 %v4713
    %v5056 = vunpack.c.h.b16 %v4713
    %v5057 = vunpack.c.l.b16 %v4714
    %v5058 = vunpack.c.h.b16 %v4714
    %v5059 = vunpack.c.l.b16 %v4715
    %v5060 = vunpack.c.h.b16 %v4715
    %v5061 = vunpack.c.l.b16 %v4716
    %v5062 = vunpack.c.h.b16 %v4716
    %v5063 = vunpack.c.l.b16 %v4717
    %v5064 = vunpack.c.h.b16 %v4717
    %v5065 = vunpack.c.l.b16 %v4718
    %v5066 = vunpack.c.h.b16 %v4718
    %v5067 = vunpack.c.l.b16 %v4719
    %v5068 = vunpack.c.h.b16 %v4719
    %v5069 = vunpack.c.l.b16 %v4720
    %v5070 = vunpack.c.h.b16 %v4720
    %v5071 = vunpack.c.l.b16 %v4721
    %v5072 = vunpack.c.h.b16 %v4721
    %v5073 = vunpack.c.l.b16 %v4722
    %v5074 = vunpack.c.h.b16 %v4722
    %v5075 = vunpack.c.l.b16 %v4723
    %v5076 = vunpack.c.h.b16 %v4723
    %v5077 = vpack.c.b16 %v4897, %v4885
    %v5078 = vpack.c.b16 %v4898, %v4886
    %v5079 = vpack.c.b16 %v4899, %v4887
    %v5080 = vpack.c.b16 %v4900, %v4888
    %v5081 = vpack.c.b16 %v4901, %v4889
    %v5082 = vpack.c.b16 %v4902, %v4890
    %v5083 = vpack.c.b16 %v4903, %v4891
    %v5084 = vpack.c.b16 %v4904, %v4892
    %v5085 = vpack.c.b16 %v4905, %v4893
    %v5086 = vpack.c.b16 %v4906, %v4894
    %v5087 = vpack.c.b16 %v4907, %v4895
    %v5088 = vpack.c.b16 %v4908, %v4896
    %v5089 = vpack.c.b16 %v4921, %v4909
    %v5090 = vpack.c.b16 %v4922, %v4910
    %v5091 = vpack.c.b16 %v4923, %v4911
    %v5092 = vpack.c.b16 %v4924, %v4912
    %v5093 = vpack.c.b16 %v4925, %v4913
    %v5094 = vpack.c.b16 %v4926, %v4914
    %v5095 = vpack.c.b16 %v4927, %v4915
    %v5096 = vpack.c.b16 %v4928, %v4916
    %v5097 = vpack.c.b16 %v4929, %v4917
    %v5098 = vpack.c.b16 %v4930, %v4918
    %v5099 = vpack.c.b16 %v4931, %v4919
    %v5100 = vpack.c.b16 %v4932, %v4920
    %v5101 = vpack.c.b16 %v4945, %v4933
    %v5102 = vpack.c.b16 %v4946, %v4934
    %v5103 = vpack.c.b16 %v4947, %v4935
    %v5104 = vpack.c.b16 %v4948, %v4936
    %v5105 = vpack.c.b16 %v4949, %v4937
    %v5106 = vpack.c.b16 %v4950, %v4938
    %v5107 = vpack.c.b16 %v4951, %v4939
    %v5108 = vpack.c.b16 %v4952, %v4940
    %v5109 = vpack.c.b16 %v4953, %v4941
    %v5110 = vpack.c.b16 %v4954, %v4942
    %v5111 = vpack.c.b16 %v4955, %v4943
    %v5112 = vpack.c.b16 %v4956, %v4944
    %v5113 = vpack.c.b16 %v4969, %v4957
    %v5114 = vpack.c.b16 %v4970, %v4958
    %v5115 = vpack.c.b16 %v4971, %v4959
    %v5116 = vpack.c.b16 %v4972, %v4960
    %v5117 = vpack.c.b16 %v4973, %v4961
    %v5118 = vpack.c.b16 %v4974, %v4962
    %v5119 = vpack.c.b16 %v4975, %v4963
    %v5120 = vpack.c.b16 %v4976, %v4964
    %v5121 = vpack.c.b16 %v4977, %v4965
    %v5122 = vpack.c.b16 %v4978, %v4966
    %v5123 = vpack.c.b16 %v4979, %v4967
    %v5124 = vpack.c.b16 %v4980, %v4968
    %v5125 = vpack.c.b16 %v4993, %v4981
    %v5126 = vpack.c.b16 %v4994, %v4982
    %v5127 = vpack.c.b16 %v4995, %v4983
    %v5128 = vpack.c.b16 %v4996, %v4984
    %v5129 = vpack.c.b16 %v4997, %v4985
    %v5130 = vpack.c.b16 %v4998, %v4986
    %v5131 = vpack.c.b16 %v4999, %v4987
    %v5132 = vpack.c.b16 %v5000, %v4988
    %v5133 = vpack.c.b16 %v5001, %v4989
    %v5134 = vpack.c.b16 %v5002, %v4990
    %v5135 = vpack.c.b16 %v5003, %v4991
    %v5136 = vpack.c.b16 %v5004, %v4992
    %v5137 = vpack.c.b16 %v5017, %v5005
    %v5138 = vpack.c.b16 %v5018, %v5006
    %v5139 = vpack.c.b16 %v5019, %v5007
    %v5140 = vpack.c.b16 %v5020, %v5008
    %v5141 = vpack.c.b16 %v5021, %v5009
    %v5142 = vpack.c.b16 %v5022, %v5010
    %v5143 = vpack.c.b16 %v5023, %v5011
    %v5144 = vpack.c.b16 %v5024, %v5012
    %v5145 = vpack.c.b16 %v5025, %v5013
    %v5146 = vpack.c.b16 %v5026, %v5014
    %v5147 = vpack.c.b16 %v5027, %v5015
    %v5148 = vpack.c.b16 %v5028, %v5016
    %v5149 = vpack.c.b16 %v5041, %v5029
    %v5150 = vpack.c.b16 %v5042, %v5030
    %v5151 = vpack.c.b16 %v5043, %v5031
    %v5152 = vpack.c.b16 %v5044, %v5032
    %v5153 = vpack.c.b16 %v5045, %v5033
    %v5154 = vpack.c.b16 %v5046, %v5034
    %v5155 = vpack.c.b16 %v5047, %v5035
    %v5156 = vpack.c.b16 %v5048, %v5036
    %v5157 = vpack.c.b16 %v5049, %v5037
    %v5158 = vpack.c.b16 %v5050, %v5038
    %v5159 = vpack.c.b16 %v5051, %v5039
    %v5160 = vpack.c.b16 %v5052, %v5040
    %v5161 = vpack.c.b16 %v5065, %v5053
    %v5162 = vpack.c.b16 %v5066, %v5054
    %v5163 = vpack.c.b16 %v5067, %v5055
    %v5164 = vpack.c.b16 %v5068, %v5056
    %v5165 = vpack.c.b16 %v5069, %v5057
    %v5166 = vpack.c.b16 %v5070, %v5058
    %v5167 = vpack.c.b16 %v5071, %v5059
    %v5168 = vpack.c.b16 %v5072, %v5060
    %v5169 = vpack.c.b16 %v5073, %v5061
    %v5170 = vpack.c.b16 %v5074, %v5062
    %v5171 = vpack.c.b16 %v5075, %v5063
    %v5172 = vpack.c.b16 %v5076, %v5064
    %5269 = vmatprep.subr.bf16.mxu0 %v5078
    %5270 = vmatpush1.bf16.msra.mxu0 %v5077
    %5271 = vmatprep.subr.bf16.mxu0 %v5090
    %5272 = vmatpush1.bf16.msra.mxu0 %v5089
    %5273 = vmatprep.subr.bf16.mxu0 %v5102
    %5274 = vmatpush1.bf16.msra.mxu0 %v5101
    %5275 = vmatprep.subr.bf16.mxu0 %v5114
    %5276 = vmatpush1.bf16.msra.mxu0 %v5113
    %5277 = vmatprep.subr.bf16.mxu0 %v5126
    %5278 = vmatpush1.bf16.msra.mxu0 %v5125
    %5279 = vmatprep.subr.bf16.mxu0 %v5138
    %5280 = vmatpush1.bf16.msra.mxu0 %v5137
    %5281 = vmatprep.subr.bf16.mxu0 %v5150
    %5282 = vmatpush1.bf16.msra.mxu0 %v5149
    %5283 = vmatprep.subr.bf16.mxu0 %v5162
    %5284 = vmatpush1.bf16.msra.mxu0 %v5161
    %5285 = vmatprep.subr.bf16.mxu0 0
    %5286 = vmatpush1.bf16.msra.mxu0 0
    %5287 = vmatprep.subr.bf16.mxu0 0
    %5288 = vmatpush1.bf16.msra.mxu0 0
    %5289 = vmatprep.subr.bf16.mxu0 0
    %5290 = vmatpush1.bf16.msra.mxu0 0
    %5291 = vmatprep.subr.bf16.mxu0 0
    %5292 = vmatpush1.bf16.msra.mxu0 0
    %5293 = vmatprep.subr.bf16.mxu0 0
    %5294 = vmatpush1.bf16.msra.mxu0 0
    %5295 = vmatprep.subr.bf16.mxu0 0
    %5296 = vmatpush1.bf16.msra.mxu0 0
    %5297 = vmatprep.subr.bf16.mxu0 0
    %5298 = vmatpush1.bf16.msra.mxu0 0
    %5299 = vmatprep.subr.bf16.mxu0 0
    %5300 = vmatpush1.bf16.msra.mxu0 0
    %5301 = vmatprep.mubr.bf16.mxu0 0
    %5302 = vmatmul.mubr.bf16.gmra.mrb[0].mxu0 %v4724
    %v5303 = vpop.f32.mrb[0].mxu0
    %v5304 = vadd.f32 %v4732, %v5303
    %v5305 = vpop.f32.mrb[0].mxu0
    %v5306 = vadd.f32 %v4736, %v5305
    %v5307 = vpop.f32.mrb[0].mxu0
    %v5308 = vadd.f32 %v4732, %v5307
    %v5309 = vpop.f32.mrb[0].mxu0
    %v5310 = vadd.f32 %v4736, %v5309
    %5311 = vdwg.mxu0
    %5312 = vmatprep.subr.bf16.mxu0 %v5080
    %5313 = vmatpush1.bf16.msra.mxu0 %v5079
    %5314 = vmatprep.subr.bf16.mxu0 %v5092
    %5315 = vmatpush1.bf16.msra.mxu0 %v5091
    %5316 = vmatprep.subr.bf16.mxu0 %v5104
    %5317 = vmatpush1.bf16.msra.mxu0 %v5103
    %5318 = vmatprep.subr.bf16.mxu0 %v5116
    %5319 = vmatpush1.bf16.msra.mxu0 %v5115
    %5320 = vmatprep.subr.bf16.mxu0 %v5128
    %5321 = vmatpush1.bf16.msra.mxu0 %v5127
    %5322 = vmatprep.subr.bf16.mxu0 %v5140
    %5323 = vmatpush1.bf16.msra.mxu0 %v5139
    %5324 = vmatprep.subr.bf16.mxu0 %v5152
    %5325 = vmatpush1.bf16.msra.mxu0 %v5151
    %5326 = vmatprep.subr.bf16.mxu0 %v5164
    %5327 = vmatpush1.bf16.msra.mxu0 %v5163
    %5328 = vmatprep.subr.bf16.mxu0 0
    %5329 = vmatpush1.bf16.msra.mxu0 0
    %5330 = vmatprep.subr.bf16.mxu0 0
    %5331 = vmatpush1.bf16.msra.mxu0 0
    %5332 = vmatprep.subr.bf16.mxu0 0
    %5333 = vmatpush1.bf16.msra.mxu0 0
    %5334 = vmatprep.subr.bf16.mxu0 0
    %5335 = vmatpush1.bf16.msra.mxu0 0
    %5336 = vmatprep.subr.bf16.mxu0 0
    %5337 = vmatpush1.bf16.msra.mxu0 0
    %5338 = vmatprep.subr.bf16.mxu0 0
    %5339 = vmatpush1.bf16.msra.mxu0 0
    %5340 = vmatprep.subr.bf16.mxu0 0
    %5341 = vmatpush1.bf16.msra.mxu0 0
    %5342 = vmatprep.subr.bf16.mxu0 0
    %5343 = vmatpush1.bf16.msra.mxu0 0
    %5344 = vmatprep.mubr.bf16.mxu0 0
    %5345 = vmatmul.mubr.bf16.gmra.mrb[0].mxu0 %v4724
    %v5346 = vpop.f32.mrb[0].mxu0
    %v5347 = vadd.f32 %v4740, %v5346
    %v5348 = vpop.f32.mrb[0].mxu0
    %v5349 = vadd.f32 %v4744, %v5348
    %v5350 = vpop.f32.mrb[0].mxu0
    %v5351 = vadd.f32 %v4740, %v5350
    %v5352 = vpop.f32.mrb[0].mxu0
    %v5353 = vadd.f32 %v4744, %v5352
    %5354 = vdwg.mxu0
    %5355 = vmatprep.subr.bf16.mxu0 %v5082
    %5356 = vmatpush1.bf16.msra.mxu0 %v5081
    %5357 = vmatprep.subr.bf16.mxu0 %v5094
    %5358 = vmatpush1.bf16.msra.mxu0 %v5093
    %5359 = vmatprep.subr.bf16.mxu0 %v5106
    %5360 = vmatpush1.bf16.msra.mxu0 %v5105
    %5361 = vmatprep.subr.bf16.mxu0 %v5118
    %5362 = vmatpush1.bf16.msra.mxu0 %v5117
    %5363 = vmatprep.subr.bf16.mxu0 %v5130
    %5364 = vmatpush1.bf16.msra.mxu0 %v5129
    %5365 = vmatprep.subr.bf16.mxu0 %v5142
    %5366 = vmatpush1.bf16.msra.mxu0 %v5141
    %5367 = vmatprep.subr.bf16.mxu0 %v5154
    %5368 = vmatpush1.bf16.msra.mxu0 %v5153
    %5369 = vmatprep.subr.bf16.mxu0 %v5166
    %5370 = vmatpush1.bf16.msra.mxu0 %v5165
    %5371 = vmatprep.subr.bf16.mxu0 0
    %5372 = vmatpush1.bf16.msra.mxu0 0
    %5373 = vmatprep.subr.bf16.mxu0 0
    %5374 = vmatpush1.bf16.msra.mxu0 0
    %5375 = vmatprep.subr.bf16.mxu0 0
    %5376 = vmatpush1.bf16.msra.mxu0 0
    %5377 = vmatprep.subr.bf16.mxu0 0
    %5378 = vmatpush1.bf16.msra.mxu0 0
    %5379 = vmatprep.subr.bf16.mxu0 0
    %5380 = vmatpush1.bf16.msra.mxu0 0
    %5381 = vmatprep.subr.bf16.mxu0 0
    %5382 = vmatpush1.bf16.msra.mxu0 0
    %5383 = vmatprep.subr.bf16.mxu0 0
    %5384 = vmatpush1.bf16.msra.mxu0 0
    %5385 = vmatprep.subr.bf16.mxu0 0
    %5386 = vmatpush1.bf16.msra.mxu0 0
    %5387 = vmatprep.mubr.bf16.mxu0 0
    %5388 = vmatmul.mubr.bf16.gmra.mrb[0].mxu0 %v4724
    %v5389 = vpop.f32.mrb[0].mxu0
    %v5390 = vadd.f32 %v4748, %v5389
    %v5391 = vpop.f32.mrb[0].mxu0
    %v5392 = vadd.f32 %v4752, %v5391
    %v5393 = vpop.f32.mrb[0].mxu0
    %v5394 = vadd.f32 %v4748, %v5393
    %v5395 = vpop.f32.mrb[0].mxu0
    %v5396 = vadd.f32 %v4752, %v5395
    %5397 = vdwg.mxu0
    %5398 = vmatprep.subr.bf16.mxu0 %v5084
    %5399 = vmatpush1.bf16.msra.mxu0 %v5083
    %5400 = vmatprep.subr.bf16.mxu0 %v5096
    %5401 = vmatpush1.bf16.msra.mxu0 %v5095
    %5402 = vmatprep.subr.bf16.mxu0 %v5108
    %5403 = vmatpush1.bf16.msra.mxu0 %v5107
    %5404 = vmatprep.subr.bf16.mxu0 %v5120
    %5405 = vmatpush1.bf16.msra.mxu0 %v5119
    %5406 = vmatprep.subr.bf16.mxu0 %v5132
    %5407 = vmatpush1.bf16.msra.mxu0 %v5131
    %5408 = vmatprep.subr.bf16.mxu0 %v5144
    %5409 = vmatpush1.bf16.msra.mxu0 %v5143
    %5410 = vmatprep.subr.bf16.mxu0 %v5156
    %5411 = vmatpush1.bf16.msra.mxu0 %v5155
    %5412 = vmatprep.subr.bf16.mxu0 %v5168
    %5413 = vmatpush1.bf16.msra.mxu0 %v5167
    %5414 = vmatprep.subr.bf16.mxu0 0
    %5415 = vmatpush1.bf16.msra.mxu0 0
    %5416 = vmatprep.subr.bf16.mxu0 0
    %5417 = vmatpush1.bf16.msra.mxu0 0
    %5418 = vmatprep.subr.bf16.mxu0 0
    %5419 = vmatpush1.bf16.msra.mxu0 0
    %5420 = vmatprep.subr.bf16.mxu0 0
    %5421 = vmatpush1.bf16.msra.mxu0 0
    %5422 = vmatprep.subr.bf16.mxu0 0
    %5423 = vmatpush1.bf16.msra.mxu0 0
    %5424 = vmatprep.subr.bf16.mxu0 0
    %5425 = vmatpush1.bf16.msra.mxu0 0
    %5426 = vmatprep.subr.bf16.mxu0 0
    %5427 = vmatpush1.bf16.msra.mxu0 0
    %5428 = vmatprep.subr.bf16.mxu0 0
    %5429 = vmatpush1.bf16.msra.mxu0 0
    %5430 = vmatprep.mubr.bf16.mxu0 0
    %5431 = vmatmul.mubr.bf16.gmra.mrb[0].mxu0 %v4724
    %v5432 = vpop.f32.mrb[0].mxu0
    %v5433 = vadd.f32 %v4756, %v5432
    %v5434 = vpop.f32.mrb[0].mxu0
    %v5435 = vadd.f32 %v4760, %v5434
    %v5436 = vpop.f32.mrb[0].mxu0
    %v5437 = vadd.f32 %v4756, %v5436
    %v5438 = vpop.f32.mrb[0].mxu0
    %v5439 = vadd.f32 %v4760, %v5438
    %5440 = vdwg.mxu0
    %5441 = vmatprep.subr.bf16.mxu0 %v5086
    %5442 = vmatpush1.bf16.msra.mxu0 %v5085
    %5443 = vmatprep.subr.bf16.mxu0 %v5098
    %5444 = vmatpush1.bf16.msra.mxu0 %v5097
    %5445 = vmatprep.subr.bf16.mxu0 %v5110
    %5446 = vmatpush1.bf16.msra.mxu0 %v5109
    %5447 = vmatprep.subr.bf16.mxu0 %v5122
    %5448 = vmatpush1.bf16.msra.mxu0 %v5121
    %5449 = vmatprep.subr.bf16.mxu0 %v5134
    %5450 = vmatpush1.bf16.msra.mxu0 %v5133
    %5451 = vmatprep.subr.bf16.mxu0 %v5146
    %5452 = vmatpush1.bf16.msra.mxu0 %v5145
    %5453 = vmatprep.subr.bf16.mxu0 %v5158
    %5454 = vmatpush1.bf16.msra.mxu0 %v5157
    %5455 = vmatprep.subr.bf16.mxu0 %v5170
    %5456 = vmatpush1.bf16.msra.mxu0 %v5169
    %5457 = vmatprep.subr.bf16.mxu0 0
    %5458 = vmatpush1.bf16.msra.mxu0 0
    %5459 = vmatprep.subr.bf16.mxu0 0
    %5460 = vmatpush1.bf16.msra.mxu0 0
    %5461 = vmatprep.subr.bf16.mxu0 0
    %5462 = vmatpush1.bf16.msra.mxu0 0
    %5463 = vmatprep.subr.bf16.mxu0 0
    %5464 = vmatpush1.bf16.msra.mxu0 0
    %5465 = vmatprep.subr.bf16.mxu0 0
    %5466 = vmatpush1.bf16.msra.mxu0 0
    %5467 = vmatprep.subr.bf16.mxu0 0
    %5468 = vmatpush1.bf16.msra.mxu0 0
    %5469 = vmatprep.subr.bf16.mxu0 0
    %5470 = vmatpush1.bf16.msra.mxu0 0
    %5471 = vmatprep.subr.bf16.mxu0 0
    %5472 = vmatpush1.bf16.msra.mxu0 0
    %5473 = vmatprep.mubr.bf16.mxu0 0
    %5474 = vmatmul.mubr.bf16.gmra.mrb[0].mxu0 %v4724
    %v5475 = vpop.f32.mrb[0].mxu0
    %v5476 = vadd.f32 %v4764, %v5475
    %v5477 = vpop.f32.mrb[0].mxu0
    %v5478 = vadd.f32 %v4768, %v5477
    %v5479 = vpop.f32.mrb[0].mxu0
    %v5480 = vadd.f32 %v4764, %v5479
    %v5481 = vpop.f32.mrb[0].mxu0
    %v5482 = vadd.f32 %v4768, %v5481
    %5483 = vdwg.mxu0
    %5484 = vmatprep.subr.bf16.mxu0 %v5088
    %5485 = vmatpush1.bf16.msra.mxu0 %v5087
    %5486 = vmatprep.subr.bf16.mxu0 %v5100
    %5487 = vmatpush1.bf16.msra.mxu0 %v5099
    %5488 = vmatprep.subr.bf16.mxu0 %v5112
    %5489 = vmatpush1.bf16.msra.mxu0 %v5111
    %5490 = vmatprep.subr.bf16.mxu0 %v5124
    %5491 = vmatpush1.bf16.msra.mxu0 %v5123
    %5492 = vmatprep.subr.bf16.mxu0 %v5136
    %5493 = vmatpush1.bf16.msra.mxu0 %v5135
    %5494 = vmatprep.subr.bf16.mxu0 %v5148
    %5495 = vmatpush1.bf16.msra.mxu0 %v5147
    %5496 = vmatprep.subr.bf16.mxu0 %v5160
    %5497 = vmatpush1.bf16.msra.mxu0 %v5159
    %5498 = vmatprep.subr.bf16.mxu0 %v5172
    %5499 = vmatpush1.bf16.msra.mxu0 %v5171
    %5500 = vmatprep.subr.bf16.mxu0 0
    %5501 = vmatpush1.bf16.msra.mxu0 0
    %5502 = vmatprep.subr.bf16.mxu0 0
    %5503 = vmatpush1.bf16.msra.mxu0 0
    %5504 = vmatprep.subr.bf16.mxu0 0
    %5505 = vmatpush1.bf16.msra.mxu0 0
    %5506 = vmatprep.subr.bf16.mxu0 0
    %5507 = vmatpush1.bf16.msra.mxu0 0
    %5508 = vmatprep.subr.bf16.mxu0 0
    %5509 = vmatpush1.bf16.msra.mxu0 0
    %5510 = vmatprep.subr.bf16.mxu0 0
    %5511 = vmatpush1.bf16.msra.mxu0 0
    %5512 = vmatprep.subr.bf16.mxu0 0
    %5513 = vmatpush1.bf16.msra.mxu0 0
    %5514 = vmatprep.subr.bf16.mxu0 0
    %5515 = vmatpush1.bf16.msra.mxu0 0
    %5516 = vmatprep.mubr.bf16.mxu0 0
    %5517 = vmatmul.mubr.bf16.gmra.mrb[0].mxu0 %v4724
    %v5518 = vpop.f32.mrb[0].mxu0
    %v5519 = vadd.f32 %v4772, %v5518
    %v5520 = vpop.f32.mrb[0].mxu0
    %v5521 = vadd.f32 %v4776, %v5520
    %v5522 = vpop.f32.mrb[0].mxu0
    %v5523 = vadd.f32 %v4772, %v5522
    %v5524 = vpop.f32.mrb[0].mxu0
    %v5525 = vadd.f32 %v4776, %v5524
    %5526 = vdwg.mxu0
    %v5527 = vld [vmem:[#allocation43] sm:$0x3f]
    %v5528 = vpack.c.bf16 %v4623, %v4622
    %v5529 = vpack.c.bf16 %v4624, %v4624
    %v5531 = vcombine.high %v5527, %v5527
    %v5533 = vunpack.c.l.s4 1983009808
    %v5534 = vunpack.c.0.s8 %v5533
    %v5535 = vlaneseq
    %v5536 = vshrl.u32 %v5535, 7
    %v5537 = vsub.s32 %v5534, %v5536
    %v5538 = vrot.slane %v5527, %v5537
    %v5540 = vunpack.c.l.s4 1983009808
    %v5541 = vunpack.c.0.s8 %v5540
    %v5542 = vlaneseq
    %v5543 = vshrl.u32 %v5542, 7
    %v5544 = vsub.s32 %v5541, %v5543
    %v5545 = vrot.slane %v5531, %v5544
    %v5546 = vcombine.high %v5538, %v5538
    %v5548 = vsel %vm1495, %v5528, 0
    %v5551 = vsel %vm1495, %v5529, 0
    %v5554 = vand.u32 %v5538, %v1514
    %v5557 = vand.u32 %v5546, %v1514
    %v5560 = vand.u32 %v5545, %v1514
    %5562 = vmatprep.subr.bf16.mxu0 %v5557
    %5563 = vmatpush1.bf16.msra.mxu0 %v5554
    %5564 = vmatprep.subr.bf16.mxu0 0
    %5565 = vmatpush1.bf16.msra.mxu0 0
    %5566 = vmatprep.subr.bf16.mxu0 0
    %5567 = vmatpush1.bf16.msra.mxu0 0
    %5568 = vmatprep.subr.bf16.mxu0 0
    %5569 = vmatpush1.bf16.msra.mxu0 0
    %5570 = vmatprep.subr.bf16.mxu0 0
    %5571 = vmatpush1.bf16.msra.mxu0 0
    %5572 = vmatprep.subr.bf16.mxu0 0
    %5573 = vmatpush1.bf16.msra.mxu0 0
    %5574 = vmatprep.subr.bf16.mxu0 0
    %5575 = vmatpush1.bf16.msra.mxu0 0
    %5576 = vmatprep.subr.bf16.mxu0 0
    %5577 = vmatpush1.bf16.msra.mxu0 0
    %5578 = vmatprep.subr.bf16.mxu0 0
    %5579 = vmatpush1.bf16.msra.mxu0 0
    %5580 = vmatprep.subr.bf16.mxu0 0
    %5581 = vmatpush1.bf16.msra.mxu0 0
    %5582 = vmatprep.subr.bf16.mxu0 0
    %5583 = vmatpush1.bf16.msra.mxu0 0
    %5584 = vmatprep.subr.bf16.mxu0 0
    %5585 = vmatpush1.bf16.msra.mxu0 0
    %5586 = vmatprep.subr.bf16.mxu0 0
    %5587 = vmatpush1.bf16.msra.mxu0 0
    %5588 = vmatprep.subr.bf16.mxu0 0
    %5589 = vmatpush1.bf16.msra.mxu0 0
    %5590 = vmatprep.subr.bf16.mxu0 0
    %5591 = vmatpush1.bf16.msra.mxu0 0
    %5592 = vmatprep.subr.bf16.mxu0 0
    %5593 = vmatpush1.bf16.msra.mxu0 0
    %5594 = vmatprep.mubr.bf16.mxu0 0
    %5595 = vmatmul.mubr.bf16.gmra.mrb[0].mxu0 %v5548
    %v5596 = vpop.f32.mrb[0].mxu0
    %v5597 = vadd.f32 0.0, %v5596
    %v5598 = vpop.f32.mrb[0].mxu0
    %v5599 = vadd.f32 0.0, %v5598
    %v5600 = vpop.f32.mrb[0].mxu0
    %v5601 = vadd.f32 0.0, %v5600
    %v5602 = vpop.f32.mrb[0].mxu0
    %v5603 = vadd.f32 0.0, %v5602
    %5604 = vmatprep.mubr.bf16.mxu0 0
    %5605 = vmatmul.mubr.bf16.gmra.mrb[0].mxu0 %v5551
    %v5606 = vpop.f32.mrb[0].mxu0
    %v5607 = vadd.f32 0.0, %v5606
    %v5608 = vpop.f32.mrb[0].mxu0
    %v5609 = vadd.f32 0.0, %v5608
    %v5610 = vpop.f32.mrb[0].mxu0
    %v5611 = vpop.f32.mrb[0].mxu0
    %5612 = vdwg.mxu0
    %5613 = vmatprep.subr.bf16.mxu0 0
    %5614 = vmatpush1.bf16.msra.mxu0 %v5560
    %5615 = vmatprep.subr.bf16.mxu0 0
    %5616 = vmatpush1.bf16.msra.mxu0 0
    %5617 = vmatprep.subr.bf16.mxu0 0
    %5618 = vmatpush1.bf16.msra.mxu0 0
    %5619 = vmatprep.subr.bf16.mxu0 0
    %5620 = vmatpush1.bf16.msra.mxu0 0
    %5621 = vmatprep.subr.bf16.mxu0 0
    %5622 = vmatpush1.bf16.msra.mxu0 0
    %5623 = vmatprep.subr.bf16.mxu0 0
    %5624 = vmatpush1.bf16.msra.mxu0 0
    %5625 = vmatprep.subr.bf16.mxu0 0
    %5626 = vmatpush1.bf16.msra.mxu0 0
    %5627 = vmatprep.subr.bf16.mxu0 0
    %5628 = vmatpush1.bf16.msra.mxu0 0
    %5629 = vmatprep.subr.bf16.mxu0 0
    %5630 = vmatpush1.bf16.msra.mxu0 0
    %5631 = vmatprep.subr.bf16.mxu0 0
    %5632 = vmatpush1.bf16.msra.mxu0 0
    %5633 = vmatprep.subr.bf16.mxu0 0
    %5634 = vmatpush1.bf16.msra.mxu0 0
    %5635 = vmatprep.subr.bf16.mxu0 0
    %5636 = vmatpush1.bf16.msra.mxu0 0
    %5637 = vmatprep.subr.bf16.mxu0 0
    %5638 = vmatpush1.bf16.msra.mxu0 0
    %5639 = vmatprep.subr.bf16.mxu0 0
    %5640 = vmatpush1.bf16.msra.mxu0 0
    %5641 = vmatprep.subr.bf16.mxu0 0
    %5642 = vmatpush1.bf16.msra.mxu0 0
    %5643 = vmatprep.subr.bf16.mxu0 0
    %5644 = vmatpush1.bf16.msra.mxu0 0
    %5645 = vmatprep.mubr.bf16.mxu0 0
    %5646 = vmatmul.mubr.bf16.gmra.mrb[0].mxu0 %v5548
    %v5647 = vpop.f32.mrb[0].mxu0
    %v5648 = vadd.f32 0.0, %v5647
    %v5649 = vpop.f32.mrb[0].mxu0
    %v5650 = vpop.f32.mrb[0].mxu0
    %v5651 = vadd.f32 0.0, %v5650
    %v5652 = vpop.f32.mrb[0].mxu0
    %5653 = vmatprep.mubr.bf16.mxu0 0
    %5654 = vmatmul.mubr.bf16.gmra.mrb[0].mxu0 %v5551
    %v5655 = vpop.f32.mrb[0].mxu0
    %v5656 = vadd.f32 0.0, %v5655
    %v5657 = vpop.f32.mrb[0].mxu0
    %v5658 = vpop.f32.mrb[0].mxu0
    %v5659 = vpop.f32.mrb[0].mxu0
    %5660 = vdwg.mxu0
    %v5661 = vpack.c.bf16 %v5308, %v5304
    %v5662 = vpack.c.bf16 %v5310, %v5306
    %v5663 = vpack.c.bf16 %v5351, %v5347
    %5664 = vmatprep.subr.bf16.mxu0 %v5662
    %5665 = vmatpush1.bf16.msra.mxu0 %v5661
    %5666 = vmatprep.subr.bf16.mxu0 0
    %5667 = vmatpush1.bf16.msra.mxu0 0
    %5668 = vmatprep.subr.bf16.mxu0 0
    %5669 = vmatpush1.bf16.msra.mxu0 0
    %5670 = vmatprep.subr.bf16.mxu0 0
    %5671 = vmatpush1.bf16.msra.mxu0 0
    %5672 = vmatprep.subr.bf16.mxu0 0
    %5673 = vmatpush1.bf16.msra.mxu0 0
    %5674 = vmatprep.subr.bf16.mxu0 0
    %5675 = vmatpush1.bf16.msra.mxu0 0
    %5676 = vmatprep.subr.bf16.mxu0 0
    %5677 = vmatpush1.bf16.msra.mxu0 0
    %5678 = vmatprep.subr.bf16.mxu0 0
    %5679 = vmatpush1.bf16.msra.mxu0 0
    %5680 = vmatprep.subr.bf16.mxu0 0
    %5681 = vmatpush1.bf16.msra.mxu0 0
    %5682 = vmatprep.subr.bf16.mxu0 0
    %5683 = vmatpush1.bf16.msra.mxu0 0
    %5684 = vmatprep.subr.bf16.mxu0 0
    %5685 = vmatpush1.bf16.msra.mxu0 0
    %5686 = vmatprep.subr.bf16.mxu0 0
    %5687 = vmatpush1.bf16.msra.mxu0 0
    %5688 = vmatprep.subr.bf16.mxu0 0
    %5689 = vmatpush1.bf16.msra.mxu0 0
    %5690 = vmatprep.subr.bf16.mxu0 0
    %5691 = vmatpush1.bf16.msra.mxu0 0
    %5692 = vmatprep.subr.bf16.mxu0 0
    %5693 = vmatpush1.bf16.msra.mxu0 0
    %5694 = vmatprep.subr.bf16.mxu0 0
    %5695 = vmatpush1.bf16.msra.mxu0 0
    %5696 = vmatprep.mubr.bf16.mxu0 0
    %5697 = vmatmul.mubr.bf16.gmra.mrb[0].mxu0 %v854
    %v5698 = vpop.f32.mrb[0].mxu0
    %v5699 = vadd.f32 0.0, %v5698
    %v5700 = vpop.f32.mrb[0].mxu0
    %v5701 = vadd.f32 0.0, %v5700
    %v5702 = vpop.f32.mrb[0].mxu0
    %v5703 = vadd.f32 0.0, %v5702
    %v5704 = vpop.f32.mrb[0].mxu0
    %v5705 = vadd.f32 0.0, %v5704
    %5706 = vmatprep.mubr.bf16.mxu0 0
    %5707 = vmatmul.mubr.bf16.gmra.mrb[0].mxu0 %v857
    %v5708 = vpop.f32.mrb[0].mxu0
    %v5709 = vadd.f32 0.0, %v5708
    %v5710 = vpop.f32.mrb[0].mxu0
    %v5711 = vadd.f32 0.0, %v5710
    %v5712 = vpop.f32.mrb[0].mxu0
    %v5713 = vpop.f32.mrb[0].mxu0
    %5714 = vdwg.mxu0
    %5715 = vmatprep.subr.bf16.mxu0 0
    %5716 = vmatpush1.bf16.msra.mxu0 %v5663
    %5717 = vmatprep.subr.bf16.mxu0 0
    %5718 = vmatpush1.bf16.msra.mxu0 0
    %5719 = vmatprep.subr.bf16.mxu0 0
    %5720 = vmatpush1.bf16.msra.mxu0 0
    %5721 = vmatprep.subr.bf16.mxu0 0
    %5722 = vmatpush1.bf16.msra.mxu0 0
    %5723 = vmatprep.subr.bf16.mxu0 0
    %5724 = vmatpush1.bf16.msra.mxu0 0
    %5725 = vmatprep.subr.bf16.mxu0 0
    %5726 = vmatpush1.bf16.msra.mxu0 0
    %5727 = vmatprep.subr.bf16.mxu0 0
    %5728 = vmatpush1.bf16.msra.mxu0 0
    %5729 = vmatprep.subr.bf16.mxu0 0
    %5730 = vmatpush1.bf16.msra.mxu0 0
    %5731 = vmatprep.subr.bf16.mxu0 0
    %5732 = vmatpush1.bf16.msra.mxu0 0
    %5733 = vmatprep.subr.bf16.mxu0 0
    %5734 = vmatpush1.bf16.msra.mxu0 0
    %5735 = vmatprep.subr.bf16.mxu0 0
    %5736 = vmatpush1.bf16.msra.mxu0 0
    %5737 = vmatprep.subr.bf16.mxu0 0
    %5738 = vmatpush1.bf16.msra.mxu0 0
    %5739 = vmatprep.subr.bf16.mxu0 0
    %5740 = vmatpush1.bf16.msra.mxu0 0
    %5741 = vmatprep.subr.bf16.mxu0 0
    %5742 = vmatpush1.bf16.msra.mxu0 0
    %5743 = vmatprep.subr.bf16.mxu0 0
    %5744 = vmatpush1.bf16.msra.mxu0 0
    %5745 = vmatprep.subr.bf16.mxu0 0
    %5746 = vmatpush1.bf16.msra.mxu0 0
    %5747 = vmatprep.mubr.bf16.mxu0 0
    %5748 = vmatmul.mubr.bf16.gmra.mrb[0].mxu0 %v854
    %v5749 = vpop.f32.mrb[0].mxu0
    %v5750 = vadd.f32 0.0, %v5749
    %v5751 = vpop.f32.mrb[0].mxu0
    %v5752 = vpop.f32.mrb[0].mxu0
    %v5753 = vadd.f32 0.0, %v5752
    %v5754 = vpop.f32.mrb[0].mxu0
    %5755 = vmatprep.mubr.bf16.mxu0 0
    %5756 = vmatmul.mubr.bf16.gmra.mrb[0].mxu0 %v857
    %v5757 = vpop.f32.mrb[0].mxu0
    %v5758 = vadd.f32 0.0, %v5757
    %v5759 = vpop.f32.mrb[0].mxu0
    %v5760 = vpop.f32.mrb[0].mxu0
    %v5761 = vpop.f32.mrb[0].mxu0
    %5762 = vdwg.mxu0
    %v5763 = vpack.c.bf16 %v5353, %v5349
    %v5764 = vpack.c.bf16 %v5394, %v5390
    %v5765 = vpack.c.bf16 %v5396, %v5392
    %v5769 = vunpack.c.l.b16 %v4619
    %v5770 = vunpack.c.l.b16 %v4620
    %v5771 = vunpack.c.l.b16 %v4621
    %v5772 = vpack.c.b16 %v5770, %v5769
    %v5773 = vpack.c.b16 %v5771, %v5771
    %v5775 = vsel %vm781, %v5772, 0
    %v5778 = vsel %vm781, %v5773, 0
    %5780 = vmatprep.subr.bf16.mxu0 %v5764
    %5781 = vmatpush1.bf16.msra.mxu0 %v5763
    %5782 = vmatprep.subr.bf16.mxu0 0
    %5783 = vmatpush1.bf16.msra.mxu0 0
    %5784 = vmatprep.subr.bf16.mxu0 0
    %5785 = vmatpush1.bf16.msra.mxu0 0
    %5786 = vmatprep.subr.bf16.mxu0 0
    %5787 = vmatpush1.bf16.msra.mxu0 0
    %5788 = vmatprep.subr.bf16.mxu0 0
    %5789 = vmatpush1.bf16.msra.mxu0 0
    %5790 = vmatprep.subr.bf16.mxu0 0
    %5791 = vmatpush1.bf16.msra.mxu0 0
    %5792 = vmatprep.subr.bf16.mxu0 0
    %5793 = vmatpush1.bf16.msra.mxu0 0
    %5794 = vmatprep.subr.bf16.mxu0 0
    %5795 = vmatpush1.bf16.msra.mxu0 0
    %5796 = vmatprep.subr.bf16.mxu0 0
    %5797 = vmatpush1.bf16.msra.mxu0 0
    %5798 = vmatprep.subr.bf16.mxu0 0
    %5799 = vmatpush1.bf16.msra.mxu0 0
    %5800 = vmatprep.subr.bf16.mxu0 0
    %5801 = vmatpush1.bf16.msra.mxu0 0
    %5802 = vmatprep.subr.bf16.mxu0 0
    %5803 = vmatpush1.bf16.msra.mxu0 0
    %5804 = vmatprep.subr.bf16.mxu0 0
    %5805 = vmatpush1.bf16.msra.mxu0 0
    %5806 = vmatprep.subr.bf16.mxu0 0
    %5807 = vmatpush1.bf16.msra.mxu0 0
    %5808 = vmatprep.subr.bf16.mxu0 0
    %5809 = vmatpush1.bf16.msra.mxu0 0
    %5810 = vmatprep.subr.bf16.mxu0 0
    %5811 = vmatpush1.bf16.msra.mxu0 0
    %5812 = vmatprep.mubr.bf16.mxu0 0
    %5813 = vmatmul.mubr.bf16.gmra.mrb[0].mxu0 %v5775
    %v5814 = vpop.f32.mrb[0].mxu0
    %v5815 = vadd.f32 %v5597, %v5814
    %v5816 = vpop.f32.mrb[0].mxu0
    %v5817 = vadd.f32 %v5599, %v5816
    %v5818 = vpop.f32.mrb[0].mxu0
    %v5819 = vadd.f32 %v5601, %v5818
    %v5820 = vpop.f32.mrb[0].mxu0
    %v5821 = vadd.f32 %v5603, %v5820
    %5822 = vmatprep.mubr.bf16.mxu0 0
    %5823 = vmatmul.mubr.bf16.gmra.mrb[0].mxu0 %v5778
    %v5824 = vpop.f32.mrb[0].mxu0
    %v5825 = vadd.f32 %v5607, %v5824
    %v5826 = vpop.f32.mrb[0].mxu0
    %v5827 = vadd.f32 %v5609, %v5826
    %v5828 = vpop.f32.mrb[0].mxu0
    %v5829 = vpop.f32.mrb[0].mxu0
    %5830 = vdwg.mxu0
    %5831 = vmatprep.subr.bf16.mxu0 0
    %5832 = vmatpush1.bf16.msra.mxu0 %v5765
    %5833 = vmatprep.subr.bf16.mxu0 0
    %5834 = vmatpush1.bf16.msra.mxu0 0
    %5835 = vmatprep.subr.bf16.mxu0 0
    %5836 = vmatpush1.bf16.msra.mxu0 0
    %5837 = vmatprep.subr.bf16.mxu0 0
    %5838 = vmatpush1.bf16.msra.mxu0 0
    %5839 = vmatprep.subr.bf16.mxu0 0
    %5840 = vmatpush1.bf16.msra.mxu0 0
    %5841 = vmatprep.subr.bf16.mxu0 0
    %5842 = vmatpush1.bf16.msra.mxu0 0
    %5843 = vmatprep.subr.bf16.mxu0 0
    %5844 = vmatpush1.bf16.msra.mxu0 0
    %5845 = vmatprep.subr.bf16.mxu0 0
    %5846 = vmatpush1.bf16.msra.mxu0 0
    %5847 = vmatprep.subr.bf16.mxu0 0
    %5848 = vmatpush1.bf16.msra.mxu0 0
    %5849 = vmatprep.subr.bf16.mxu0 0
    %5850 = vmatpush1.bf16.msra.mxu0 0
    %5851 = vmatprep.subr.bf16.mxu0 0
    %5852 = vmatpush1.bf16.msra.mxu0 0
    %5853 = vmatprep.subr.bf16.mxu0 0
    %5854 = vmatpush1.bf16.msra.mxu0 0
    %5855 = vmatprep.subr.bf16.mxu0 0
    %5856 = vmatpush1.bf16.msra.mxu0 0
    %5857 = vmatprep.subr.bf16.mxu0 0
    %5858 = vmatpush1.bf16.msra.mxu0 0
    %5859 = vmatprep.subr.bf16.mxu0 0
    %5860 = vmatpush1.bf16.msra.mxu0 0
    %5861 = vmatprep.subr.bf16.mxu0 0
    %5862 = vmatpush1.bf16.msra.mxu0 0
    %5863 = vmatprep.mubr.bf16.mxu0 0
    %5864 = vmatmul.mubr.bf16.gmra.mrb[0].mxu0 %v5775
    %v5865 = vpop.f32.mrb[0].mxu0
    %v5866 = vadd.f32 %v5648, %v5865
    %v5867 = vpop.f32.mrb[0].mxu0
    %v5868 = vpop.f32.mrb[0].mxu0
    %v5869 = vadd.f32 %v5651, %v5868
    %v5870 = vpop.f32.mrb[0].mxu0
    %5871 = vmatprep.mubr.bf16.mxu0 0
    %5872 = vmatmul.mubr.bf16.gmra.mrb[0].mxu0 %v5778
    %v5873 = vpop.f32.mrb[0].mxu0
    %v5874 = vadd.f32 %v5656, %v5873
    %v5875 = vpop.f32.mrb[0].mxu0
    %v5876 = vpop.f32.mrb[0].mxu0
    %v5877 = vpop.f32.mrb[0].mxu0
    %5878 = vdwg.mxu0
    %v5879 = vmul.f32 %v5699, %v5815
    %v5880 = vmul.f32 %v5701, %v5817
    %v5881 = vmul.f32 %v5750, %v5866
    %v5882 = vmul.f32 %v5703, %v5819
    %v5883 = vmul.f32 %v5705, %v5821
    %v5884 = vmul.f32 %v5753, %v5869
    %v5885 = vmul.f32 %v5709, %v5825
    %v5886 = vmul.f32 %v5711, %v5827
    %v5887 = vmul.f32 %v5758, %v5874
    %v5888 = vpack.c.bf16 %v5882, %v5879
    %v5889 = vpack.c.bf16 %v5883, %v5880
    %v5890 = vpack.c.bf16 %v5884, %v5881
    %v5891 = vpack.c.bf16 %v5885, %v5885
    %v5892 = vpack.c.bf16 %v5886, %v5886
    %v5893 = vpack.c.bf16 %v5887, %v5887
    %v5942 = vunpack.c.l.b16 %v674
    %v5943 = vunpack.c.l.b16 %v675
    %v5944 = vunpack.c.l.b16 %v676
    %v5945 = vunpack.c.l.b16 %v677
    %v5946 = vunpack.c.l.b16 %v678
    %v5947 = vunpack.c.l.b16 %v679
    %v5948 = vunpack.c.l.b16 %v680
    %v5949 = vunpack.c.l.b16 %v681
    %v5950 = vunpack.c.l.b16 %v682
    %v5951 = vunpack.c.l.b16 %v683
    %v5952 = vunpack.c.l.b16 %v684
    %v5953 = vunpack.c.l.b16 %v685
    %v5954 = vunpack.c.l.b16 %v686
    %v5955 = vunpack.c.l.b16 %v687
    %v5956 = vunpack.c.l.b16 %v688
    %v5957 = vunpack.c.l.b16 %v689
    %v5958 = vunpack.c.l.b16 %v690
    %v5959 = vunpack.c.l.b16 %v691
    %v5960 = vunpack.c.l.b16 %v692
    %v5961 = vunpack.c.l.b16 %v693
    %v5962 = vunpack.c.l.b16 %v694
    %v5963 = vunpack.c.l.b16 %v695
    %v5964 = vunpack.c.l.b16 %v696
    %v5965 = vunpack.c.l.b16 %v697
    %v5966 = vunpack.c.l.b16 %v698
    %v5967 = vunpack.c.l.b16 %v699
    %v5968 = vunpack.c.l.b16 %v700
    %v5969 = vunpack.c.l.b16 %v701
    %v5970 = vunpack.c.l.b16 %v702
    %v5971 = vunpack.c.l.b16 %v703
    %v5972 = vunpack.c.l.b16 %v704
    %v5973 = vunpack.c.l.b16 %v705
    %v5974 = vunpack.c.l.b16 %v706
    %v5975 = vunpack.c.l.b16 %v707
    %v5976 = vunpack.c.l.b16 %v708
    %v5977 = vunpack.c.l.b16 %v709
    %v5978 = vunpack.c.l.b16 %v710
    %v5979 = vunpack.c.l.b16 %v711
    %v5980 = vunpack.c.l.b16 %v712
    %v5981 = vunpack.c.l.b16 %v713
    %v5982 = vunpack.c.l.b16 %v714
    %v5983 = vunpack.c.l.b16 %v715
    %v5984 = vunpack.c.l.b16 %v716
    %v5985 = vunpack.c.l.b16 %v717
    %v5986 = vunpack.c.l.b16 %v718
    %v5987 = vunpack.c.l.b16 %v719
    %v5988 = vunpack.c.l.b16 %v720
    %v5989 = vunpack.c.l.b16 %v721
    %v5990 = vpack.c.b16 %v5943, %v5942
    %v5991 = vpack.c.b16 %v5945, %v5944
    %v5992 = vpack.c.b16 %v5947, %v5946
    %v5993 = vpack.c.b16 %v5949, %v5948
    %v5994 = vpack.c.b16 %v5951, %v5950
    %v5995 = vpack.c.b16 %v5953, %v5952
    %v5996 = vpack.c.b16 %v5955, %v5954
    %v5997 = vpack.c.b16 %v5957, %v5956
    %v5998 = vpack.c.b16 %v5959, %v5958
    %v5999 = vpack.c.b16 %v5961, %v5960
    %v6000 = vpack.c.b16 %v5963, %v5962
    %v6001 = vpack.c.b16 %v5965, %v5964
    %v6002 = vpack.c.b16 %v5967, %v5966
    %v6003 = vpack.c.b16 %v5969, %v5968
    %v6004 = vpack.c.b16 %v5971, %v5970
    %v6005 = vpack.c.b16 %v5973, %v5972
    %v6006 = vpack.c.b16 %v5975, %v5974
    %v6007 = vpack.c.b16 %v5977, %v5976
    %v6008 = vpack.c.b16 %v5979, %v5978
    %v6009 = vpack.c.b16 %v5981, %v5980
    %v6010 = vpack.c.b16 %v5983, %v5982
    %v6011 = vpack.c.b16 %v5985, %v5984
    %v6012 = vpack.c.b16 %v5987, %v5986
    %v6013 = vpack.c.b16 %v5989, %v5988
    %6038 = vmatprep.subr.bf16.mxu0 0
    %6039 = vmatpush1.bf16.msra.mxu0 %v5990
    %6040 = vmatprep.subr.bf16.mxu0 0
    %6041 = vmatpush1.bf16.msra.mxu0 %v5991
    %6042 = vmatprep.subr.bf16.mxu0 0
    %6043 = vmatpush1.bf16.msra.mxu0 %v5992
    %6044 = vmatprep.subr.bf16.mxu0 0
    %6045 = vmatpush1.bf16.msra.mxu0 %v5993
    %6046 = vmatprep.subr.bf16.mxu0 0
    %6047 = vmatpush1.bf16.msra.mxu0 %v5994
    %6048 = vmatprep.subr.bf16.mxu0 0
    %6049 = vmatpush1.bf16.msra.mxu0 %v5995
    %6050 = vmatprep.subr.bf16.mxu0 0
    %6051 = vmatpush1.bf16.msra.mxu0 %v5996
    %6052 = vmatprep.subr.bf16.mxu0 0
    %6053 = vmatpush1.bf16.msra.mxu0 %v5997
    %6054 = vmatprep.subr.bf16.mxu0 0
    %6055 = vmatpush1.bf16.msra.mxu0 %v5998
    %6056 = vmatprep.subr.bf16.mxu0 0
    %6057 = vmatpush1.bf16.msra.mxu0 %v5999
    %6058 = vmatprep.subr.bf16.mxu0 0
    %6059 = vmatpush1.bf16.msra.mxu0 %v6000
    %6060 = vmatprep.subr.bf16.mxu0 0
    %6061 = vmatpush1.bf16.msra.mxu0 %v6001
    %6062 = vmatprep.subr.bf16.mxu0 0
    %6063 = vmatpush1.bf16.msra.mxu0 %v6002
    %6064 = vmatprep.subr.bf16.mxu0 0
    %6065 = vmatpush1.bf16.msra.mxu0 %v6003
    %6066 = vmatprep.subr.bf16.mxu0 0
    %6067 = vmatpush1.bf16.msra.mxu0 %v6004
    %6068 = vmatprep.subr.bf16.mxu0 0
    %6069 = vmatpush1.bf16.msra.mxu0 %v6005
    %6070 = vmatprep.mubr.bf16.mxu0 %v5889
    %6071 = vmatmul.mubr.bf16.gmra.mrb[0].mxu0 %v5888
    %v6072 = vpop.f32.mrb[0].mxu0
    %v6073 = vadd.f32 0.0, %v6072
    %v6074 = vpop.f32.mrb[0].mxu0
    %v6075 = vpop.f32.mrb[0].mxu0
    %v6076 = vadd.f32 0.0, %v6075
    %v6077 = vpop.f32.mrb[0].mxu0
    %6078 = vmatprep.mubr.bf16.mxu0 %v5892
    %6079 = vmatmul.mubr.bf16.gmra.mrb[0].mxu0 %v5891
    %v6080 = vpop.f32.mrb[0].mxu0
    %v6081 = vadd.f32 0.0, %v6080
    %v6082 = vpop.f32.mrb[0].mxu0
    %v6083 = vpop.f32.mrb[0].mxu0
    %v6084 = vpop.f32.mrb[0].mxu0
    %6085 = vdwg.mxu0
    %6086 = vmatprep.subr.bf16.mxu0 0
    %6087 = vmatpush1.bf16.msra.mxu0 %v6006
    %6088 = vmatprep.subr.bf16.mxu0 0
    %6089 = vmatpush1.bf16.msra.mxu0 %v6007
    %6090 = vmatprep.subr.bf16.mxu0 0
    %6091 = vmatpush1.bf16.msra.mxu0 %v6008
    %6092 = vmatprep.subr.bf16.mxu0 0
    %6093 = vmatpush1.bf16.msra.mxu0 %v6009
    %6094 = vmatprep.subr.bf16.mxu0 0
    %6095 = vmatpush1.bf16.msra.mxu0 %v6010
    %6096 = vmatprep.subr.bf16.mxu0 0
    %6097 = vmatpush1.bf16.msra.mxu0 %v6011
    %6098 = vmatprep.subr.bf16.mxu0 0
    %6099 = vmatpush1.bf16.msra.mxu0 %v6012
    %6100 = vmatprep.subr.bf16.mxu0 0
    %6101 = vmatpush1.bf16.msra.mxu0 %v6013
    %6102 = vmatprep.subr.bf16.mxu0 0
    %6103 = vmatpush1.bf16.msra.mxu0 0
    %6104 = vmatprep.subr.bf16.mxu0 0
    %6105 = vmatpush1.bf16.msra.mxu0 0
    %6106 = vmatprep.subr.bf16.mxu0 0
    %6107 = vmatpush1.bf16.msra.mxu0 0
    %6108 = vmatprep.subr.bf16.mxu0 0
    %6109 = vmatpush1.bf16.msra.mxu0 0
    %6110 = vmatprep.subr.bf16.mxu0 0
    %6111 = vmatpush1.bf16.msra.mxu0 0
    %6112 = vmatprep.subr.bf16.mxu0 0
    %6113 = vmatpush1.bf16.msra.mxu0 0
    %6114 = vmatprep.subr.bf16.mxu0 0
    %6115 = vmatpush1.bf16.msra.mxu0 0
    %6116 = vmatprep.subr.bf16.mxu0 0
    %6117 = vmatpush1.bf16.msra.mxu0 0
    %6118 = vmatprep.mubr.bf16.mxu0 0
    %6119 = vmatmul.mubr.bf16.gmra.mrb[0].mxu0 %v5890
    %v6120 = vpop.f32.mrb[0].mxu0
    %v6121 = vadd.f32 %v6073, %v6120
    %v6122 = vpop.f32.mrb[0].mxu0
    %v6123 = vpop.f32.mrb[0].mxu0
    %v6124 = vadd.f32 %v6076, %v6123
    %v6125 = vpop.f32.mrb[0].mxu0
    %6126 = vmatprep.mubr.bf16.mxu0 0
    %6127 = vmatmul.mubr.bf16.gmra.mrb[0].mxu0 %v5893
    %v6128 = vpop.f32.mrb[0].mxu0
    %v6129 = vadd.f32 %v6081, %v6128
    %v6130 = vpop.f32.mrb[0].mxu0
    %v6131 = vpop.f32.mrb[0].mxu0
    %v6132 = vpop.f32.mrb[0].mxu0
    %6133 = vdwg.mxu0
    %v6134 = vmul.f32 %v6121, 0.25
    %v6135 = vmul.f32 %v6124, 0.25
    %v6136 = vmul.f32 %v6129, 0.25
    %vm6137 = vcmp.gt.f32.partialorder %v4625, 0.0
    %vm6138 = vcmp.gt.f32.partialorder %v4626, 0.0
    %vm6139 = vcmp.gt.f32.partialorder %v4627, 0.0
    %v6140 = vsel %vm6137, %v6134, -1e+09
    %v6141 = vsel %vm6138, %v6135, -1e+09
    %v6142 = vsel %vm6139, %v6136, -1e+09
    %v6143 = vsel %vm1828, %v6140, -inf
    %v6144 = vsel %vm1828, %v6141, -inf
    %v6145 = vsel %vm1828, %v6142, -inf
    %v6146 = vmax.f32 %v6143, %v6144
    %v6147 = vmax.f32 %v6146, %v6145
    %v6148 = vrot.slane %v6147, 4
    %v6149 = vmax.f32 %v6147, %v6148
    %v6150 = vrot.slane %v6149, 2
    %v6151 = vmax.f32 %v6149, %v6150
    %v6152 = vrot.slane %v6151, 1
    %v6153 = vmax.f32 %v6151, %v6152
    %v6154 = vsub.f32 %v6140, %v6153
    %v6155 = vsub.f32 %v6141, %v6153
    %v6156 = vsub.f32 %v6142, %v6153
    %v6157 = vmul.f32 %v6154, 1.442695
    %v6158 = vpow.pop %v6157
    %v6159 = vmul.f32 %v6155, 1.442695
    %v6160 = vpow.pop %v6159
    %v6161 = vmul.f32 %v6156, 1.442695
    %v6162 = vpow.pop %v6161
    %v6163 = vmul.f32 %v6158, %v4625
    %v6164 = vmul.f32 %v6160, %v4626
    %v6165 = vmul.f32 %v6162, %v4627
    %v6166 = vpack.c.bf16 %v6164, %v6163
    %v6167 = vpack.c.bf16 %v6165, %v6165
    %v6169 = vsel %vm1828, %v900, 0
    %v6172 = vsel %vm962, %v6167, 0
    %6174 = vmatprep.subr.bf16.mxu0 0
    %6175 = vmatpush1.bf16.msra.mxu0 %v6166
    %6176 = vmatprep.subr.bf16.mxu0 0
    %6177 = vmatpush1.bf16.msra.mxu0 %v6172
    %6178 = vmatprep.subr.bf16.mxu0 0
    %6179 = vmatpush1.bf16.msra.mxu0 0
    %6180 = vmatprep.subr.bf16.mxu0 0
    %6181 = vmatpush1.bf16.msra.mxu0 0
    %6182 = vmatprep.subr.bf16.mxu0 0
    %6183 = vmatpush1.bf16.msra.mxu0 0
    %6184 = vmatprep.subr.bf16.mxu0 0
    %6185 = vmatpush1.bf16.msra.mxu0 0
    %6186 = vmatprep.subr.bf16.mxu0 0
    %6187 = vmatpush1.bf16.msra.mxu0 0
    %6188 = vmatprep.subr.bf16.mxu0 0
    %6189 = vmatpush1.bf16.msra.mxu0 0
    %6190 = vmatprep.subr.bf16.mxu0 0
    %6191 = vmatpush1.bf16.msra.mxu0 0
    %6192 = vmatprep.subr.bf16.mxu0 0
    %6193 = vmatpush1.bf16.msra.mxu0 0
    %6194 = vmatprep.subr.bf16.mxu0 0
    %6195 = vmatpush1.bf16.msra.mxu0 0
    %6196 = vmatprep.subr.bf16.mxu0 0
    %6197 = vmatpush1.bf16.msra.mxu0 0
    %6198 = vmatprep.subr.bf16.mxu0 0
    %6199 = vmatpush1.bf16.msra.mxu0 0
    %6200 = vmatprep.subr.bf16.mxu0 0
    %6201 = vmatpush1.bf16.msra.mxu0 0
    %6202 = vmatprep.subr.bf16.mxu0 0
    %6203 = vmatpush1.bf16.msra.mxu0 0
    %6204 = vmatprep.subr.bf16.mxu0 0
    %6205 = vmatpush1.bf16.msra.mxu0 0
    %6206 = vmatprep.mubr.bf16.mxu0 0
    %6207 = vmatmul.mubr.bf16.gmra.mrb[0].mxu0 %v6169
    %v6208 = vpop.f32.mrb[0].mxu0
    %v6209 = vadd.f32 0.0, %v6208
    %v6210 = vpop.f32.mrb[0].mxu0
    %v6211 = vpop.f32.mrb[0].mxu0
    %v6212 = vadd.f32 0.0, %v6211
    %v6213 = vpop.f32.mrb[0].mxu0
    %6214 = vdwg.mxu0
    %v6215 = vmax.f32 %v6209, 1e-20
    %v6216 = vmax.f32 %v6212, 1e-20
    %v6217 = vrcp.pop %v6215
    %v6218 = vrcp.pop %v6216
    %v6219 = vpack.c.bf16 %v5437, %v5433
    %v6220 = vpack.c.bf16 %v5439, %v5435
    %v6221 = vpack.c.bf16 %v5480, %v5476
    %6222 = vmatprep.subr.bf16.mxu0 %v6220
    %6223 = vmatpush1.bf16.msra.mxu0 %v6219
    %6224 = vmatprep.subr.bf16.mxu0 0
    %6225 = vmatpush1.bf16.msra.mxu0 0
    %6226 = vmatprep.subr.bf16.mxu0 0
    %6227 = vmatpush1.bf16.msra.mxu0 0
    %6228 = vmatprep.subr.bf16.mxu0 0
    %6229 = vmatpush1.bf16.msra.mxu0 0
    %6230 = vmatprep.subr.bf16.mxu0 0
    %6231 = vmatpush1.bf16.msra.mxu0 0
    %6232 = vmatprep.subr.bf16.mxu0 0
    %6233 = vmatpush1.bf16.msra.mxu0 0
    %6234 = vmatprep.subr.bf16.mxu0 0
    %6235 = vmatpush1.bf16.msra.mxu0 0
    %6236 = vmatprep.subr.bf16.mxu0 0
    %6237 = vmatpush1.bf16.msra.mxu0 0
    %6238 = vmatprep.subr.bf16.mxu0 0
    %6239 = vmatpush1.bf16.msra.mxu0 0
    %6240 = vmatprep.subr.bf16.mxu0 0
    %6241 = vmatpush1.bf16.msra.mxu0 0
    %6242 = vmatprep.subr.bf16.mxu0 0
    %6243 = vmatpush1.bf16.msra.mxu0 0
    %6244 = vmatprep.subr.bf16.mxu0 0
    %6245 = vmatpush1.bf16.msra.mxu0 0
    %6246 = vmatprep.subr.bf16.mxu0 0
    %6247 = vmatpush1.bf16.msra.mxu0 0
    %6248 = vmatprep.subr.bf16.mxu0 0
    %6249 = vmatpush1.bf16.msra.mxu0 0
    %6250 = vmatprep.subr.bf16.mxu0 0
    %6251 = vmatpush1.bf16.msra.mxu0 0
    %6252 = vmatprep.subr.bf16.mxu0 0
    %6253 = vmatpush1.bf16.msra.mxu0 0
    %6254 = vmatprep.mubr.bf16.mxu0 0
    %6255 = vmatmul.mubr.bf16.gmra.mrb[0].mxu0 %v5775
    %v6256 = vpop.f32.mrb[0].mxu0
    %v6257 = vadd.f32 %v5597, %v6256
    %v6258 = vpop.f32.mrb[0].mxu0
    %v6259 = vadd.f32 %v5599, %v6258
    %v6260 = vpop.f32.mrb[0].mxu0
    %v6261 = vadd.f32 %v5601, %v6260
    %v6262 = vpop.f32.mrb[0].mxu0
    %v6263 = vadd.f32 %v5603, %v6262
    %6264 = vmatprep.mubr.bf16.mxu0 0
    %6265 = vmatmul.mubr.bf16.gmra.mrb[0].mxu0 %v5778
    %v6266 = vpop.f32.mrb[0].mxu0
    %v6267 = vadd.f32 %v5607, %v6266
    %v6268 = vpop.f32.mrb[0].mxu0
    %v6269 = vadd.f32 %v5609, %v6268
    %v6270 = vpop.f32.mrb[0].mxu0
    %v6271 = vpop.f32.mrb[0].mxu0
    %6272 = vdwg.mxu0
    %6273 = vmatprep.subr.bf16.mxu0 0
    %6274 = vmatpush1.bf16.msra.mxu0 %v6221
    %6275 = vmatprep.subr.bf16.mxu0 0
    %6276 = vmatpush1.bf16.msra.mxu0 0
    %6277 = vmatprep.subr.bf16.mxu0 0
    %6278 = vmatpush1.bf16.msra.mxu0 0
    %6279 = vmatprep.subr.bf16.mxu0 0
    %6280 = vmatpush1.bf16.msra.mxu0 0
    %6281 = vmatprep.subr.bf16.mxu0 0
    %6282 = vmatpush1.bf16.msra.mxu0 0
    %6283 = vmatprep.subr.bf16.mxu0 0
    %6284 = vmatpush1.bf16.msra.mxu0 0
    %6285 = vmatprep.subr.bf16.mxu0 0
    %6286 = vmatpush1.bf16.msra.mxu0 0
    %6287 = vmatprep.subr.bf16.mxu0 0
    %6288 = vmatpush1.bf16.msra.mxu0 0
    %6289 = vmatprep.subr.bf16.mxu0 0
    %6290 = vmatpush1.bf16.msra.mxu0 0
    %6291 = vmatprep.subr.bf16.mxu0 0
    %6292 = vmatpush1.bf16.msra.mxu0 0
    %6293 = vmatprep.subr.bf16.mxu0 0
    %6294 = vmatpush1.bf16.msra.mxu0 0
    %6295 = vmatprep.subr.bf16.mxu0 0
    %6296 = vmatpush1.bf16.msra.mxu0 0
    %6297 = vmatprep.subr.bf16.mxu0 0
    %6298 = vmatpush1.bf16.msra.mxu0 0
    %6299 = vmatprep.subr.bf16.mxu0 0
    %6300 = vmatpush1.bf16.msra.mxu0 0
    %6301 = vmatprep.subr.bf16.mxu0 0
    %6302 = vmatpush1.bf16.msra.mxu0 0
    %6303 = vmatprep.subr.bf16.mxu0 0
    %6304 = vmatpush1.bf16.msra.mxu0 0
    %6305 = vmatprep.mubr.bf16.mxu0 0
    %6306 = vmatmul.mubr.bf16.gmra.mrb[0].mxu0 %v5775
    %v6307 = vpop.f32.mrb[0].mxu0
    %v6308 = vadd.f32 %v5648, %v6307
    %v6309 = vpop.f32.mrb[0].mxu0
    %v6310 = vpop.f32.mrb[0].mxu0
    %v6311 = vadd.f32 %v5651, %v6310
    %v6312 = vpop.f32.mrb[0].mxu0
    %6313 = vmatprep.mubr.bf16.mxu0 0
    %6314 = vmatmul.mubr.bf16.gmra.mrb[0].mxu0 %v5778
    %v6315 = vpop.f32.mrb[0].mxu0
    %v6316 = vadd.f32 %v5656, %v6315
    %v6317 = vpop.f32.mrb[0].mxu0
    %v6318 = vpop.f32.mrb[0].mxu0
    %v6319 = vpop.f32.mrb[0].mxu0
    %6320 = vdwg.mxu0
    %v6322 = vsel %vm1828, %v6166, 0
    %v6324 = vsel %vm1828, %v6167, 0
    %6326 = vmatprep.subr.bf16.mxu0 %v2117
    %6327 = vmatpush1.bf16.msra.mxu0 %v2116
    %6328 = vmatprep.subr.bf16.mxu0 %v2143
    %6329 = vmatpush1.bf16.msra.mxu0 %v2140
    %6330 = vmatprep.subr.bf16.mxu0 0
    %6331 = vmatpush1.bf16.msra.mxu0 0
    %6332 = vmatprep.subr.bf16.mxu0 0
    %6333 = vmatpush1.bf16.msra.mxu0 0
    %6334 = vmatprep.subr.bf16.mxu0 0
    %6335 = vmatpush1.bf16.msra.mxu0 0
    %6336 = vmatprep.subr.bf16.mxu0 0
    %6337 = vmatpush1.bf16.msra.mxu0 0
    %6338 = vmatprep.subr.bf16.mxu0 0
    %6339 = vmatpush1.bf16.msra.mxu0 0
    %6340 = vmatprep.subr.bf16.mxu0 0
    %6341 = vmatpush1.bf16.msra.mxu0 0
    %6342 = vmatprep.subr.bf16.mxu0 0
    %6343 = vmatpush1.bf16.msra.mxu0 0
    %6344 = vmatprep.subr.bf16.mxu0 0
    %6345 = vmatpush1.bf16.msra.mxu0 0
    %6346 = vmatprep.subr.bf16.mxu0 0
    %6347 = vmatpush1.bf16.msra.mxu0 0
    %6348 = vmatprep.subr.bf16.mxu0 0
    %6349 = vmatpush1.bf16.msra.mxu0 0
    %6350 = vmatprep.subr.bf16.mxu0 0
    %6351 = vmatpush1.bf16.msra.mxu0 0
    %6352 = vmatprep.subr.bf16.mxu0 0
    %6353 = vmatpush1.bf16.msra.mxu0 0
    %6354 = vmatprep.subr.bf16.mxu0 0
    %6355 = vmatpush1.bf16.msra.mxu0 0
    %6356 = vmatprep.subr.bf16.mxu0 0
    %6357 = vmatpush1.bf16.msra.mxu0 0
    %6358 = vmatprep.mubr.bf16.mxu0 0
    %6359 = vmatmul.mubr.bf16.gmra.mrb[0].mxu0 %v6322
    %v6360 = vpop.f32.mrb[0].mxu0
    %v6361 = vadd.f32 0.0, %v6360
    %v6362 = vpop.f32.mrb[0].mxu0
    %v6363 = vadd.f32 0.0, %v6362
    %v6364 = vpop.f32.mrb[0].mxu0
    %v6365 = vadd.f32 0.0, %v6364
    %v6366 = vpop.f32.mrb[0].mxu0
    %v6367 = vadd.f32 0.0, %v6366
    %6368 = vmatprep.mubr.bf16.mxu0 0
    %6369 = vmatmul.mubr.bf16.gmra.mrb[0].mxu0 %v6324
    %v6370 = vpop.f32.mrb[0].mxu0
    %v6371 = vadd.f32 0.0, %v6370
    %v6372 = vpop.f32.mrb[0].mxu0
    %v6373 = vadd.f32 0.0, %v6372
    %v6374 = vpop.f32.mrb[0].mxu0
    %v6375 = vpop.f32.mrb[0].mxu0
    %6376 = vdwg.mxu0
    %6377 = vmatprep.subr.bf16.mxu0 0
    %6378 = vmatpush1.bf16.msra.mxu0 %v2118
    %6379 = vmatprep.subr.bf16.mxu0 0
    %6380 = vmatpush1.bf16.msra.mxu0 %v2146
    %6381 = vmatprep.subr.bf16.mxu0 0
    %6382 = vmatpush1.bf16.msra.mxu0 0
    %6383 = vmatprep.subr.bf16.mxu0 0
    %6384 = vmatpush1.bf16.msra.mxu0 0
    %6385 = vmatprep.subr.bf16.mxu0 0
    %6386 = vmatpush1.bf16.msra.mxu0 0
    %6387 = vmatprep.subr.bf16.mxu0 0
    %6388 = vmatpush1.bf16.msra.mxu0 0
    %6389 = vmatprep.subr.bf16.mxu0 0
    %6390 = vmatpush1.bf16.msra.mxu0 0
    %6391 = vmatprep.subr.bf16.mxu0 0
    %6392 = vmatpush1.bf16.msra.mxu0 0
    %6393 = vmatprep.subr.bf16.mxu0 0
    %6394 = vmatpush1.bf16.msra.mxu0 0
    %6395 = vmatprep.subr.bf16.mxu0 0
    %6396 = vmatpush1.bf16.msra.mxu0 0
    %6397 = vmatprep.subr.bf16.mxu0 0
    %6398 = vmatpush1.bf16.msra.mxu0 0
    %6399 = vmatprep.subr.bf16.mxu0 0
    %6400 = vmatpush1.bf16.msra.mxu0 0
    %6401 = vmatprep.subr.bf16.mxu0 0
    %6402 = vmatpush1.bf16.msra.mxu0 0
    %6403 = vmatprep.subr.bf16.mxu0 0
    %6404 = vmatpush1.bf16.msra.mxu0 0
    %6405 = vmatprep.subr.bf16.mxu0 0
    %6406 = vmatpush1.bf16.msra.mxu0 0
    %6407 = vmatprep.subr.bf16.mxu0 0
    %6408 = vmatpush1.bf16.msra.mxu0 0
    %6409 = vmatprep.mubr.bf16.mxu0 0
    %6410 = vmatmul.mubr.bf16.gmra.mrb[0].mxu0 %v6322
    %v6411 = vpop.f32.mrb[0].mxu0
    %v6412 = vadd.f32 0.0, %v6411
    %v6413 = vpop.f32.mrb[0].mxu0
    %v6414 = vpop.f32.mrb[0].mxu0
    %v6415 = vadd.f32 0.0, %v6414
    %v6416 = vpop.f32.mrb[0].mxu0
    %6417 = vmatprep.mubr.bf16.mxu0 0
    %6418 = vmatmul.mubr.bf16.gmra.mrb[0].mxu0 %v6324
    %v6419 = vpop.f32.mrb[0].mxu0
    %v6420 = vadd.f32 0.0, %v6419
    %v6421 = vpop.f32.mrb[0].mxu0
    %v6422 = vpop.f32.mrb[0].mxu0
    %v6423 = vpop.f32.mrb[0].mxu0
    %6424 = vdwg.mxu0
    %v6425 = vmul.f32 %v6257, %v6361
    %v6426 = vmul.f32 %v6259, %v6363
    %v6427 = vmul.f32 %v6308, %v6412
    %v6428 = vmul.f32 %v6261, %v6365
    %v6429 = vmul.f32 %v6263, %v6367
    %v6430 = vmul.f32 %v6311, %v6415
    %v6431 = vmul.f32 %v6267, %v6371
    %v6432 = vmul.f32 %v6269, %v6373
    %v6433 = vmul.f32 %v6316, %v6420
    %v6434 = vpack.c.bf16 %v6428, %v6425
    %v6435 = vpack.c.bf16 %v6429, %v6426
    %v6436 = vpack.c.bf16 %v6430, %v6427
    %v6437 = vpack.c.bf16 %v6431, %v6431
    %v6438 = vpack.c.bf16 %v6432, %v6432
    %v6439 = vpack.c.bf16 %v6433, %v6433
    %v6441 = vsel %vm962, %v6437, 0
    %v6444 = vsel %vm962, %v6438, 0
    %v6447 = vsel %vm962, %v6439, 0
    %6449 = vmatprep.subr.bf16.mxu0 %v6435
    %6450 = vmatpush1.bf16.msra.mxu0 %v6434
    %6451 = vmatprep.subr.bf16.mxu0 %v6444
    %6452 = vmatpush1.bf16.msra.mxu0 %v6441
    %6453 = vmatprep.subr.bf16.mxu0 0
    %6454 = vmatpush1.bf16.msra.mxu0 0
    %6455 = vmatprep.subr.bf16.mxu0 0
    %6456 = vmatpush1.bf16.msra.mxu0 0
    %6457 = vmatprep.subr.bf16.mxu0 0
    %6458 = vmatpush1.bf16.msra.mxu0 0
    %6459 = vmatprep.subr.bf16.mxu0 0
    %6460 = vmatpush1.bf16.msra.mxu0 0
    %6461 = vmatprep.subr.bf16.mxu0 0
    %6462 = vmatpush1.bf16.msra.mxu0 0
    %6463 = vmatprep.subr.bf16.mxu0 0
    %6464 = vmatpush1.bf16.msra.mxu0 0
    %6465 = vmatprep.subr.bf16.mxu0 0
    %6466 = vmatpush1.bf16.msra.mxu0 0
    %6467 = vmatprep.subr.bf16.mxu0 0
    %6468 = vmatpush1.bf16.msra.mxu0 0
    %6469 = vmatprep.subr.bf16.mxu0 0
    %6470 = vmatpush1.bf16.msra.mxu0 0
    %6471 = vmatprep.subr.bf16.mxu0 0
    %6472 = vmatpush1.bf16.msra.mxu0 0
    %6473 = vmatprep.subr.bf16.mxu0 0
    %6474 = vmatpush1.bf16.msra.mxu0 0
    %6475 = vmatprep.subr.bf16.mxu0 0
    %6476 = vmatpush1.bf16.msra.mxu0 0
    %6477 = vmatprep.subr.bf16.mxu0 0
    %6478 = vmatpush1.bf16.msra.mxu0 0
    %6479 = vmatprep.subr.bf16.mxu0 0
    %6480 = vmatpush1.bf16.msra.mxu0 0
    %6481 = vmatprep.mubr.bf16.mxu0 0
    %6482 = vmatmul.mubr.bf16.gmra.mrb[0].mxu0 %v6169
    %v6483 = vpop.f32.mrb[0].mxu0
    %v6484 = vadd.f32 0.0, %v6483
    %v6485 = vpop.f32.mrb[0].mxu0
    %v6486 = vadd.f32 0.0, %v6485
    %v6487 = vpop.f32.mrb[0].mxu0
    %v6488 = vadd.f32 0.0, %v6487
    %v6489 = vpop.f32.mrb[0].mxu0
    %v6490 = vadd.f32 0.0, %v6489
    %6491 = vdwg.mxu0
    %6492 = vmatprep.subr.bf16.mxu0 0
    %6493 = vmatpush1.bf16.msra.mxu0 %v6436
    %6494 = vmatprep.subr.bf16.mxu0 0
    %6495 = vmatpush1.bf16.msra.mxu0 %v6447
    %6496 = vmatprep.subr.bf16.mxu0 0
    %6497 = vmatpush1.bf16.msra.mxu0 0
    %6498 = vmatprep.subr.bf16.mxu0 0
    %6499 = vmatpush1.bf16.msra.mxu0 0
    %6500 = vmatprep.subr.bf16.mxu0 0
    %6501 = vmatpush1.bf16.msra.mxu0 0
    %6502 = vmatprep.subr.bf16.mxu0 0
    %6503 = vmatpush1.bf16.msra.mxu0 0
    %6504 = vmatprep.subr.bf16.mxu0 0
    %6505 = vmatpush1.bf16.msra.mxu0 0
    %6506 = vmatprep.subr.bf16.mxu0 0
    %6507 = vmatpush1.bf16.msra.mxu0 0
    %6508 = vmatprep.subr.bf16.mxu0 0
    %6509 = vmatpush1.bf16.msra.mxu0 0
    %6510 = vmatprep.subr.bf16.mxu0 0
    %6511 = vmatpush1.bf16.msra.mxu0 0
    %6512 = vmatprep.subr.bf16.mxu0 0
    %6513 = vmatpush1.bf16.msra.mxu0 0
    %6514 = vmatprep.subr.bf16.mxu0 0
    %6515 = vmatpush1.bf16.msra.mxu0 0
    %6516 = vmatprep.subr.bf16.mxu0 0
    %6517 = vmatpush1.bf16.msra.mxu0 0
    %6518 = vmatprep.subr.bf16.mxu0 0
    %6519 = vmatpush1.bf16.msra.mxu0 0
    %6520 = vmatprep.subr.bf16.mxu0 0
    %6521 = vmatpush1.bf16.msra.mxu0 0
    %6522 = vmatprep.subr.bf16.mxu0 0
    %6523 = vmatpush1.bf16.msra.mxu0 0
    %6524 = vmatprep.mubr.bf16.mxu0 0
    %6525 = vmatmul.mubr.bf16.gmra.mrb[0].mxu0 %v6169
    %v6526 = vpop.f32.mrb[0].mxu0
    %v6527 = vadd.f32 0.0, %v6526
    %v6528 = vpop.f32.mrb[0].mxu0
    %v6529 = vpop.f32.mrb[0].mxu0
    %v6530 = vadd.f32 0.0, %v6529
    %v6531 = vpop.f32.mrb[0].mxu0
    %6532 = vdwg.mxu0
    %v6533 = vpack.c.bf16 %v6218, %v6217
    %v6535 = vsel %vm1828, %v6533, 0
    %6537 = vmatprep.subr.bf16.mxu0 %v2117
    %6538 = vmatpush1.bf16.msra.mxu0 %v2116
    %6539 = vmatprep.subr.bf16.mxu0 %v2143
    %6540 = vmatpush1.bf16.msra.mxu0 %v2140
    %6541 = vmatprep.subr.bf16.mxu0 0
    %6542 = vmatpush1.bf16.msra.mxu0 0
    %6543 = vmatprep.subr.bf16.mxu0 0
    %6544 = vmatpush1.bf16.msra.mxu0 0
    %6545 = vmatprep.subr.bf16.mxu0 0
    %6546 = vmatpush1.bf16.msra.mxu0 0
    %6547 = vmatprep.subr.bf16.mxu0 0
    %6548 = vmatpush1.bf16.msra.mxu0 0
    %6549 = vmatprep.subr.bf16.mxu0 0
    %6550 = vmatpush1.bf16.msra.mxu0 0
    %6551 = vmatprep.subr.bf16.mxu0 0
    %6552 = vmatpush1.bf16.msra.mxu0 0
    %6553 = vmatprep.subr.bf16.mxu0 0
    %6554 = vmatpush1.bf16.msra.mxu0 0
    %6555 = vmatprep.subr.bf16.mxu0 0
    %6556 = vmatpush1.bf16.msra.mxu0 0
    %6557 = vmatprep.subr.bf16.mxu0 0
    %6558 = vmatpush1.bf16.msra.mxu0 0
    %6559 = vmatprep.subr.bf16.mxu0 0
    %6560 = vmatpush1.bf16.msra.mxu0 0
    %6561 = vmatprep.subr.bf16.mxu0 0
    %6562 = vmatpush1.bf16.msra.mxu0 0
    %6563 = vmatprep.subr.bf16.mxu0 0
    %6564 = vmatpush1.bf16.msra.mxu0 0
    %6565 = vmatprep.subr.bf16.mxu0 0
    %6566 = vmatpush1.bf16.msra.mxu0 0
    %6567 = vmatprep.subr.bf16.mxu0 0
    %6568 = vmatpush1.bf16.msra.mxu0 0
    %6569 = vmatprep.mubr.bf16.mxu0 0
    %6570 = vmatmul.mubr.bf16.gmra.mrb[0].mxu0 %v6535
    %v6571 = vpop.f32.mrb[0].mxu0
    %v6572 = vadd.f32 0.0, %v6571
    %v6573 = vpop.f32.mrb[0].mxu0
    %v6574 = vadd.f32 0.0, %v6573
    %v6575 = vpop.f32.mrb[0].mxu0
    %v6576 = vadd.f32 0.0, %v6575
    %v6577 = vpop.f32.mrb[0].mxu0
    %v6578 = vadd.f32 0.0, %v6577
    %6579 = vdwg.mxu0
    %6580 = vmatprep.subr.bf16.mxu0 0
    %6581 = vmatpush1.bf16.msra.mxu0 %v2118
    %6582 = vmatprep.subr.bf16.mxu0 0
    %6583 = vmatpush1.bf16.msra.mxu0 %v2146
    %6584 = vmatprep.subr.bf16.mxu0 0
    %6585 = vmatpush1.bf16.msra.mxu0 0
    %6586 = vmatprep.subr.bf16.mxu0 0
    %6587 = vmatpush1.bf16.msra.mxu0 0
    %6588 = vmatprep.subr.bf16.mxu0 0
    %6589 = vmatpush1.bf16.msra.mxu0 0
    %6590 = vmatprep.subr.bf16.mxu0 0
    %6591 = vmatpush1.bf16.msra.mxu0 0
    %6592 = vmatprep.subr.bf16.mxu0 0
    %6593 = vmatpush1.bf16.msra.mxu0 0
    %6594 = vmatprep.subr.bf16.mxu0 0
    %6595 = vmatpush1.bf16.msra.mxu0 0
    %6596 = vmatprep.subr.bf16.mxu0 0
    %6597 = vmatpush1.bf16.msra.mxu0 0
    %6598 = vmatprep.subr.bf16.mxu0 0
    %6599 = vmatpush1.bf16.msra.mxu0 0
    %6600 = vmatprep.subr.bf16.mxu0 0
    %6601 = vmatpush1.bf16.msra.mxu0 0
    %6602 = vmatprep.subr.bf16.mxu0 0
    %6603 = vmatpush1.bf16.msra.mxu0 0
    %6604 = vmatprep.subr.bf16.mxu0 0
    %6605 = vmatpush1.bf16.msra.mxu0 0
    %6606 = vmatprep.subr.bf16.mxu0 0
    %6607 = vmatpush1.bf16.msra.mxu0 0
    %6608 = vmatprep.subr.bf16.mxu0 0
    %6609 = vmatpush1.bf16.msra.mxu0 0
    %6610 = vmatprep.subr.bf16.mxu0 0
    %6611 = vmatpush1.bf16.msra.mxu0 0
    %6612 = vmatprep.mubr.bf16.mxu0 0
    %6613 = vmatmul.mubr.bf16.gmra.mrb[0].mxu0 %v6535
    %v6614 = vpop.f32.mrb[0].mxu0
    %v6615 = vadd.f32 0.0, %v6614
    %v6616 = vpop.f32.mrb[0].mxu0
    %v6617 = vpop.f32.mrb[0].mxu0
    %v6618 = vadd.f32 0.0, %v6617
    %v6619 = vpop.f32.mrb[0].mxu0
    %6620 = vdwg.mxu0
    %v6621 = vmul.f32 %v6484, %v6572
    %v6622 = vmul.f32 %v6486, %v6574
    %v6623 = vmul.f32 %v6527, %v6615
    %v6624 = vmul.f32 %v6488, %v6576
    %v6625 = vmul.f32 %v6490, %v6578
    %v6626 = vmul.f32 %v6530, %v6618
    %v6627 = vadd.f32 %v6621, %v5478
    %v6628 = vadd.f32 %v6622, %v5519
    %v6629 = vadd.f32 %v6623, %v5521
    %v6630 = vadd.f32 %v6624, %v5482
    %v6631 = vadd.f32 %v6625, %v5523
    %v6632 = vadd.f32 %v6626, %v5525
    %v6633 = vld [vmem:[#allocation45] sm:$0xf]
    %v6634 = vld [vmem:[#allocation45 + $0x4] sm:$0xf]
    %v6635 = vld [vmem:[#allocation45 + $0x8] sm:$0xf]
    %v6636 = vld [vmem:[#allocation45 + $0xc] sm:$0xf]
    %v6637 = vld [vmem:[#allocation45 + $0x10] sm:$0xf]
    %v6638 = vld [vmem:[#allocation45 + $0x14] sm:$0xf]
    %v6639 = vld [vmem:[#allocation45 + $0x18] sm:$0xf]
    %v6640 = vld [vmem:[#allocation45 + $0x1c] sm:$0xf]
    %v6641 = vld [vmem:[#allocation45 + $0x20] sm:$0xf]
    %v6642 = vld [vmem:[#allocation45 + $0x24] sm:$0xf]
    %v6643 = vld [vmem:[#allocation45 + $0x28] sm:$0xf]
    %v6644 = vld [vmem:[#allocation45 + $0x2c] sm:$0xf]
    %v6645 = vld [vmem:[#allocation45 + $0x30] sm:$0xf]
    %v6646 = vld [vmem:[#allocation45 + $0x34] sm:$0xf]
    %v6647 = vld [vmem:[#allocation45 + $0x38] sm:$0xf]
    %v6648 = vld [vmem:[#allocation45 + $0x3c] sm:$0xf]
    %v6649 = vld [vmem:[#allocation45 + $0x40] sm:$0xf]
    %v6650 = vld [vmem:[#allocation45 + $0x44] sm:$0xf]
    %v6651 = vld [vmem:[#allocation45 + $0x48] sm:$0xf]
    %v6652 = vld [vmem:[#allocation45 + $0x4c] sm:$0xf]
    %v6653 = vld [vmem:[#allocation45 + $0x50] sm:$0xf]
    %v6654 = vld [vmem:[#allocation45 + $0x54] sm:$0xf]
    %v6655 = vld [vmem:[#allocation45 + $0x58] sm:$0xf]
    %v6656 = vld [vmem:[#allocation45 + $0x5c] sm:$0xf]
    %v6657 = vld [vmem:[#allocation45 + $0x60] sm:$0xf]
    %v6658 = vld [vmem:[#allocation45 + $0x64] sm:$0xf]
    %v6659 = vld [vmem:[#allocation45 + $0x68] sm:$0xf]
    %v6660 = vld [vmem:[#allocation45 + $0x6c] sm:$0xf]
    %v6661 = vld [vmem:[#allocation45 + $0x70] sm:$0xf]
    %v6662 = vld [vmem:[#allocation45 + $0x74] sm:$0xf]
    %v6663 = vld [vmem:[#allocation45 + $0x78] sm:$0xf]
    %v6664 = vld [vmem:[#allocation45 + $0x7c] sm:$0xf]
    %v6665 = vld [vmem:[#allocation45 + $0x80] sm:$0xf]
    %v6666 = vld [vmem:[#allocation45 + $0x84] sm:$0xf]
    %v6667 = vld [vmem:[#allocation45 + $0x88] sm:$0xf]
    %v6668 = vld [vmem:[#allocation45 + $0x8c] sm:$0xf]
    %v6669 = vld [vmem:[#allocation45 + $0x90] sm:$0xf]
    %v6670 = vld [vmem:[#allocation45 + $0x94] sm:$0xf]
    %v6671 = vld [vmem:[#allocation45 + $0x98] sm:$0xf]
    %v6672 = vld [vmem:[#allocation45 + $0x9c] sm:$0xf]
    %v6673 = vld [vmem:[#allocation45 + $0xa0] sm:$0xf]
    %v6674 = vld [vmem:[#allocation45 + $0xa4] sm:$0xf]
    %v6675 = vld [vmem:[#allocation45 + $0xa8] sm:$0xf]
    %v6676 = vld [vmem:[#allocation45 + $0xac] sm:$0xf]
    %v6677 = vld [vmem:[#allocation45 + $0xb0] sm:$0xf]
    %v6678 = vld [vmem:[#allocation45 + $0xb4] sm:$0xf]
    %v6679 = vld [vmem:[#allocation45 + $0xb8] sm:$0xf]
    %v6680 = vld [vmem:[#allocation45 + $0xbc] sm:$0xf]
    %v6681 = vpack.c.bf16 %v6630, %v6627
    %v6682 = vpack.c.bf16 %v6631, %v6628
    %v6683 = vpack.c.bf16 %v6632, %v6629
    %v6684 = vld [vmem:[#allocation46] sm:$0x1]
    %v6686 = vlaneseq
    %v6687 = vshrl.u32 %v6686, 7
    %v6688 = vsub.s32 0, %v6687
    %v6689 = vrot.slane %v6684, %v6688
    %v6739 = vunpack.c.l.b16 %v6633
    %v6740 = vunpack.c.l.b16 %v6634
    %v6741 = vunpack.c.l.b16 %v6635
    %v6742 = vunpack.c.l.b16 %v6636
    %v6743 = vunpack.c.l.b16 %v6637
    %v6744 = vunpack.c.l.b16 %v6638
    %v6745 = vunpack.c.l.b16 %v6639
    %v6746 = vunpack.c.l.b16 %v6640
    %v6747 = vunpack.c.l.b16 %v6641
    %v6748 = vunpack.c.l.b16 %v6642
    %v6749 = vunpack.c.l.b16 %v6643
    %v6750 = vunpack.c.l.b16 %v6644
    %v6751 = vunpack.c.l.b16 %v6645
    %v6752 = vunpack.c.l.b16 %v6646
    %v6753 = vunpack.c.l.b16 %v6647
    %v6754 = vunpack.c.l.b16 %v6648
    %v6755 = vunpack.c.l.b16 %v6649
    %v6756 = vunpack.c.l.b16 %v6650
    %v6757 = vunpack.c.l.b16 %v6651
    %v6758 = vunpack.c.l.b16 %v6652
    %v6759 = vunpack.c.l.b16 %v6653
    %v6760 = vunpack.c.l.b16 %v6654
    %v6761 = vunpack.c.l.b16 %v6655
    %v6762 = vunpack.c.l.b16 %v6656
    %v6763 = vunpack.c.l.b16 %v6657
    %v6764 = vunpack.c.l.b16 %v6658
    %v6765 = vunpack.c.l.b16 %v6659
    %v6766 = vunpack.c.l.b16 %v6660
    %v6767 = vunpack.c.l.b16 %v6661
    %v6768 = vunpack.c.l.b16 %v6662
    %v6769 = vunpack.c.l.b16 %v6663
    %v6770 = vunpack.c.l.b16 %v6664
    %v6771 = vunpack.c.l.b16 %v6665
    %v6772 = vunpack.c.l.b16 %v6666
    %v6773 = vunpack.c.l.b16 %v6667
    %v6774 = vunpack.c.l.b16 %v6668
    %v6775 = vunpack.c.l.b16 %v6669
    %v6776 = vunpack.c.l.b16 %v6670
    %v6777 = vunpack.c.l.b16 %v6671
    %v6778 = vunpack.c.l.b16 %v6672
    %v6779 = vunpack.c.l.b16 %v6673
    %v6780 = vunpack.c.l.b16 %v6674
    %v6781 = vunpack.c.l.b16 %v6675
    %v6782 = vunpack.c.l.b16 %v6676
    %v6783 = vunpack.c.l.b16 %v6677
    %v6784 = vunpack.c.l.b16 %v6678
    %v6785 = vunpack.c.l.b16 %v6679
    %v6786 = vunpack.c.l.b16 %v6680
    %v6787 = vpack.c.b16 %v6740, %v6739
    %v6788 = vpack.c.b16 %v6742, %v6741
    %v6789 = vpack.c.b16 %v6744, %v6743
    %v6790 = vpack.c.b16 %v6746, %v6745
    %v6791 = vpack.c.b16 %v6748, %v6747
    %v6792 = vpack.c.b16 %v6750, %v6749
    %v6793 = vpack.c.b16 %v6752, %v6751
    %v6794 = vpack.c.b16 %v6754, %v6753
    %v6795 = vpack.c.b16 %v6756, %v6755
    %v6796 = vpack.c.b16 %v6758, %v6757
    %v6797 = vpack.c.b16 %v6760, %v6759
    %v6798 = vpack.c.b16 %v6762, %v6761
    %v6799 = vpack.c.b16 %v6764, %v6763
    %v6800 = vpack.c.b16 %v6766, %v6765
    %v6801 = vpack.c.b16 %v6768, %v6767
    %v6802 = vpack.c.b16 %v6770, %v6769
    %v6803 = vpack.c.b16 %v6772, %v6771
    %v6804 = vpack.c.b16 %v6774, %v6773
    %v6805 = vpack.c.b16 %v6776, %v6775
    %v6806 = vpack.c.b16 %v6778, %v6777
    %v6807 = vpack.c.b16 %v6780, %v6779
    %v6808 = vpack.c.b16 %v6782, %v6781
    %v6809 = vpack.c.b16 %v6784, %v6783
    %v6810 = vpack.c.b16 %v6786, %v6785
    %6835 = vmatprep.subr.bf16.mxu0 0
    %6836 = vmatpush1.bf16.msra.mxu0 %v6787
    %6837 = vmatprep.subr.bf16.mxu0 0
    %6838 = vmatpush1.bf16.msra.mxu0 %v6788
    %6839 = vmatprep.subr.bf16.mxu0 0
    %6840 = vmatpush1.bf16.msra.mxu0 %v6789
    %6841 = vmatprep.subr.bf16.mxu0 0
    %6842 = vmatpush1.bf16.msra.mxu0 %v6790
    %6843 = vmatprep.subr.bf16.mxu0 0
    %6844 = vmatpush1.bf16.msra.mxu0 %v6791
    %6845 = vmatprep.subr.bf16.mxu0 0
    %6846 = vmatpush1.bf16.msra.mxu0 %v6792
    %6847 = vmatprep.subr.bf16.mxu0 0
    %6848 = vmatpush1.bf16.msra.mxu0 %v6793
    %6849 = vmatprep.subr.bf16.mxu0 0
    %6850 = vmatpush1.bf16.msra.mxu0 %v6794
    %6851 = vmatprep.subr.bf16.mxu0 0
    %6852 = vmatpush1.bf16.msra.mxu0 %v6795
    %6853 = vmatprep.subr.bf16.mxu0 0
    %6854 = vmatpush1.bf16.msra.mxu0 %v6796
    %6855 = vmatprep.subr.bf16.mxu0 0
    %6856 = vmatpush1.bf16.msra.mxu0 %v6797
    %6857 = vmatprep.subr.bf16.mxu0 0
    %6858 = vmatpush1.bf16.msra.mxu0 %v6798
    %6859 = vmatprep.subr.bf16.mxu0 0
    %6860 = vmatpush1.bf16.msra.mxu0 %v6799
    %6861 = vmatprep.subr.bf16.mxu0 0
    %6862 = vmatpush1.bf16.msra.mxu0 %v6800
    %6863 = vmatprep.subr.bf16.mxu0 0
    %6864 = vmatpush1.bf16.msra.mxu0 %v6801
    %6865 = vmatprep.subr.bf16.mxu0 0
    %6866 = vmatpush1.bf16.msra.mxu0 %v6802
    %6867 = vmatprep.mubr.bf16.mxu0 %v6682
    %6868 = vmatmul.mubr.bf16.gmra.mrb[0].mxu0 %v6681
    %v6869 = vpop.f32.mrb[0].mxu0
    %v6870 = vadd.f32 %v6689, %v6869
    %v6871 = vpop.f32.mrb[0].mxu0
    %v6872 = vpop.f32.mrb[0].mxu0
    %v6873 = vadd.f32 %v6689, %v6872
    %v6874 = vpop.f32.mrb[0].mxu0
    %6875 = vdwg.mxu0
    %6876 = vmatprep.subr.bf16.mxu0 0
    %6877 = vmatpush1.bf16.msra.mxu0 %v6803
    %6878 = vmatprep.subr.bf16.mxu0 0
    %6879 = vmatpush1.bf16.msra.mxu0 %v6804
    %6880 = vmatprep.subr.bf16.mxu0 0
    %6881 = vmatpush1.bf16.msra.mxu0 %v6805
    %6882 = vmatprep.subr.bf16.mxu0 0
    %6883 = vmatpush1.bf16.msra.mxu0 %v6806
    %6884 = vmatprep.subr.bf16.mxu0 0
    %6885 = vmatpush1.bf16.msra.mxu0 %v6807
    %6886 = vmatprep.subr.bf16.mxu0 0
    %6887 = vmatpush1.bf16.msra.mxu0 %v6808
    %6888 = vmatprep.subr.bf16.mxu0 0
    %6889 = vmatpush1.bf16.msra.mxu0 %v6809
    %6890 = vmatprep.subr.bf16.mxu0 0
    %6891 = vmatpush1.bf16.msra.mxu0 %v6810
    %6892 = vmatprep.subr.bf16.mxu0 0
    %6893 = vmatpush1.bf16.msra.mxu0 0
    %6894 = vmatprep.subr.bf16.mxu0 0
    %6895 = vmatpush1.bf16.msra.mxu0 0
    %6896 = vmatprep.subr.bf16.mxu0 0
    %6897 = vmatpush1.bf16.msra.mxu0 0
    %6898 = vmatprep.subr.bf16.mxu0 0
    %6899 = vmatpush1.bf16.msra.mxu0 0
    %6900 = vmatprep.subr.bf16.mxu0 0
    %6901 = vmatpush1.bf16.msra.mxu0 0
    %6902 = vmatprep.subr.bf16.mxu0 0
    %6903 = vmatpush1.bf16.msra.mxu0 0
    %6904 = vmatprep.subr.bf16.mxu0 0
    %6905 = vmatpush1.bf16.msra.mxu0 0
    %6906 = vmatprep.subr.bf16.mxu0 0
    %6907 = vmatpush1.bf16.msra.mxu0 0
    %6908 = vmatprep.mubr.bf16.mxu0 0
    %6909 = vmatmul.mubr.bf16.gmra.mrb[0].mxu0 %v6683
    %v6910 = vpop.f32.mrb[0].mxu0
    %v6911 = vadd.f32 %v6870, %v6910
    %v6912 = vpop.f32.mrb[0].mxu0
    %v6913 = vpop.f32.mrb[0].mxu0
    %v6914 = vadd.f32 %v6873, %v6913
    %v6915 = vpop.f32.mrb[0].mxu0
    %6916 = vdwg.mxu0
    %v6917 = vmax.f32 %v6911, 0.0
    %v6918 = vmax.f32 %v6914, 0.0
    %v6919 = vadd.f32 %v6917, %v4617
    %v6920 = vadd.f32 %v6918, %v4618
    %v6921 = vld [vmem:[#allocation51] sm:$0x1]
    %v6922 = vld [vmem:[#allocation49] sm:$0x1]
    %6923 = vadd.xlane.f32.xlu0 %v6919
    %v6924 = vpop.xlane.xlu0 %6923
    %6925 = vadd.xlane.f32.xlu0 %v6920
    %v6926 = vpop.xlane.xlu0 %6925
    %v6927 = vmul.f32 %v6924, %v2847
    %v6928 = vmul.f32 %v6926, %v2847
    %v6929 = vsub.f32 %v6919, %v6927
    %v6930 = vsub.f32 %v6920, %v6928
    %v6931 = vmul.f32 %v6929, %v6929
    %v6932 = vmul.f32 %v6930, %v6930
    %6933 = vadd.xlane.f32.xlu0 %v6931
    %v6934 = vpop.xlane.xlu0 %6933
    %6935 = vadd.xlane.f32.xlu0 %v6932
    %v6936 = vpop.xlane.xlu0 %6935
    %v6937 = vmul.f32 %v6934, %v2847
    %v6938 = vmul.f32 %v6936, %v2847
    %v6939 = vadd.f32 %v6937, 1e-05
    %v6940 = vadd.f32 %v6938, 1e-05
    %v6941 = vrsqrt.pop %v6939
    %v6942 = vrsqrt.pop %v6940
    %v6943 = vmul.f32 %v6929, %v6941
    %v6944 = vmul.f32 %v6930, %v6942
    %v6946 = vlaneseq
    %v6947 = vshrl.u32 %v6946, 7
    %v6948 = vsub.s32 0, %v6947
    %v6949 = vrot.slane %v6921, %v6948
    %v6951 = vmul.f32 %v6943, %v6949
    %v6952 = vmul.f32 %v6944, %v6949
    %v6954 = vlaneseq
    %v6955 = vshrl.u32 %v6954, 7
    %v6956 = vsub.s32 0, %v6955
    %v6957 = vrot.slane %v6922, %v6956
    %v6959 = vadd.f32 %v6951, %v6957
    %v6960 = vadd.f32 %v6952, %v6957
    %v6961 = vld [vmem:[#allocation54] sm:$0xff]
    %v6962 = vld [vmem:[#allocation54 + $0x8] sm:$0xff]
    %v6963 = vld [vmem:[#allocation54 + $0x10] sm:$0xff]
    %v6964 = vld [vmem:[#allocation54 + $0x18] sm:$0xff]
    %v6965 = vld [vmem:[#allocation54 + $0x20] sm:$0xff]
    %v6966 = vld [vmem:[#allocation54 + $0x28] sm:$0xff]
    %v6967 = vld [vmem:[#allocation54 + $0x30] sm:$0xff]
    %v6968 = vld [vmem:[#allocation54 + $0x38] sm:$0xff]
    %v6969 = vld [vmem:[#allocation54 + $0x40] sm:$0xff]
    %v6970 = vld [vmem:[#allocation54 + $0x48] sm:$0xff]
    %v6971 = vld [vmem:[#allocation54 + $0x50] sm:$0xff]
    %v6972 = vld [vmem:[#allocation54 + $0x58] sm:$0xff]
    %v6973 = vld [vmem:[#allocation54 + $0x60] sm:$0xff]
    %v6974 = vld [vmem:[#allocation54 + $0x68] sm:$0xff]
    %v6975 = vld [vmem:[#allocation54 + $0x70] sm:$0xff]
    %v6976 = vld [vmem:[#allocation54 + $0x78] sm:$0xff]
    %v6977 = vld [vmem:[#allocation54 + $0x80] sm:$0xff]
    %v6978 = vld [vmem:[#allocation54 + $0x88] sm:$0xff]
    %v6979 = vld [vmem:[#allocation54 + $0x90] sm:$0xff]
    %v6980 = vld [vmem:[#allocation54 + $0x98] sm:$0xff]
    %v6981 = vld [vmem:[#allocation54 + $0xa0] sm:$0xff]
    %v6982 = vld [vmem:[#allocation54 + $0xa8] sm:$0xff]
    %v6983 = vld [vmem:[#allocation54 + $0xb0] sm:$0xff]
    %v6984 = vld [vmem:[#allocation54 + $0xb8] sm:$0xff]
    %v6985 = vld [vmem:[#allocation54 + $0xc0] sm:$0xff]
    %v6986 = vld [vmem:[#allocation54 + $0xc8] sm:$0xff]
    %v6987 = vld [vmem:[#allocation54 + $0xd0] sm:$0xff]
    %v6988 = vld [vmem:[#allocation54 + $0xd8] sm:$0xff]
    %v6989 = vld [vmem:[#allocation54 + $0xe0] sm:$0xff]
    %v6990 = vld [vmem:[#allocation54 + $0xe8] sm:$0xff]
    %v6991 = vld [vmem:[#allocation54 + $0xf0] sm:$0xff]
    %v6992 = vld [vmem:[#allocation54 + $0xf8] sm:$0xff]
    %v6993 = vld [vmem:[#allocation54 + $0x100] sm:$0xff]
    %v6994 = vld [vmem:[#allocation54 + $0x108] sm:$0xff]
    %v6995 = vld [vmem:[#allocation54 + $0x110] sm:$0xff]
    %v6996 = vld [vmem:[#allocation54 + $0x118] sm:$0xff]
    %v6997 = vld [vmem:[#allocation54 + $0x120] sm:$0xff]
    %v6998 = vld [vmem:[#allocation54 + $0x128] sm:$0xff]
    %v6999 = vld [vmem:[#allocation54 + $0x130] sm:$0xff]
    %v7000 = vld [vmem:[#allocation54 + $0x138] sm:$0xff]
    %v7001 = vld [vmem:[#allocation54 + $0x140] sm:$0xff]
    %v7002 = vld [vmem:[#allocation54 + $0x148] sm:$0xff]
    %v7003 = vld [vmem:[#allocation54 + $0x150] sm:$0xff]
    %v7004 = vld [vmem:[#allocation54 + $0x158] sm:$0xff]
    %v7005 = vld [vmem:[#allocation54 + $0x160] sm:$0xff]
    %v7006 = vld [vmem:[#allocation54 + $0x168] sm:$0xff]
    %v7007 = vld [vmem:[#allocation54 + $0x170] sm:$0xff]
    %v7008 = vld [vmem:[#allocation54 + $0x178] sm:$0xff]
    %v7009 = vld [vmem:[#allocation54 + $0x180] sm:$0xff]
    %v7010 = vld [vmem:[#allocation54 + $0x188] sm:$0xff]
    %v7011 = vld [vmem:[#allocation54 + $0x190] sm:$0xff]
    %v7012 = vld [vmem:[#allocation54 + $0x198] sm:$0xff]
    %v7013 = vld [vmem:[#allocation54 + $0x1a0] sm:$0xff]
    %v7014 = vld [vmem:[#allocation54 + $0x1a8] sm:$0xff]
    %v7015 = vld [vmem:[#allocation54 + $0x1b0] sm:$0xff]
    %v7016 = vld [vmem:[#allocation54 + $0x1b8] sm:$0xff]
    %v7017 = vld [vmem:[#allocation54 + $0x1c0] sm:$0xff]
    %v7018 = vld [vmem:[#allocation54 + $0x1c8] sm:$0xff]
    %v7019 = vld [vmem:[#allocation54 + $0x1d0] sm:$0xff]
    %v7020 = vld [vmem:[#allocation54 + $0x1d8] sm:$0xff]
    %v7021 = vld [vmem:[#allocation54 + $0x1e0] sm:$0xff]
    %v7022 = vld [vmem:[#allocation54 + $0x1e8] sm:$0xff]
    %v7023 = vld [vmem:[#allocation54 + $0x1f0] sm:$0xff]
    %v7024 = vld [vmem:[#allocation54 + $0x1f8] sm:$0xff]
    %v7025 = vld [vmem:[#allocation54 + $0x200] sm:$0xff]
    %v7026 = vld [vmem:[#allocation54 + $0x208] sm:$0xff]
    %v7027 = vld [vmem:[#allocation54 + $0x210] sm:$0xff]
    %v7028 = vld [vmem:[#allocation54 + $0x218] sm:$0xff]
    %v7029 = vld [vmem:[#allocation54 + $0x220] sm:$0xff]
    %v7030 = vld [vmem:[#allocation54 + $0x228] sm:$0xff]
    %v7031 = vld [vmem:[#allocation54 + $0x230] sm:$0xff]
    %v7032 = vld [vmem:[#allocation54 + $0x238] sm:$0xff]
    %v7033 = vld [vmem:[#allocation54 + $0x240] sm:$0xff]
    %v7034 = vld [vmem:[#allocation54 + $0x248] sm:$0xff]
    %v7035 = vld [vmem:[#allocation54 + $0x250] sm:$0xff]
    %v7036 = vld [vmem:[#allocation54 + $0x258] sm:$0xff]
    %v7037 = vld [vmem:[#allocation54 + $0x260] sm:$0xff]
    %v7038 = vld [vmem:[#allocation54 + $0x268] sm:$0xff]
    %v7039 = vld [vmem:[#allocation54 + $0x270] sm:$0xff]
    %v7040 = vld [vmem:[#allocation54 + $0x278] sm:$0xff]
    %v7041 = vld [vmem:[#allocation54 + $0x280] sm:$0xff]
    %v7042 = vld [vmem:[#allocation54 + $0x288] sm:$0xff]
    %v7043 = vld [vmem:[#allocation54 + $0x290] sm:$0xff]
    %v7044 = vld [vmem:[#allocation54 + $0x298] sm:$0xff]
    %v7045 = vld [vmem:[#allocation54 + $0x2a0] sm:$0xff]
    %v7046 = vld [vmem:[#allocation54 + $0x2a8] sm:$0xff]
    %v7047 = vld [vmem:[#allocation54 + $0x2b0] sm:$0xff]
    %v7048 = vld [vmem:[#allocation54 + $0x2b8] sm:$0xff]
    %v7049 = vld [vmem:[#allocation54 + $0x2c0] sm:$0xff]
    %v7050 = vld [vmem:[#allocation54 + $0x2c8] sm:$0xff]
    %v7051 = vld [vmem:[#allocation54 + $0x2d0] sm:$0xff]
    %v7052 = vld [vmem:[#allocation54 + $0x2d8] sm:$0xff]
    %v7053 = vld [vmem:[#allocation54 + $0x2e0] sm:$0xff]
    %v7054 = vld [vmem:[#allocation54 + $0x2e8] sm:$0xff]
    %v7055 = vld [vmem:[#allocation54 + $0x2f0] sm:$0xff]
    %v7056 = vld [vmem:[#allocation54 + $0x2f8] sm:$0xff]
    %v7057 = vpack.c.bf16 %v6960, %v6959
    %v7058 = vld [vmem:[%s111] sm:$0xff]
    %v7059 = vld [vmem:[%s111 + $0x8] sm:$0xf]
    %v7062 = vlaneseq
    %v7063 = vshrl.u32 %v7062, 7
    %v7064 = vsub.s32 0, %v7063
    %v7065 = vrot.slane %v7058, %v7064
    %v7066 = vlaneseq
    %v7067 = vshrl.u32 %v7066, 7
    %v7068 = vsub.s32 1, %v7067
    %v7069 = vrot.slane %v7058, %v7068
    %v7070 = vlaneseq
    %v7071 = vshrl.u32 %v7070, 7
    %v7072 = vsub.s32 2, %v7071
    %v7073 = vrot.slane %v7058, %v7072
    %v7074 = vlaneseq
    %v7075 = vshrl.u32 %v7074, 7
    %v7076 = vsub.s32 3, %v7075
    %v7077 = vrot.slane %v7058, %v7076
    %v7078 = vlaneseq
    %v7079 = vshrl.u32 %v7078, 7
    %v7080 = vsub.s32 4, %v7079
    %v7081 = vrot.slane %v7058, %v7080
    %v7082 = vlaneseq
    %v7083 = vshrl.u32 %v7082, 7
    %v7084 = vsub.s32 5, %v7083
    %v7085 = vrot.slane %v7058, %v7084
    %v7086 = vlaneseq
    %v7087 = vshrl.u32 %v7086, 7
    %v7088 = vsub.s32 6, %v7087
    %v7089 = vrot.slane %v7058, %v7088
    %v7090 = vlaneseq
    %v7091 = vshrl.u32 %v7090, 7
    %v7092 = vsub.s32 7, %v7091
    %v7093 = vrot.slane %v7058, %v7092
    %v7094 = vlaneseq
    %v7095 = vshrl.u32 %v7094, 7
    %v7096 = vsub.s32 0, %v7095
    %v7097 = vrot.slane %v7059, %v7096
    %v7098 = vlaneseq
    %v7099 = vshrl.u32 %v7098, 7
    %v7100 = vsub.s32 1, %v7099
    %v7101 = vrot.slane %v7059, %v7100
    %v7102 = vlaneseq
    %v7103 = vshrl.u32 %v7102, 7
    %v7104 = vsub.s32 2, %v7103
    %v7105 = vrot.slane %v7059, %v7104
    %v7106 = vlaneseq
    %v7107 = vshrl.u32 %v7106, 7
    %v7108 = vsub.s32 3, %v7107
    %v7109 = vrot.slane %v7059, %v7108
    %v7218 = vunpack.c.l.b16 %v6961
    %v7219 = vunpack.c.h.b16 %v6961
    %v7220 = vunpack.c.l.b16 %v6962
    %v7221 = vunpack.c.h.b16 %v6962
    %v7222 = vunpack.c.l.b16 %v6963
    %v7223 = vunpack.c.h.b16 %v6963
    %v7224 = vunpack.c.l.b16 %v6964
    %v7225 = vunpack.c.h.b16 %v6964
    %v7226 = vunpack.c.l.b16 %v6965
    %v7227 = vunpack.c.h.b16 %v6965
    %v7228 = vunpack.c.l.b16 %v6966
    %v7229 = vunpack.c.h.b16 %v6966
    %v7230 = vunpack.c.l.b16 %v6967
    %v7231 = vunpack.c.h.b16 %v6967
    %v7232 = vunpack.c.l.b16 %v6968
    %v7233 = vunpack.c.h.b16 %v6968
    %v7234 = vunpack.c.l.b16 %v6969
    %v7235 = vunpack.c.h.b16 %v6969
    %v7236 = vunpack.c.l.b16 %v6970
    %v7237 = vunpack.c.h.b16 %v6970
    %v7238 = vunpack.c.l.b16 %v6971
    %v7239 = vunpack.c.h.b16 %v6971
    %v7240 = vunpack.c.l.b16 %v6972
    %v7241 = vunpack.c.h.b16 %v6972
    %v7242 = vunpack.c.l.b16 %v6973
    %v7243 = vunpack.c.h.b16 %v6973
    %v7244 = vunpack.c.l.b16 %v6974
    %v7245 = vunpack.c.h.b16 %v6974
    %v7246 = vunpack.c.l.b16 %v6975
    %v7247 = vunpack.c.h.b16 %v6975
    %v7248 = vunpack.c.l.b16 %v6976
    %v7249 = vunpack.c.h.b16 %v6976
    %v7250 = vunpack.c.l.b16 %v6977
    %v7251 = vunpack.c.h.b16 %v6977
    %v7252 = vunpack.c.l.b16 %v6978
    %v7253 = vunpack.c.h.b16 %v6978
    %v7254 = vunpack.c.l.b16 %v6979
    %v7255 = vunpack.c.h.b16 %v6979
    %v7256 = vunpack.c.l.b16 %v6980
    %v7257 = vunpack.c.h.b16 %v6980
    %v7258 = vunpack.c.l.b16 %v6981
    %v7259 = vunpack.c.h.b16 %v6981
    %v7260 = vunpack.c.l.b16 %v6982
    %v7261 = vunpack.c.h.b16 %v6982
    %v7262 = vunpack.c.l.b16 %v6983
    %v7263 = vunpack.c.h.b16 %v6983
    %v7264 = vunpack.c.l.b16 %v6984
    %v7265 = vunpack.c.h.b16 %v6984
    %v7266 = vunpack.c.l.b16 %v6985
    %v7267 = vunpack.c.h.b16 %v6985
    %v7268 = vunpack.c.l.b16 %v6986
    %v7269 = vunpack.c.h.b16 %v6986
    %v7270 = vunpack.c.l.b16 %v6987
    %v7271 = vunpack.c.h.b16 %v6987
    %v7272 = vunpack.c.l.b16 %v6988
    %v7273 = vunpack.c.h.b16 %v6988
    %v7274 = vunpack.c.l.b16 %v6989
    %v7275 = vunpack.c.h.b16 %v6989
    %v7276 = vunpack.c.l.b16 %v6990
    %v7277 = vunpack.c.h.b16 %v6990
    %v7278 = vunpack.c.l.b16 %v6991
    %v7279 = vunpack.c.h.b16 %v6991
    %v7280 = vunpack.c.l.b16 %v6992
    %v7281 = vunpack.c.h.b16 %v6992
    %v7282 = vunpack.c.l.b16 %v6993
    %v7283 = vunpack.c.h.b16 %v6993
    %v7284 = vunpack.c.l.b16 %v6994
    %v7285 = vunpack.c.h.b16 %v6994
    %v7286 = vunpack.c.l.b16 %v6995
    %v7287 = vunpack.c.h.b16 %v6995
    %v7288 = vunpack.c.l.b16 %v6996
    %v7289 = vunpack.c.h.b16 %v6996
    %v7290 = vunpack.c.l.b16 %v6997
    %v7291 = vunpack.c.h.b16 %v6997
    %v7292 = vunpack.c.l.b16 %v6998
    %v7293 = vunpack.c.h.b16 %v6998
    %v7294 = vunpack.c.l.b16 %v6999
    %v7295 = vunpack.c.h.b16 %v6999
    %v7296 = vunpack.c.l.b16 %v7000
    %v7297 = vunpack.c.h.b16 %v7000
    %v7298 = vunpack.c.l.b16 %v7001
    %v7299 = vunpack.c.h.b16 %v7001
    %v7300 = vunpack.c.l.b16 %v7002
    %v7301 = vunpack.c.h.b16 %v7002
    %v7302 = vunpack.c.l.b16 %v7003
    %v7303 = vunpack.c.h.b16 %v7003
    %v7304 = vunpack.c.l.b16 %v7004
    %v7305 = vunpack.c.h.b16 %v7004
    %v7306 = vunpack.c.l.b16 %v7005
    %v7307 = vunpack.c.h.b16 %v7005
    %v7308 = vunpack.c.l.b16 %v7006
    %v7309 = vunpack.c.h.b16 %v7006
    %v7310 = vunpack.c.l.b16 %v7007
    %v7311 = vunpack.c.h.b16 %v7007
    %v7312 = vunpack.c.l.b16 %v7008
    %v7313 = vunpack.c.h.b16 %v7008
    %v7314 = vunpack.c.l.b16 %v7009
    %v7315 = vunpack.c.h.b16 %v7009
    %v7316 = vunpack.c.l.b16 %v7010
    %v7317 = vunpack.c.h.b16 %v7010
    %v7318 = vunpack.c.l.b16 %v7011
    %v7319 = vunpack.c.h.b16 %v7011
    %v7320 = vunpack.c.l.b16 %v7012
    %v7321 = vunpack.c.h.b16 %v7012
    %v7322 = vunpack.c.l.b16 %v7013
    %v7323 = vunpack.c.h.b16 %v7013
    %v7324 = vunpack.c.l.b16 %v7014
    %v7325 = vunpack.c.h.b16 %v7014
    %v7326 = vunpack.c.l.b16 %v7015
    %v7327 = vunpack.c.h.b16 %v7015
    %v7328 = vunpack.c.l.b16 %v7016
    %v7329 = vunpack.c.h.b16 %v7016
    %v7330 = vunpack.c.l.b16 %v7017
    %v7331 = vunpack.c.h.b16 %v7017
    %v7332 = vunpack.c.l.b16 %v7018
    %v7333 = vunpack.c.h.b16 %v7018
    %v7334 = vunpack.c.l.b16 %v7019
    %v7335 = vunpack.c.h.b16 %v7019
    %v7336 = vunpack.c.l.b16 %v7020
    %v7337 = vunpack.c.h.b16 %v7020
    %v7338 = vunpack.c.l.b16 %v7021
    %v7339 = vunpack.c.h.b16 %v7021
    %v7340 = vunpack.c.l.b16 %v7022
    %v7341 = vunpack.c.h.b16 %v7022
    %v7342 = vunpack.c.l.b16 %v7023
    %v7343 = vunpack.c.h.b16 %v7023
    %v7344 = vunpack.c.l.b16 %v7024
    %v7345 = vunpack.c.h.b16 %v7024
    %v7346 = vunpack.c.l.b16 %v7025
    %v7347 = vunpack.c.h.b16 %v7025
    %v7348 = vunpack.c.l.b16 %v7026
    %v7349 = vunpack.c.h.b16 %v7026
    %v7350 = vunpack.c.l.b16 %v7027
    %v7351 = vunpack.c.h.b16 %v7027
    %v7352 = vunpack.c.l.b16 %v7028
    %v7353 = vunpack.c.h.b16 %v7028
    %v7354 = vunpack.c.l.b16 %v7029
    %v7355 = vunpack.c.h.b16 %v7029
    %v7356 = vunpack.c.l.b16 %v7030
    %v7357 = vunpack.c.h.b16 %v7030
    %v7358 = vunpack.c.l.b16 %v7031
    %v7359 = vunpack.c.h.b16 %v7031
    %v7360 = vunpack.c.l.b16 %v7032
    %v7361 = vunpack.c.h.b16 %v7032
    %v7362 = vunpack.c.l.b16 %v7033
    %v7363 = vunpack.c.h.b16 %v7033
    %v7364 = vunpack.c.l.b16 %v7034
    %v7365 = vunpack.c.h.b16 %v7034
    %v7366 = vunpack.c.l.b16 %v7035
    %v7367 = vunpack.c.h.b16 %v7035
    %v7368 = vunpack.c.l.b16 %v7036
    %v7369 = vunpack.c.h.b16 %v7036
    %v7370 = vunpack.c.l.b16 %v7037
    %v7371 = vunpack.c.h.b16 %v7037
    %v7372 = vunpack.c.l.b16 %v7038
    %v7373 = vunpack.c.h.b16 %v7038
    %v7374 = vunpack.c.l.b16 %v7039
    %v7375 = vunpack.c.h.b16 %v7039
    %v7376 = vunpack.c.l.b16 %v7040
    %v7377 = vunpack.c.h.b16 %v7040
    %v7378 = vunpack.c.l.b16 %v7041
    %v7379 = vunpack.c.h.b16 %v7041
    %v7380 = vunpack.c.l.b16 %v7042
    %v7381 = vunpack.c.h.b16 %v7042
    %v7382 = vunpack.c.l.b16 %v7043
    %v7383 = vunpack.c.h.b16 %v7043
    %v7384 = vunpack.c.l.b16 %v7044
    %v7385 = vunpack.c.h.b16 %v7044
    %v7386 = vunpack.c.l.b16 %v7045
    %v7387 = vunpack.c.h.b16 %v7045
    %v7388 = vunpack.c.l.b16 %v7046
    %v7389 = vunpack.c.h.b16 %v7046
    %v7390 = vunpack.c.l.b16 %v7047
    %v7391 = vunpack.c.h.b16 %v7047
    %v7392 = vunpack.c.l.b16 %v7048
    %v7393 = vunpack.c.h.b16 %v7048
    %v7394 = vunpack.c.l.b16 %v7049
    %v7395 = vunpack.c.h.b16 %v7049
    %v7396 = vunpack.c.l.b16 %v7050
    %v7397 = vunpack.c.h.b16 %v7050
    %v7398 = vunpack.c.l.b16 %v7051
    %v7399 = vunpack.c.h.b16 %v7051
    %v7400 = vunpack.c.l.b16 %v7052
    %v7401 = vunpack.c.h.b16 %v7052
    %v7402 = vunpack.c.l.b16 %v7053
    %v7403 = vunpack.c.h.b16 %v7053
    %v7404 = vunpack.c.l.b16 %v7054
    %v7405 = vunpack.c.h.b16 %v7054
    %v7406 = vunpack.c.l.b16 %v7055
    %v7407 = vunpack.c.h.b16 %v7055
    %v7408 = vunpack.c.l.b16 %v7056
    %v7409 = vunpack.c.h.b16 %v7056
    %v7410 = vpack.c.b16 %v7230, %v7218
    %v7411 = vpack.c.b16 %v7231, %v7219
    %v7412 = vpack.c.b16 %v7232, %v7220
    %v7413 = vpack.c.b16 %v7233, %v7221
    %v7414 = vpack.c.b16 %v7234, %v7222
    %v7415 = vpack.c.b16 %v7235, %v7223
    %v7416 = vpack.c.b16 %v7236, %v7224
    %v7417 = vpack.c.b16 %v7237, %v7225
    %v7418 = vpack.c.b16 %v7238, %v7226
    %v7419 = vpack.c.b16 %v7239, %v7227
    %v7420 = vpack.c.b16 %v7240, %v7228
    %v7421 = vpack.c.b16 %v7241, %v7229
    %v7422 = vpack.c.b16 %v7254, %v7242
    %v7423 = vpack.c.b16 %v7255, %v7243
    %v7424 = vpack.c.b16 %v7256, %v7244
    %v7425 = vpack.c.b16 %v7257, %v7245
    %v7426 = vpack.c.b16 %v7258, %v7246
    %v7427 = vpack.c.b16 %v7259, %v7247
    %v7428 = vpack.c.b16 %v7260, %v7248
    %v7429 = vpack.c.b16 %v7261, %v7249
    %v7430 = vpack.c.b16 %v7262, %v7250
    %v7431 = vpack.c.b16 %v7263, %v7251
    %v7432 = vpack.c.b16 %v7264, %v7252
    %v7433 = vpack.c.b16 %v7265, %v7253
    %v7434 = vpack.c.b16 %v7278, %v7266
    %v7435 = vpack.c.b16 %v7279, %v7267
    %v7436 = vpack.c.b16 %v7280, %v7268
    %v7437 = vpack.c.b16 %v7281, %v7269
    %v7438 = vpack.c.b16 %v7282, %v7270
    %v7439 = vpack.c.b16 %v7283, %v7271
    %v7440 = vpack.c.b16 %v7284, %v7272
    %v7441 = vpack.c.b16 %v7285, %v7273
    %v7442 = vpack.c.b16 %v7286, %v7274
    %v7443 = vpack.c.b16 %v7287, %v7275
    %v7444 = vpack.c.b16 %v7288, %v7276
    %v7445 = vpack.c.b16 %v7289, %v7277
    %v7446 = vpack.c.b16 %v7302, %v7290
    %v7447 = vpack.c.b16 %v7303, %v7291
    %v7448 = vpack.c.b16 %v7304, %v7292
    %v7449 = vpack.c.b16 %v7305, %v7293
    %v7450 = vpack.c.b16 %v7306, %v7294
    %v7451 = vpack.c.b16 %v7307, %v7295
    %v7452 = vpack.c.b16 %v7308, %v7296
    %v7453 = vpack.c.b16 %v7309, %v7297
    %v7454 = vpack.c.b16 %v7310, %v7298
    %v7455 = vpack.c.b16 %v7311, %v7299
    %v7456 = vpack.c.b16 %v7312, %v7300
    %v7457 = vpack.c.b16 %v7313, %v7301
    %v7458 = vpack.c.b16 %v7326, %v7314
    %v7459 = vpack.c.b16 %v7327, %v7315
    %v7460 = vpack.c.b16 %v7328, %v7316
    %v7461 = vpack.c.b16 %v7329, %v7317
    %v7462 = vpack.c.b16 %v7330, %v7318
    %v7463 = vpack.c.b16 %v7331, %v7319
    %v7464 = vpack.c.b16 %v7332, %v7320
    %v7465 = vpack.c.b16 %v7333, %v7321
    %v7466 = vpack.c.b16 %v7334, %v7322
    %v7467 = vpack.c.b16 %v7335, %v7323
    %v7468 = vpack.c.b16 %v7336, %v7324
    %v7469 = vpack.c.b16 %v7337, %v7325
    %v7470 = vpack.c.b16 %v7350, %v7338
    %v7471 = vpack.c.b16 %v7351, %v7339
    %v7472 = vpack.c.b16 %v7352, %v7340
    %v7473 = vpack.c.b16 %v7353, %v7341
    %v7474 = vpack.c.b16 %v7354, %v7342
    %v7475 = vpack.c.b16 %v7355, %v7343
    %v7476 = vpack.c.b16 %v7356, %v7344
    %v7477 = vpack.c.b16 %v7357, %v7345
    %v7478 = vpack.c.b16 %v7358, %v7346
    %v7479 = vpack.c.b16 %v7359, %v7347
    %v7480 = vpack.c.b16 %v7360, %v7348
    %v7481 = vpack.c.b16 %v7361, %v7349
    %v7482 = vpack.c.b16 %v7374, %v7362
    %v7483 = vpack.c.b16 %v7375, %v7363
    %v7484 = vpack.c.b16 %v7376, %v7364
    %v7485 = vpack.c.b16 %v7377, %v7365
    %v7486 = vpack.c.b16 %v7378, %v7366
    %v7487 = vpack.c.b16 %v7379, %v7367
    %v7488 = vpack.c.b16 %v7380, %v7368
    %v7489 = vpack.c.b16 %v7381, %v7369
    %v7490 = vpack.c.b16 %v7382, %v7370
    %v7491 = vpack.c.b16 %v7383, %v7371
    %v7492 = vpack.c.b16 %v7384, %v7372
    %v7493 = vpack.c.b16 %v7385, %v7373
    %v7494 = vpack.c.b16 %v7398, %v7386
    %v7495 = vpack.c.b16 %v7399, %v7387
    %v7496 = vpack.c.b16 %v7400, %v7388
    %v7497 = vpack.c.b16 %v7401, %v7389
    %v7498 = vpack.c.b16 %v7402, %v7390
    %v7499 = vpack.c.b16 %v7403, %v7391
    %v7500 = vpack.c.b16 %v7404, %v7392
    %v7501 = vpack.c.b16 %v7405, %v7393
    %v7502 = vpack.c.b16 %v7406, %v7394
    %v7503 = vpack.c.b16 %v7407, %v7395
    %v7504 = vpack.c.b16 %v7408, %v7396
    %v7505 = vpack.c.b16 %v7409, %v7397
    %7602 = vmatprep.subr.bf16.mxu0 %v7411
    %7603 = vmatpush1.bf16.msra.mxu0 %v7410
    %7604 = vmatprep.subr.bf16.mxu0 %v7423
    %7605 = vmatpush1.bf16.msra.mxu0 %v7422
    %7606 = vmatprep.subr.bf16.mxu0 %v7435
    %7607 = vmatpush1.bf16.msra.mxu0 %v7434
    %7608 = vmatprep.subr.bf16.mxu0 %v7447
    %7609 = vmatpush1.bf16.msra.mxu0 %v7446
    %7610 = vmatprep.subr.bf16.mxu0 %v7459
    %7611 = vmatpush1.bf16.msra.mxu0 %v7458
    %7612 = vmatprep.subr.bf16.mxu0 %v7471
    %7613 = vmatpush1.bf16.msra.mxu0 %v7470
    %7614 = vmatprep.subr.bf16.mxu0 %v7483
    %7615 = vmatpush1.bf16.msra.mxu0 %v7482
    %7616 = vmatprep.subr.bf16.mxu0 %v7495
    %7617 = vmatpush1.bf16.msra.mxu0 %v7494
    %7618 = vmatprep.subr.bf16.mxu0 0
    %7619 = vmatpush1.bf16.msra.mxu0 0
    %7620 = vmatprep.subr.bf16.mxu0 0
    %7621 = vmatpush1.bf16.msra.mxu0 0
    %7622 = vmatprep.subr.bf16.mxu0 0
    %7623 = vmatpush1.bf16.msra.mxu0 0
    %7624 = vmatprep.subr.bf16.mxu0 0
    %7625 = vmatpush1.bf16.msra.mxu0 0
    %7626 = vmatprep.subr.bf16.mxu0 0
    %7627 = vmatpush1.bf16.msra.mxu0 0
    %7628 = vmatprep.subr.bf16.mxu0 0
    %7629 = vmatpush1.bf16.msra.mxu0 0
    %7630 = vmatprep.subr.bf16.mxu0 0
    %7631 = vmatpush1.bf16.msra.mxu0 0
    %7632 = vmatprep.subr.bf16.mxu0 0
    %7633 = vmatpush1.bf16.msra.mxu0 0
    %7634 = vmatprep.mubr.bf16.mxu0 0
    %7635 = vmatmul.mubr.bf16.gmra.mrb[0].mxu0 %v7057
    %v7636 = vpop.f32.mrb[0].mxu0
    %v7637 = vadd.f32 %v7065, %v7636
    %v7638 = vpop.f32.mrb[0].mxu0
    %v7639 = vadd.f32 %v7069, %v7638
    %v7640 = vpop.f32.mrb[0].mxu0
    %v7641 = vadd.f32 %v7065, %v7640
    %v7642 = vpop.f32.mrb[0].mxu0
    %v7643 = vadd.f32 %v7069, %v7642
    %7644 = vdwg.mxu0
    %7645 = vmatprep.subr.bf16.mxu0 %v7413
    %7646 = vmatpush1.bf16.msra.mxu0 %v7412
    %7647 = vmatprep.subr.bf16.mxu0 %v7425
    %7648 = vmatpush1.bf16.msra.mxu0 %v7424
    %7649 = vmatprep.subr.bf16.mxu0 %v7437
    %7650 = vmatpush1.bf16.msra.mxu0 %v7436
    %7651 = vmatprep.subr.bf16.mxu0 %v7449
    %7652 = vmatpush1.bf16.msra.mxu0 %v7448
    %7653 = vmatprep.subr.bf16.mxu0 %v7461
    %7654 = vmatpush1.bf16.msra.mxu0 %v7460
    %7655 = vmatprep.subr.bf16.mxu0 %v7473
    %7656 = vmatpush1.bf16.msra.mxu0 %v7472
    %7657 = vmatprep.subr.bf16.mxu0 %v7485
    %7658 = vmatpush1.bf16.msra.mxu0 %v7484
    %7659 = vmatprep.subr.bf16.mxu0 %v7497
    %7660 = vmatpush1.bf16.msra.mxu0 %v7496
    %7661 = vmatprep.subr.bf16.mxu0 0
    %7662 = vmatpush1.bf16.msra.mxu0 0
    %7663 = vmatprep.subr.bf16.mxu0 0
    %7664 = vmatpush1.bf16.msra.mxu0 0
    %7665 = vmatprep.subr.bf16.mxu0 0
    %7666 = vmatpush1.bf16.msra.mxu0 0
    %7667 = vmatprep.subr.bf16.mxu0 0
    %7668 = vmatpush1.bf16.msra.mxu0 0
    %7669 = vmatprep.subr.bf16.mxu0 0
    %7670 = vmatpush1.bf16.msra.mxu0 0
    %7671 = vmatprep.subr.bf16.mxu0 0
    %7672 = vmatpush1.bf16.msra.mxu0 0
    %7673 = vmatprep.subr.bf16.mxu0 0
    %7674 = vmatpush1.bf16.msra.mxu0 0
    %7675 = vmatprep.subr.bf16.mxu0 0
    %7676 = vmatpush1.bf16.msra.mxu0 0
    %7677 = vmatprep.mubr.bf16.mxu0 0
    %7678 = vmatmul.mubr.bf16.gmra.mrb[0].mxu0 %v7057
    %v7679 = vpop.f32.mrb[0].mxu0
    %v7680 = vadd.f32 %v7073, %v7679
    %v7681 = vpop.f32.mrb[0].mxu0
    %v7682 = vadd.f32 %v7077, %v7681
    %v7683 = vpop.f32.mrb[0].mxu0
    %v7684 = vadd.f32 %v7073, %v7683
    %v7685 = vpop.f32.mrb[0].mxu0
    %v7686 = vadd.f32 %v7077, %v7685
    %7687 = vdwg.mxu0
    %7688 = vmatprep.subr.bf16.mxu0 %v7415
    %7689 = vmatpush1.bf16.msra.mxu0 %v7414
    %7690 = vmatprep.subr.bf16.mxu0 %v7427
    %7691 = vmatpush1.bf16.msra.mxu0 %v7426
    %7692 = vmatprep.subr.bf16.mxu0 %v7439
    %7693 = vmatpush1.bf16.msra.mxu0 %v7438
    %7694 = vmatprep.subr.bf16.mxu0 %v7451
    %7695 = vmatpush1.bf16.msra.mxu0 %v7450
    %7696 = vmatprep.subr.bf16.mxu0 %v7463
    %7697 = vmatpush1.bf16.msra.mxu0 %v7462
    %7698 = vmatprep.subr.bf16.mxu0 %v7475
    %7699 = vmatpush1.bf16.msra.mxu0 %v7474
    %7700 = vmatprep.subr.bf16.mxu0 %v7487
    %7701 = vmatpush1.bf16.msra.mxu0 %v7486
    %7702 = vmatprep.subr.bf16.mxu0 %v7499
    %7703 = vmatpush1.bf16.msra.mxu0 %v7498
    %7704 = vmatprep.subr.bf16.mxu0 0
    %7705 = vmatpush1.bf16.msra.mxu0 0
    %7706 = vmatprep.subr.bf16.mxu0 0
    %7707 = vmatpush1.bf16.msra.mxu0 0
    %7708 = vmatprep.subr.bf16.mxu0 0
    %7709 = vmatpush1.bf16.msra.mxu0 0
    %7710 = vmatprep.subr.bf16.mxu0 0
    %7711 = vmatpush1.bf16.msra.mxu0 0
    %7712 = vmatprep.subr.bf16.mxu0 0
    %7713 = vmatpush1.bf16.msra.mxu0 0
    %7714 = vmatprep.subr.bf16.mxu0 0
    %7715 = vmatpush1.bf16.msra.mxu0 0
    %7716 = vmatprep.subr.bf16.mxu0 0
    %7717 = vmatpush1.bf16.msra.mxu0 0
    %7718 = vmatprep.subr.bf16.mxu0 0
    %7719 = vmatpush1.bf16.msra.mxu0 0
    %7720 = vmatprep.mubr.bf16.mxu0 0
    %7721 = vmatmul.mubr.bf16.gmra.mrb[0].mxu0 %v7057
    %v7722 = vpop.f32.mrb[0].mxu0
    %v7723 = vadd.f32 %v7081, %v7722
    %v7724 = vpop.f32.mrb[0].mxu0
    %v7725 = vadd.f32 %v7085, %v7724
    %v7726 = vpop.f32.mrb[0].mxu0
    %v7727 = vadd.f32 %v7081, %v7726
    %v7728 = vpop.f32.mrb[0].mxu0
    %v7729 = vadd.f32 %v7085, %v7728
    %7730 = vdwg.mxu0
    %7731 = vmatprep.subr.bf16.mxu0 %v7417
    %7732 = vmatpush1.bf16.msra.mxu0 %v7416
    %7733 = vmatprep.subr.bf16.mxu0 %v7429
    %7734 = vmatpush1.bf16.msra.mxu0 %v7428
    %7735 = vmatprep.subr.bf16.mxu0 %v7441
    %7736 = vmatpush1.bf16.msra.mxu0 %v7440
    %7737 = vmatprep.subr.bf16.mxu0 %v7453
    %7738 = vmatpush1.bf16.msra.mxu0 %v7452
    %7739 = vmatprep.subr.bf16.mxu0 %v7465
    %7740 = vmatpush1.bf16.msra.mxu0 %v7464
    %7741 = vmatprep.subr.bf16.mxu0 %v7477
    %7742 = vmatpush1.bf16.msra.mxu0 %v7476
    %7743 = vmatprep.subr.bf16.mxu0 %v7489
    %7744 = vmatpush1.bf16.msra.mxu0 %v7488
    %7745 = vmatprep.subr.bf16.mxu0 %v7501
    %7746 = vmatpush1.bf16.msra.mxu0 %v7500
    %7747 = vmatprep.subr.bf16.mxu0 0
    %7748 = vmatpush1.bf16.msra.mxu0 0
    %7749 = vmatprep.subr.bf16.mxu0 0
    %7750 = vmatpush1.bf16.msra.mxu0 0
    %7751 = vmatprep.subr.bf16.mxu0 0
    %7752 = vmatpush1.bf16.msra.mxu0 0
    %7753 = vmatprep.subr.bf16.mxu0 0
    %7754 = vmatpush1.bf16.msra.mxu0 0
    %7755 = vmatprep.subr.bf16.mxu0 0
    %7756 = vmatpush1.bf16.msra.mxu0 0
    %7757 = vmatprep.subr.bf16.mxu0 0
    %7758 = vmatpush1.bf16.msra.mxu0 0
    %7759 = vmatprep.subr.bf16.mxu0 0
    %7760 = vmatpush1.bf16.msra.mxu0 0
    %7761 = vmatprep.subr.bf16.mxu0 0
    %7762 = vmatpush1.bf16.msra.mxu0 0
    %7763 = vmatprep.mubr.bf16.mxu0 0
    %7764 = vmatmul.mubr.bf16.gmra.mrb[0].mxu0 %v7057
    %v7765 = vpop.f32.mrb[0].mxu0
    %v7766 = vadd.f32 %v7089, %v7765
    %v7767 = vpop.f32.mrb[0].mxu0
    %v7768 = vadd.f32 %v7093, %v7767
    %v7769 = vpop.f32.mrb[0].mxu0
    %v7770 = vadd.f32 %v7089, %v7769
    %v7771 = vpop.f32.mrb[0].mxu0
    %v7772 = vadd.f32 %v7093, %v7771
    %7773 = vdwg.mxu0
    %7774 = vmatprep.subr.bf16.mxu0 %v7419
    %7775 = vmatpush1.bf16.msra.mxu0 %v7418
    %7776 = vmatprep.subr.bf16.mxu0 %v7431
    %7777 = vmatpush1.bf16.msra.mxu0 %v7430
    %7778 = vmatprep.subr.bf16.mxu0 %v7443
    %7779 = vmatpush1.bf16.msra.mxu0 %v7442
    %7780 = vmatprep.subr.bf16.mxu0 %v7455
    %7781 = vmatpush1.bf16.msra.mxu0 %v7454
    %7782 = vmatprep.subr.bf16.mxu0 %v7467
    %7783 = vmatpush1.bf16.msra.mxu0 %v7466
    %7784 = vmatprep.subr.bf16.mxu0 %v7479
    %7785 = vmatpush1.bf16.msra.mxu0 %v7478
    %7786 = vmatprep.subr.bf16.mxu0 %v7491
    %7787 = vmatpush1.bf16.msra.mxu0 %v7490
    %7788 = vmatprep.subr.bf16.mxu0 %v7503
    %7789 = vmatpush1.bf16.msra.mxu0 %v7502
    %7790 = vmatprep.subr.bf16.mxu0 0
    %7791 = vmatpush1.bf16.msra.mxu0 0
    %7792 = vmatprep.subr.bf16.mxu0 0
    %7793 = vmatpush1.bf16.msra.mxu0 0
    %7794 = vmatprep.subr.bf16.mxu0 0
    %7795 = vmatpush1.bf16.msra.mxu0 0
    %7796 = vmatprep.subr.bf16.mxu0 0
    %7797 = vmatpush1.bf16.msra.mxu0 0
    %7798 = vmatprep.subr.bf16.mxu0 0
    %7799 = vmatpush1.bf16.msra.mxu0 0
    %7800 = vmatprep.subr.bf16.mxu0 0
    %7801 = vmatpush1.bf16.msra.mxu0 0
    %7802 = vmatprep.subr.bf16.mxu0 0
    %7803 = vmatpush1.bf16.msra.mxu0 0
    %7804 = vmatprep.subr.bf16.mxu0 0
    %7805 = vmatpush1.bf16.msra.mxu0 0
    %7806 = vmatprep.mubr.bf16.mxu0 0
    %7807 = vmatmul.mubr.bf16.gmra.mrb[0].mxu0 %v7057
    %v7808 = vpop.f32.mrb[0].mxu0
    %v7809 = vadd.f32 %v7097, %v7808
    %v7810 = vpop.f32.mrb[0].mxu0
    %v7811 = vadd.f32 %v7101, %v7810
    %v7812 = vpop.f32.mrb[0].mxu0
    %v7813 = vadd.f32 %v7097, %v7812
    %v7814 = vpop.f32.mrb[0].mxu0
    %v7815 = vadd.f32 %v7101, %v7814
    %7816 = vdwg.mxu0
    %7817 = vmatprep.subr.bf16.mxu0 %v7421
    %7818 = vmatpush1.bf16.msra.mxu0 %v7420
    %7819 = vmatprep.subr.bf16.mxu0 %v7433
    %7820 = vmatpush1.bf16.msra.mxu0 %v7432
    %7821 = vmatprep.subr.bf16.mxu0 %v7445
    %7822 = vmatpush1.bf16.msra.mxu0 %v7444
    %7823 = vmatprep.subr.bf16.mxu0 %v7457
    %7824 = vmatpush1.bf16.msra.mxu0 %v7456
    %7825 = vmatprep.subr.bf16.mxu0 %v7469
    %7826 = vmatpush1.bf16.msra.mxu0 %v7468
    %7827 = vmatprep.subr.bf16.mxu0 %v7481
    %7828 = vmatpush1.bf16.msra.mxu0 %v7480
    %7829 = vmatprep.subr.bf16.mxu0 %v7493
    %7830 = vmatpush1.bf16.msra.mxu0 %v7492
    %7831 = vmatprep.subr.bf16.mxu0 %v7505
    %7832 = vmatpush1.bf16.msra.mxu0 %v7504
    %7833 = vmatprep.subr.bf16.mxu0 0
    %7834 = vmatpush1.bf16.msra.mxu0 0
    %7835 = vmatprep.subr.bf16.mxu0 0
    %7836 = vmatpush1.bf16.msra.mxu0 0
    %7837 = vmatprep.subr.bf16.mxu0 0
    %7838 = vmatpush1.bf16.msra.mxu0 0
    %7839 = vmatprep.subr.bf16.mxu0 0
    %7840 = vmatpush1.bf16.msra.mxu0 0
    %7841 = vmatprep.subr.bf16.mxu0 0
    %7842 = vmatpush1.bf16.msra.mxu0 0
    %7843 = vmatprep.subr.bf16.mxu0 0
    %7844 = vmatpush1.bf16.msra.mxu0 0
    %7845 = vmatprep.subr.bf16.mxu0 0
    %7846 = vmatpush1.bf16.msra.mxu0 0
    %7847 = vmatprep.subr.bf16.mxu0 0
    %7848 = vmatpush1.bf16.msra.mxu0 0
    %7849 = vmatprep.mubr.bf16.mxu0 0
    %7850 = vmatmul.mubr.bf16.gmra.mrb[0].mxu0 %v7057
    %v7851 = vpop.f32.mrb[0].mxu0
    %v7852 = vadd.f32 %v7105, %v7851
    %v7853 = vpop.f32.mrb[0].mxu0
    %v7854 = vadd.f32 %v7109, %v7853
    %v7855 = vpop.f32.mrb[0].mxu0
    %v7856 = vadd.f32 %v7105, %v7855
    %v7857 = vpop.f32.mrb[0].mxu0
    %v7858 = vadd.f32 %v7109, %v7857
    %7859 = vdwg.mxu0
    %v7860 = vld [vmem:[%s103] sm:$0x3f]
    %v7862 = vcombine.high %v7860, %v7860
    %v7864 = vunpack.c.l.s4 1983009808
    %v7865 = vunpack.c.0.s8 %v7864
    %v7866 = vlaneseq
    %v7867 = vshrl.u32 %v7866, 7
    %v7868 = vsub.s32 %v7865, %v7867
    %v7869 = vrot.slane %v7860, %v7868
    %v7871 = vunpack.c.l.s4 1983009808
    %v7872 = vunpack.c.0.s8 %v7871
    %v7873 = vlaneseq
    %v7874 = vshrl.u32 %v7873, 7
    %v7875 = vsub.s32 %v7872, %v7874
    %v7876 = vrot.slane %v7862, %v7875
    %v7877 = vcombine.high %v7869, %v7869
    %v7879 = vand.u32 %v7869, %v1514
    %v7882 = vand.u32 %v7877, %v1514
    %v7885 = vand.u32 %v7876, %v1514
    %7887 = vmatprep.subr.bf16.mxu0 %v7882
    %7888 = vmatpush1.bf16.msra.mxu0 %v7879
    %7889 = vmatprep.subr.bf16.mxu0 0
    %7890 = vmatpush1.bf16.msra.mxu0 0
    %7891 = vmatprep.subr.bf16.mxu0 0
    %7892 = vmatpush1.bf16.msra.mxu0 0
    %7893 = vmatprep.subr.bf16.mxu0 0
    %7894 = vmatpush1.bf16.msra.mxu0 0
    %7895 = vmatprep.subr.bf16.mxu0 0
    %7896 = vmatpush1.bf16.msra.mxu0 0
    %7897 = vmatprep.subr.bf16.mxu0 0
    %7898 = vmatpush1.bf16.msra.mxu0 0
    %7899 = vmatprep.subr.bf16.mxu0 0
    %7900 = vmatpush1.bf16.msra.mxu0 0
    %7901 = vmatprep.subr.bf16.mxu0 0
    %7902 = vmatpush1.bf16.msra.mxu0 0
    %7903 = vmatprep.subr.bf16.mxu0 0
    %7904 = vmatpush1.bf16.msra.mxu0 0
    %7905 = vmatprep.subr.bf16.mxu0 0
    %7906 = vmatpush1.bf16.msra.mxu0 0
    %7907 = vmatprep.subr.bf16.mxu0 0
    %7908 = vmatpush1.bf16.msra.mxu0 0
    %7909 = vmatprep.subr.bf16.mxu0 0
    %7910 = vmatpush1.bf16.msra.mxu0 0
    %7911 = vmatprep.subr.bf16.mxu0 0
    %7912 = vmatpush1.bf16.msra.mxu0 0
    %7913 = vmatprep.subr.bf16.mxu0 0
    %7914 = vmatpush1.bf16.msra.mxu0 0
    %7915 = vmatprep.subr.bf16.mxu0 0
    %7916 = vmatpush1.bf16.msra.mxu0 0
    %7917 = vmatprep.subr.bf16.mxu0 0
    %7918 = vmatpush1.bf16.msra.mxu0 0
    %7919 = vmatprep.mubr.bf16.mxu0 0
    %7920 = vmatmul.mubr.bf16.gmra.mrb[0].mxu0 %v5548
    %v7921 = vpop.f32.mrb[0].mxu0
    %v7922 = vadd.f32 0.0, %v7921
    %v7923 = vpop.f32.mrb[0].mxu0
    %v7924 = vadd.f32 0.0, %v7923
    %v7925 = vpop.f32.mrb[0].mxu0
    %v7926 = vadd.f32 0.0, %v7925
    %v7927 = vpop.f32.mrb[0].mxu0
    %v7928 = vadd.f32 0.0, %v7927
    %7929 = vmatprep.mubr.bf16.mxu0 0
    %7930 = vmatmul.mubr.bf16.gmra.mrb[0].mxu0 %v5551
    %v7931 = vpop.f32.mrb[0].mxu0
    %v7932 = vadd.f32 0.0, %v7931
    %v7933 = vpop.f32.mrb[0].mxu0
    %v7934 = vadd.f32 0.0, %v7933
    %v7935 = vpop.f32.mrb[0].mxu0
    %v7936 = vpop.f32.mrb[0].mxu0
    %7937 = vdwg.mxu0
    %7938 = vmatprep.subr.bf16.mxu0 0
    %7939 = vmatpush1.bf16.msra.mxu0 %v7885
    %7940 = vmatprep.subr.bf16.mxu0 0
    %7941 = vmatpush1.bf16.msra.mxu0 0
    %7942 = vmatprep.subr.bf16.mxu0 0
    %7943 = vmatpush1.bf16.msra.mxu0 0
    %7944 = vmatprep.subr.bf16.mxu0 0
    %7945 = vmatpush1.bf16.msra.mxu0 0
    %7946 = vmatprep.subr.bf16.mxu0 0
    %7947 = vmatpush1.bf16.msra.mxu0 0
    %7948 = vmatprep.subr.bf16.mxu0 0
    %7949 = vmatpush1.bf16.msra.mxu0 0
    %7950 = vmatprep.subr.bf16.mxu0 0
    %7951 = vmatpush1.bf16.msra.mxu0 0
    %7952 = vmatprep.subr.bf16.mxu0 0
    %7953 = vmatpush1.bf16.msra.mxu0 0
    %7954 = vmatprep.subr.bf16.mxu0 0
    %7955 = vmatpush1.bf16.msra.mxu0 0
    %7956 = vmatprep.subr.bf16.mxu0 0
    %7957 = vmatpush1.bf16.msra.mxu0 0
    %7958 = vmatprep.subr.bf16.mxu0 0
    %7959 = vmatpush1.bf16.msra.mxu0 0
    %7960 = vmatprep.subr.bf16.mxu0 0
    %7961 = vmatpush1.bf16.msra.mxu0 0
    %7962 = vmatprep.subr.bf16.mxu0 0
    %7963 = vmatpush1.bf16.msra.mxu0 0
    %7964 = vmatprep.subr.bf16.mxu0 0
    %7965 = vmatpush1.bf16.msra.mxu0 0
    %7966 = vmatprep.subr.bf16.mxu0 0
    %7967 = vmatpush1.bf16.msra.mxu0 0
    %7968 = vmatprep.subr.bf16.mxu0 0
    %7969 = vmatpush1.bf16.msra.mxu0 0
    %7970 = vmatprep.mubr.bf16.mxu0 0
    %7971 = vmatmul.mubr.bf16.gmra.mrb[0].mxu0 %v5548
    %v7972 = vpop.f32.mrb[0].mxu0
    %v7973 = vadd.f32 0.0, %v7972
    %v7974 = vpop.f32.mrb[0].mxu0
    %v7975 = vpop.f32.mrb[0].mxu0
    %v7976 = vadd.f32 0.0, %v7975
    %v7977 = vpop.f32.mrb[0].mxu0
    %7978 = vmatprep.mubr.bf16.mxu0 0
    %7979 = vmatmul.mubr.bf16.gmra.mrb[0].mxu0 %v5551
    %v7980 = vpop.f32.mrb[0].mxu0
    %v7981 = vadd.f32 0.0, %v7980
    %v7982 = vpop.f32.mrb[0].mxu0
    %v7983 = vpop.f32.mrb[0].mxu0
    %v7984 = vpop.f32.mrb[0].mxu0
    %7985 = vdwg.mxu0
    %v7986 = vpack.c.bf16 %v7641, %v7637
    %v7987 = vpack.c.bf16 %v7643, %v7639
    %v7988 = vpack.c.bf16 %v7684, %v7680
    %7989 = vmatprep.subr.bf16.mxu0 %v7987
    %7990 = vmatpush1.bf16.msra.mxu0 %v7986
    %7991 = vmatprep.subr.bf16.mxu0 0
    %7992 = vmatpush1.bf16.msra.mxu0 0
    %7993 = vmatprep.subr.bf16.mxu0 0
    %7994 = vmatpush1.bf16.msra.mxu0 0
    %7995 = vmatprep.subr.bf16.mxu0 0
    %7996 = vmatpush1.bf16.msra.mxu0 0
    %7997 = vmatprep.subr.bf16.mxu0 0
    %7998 = vmatpush1.bf16.msra.mxu0 0
    %7999 = vmatprep.subr.bf16.mxu0 0
    %8000 = vmatpush1.bf16.msra.mxu0 0
    %8001 = vmatprep.subr.bf16.mxu0 0
    %8002 = vmatpush1.bf16.msra.mxu0 0
    %8003 = vmatprep.subr.bf16.mxu0 0
    %8004 = vmatpush1.bf16.msra.mxu0 0
    %8005 = vmatprep.subr.bf16.mxu0 0
    %8006 = vmatpush1.bf16.msra.mxu0 0
    %8007 = vmatprep.subr.bf16.mxu0 0
    %8008 = vmatpush1.bf16.msra.mxu0 0
    %8009 = vmatprep.subr.bf16.mxu0 0
    %8010 = vmatpush1.bf16.msra.mxu0 0
    %8011 = vmatprep.subr.bf16.mxu0 0
    %8012 = vmatpush1.bf16.msra.mxu0 0
    %8013 = vmatprep.subr.bf16.mxu0 0
    %8014 = vmatpush1.bf16.msra.mxu0 0
    %8015 = vmatprep.subr.bf16.mxu0 0
    %8016 = vmatpush1.bf16.msra.mxu0 0
    %8017 = vmatprep.subr.bf16.mxu0 0
    %8018 = vmatpush1.bf16.msra.mxu0 0
    %8019 = vmatprep.subr.bf16.mxu0 0
    %8020 = vmatpush1.bf16.msra.mxu0 0
    %8021 = vmatprep.mubr.bf16.mxu0 0
    %8022 = vmatmul.mubr.bf16.gmra.mrb[0].mxu0 %v854
    %v8023 = vpop.f32.mrb[0].mxu0
    %v8024 = vadd.f32 0.0, %v8023
    %v8025 = vpop.f32.mrb[0].mxu0
    %v8026 = vadd.f32 0.0, %v8025
    %v8027 = vpop.f32.mrb[0].mxu0
    %v8028 = vadd.f32 0.0, %v8027
    %v8029 = vpop.f32.mrb[0].mxu0
    %v8030 = vadd.f32 0.0, %v8029
    %8031 = vmatprep.mubr.bf16.mxu0 0
    %8032 = vmatmul.mubr.bf16.gmra.mrb[0].mxu0 %v857
    %v8033 = vpop.f32.mrb[0].mxu0
    %v8034 = vadd.f32 0.0, %v8033
    %v8035 = vpop.f32.mrb[0].mxu0
    %v8036 = vadd.f32 0.0, %v8035
    %v8037 = vpop.f32.mrb[0].mxu0
    %v8038 = vpop.f32.mrb[0].mxu0
    %8039 = vdwg.mxu0
    %8040 = vmatprep.subr.bf16.mxu0 0
    %8041 = vmatpush1.bf16.msra.mxu0 %v7988
    %8042 = vmatprep.subr.bf16.mxu0 0
    %8043 = vmatpush1.bf16.msra.mxu0 0
    %8044 = vmatprep.subr.bf16.mxu0 0
    %8045 = vmatpush1.bf16.msra.mxu0 0
    %8046 = vmatprep.subr.bf16.mxu0 0
    %8047 = vmatpush1.bf16.msra.mxu0 0
    %8048 = vmatprep.subr.bf16.mxu0 0
    %8049 = vmatpush1.bf16.msra.mxu0 0
    %8050 = vmatprep.subr.bf16.mxu0 0
    %8051 = vmatpush1.bf16.msra.mxu0 0
    %8052 = vmatprep.subr.bf16.mxu0 0
    %8053 = vmatpush1.bf16.msra.mxu0 0
    %8054 = vmatprep.subr.bf16.mxu0 0
    %8055 = vmatpush1.bf16.msra.mxu0 0
    %8056 = vmatprep.subr.bf16.mxu0 0
    %8057 = vmatpush1.bf16.msra.mxu0 0
    %8058 = vmatprep.subr.bf16.mxu0 0
    %8059 = vmatpush1.bf16.msra.mxu0 0
    %8060 = vmatprep.subr.bf16.mxu0 0
    %8061 = vmatpush1.bf16.msra.mxu0 0
    %8062 = vmatprep.subr.bf16.mxu0 0
    %8063 = vmatpush1.bf16.msra.mxu0 0
    %8064 = vmatprep.subr.bf16.mxu0 0
    %8065 = vmatpush1.bf16.msra.mxu0 0
    %8066 = vmatprep.subr.bf16.mxu0 0
    %8067 = vmatpush1.bf16.msra.mxu0 0
    %8068 = vmatprep.subr.bf16.mxu0 0
    %8069 = vmatpush1.bf16.msra.mxu0 0
    %8070 = vmatprep.subr.bf16.mxu0 0
    %8071 = vmatpush1.bf16.msra.mxu0 0
    %8072 = vmatprep.mubr.bf16.mxu0 0
    %8073 = vmatmul.mubr.bf16.gmra.mrb[0].mxu0 %v854
    %v8074 = vpop.f32.mrb[0].mxu0
    %v8075 = vadd.f32 0.0, %v8074
    %v8076 = vpop.f32.mrb[0].mxu0
    %v8077 = vpop.f32.mrb[0].mxu0
    %v8078 = vadd.f32 0.0, %v8077
    %v8079 = vpop.f32.mrb[0].mxu0
    %8080 = vmatprep.mubr.bf16.mxu0 0
    %8081 = vmatmul.mubr.bf16.gmra.mrb[0].mxu0 %v857
    %v8082 = vpop.f32.mrb[0].mxu0
    %v8083 = vadd.f32 0.0, %v8082
    %v8084 = vpop.f32.mrb[0].mxu0
    %v8085 = vpop.f32.mrb[0].mxu0
    %v8086 = vpop.f32.mrb[0].mxu0
    %8087 = vdwg.mxu0
    %v8088 = vpack.c.bf16 %v7686, %v7682
    %v8089 = vpack.c.bf16 %v7727, %v7723
    %v8090 = vpack.c.bf16 %v7729, %v7725
    %8091 = vmatprep.subr.bf16.mxu0 %v8089
    %8092 = vmatpush1.bf16.msra.mxu0 %v8088
    %8093 = vmatprep.subr.bf16.mxu0 0
    %8094 = vmatpush1.bf16.msra.mxu0 0
    %8095 = vmatprep.subr.bf16.mxu0 0
    %8096 = vmatpush1.bf16.msra.mxu0 0
    %8097 = vmatprep.subr.bf16.mxu0 0
    %8098 = vmatpush1.bf16.msra.mxu0 0
    %8099 = vmatprep.subr.bf16.mxu0 0
    %8100 = vmatpush1.bf16.msra.mxu0 0
    %8101 = vmatprep.subr.bf16.mxu0 0
    %8102 = vmatpush1.bf16.msra.mxu0 0
    %8103 = vmatprep.subr.bf16.mxu0 0
    %8104 = vmatpush1.bf16.msra.mxu0 0
    %8105 = vmatprep.subr.bf16.mxu0 0
    %8106 = vmatpush1.bf16.msra.mxu0 0
    %8107 = vmatprep.subr.bf16.mxu0 0
    %8108 = vmatpush1.bf16.msra.mxu0 0
    %8109 = vmatprep.subr.bf16.mxu0 0
    %8110 = vmatpush1.bf16.msra.mxu0 0
    %8111 = vmatprep.subr.bf16.mxu0 0
    %8112 = vmatpush1.bf16.msra.mxu0 0
    %8113 = vmatprep.subr.bf16.mxu0 0
    %8114 = vmatpush1.bf16.msra.mxu0 0
    %8115 = vmatprep.subr.bf16.mxu0 0
    %8116 = vmatpush1.bf16.msra.mxu0 0
    %8117 = vmatprep.subr.bf16.mxu0 0
    %8118 = vmatpush1.bf16.msra.mxu0 0
    %8119 = vmatprep.subr.bf16.mxu0 0
    %8120 = vmatpush1.bf16.msra.mxu0 0
    %8121 = vmatprep.subr.bf16.mxu0 0
    %8122 = vmatpush1.bf16.msra.mxu0 0
    %8123 = vmatprep.mubr.bf16.mxu0 0
    %8124 = vmatmul.mubr.bf16.gmra.mrb[0].mxu0 %v5775
    %v8125 = vpop.f32.mrb[0].mxu0
    %v8126 = vadd.f32 %v7922, %v8125
    %v8127 = vpop.f32.mrb[0].mxu0
    %v8128 = vadd.f32 %v7924, %v8127
    %v8129 = vpop.f32.mrb[0].mxu0
    %v8130 = vadd.f32 %v7926, %v8129
    %v8131 = vpop.f32.mrb[0].mxu0
    %v8132 = vadd.f32 %v7928, %v8131
    %8133 = vmatprep.mubr.bf16.mxu0 0
    %8134 = vmatmul.mubr.bf16.gmra.mrb[0].mxu0 %v5778
    %v8135 = vpop.f32.mrb[0].mxu0
    %v8136 = vadd.f32 %v7932, %v8135
    %v8137 = vpop.f32.mrb[0].mxu0
    %v8138 = vadd.f32 %v7934, %v8137
    %v8139 = vpop.f32.mrb[0].mxu0
    %v8140 = vpop.f32.mrb[0].mxu0
    %8141 = vdwg.mxu0
    %8142 = vmatprep.subr.bf16.mxu0 0
    %8143 = vmatpush1.bf16.msra.mxu0 %v8090
    %8144 = vmatprep.subr.bf16.mxu0 0
    %8145 = vmatpush1.bf16.msra.mxu0 0
    %8146 = vmatprep.subr.bf16.mxu0 0
    %8147 = vmatpush1.bf16.msra.mxu0 0
    %8148 = vmatprep.subr.bf16.mxu0 0
    %8149 = vmatpush1.bf16.msra.mxu0 0
    %8150 = vmatprep.subr.bf16.mxu0 0
    %8151 = vmatpush1.bf16.msra.mxu0 0
    %8152 = vmatprep.subr.bf16.mxu0 0
    %8153 = vmatpush1.bf16.msra.mxu0 0
    %8154 = vmatprep.subr.bf16.mxu0 0
    %8155 = vmatpush1.bf16.msra.mxu0 0
    %8156 = vmatprep.subr.bf16.mxu0 0
    %8157 = vmatpush1.bf16.msra.mxu0 0
    %8158 = vmatprep.subr.bf16.mxu0 0
    %8159 = vmatpush1.bf16.msra.mxu0 0
    %8160 = vmatprep.subr.bf16.mxu0 0
    %8161 = vmatpush1.bf16.msra.mxu0 0
    %8162 = vmatprep.subr.bf16.mxu0 0
    %8163 = vmatpush1.bf16.msra.mxu0 0
    %8164 = vmatprep.subr.bf16.mxu0 0
    %8165 = vmatpush1.bf16.msra.mxu0 0
    %8166 = vmatprep.subr.bf16.mxu0 0
    %8167 = vmatpush1.bf16.msra.mxu0 0
    %8168 = vmatprep.subr.bf16.mxu0 0
    %8169 = vmatpush1.bf16.msra.mxu0 0
    %8170 = vmatprep.subr.bf16.mxu0 0
    %8171 = vmatpush1.bf16.msra.mxu0 0
    %8172 = vmatprep.subr.bf16.mxu0 0
    %8173 = vmatpush1.bf16.msra.mxu0 0
    %8174 = vmatprep.mubr.bf16.mxu0 0
    %8175 = vmatmul.mubr.bf16.gmra.mrb[0].mxu0 %v5775
    %v8176 = vpop.f32.mrb[0].mxu0
    %v8177 = vadd.f32 %v7973, %v8176
    %v8178 = vpop.f32.mrb[0].mxu0
    %v8179 = vpop.f32.mrb[0].mxu0
    %v8180 = vadd.f32 %v7976, %v8179
    %v8181 = vpop.f32.mrb[0].mxu0
    %8182 = vmatprep.mubr.bf16.mxu0 0
    %8183 = vmatmul.mubr.bf16.gmra.mrb[0].mxu0 %v5778
    %v8184 = vpop.f32.mrb[0].mxu0
    %v8185 = vadd.f32 %v7981, %v8184
    %v8186 = vpop.f32.mrb[0].mxu0
    %v8187 = vpop.f32.mrb[0].mxu0
    %v8188 = vpop.f32.mrb[0].mxu0
    %8189 = vdwg.mxu0
    %v8190 = vmul.f32 %v8024, %v8126
    %v8191 = vmul.f32 %v8026, %v8128
    %v8192 = vmul.f32 %v8075, %v8177
    %v8193 = vmul.f32 %v8028, %v8130
    %v8194 = vmul.f32 %v8030, %v8132
    %v8195 = vmul.f32 %v8078, %v8180
    %v8196 = vmul.f32 %v8034, %v8136
    %v8197 = vmul.f32 %v8036, %v8138
    %v8198 = vmul.f32 %v8083, %v8185
    %v8199 = vpack.c.bf16 %v8193, %v8190
    %v8200 = vpack.c.bf16 %v8194, %v8191
    %v8201 = vpack.c.bf16 %v8195, %v8192
    %v8202 = vpack.c.bf16 %v8196, %v8196
    %v8203 = vpack.c.bf16 %v8197, %v8197
    %v8204 = vpack.c.bf16 %v8198, %v8198
    %8205 = vmatprep.subr.bf16.mxu0 0
    %8206 = vmatpush1.bf16.msra.mxu0 %v5990
    %8207 = vmatprep.subr.bf16.mxu0 0
    %8208 = vmatpush1.bf16.msra.mxu0 %v5991
    %8209 = vmatprep.subr.bf16.mxu0 0
    %8210 = vmatpush1.bf16.msra.mxu0 %v5992
    %8211 = vmatprep.subr.bf16.mxu0 0
    %8212 = vmatpush1.bf16.msra.mxu0 %v5993
    %8213 = vmatprep.subr.bf16.mxu0 0
    %8214 = vmatpush1.bf16.msra.mxu0 %v5994
    %8215 = vmatprep.subr.bf16.mxu0 0
    %8216 = vmatpush1.bf16.msra.mxu0 %v5995
    %8217 = vmatprep.subr.bf16.mxu0 0
    %8218 = vmatpush1.bf16.msra.mxu0 %v5996
    %8219 = vmatprep.subr.bf16.mxu0 0
    %8220 = vmatpush1.bf16.msra.mxu0 %v5997
    %8221 = vmatprep.subr.bf16.mxu0 0
    %8222 = vmatpush1.bf16.msra.mxu0 %v5998
    %8223 = vmatprep.subr.bf16.mxu0 0
    %8224 = vmatpush1.bf16.msra.mxu0 %v5999
    %8225 = vmatprep.subr.bf16.mxu0 0
    %8226 = vmatpush1.bf16.msra.mxu0 %v6000
    %8227 = vmatprep.subr.bf16.mxu0 0
    %8228 = vmatpush1.bf16.msra.mxu0 %v6001
    %8229 = vmatprep.subr.bf16.mxu0 0
    %8230 = vmatpush1.bf16.msra.mxu0 %v6002
    %8231 = vmatprep.subr.bf16.mxu0 0
    %8232 = vmatpush1.bf16.msra.mxu0 %v6003
    %8233 = vmatprep.subr.bf16.mxu0 0
    %8234 = vmatpush1.bf16.msra.mxu0 %v6004
    %8235 = vmatprep.subr.bf16.mxu0 0
    %8236 = vmatpush1.bf16.msra.mxu0 %v6005
    %8237 = vmatprep.mubr.bf16.mxu0 %v8200
    %8238 = vmatmul.mubr.bf16.gmra.mrb[0].mxu0 %v8199
    %v8239 = vpop.f32.mrb[0].mxu0
    %v8240 = vadd.f32 0.0, %v8239
    %v8241 = vpop.f32.mrb[0].mxu0
    %v8242 = vpop.f32.mrb[0].mxu0
    %v8243 = vadd.f32 0.0, %v8242
    %v8244 = vpop.f32.mrb[0].mxu0
    %8245 = vmatprep.mubr.bf16.mxu0 %v8203
    %8246 = vmatmul.mubr.bf16.gmra.mrb[0].mxu0 %v8202
    %v8247 = vpop.f32.mrb[0].mxu0
    %v8248 = vadd.f32 0.0, %v8247
    %v8249 = vpop.f32.mrb[0].mxu0
    %v8250 = vpop.f32.mrb[0].mxu0
    %v8251 = vpop.f32.mrb[0].mxu0
    %8252 = vdwg.mxu0
    %8253 = vmatprep.subr.bf16.mxu0 0
    %8254 = vmatpush1.bf16.msra.mxu0 %v6006
    %8255 = vmatprep.subr.bf16.mxu0 0
    %8256 = vmatpush1.bf16.msra.mxu0 %v6007
    %8257 = vmatprep.subr.bf16.mxu0 0
    %8258 = vmatpush1.bf16.msra.mxu0 %v6008
    %8259 = vmatprep.subr.bf16.mxu0 0
    %8260 = vmatpush1.bf16.msra.mxu0 %v6009
    %8261 = vmatprep.subr.bf16.mxu0 0
    %8262 = vmatpush1.bf16.msra.mxu0 %v6010
    %8263 = vmatprep.subr.bf16.mxu0 0
    %8264 = vmatpush1.bf16.msra.mxu0 %v6011
    %8265 = vmatprep.subr.bf16.mxu0 0
    %8266 = vmatpush1.bf16.msra.mxu0 %v6012
    %8267 = vmatprep.subr.bf16.mxu0 0
    %8268 = vmatpush1.bf16.msra.mxu0 %v6013
    %8269 = vmatprep.subr.bf16.mxu0 0
    %8270 = vmatpush1.bf16.msra.mxu0 0
    %8271 = vmatprep.subr.bf16.mxu0 0
    %8272 = vmatpush1.bf16.msra.mxu0 0
    %8273 = vmatprep.subr.bf16.mxu0 0
    %8274 = vmatpush1.bf16.msra.mxu0 0
    %8275 = vmatprep.subr.bf16.mxu0 0
    %8276 = vmatpush1.bf16.msra.mxu0 0
    %8277 = vmatprep.subr.bf16.mxu0 0
    %8278 = vmatpush1.bf16.msra.mxu0 0
    %8279 = vmatprep.subr.bf16.mxu0 0
    %8280 = vmatpush1.bf16.msra.mxu0 0
    %8281 = vmatprep.subr.bf16.mxu0 0
    %8282 = vmatpush1.bf16.msra.mxu0 0
    %8283 = vmatprep.subr.bf16.mxu0 0
    %8284 = vmatpush1.bf16.msra.mxu0 0
    %8285 = vmatprep.mubr.bf16.mxu0 0
    %8286 = vmatmul.mubr.bf16.gmra.mrb[0].mxu0 %v8201
    %v8287 = vpop.f32.mrb[0].mxu0
    %v8288 = vadd.f32 %v8240, %v8287
    %v8289 = vpop.f32.mrb[0].mxu0
    %v8290 = vpop.f32.mrb[0].mxu0
    %v8291 = vadd.f32 %v8243, %v8290
    %v8292 = vpop.f32.mrb[0].mxu0
    %8293 = vmatprep.mubr.bf16.mxu0 0
    %8294 = vmatmul.mubr.bf16.gmra.mrb[0].mxu0 %v8204
    %v8295 = vpop.f32.mrb[0].mxu0
    %v8296 = vadd.f32 %v8248, %v8295
    %v8297 = vpop.f32.mrb[0].mxu0
    %v8298 = vpop.f32.mrb[0].mxu0
    %v8299 = vpop.f32.mrb[0].mxu0
    %8300 = vdwg.mxu0
    %v8301 = vmul.f32 %v8288, 0.25
    %v8302 = vmul.f32 %v8291, 0.25
    %v8303 = vmul.f32 %v8296, 0.25
    %v8304 = vsel %vm6137, %v8301, -1e+09
    %v8305 = vsel %vm6138, %v8302, -1e+09
    %v8306 = vsel %vm6139, %v8303, -1e+09
    %v8307 = vsel %vm1828, %v8304, -inf
    %v8308 = vsel %vm1828, %v8305, -inf
    %v8309 = vsel %vm1828, %v8306, -inf
    %v8310 = vmax.f32 %v8307, %v8308
    %v8311 = vmax.f32 %v8310, %v8309
    %v8312 = vrot.slane %v8311, 4
    %v8313 = vmax.f32 %v8311, %v8312
    %v8314 = vrot.slane %v8313, 2
    %v8315 = vmax.f32 %v8313, %v8314
    %v8316 = vrot.slane %v8315, 1
    %v8317 = vmax.f32 %v8315, %v8316
    %v8318 = vsub.f32 %v8304, %v8317
    %v8319 = vsub.f32 %v8305, %v8317
    %v8320 = vsub.f32 %v8306, %v8317
    %v8321 = vmul.f32 %v8318, 1.442695
    %v8322 = vpow.pop %v8321
    %v8323 = vmul.f32 %v8319, 1.442695
    %v8324 = vpow.pop %v8323
    %v8325 = vmul.f32 %v8320, 1.442695
    %v8326 = vpow.pop %v8325
    %v8327 = vmul.f32 %v8322, %v4625
    %v8328 = vmul.f32 %v8324, %v4626
    %v8329 = vmul.f32 %v8326, %v4627
    %v8330 = vpack.c.bf16 %v8328, %v8327
    %v8331 = vpack.c.bf16 %v8329, %v8329
    %v8333 = vsel %vm962, %v8331, 0
    %8335 = vmatprep.subr.bf16.mxu0 0
    %8336 = vmatpush1.bf16.msra.mxu0 %v8330
    %8337 = vmatprep.subr.bf16.mxu0 0
    %8338 = vmatpush1.bf16.msra.mxu0 %v8333
    %8339 = vmatprep.subr.bf16.mxu0 0
    %8340 = vmatpush1.bf16.msra.mxu0 0
    %8341 = vmatprep.subr.bf16.mxu0 0
    %8342 = vmatpush1.bf16.msra.mxu0 0
    %8343 = vmatprep.subr.bf16.mxu0 0
    %8344 = vmatpush1.bf16.msra.mxu0 0
    %8345 = vmatprep.subr.bf16.mxu0 0
    %8346 = vmatpush1.bf16.msra.mxu0 0
    %8347 = vmatprep.subr.bf16.mxu0 0
    %8348 = vmatpush1.bf16.msra.mxu0 0
    %8349 = vmatprep.subr.bf16.mxu0 0
    %8350 = vmatpush1.bf16.msra.mxu0 0
    %8351 = vmatprep.subr.bf16.mxu0 0
    %8352 = vmatpush1.bf16.msra.mxu0 0
    %8353 = vmatprep.subr.bf16.mxu0 0
    %8354 = vmatpush1.bf16.msra.mxu0 0
    %8355 = vmatprep.subr.bf16.mxu0 0
    %8356 = vmatpush1.bf16.msra.mxu0 0
    %8357 = vmatprep.subr.bf16.mxu0 0
    %8358 = vmatpush1.bf16.msra.mxu0 0
    %8359 = vmatprep.subr.bf16.mxu0 0
    %8360 = vmatpush1.bf16.msra.mxu0 0
    %8361 = vmatprep.subr.bf16.mxu0 0
    %8362 = vmatpush1.bf16.msra.mxu0 0
    %8363 = vmatprep.subr.bf16.mxu0 0
    %8364 = vmatpush1.bf16.msra.mxu0 0
    %8365 = vmatprep.subr.bf16.mxu0 0
    %8366 = vmatpush1.bf16.msra.mxu0 0
    %8367 = vmatprep.mubr.bf16.mxu0 0
    %8368 = vmatmul.mubr.bf16.gmra.mrb[0].mxu0 %v6169
    %v8369 = vpop.f32.mrb[0].mxu0
    %v8370 = vadd.f32 0.0, %v8369
    %v8371 = vpop.f32.mrb[0].mxu0
    %v8372 = vpop.f32.mrb[0].mxu0
    %v8373 = vadd.f32 0.0, %v8372
    %v8374 = vpop.f32.mrb[0].mxu0
    %8375 = vdwg.mxu0
    %v8376 = vmax.f32 %v8370, 1e-20
    %v8377 = vmax.f32 %v8373, 1e-20
    %v8378 = vrcp.pop %v8376
    %v8379 = vrcp.pop %v8377
    %v8380 = vpack.c.bf16 %v7770, %v7766
    %v8381 = vpack.c.bf16 %v7772, %v7768
    %v8382 = vpack.c.bf16 %v7813, %v7809
    %8383 = vmatprep.subr.bf16.mxu0 %v8381
    %8384 = vmatpush1.bf16.msra.mxu0 %v8380
    %8385 = vmatprep.subr.bf16.mxu0 0
    %8386 = vmatpush1.bf16.msra.mxu0 0
    %8387 = vmatprep.subr.bf16.mxu0 0
    %8388 = vmatpush1.bf16.msra.mxu0 0
    %8389 = vmatprep.subr.bf16.mxu0 0
    %8390 = vmatpush1.bf16.msra.mxu0 0
    %8391 = vmatprep.subr.bf16.mxu0 0
    %8392 = vmatpush1.bf16.msra.mxu0 0
    %8393 = vmatprep.subr.bf16.mxu0 0
    %8394 = vmatpush1.bf16.msra.mxu0 0
    %8395 = vmatprep.subr.bf16.mxu0 0
    %8396 = vmatpush1.bf16.msra.mxu0 0
    %8397 = vmatprep.subr.bf16.mxu0 0
    %8398 = vmatpush1.bf16.msra.mxu0 0
    %8399 = vmatprep.subr.bf16.mxu0 0
    %8400 = vmatpush1.bf16.msra.mxu0 0
    %8401 = vmatprep.subr.bf16.mxu0 0
    %8402 = vmatpush1.bf16.msra.mxu0 0
    %8403 = vmatprep.subr.bf16.mxu0 0
    %8404 = vmatpush1.bf16.msra.mxu0 0
    %8405 = vmatprep.subr.bf16.mxu0 0
    %8406 = vmatpush1.bf16.msra.mxu0 0
    %8407 = vmatprep.subr.bf16.mxu0 0
    %8408 = vmatpush1.bf16.msra.mxu0 0
    %8409 = vmatprep.subr.bf16.mxu0 0
    %8410 = vmatpush1.bf16.msra.mxu0 0
    %8411 = vmatprep.subr.bf16.mxu0 0
    %8412 = vmatpush1.bf16.msra.mxu0 0
    %8413 = vmatprep.subr.bf16.mxu0 0
    %8414 = vmatpush1.bf16.msra.mxu0 0
    %8415 = vmatprep.mubr.bf16.mxu0 0
    %8416 = vmatmul.mubr.bf16.gmra.mrb[0].mxu0 %v5775
    %v8417 = vpop.f32.mrb[0].mxu0
    %v8418 = vadd.f32 %v7922, %v8417
    %v8419 = vpop.f32.mrb[0].mxu0
    %v8420 = vadd.f32 %v7924, %v8419
    %v8421 = vpop.f32.mrb[0].mxu0
    %v8422 = vadd.f32 %v7926, %v8421
    %v8423 = vpop.f32.mrb[0].mxu0
    %v8424 = vadd.f32 %v7928, %v8423
    %8425 = vmatprep.mubr.bf16.mxu0 0
    %8426 = vmatmul.mubr.bf16.gmra.mrb[0].mxu0 %v5778
    %v8427 = vpop.f32.mrb[0].mxu0
    %v8428 = vadd.f32 %v7932, %v8427
    %v8429 = vpop.f32.mrb[0].mxu0
    %v8430 = vadd.f32 %v7934, %v8429
    %v8431 = vpop.f32.mrb[0].mxu0
    %v8432 = vpop.f32.mrb[0].mxu0
    %8433 = vdwg.mxu0
    %8434 = vmatprep.subr.bf16.mxu0 0
    %8435 = vmatpush1.bf16.msra.mxu0 %v8382
    %8436 = vmatprep.subr.bf16.mxu0 0
    %8437 = vmatpush1.bf16.msra.mxu0 0
    %8438 = vmatprep.subr.bf16.mxu0 0
    %8439 = vmatpush1.bf16.msra.mxu0 0
    %8440 = vmatprep.subr.bf16.mxu0 0
    %8441 = vmatpush1.bf16.msra.mxu0 0
    %8442 = vmatprep.subr.bf16.mxu0 0
    %8443 = vmatpush1.bf16.msra.mxu0 0
    %8444 = vmatprep.subr.bf16.mxu0 0
    %8445 = vmatpush1.bf16.msra.mxu0 0
    %8446 = vmatprep.subr.bf16.mxu0 0
    %8447 = vmatpush1.bf16.msra.mxu0 0
    %8448 = vmatprep.subr.bf16.mxu0 0
    %8449 = vmatpush1.bf16.msra.mxu0 0
    %8450 = vmatprep.subr.bf16.mxu0 0
    %8451 = vmatpush1.bf16.msra.mxu0 0
    %8452 = vmatprep.subr.bf16.mxu0 0
    %8453 = vmatpush1.bf16.msra.mxu0 0
    %8454 = vmatprep.subr.bf16.mxu0 0
    %8455 = vmatpush1.bf16.msra.mxu0 0
    %8456 = vmatprep.subr.bf16.mxu0 0
    %8457 = vmatpush1.bf16.msra.mxu0 0
    %8458 = vmatprep.subr.bf16.mxu0 0
    %8459 = vmatpush1.bf16.msra.mxu0 0
    %8460 = vmatprep.subr.bf16.mxu0 0
    %8461 = vmatpush1.bf16.msra.mxu0 0
    %8462 = vmatprep.subr.bf16.mxu0 0
    %8463 = vmatpush1.bf16.msra.mxu0 0
    %8464 = vmatprep.subr.bf16.mxu0 0
    %8465 = vmatpush1.bf16.msra.mxu0 0
    %8466 = vmatprep.mubr.bf16.mxu0 0
    %8467 = vmatmul.mubr.bf16.gmra.mrb[0].mxu0 %v5775
    %v8468 = vpop.f32.mrb[0].mxu0
    %v8469 = vadd.f32 %v7973, %v8468
    %v8470 = vpop.f32.mrb[0].mxu0
    %v8471 = vpop.f32.mrb[0].mxu0
    %v8472 = vadd.f32 %v7976, %v8471
    %v8473 = vpop.f32.mrb[0].mxu0
    %8474 = vmatprep.mubr.bf16.mxu0 0
    %8475 = vmatmul.mubr.bf16.gmra.mrb[0].mxu0 %v5778
    %v8476 = vpop.f32.mrb[0].mxu0
    %v8477 = vadd.f32 %v7981, %v8476
    %v8478 = vpop.f32.mrb[0].mxu0
    %v8479 = vpop.f32.mrb[0].mxu0
    %v8480 = vpop.f32.mrb[0].mxu0
    %8481 = vdwg.mxu0
    %v8483 = vsel %vm1828, %v8330, 0
    %v8485 = vsel %vm1828, %v8331, 0
    %8487 = vmatprep.subr.bf16.mxu0 %v2117
    %8488 = vmatpush1.bf16.msra.mxu0 %v2116
    %8489 = vmatprep.subr.bf16.mxu0 %v2143
    %8490 = vmatpush1.bf16.msra.mxu0 %v2140
    %8491 = vmatprep.subr.bf16.mxu0 0
    %8492 = vmatpush1.bf16.msra.mxu0 0
    %8493 = vmatprep.subr.bf16.mxu0 0
    %8494 = vmatpush1.bf16.msra.mxu0 0
    %8495 = vmatprep.subr.bf16.mxu0 0
    %8496 = vmatpush1.bf16.msra.mxu0 0
    %8497 = vmatprep.subr.bf16.mxu0 0
    %8498 = vmatpush1.bf16.msra.mxu0 0
    %8499 = vmatprep.subr.bf16.mxu0 0
    %8500 = vmatpush1.bf16.msra.mxu0 0
    %8501 = vmatprep.subr.bf16.mxu0 0
    %8502 = vmatpush1.bf16.msra.mxu0 0
    %8503 = vmatprep.subr.bf16.mxu0 0
    %8504 = vmatpush1.bf16.msra.mxu0 0
    %8505 = vmatprep.subr.bf16.mxu0 0
    %8506 = vmatpush1.bf16.msra.mxu0 0
    %8507 = vmatprep.subr.bf16.mxu0 0
    %8508 = vmatpush1.bf16.msra.mxu0 0
    %8509 = vmatprep.subr.bf16.mxu0 0
    %8510 = vmatpush1.bf16.msra.mxu0 0
    %8511 = vmatprep.subr.bf16.mxu0 0
    %8512 = vmatpush1.bf16.msra.mxu0 0
    %8513 = vmatprep.subr.bf16.mxu0 0
    %8514 = vmatpush1.bf16.msra.mxu0 0
    %8515 = vmatprep.subr.bf16.mxu0 0
    %8516 = vmatpush1.bf16.msra.mxu0 0
    %8517 = vmatprep.subr.bf16.mxu0 0
    %8518 = vmatpush1.bf16.msra.mxu0 0
    %8519 = vmatprep.mubr.bf16.mxu0 0
    %8520 = vmatmul.mubr.bf16.gmra.mrb[0].mxu0 %v8483
    %v8521 = vpop.f32.mrb[0].mxu0
    %v8522 = vadd.f32 0.0, %v8521
    %v8523 = vpop.f32.mrb[0].mxu0
    %v8524 = vadd.f32 0.0, %v8523
    %v8525 = vpop.f32.mrb[0].mxu0
    %v8526 = vadd.f32 0.0, %v8525
    %v8527 = vpop.f32.mrb[0].mxu0
    %v8528 = vadd.f32 0.0, %v8527
    %8529 = vmatprep.mubr.bf16.mxu0 0
    %8530 = vmatmul.mubr.bf16.gmra.mrb[0].mxu0 %v8485
    %v8531 = vpop.f32.mrb[0].mxu0
    %v8532 = vadd.f32 0.0, %v8531
    %v8533 = vpop.f32.mrb[0].mxu0
    %v8534 = vadd.f32 0.0, %v8533
    %v8535 = vpop.f32.mrb[0].mxu0
    %v8536 = vpop.f32.mrb[0].mxu0
    %8537 = vdwg.mxu0
    %8538 = vmatprep.subr.bf16.mxu0 0
    %8539 = vmatpush1.bf16.msra.mxu0 %v2118
    %8540 = vmatprep.subr.bf16.mxu0 0
    %8541 = vmatpush1.bf16.msra.mxu0 %v2146
    %8542 = vmatprep.subr.bf16.mxu0 0
    %8543 = vmatpush1.bf16.msra.mxu0 0
    %8544 = vmatprep.subr.bf16.mxu0 0
    %8545 = vmatpush1.bf16.msra.mxu0 0
    %8546 = vmatprep.subr.bf16.mxu0 0
    %8547 = vmatpush1.bf16.msra.mxu0 0
    %8548 = vmatprep.subr.bf16.mxu0 0
    %8549 = vmatpush1.bf16.msra.mxu0 0
    %8550 = vmatprep.subr.bf16.mxu0 0
    %8551 = vmatpush1.bf16.msra.mxu0 0
    %8552 = vmatprep.subr.bf16.mxu0 0
    %8553 = vmatpush1.bf16.msra.mxu0 0
    %8554 = vmatprep.subr.bf16.mxu0 0
    %8555 = vmatpush1.bf16.msra.mxu0 0
    %8556 = vmatprep.subr.bf16.mxu0 0
    %8557 = vmatpush1.bf16.msra.mxu0 0
    %8558 = vmatprep.subr.bf16.mxu0 0
    %8559 = vmatpush1.bf16.msra.mxu0 0
    %8560 = vmatprep.subr.bf16.mxu0 0
    %8561 = vmatpush1.bf16.msra.mxu0 0
    %8562 = vmatprep.subr.bf16.mxu0 0
    %8563 = vmatpush1.bf16.msra.mxu0 0
    %8564 = vmatprep.subr.bf16.mxu0 0
    %8565 = vmatpush1.bf16.msra.mxu0 0
    %8566 = vmatprep.subr.bf16.mxu0 0
    %8567 = vmatpush1.bf16.msra.mxu0 0
    %8568 = vmatprep.subr.bf16.mxu0 0
    %8569 = vmatpush1.bf16.msra.mxu0 0
    %8570 = vmatprep.mubr.bf16.mxu0 0
    %8571 = vmatmul.mubr.bf16.gmra.mrb[0].mxu0 %v8483
    %v8572 = vpop.f32.mrb[0].mxu0
    %v8573 = vadd.f32 0.0, %v8572
    %v8574 = vpop.f32.mrb[0].mxu0
    %v8575 = vpop.f32.mrb[0].mxu0
    %v8576 = vadd.f32 0.0, %v8575
    %v8577 = vpop.f32.mrb[0].mxu0
    %8578 = vmatprep.mubr.bf16.mxu0 0
    %8579 = vmatmul.mubr.bf16.gmra.mrb[0].mxu0 %v8485
    %v8580 = vpop.f32.mrb[0].mxu0
    %v8581 = vadd.f32 0.0, %v8580
    %v8582 = vpop.f32.mrb[0].mxu0
    %v8583 = vpop.f32.mrb[0].mxu0
    %v8584 = vpop.f32.mrb[0].mxu0
    %8585 = vdwg.mxu0
    %v8586 = vmul.f32 %v8418, %v8522
    %v8587 = vmul.f32 %v8420, %v8524
    %v8588 = vmul.f32 %v8469, %v8573
    %v8589 = vmul.f32 %v8422, %v8526
    %v8590 = vmul.f32 %v8424, %v8528
    %v8591 = vmul.f32 %v8472, %v8576
    %v8592 = vmul.f32 %v8428, %v8532
    %v8593 = vmul.f32 %v8430, %v8534
    %v8594 = vmul.f32 %v8477, %v8581
    %v8595 = vpack.c.bf16 %v8589, %v8586
    %v8596 = vpack.c.bf16 %v8590, %v8587
    %v8597 = vpack.c.bf16 %v8591, %v8588
    %v8598 = vpack.c.bf16 %v8592, %v8592
    %v8599 = vpack.c.bf16 %v8593, %v8593
    %v8600 = vpack.c.bf16 %v8594, %v8594
    %v8602 = vsel %vm962, %v8598, 0
    %v8605 = vsel %vm962, %v8599, 0
    %v8608 = vsel %vm962, %v8600, 0
    %8610 = vmatprep.subr.bf16.mxu0 %v8596
    %8611 = vmatpush1.bf16.msra.mxu0 %v8595
    %8612 = vmatprep.subr.bf16.mxu0 %v8605
    %8613 = vmatpush1.bf16.msra.mxu0 %v8602
    %8614 = vmatprep.subr.bf16.mxu0 0
    %8615 = vmatpush1.bf16.msra.mxu0 0
    %8616 = vmatprep.subr.bf16.mxu0 0
    %8617 = vmatpush1.bf16.msra.mxu0 0
    %8618 = vmatprep.subr.bf16.mxu0 0
    %8619 = vmatpush1.bf16.msra.mxu0 0
    %8620 = vmatprep.subr.bf16.mxu0 0
    %8621 = vmatpush1.bf16.msra.mxu0 0
    %8622 = vmatprep.subr.bf16.mxu0 0
    %8623 = vmatpush1.bf16.msra.mxu0 0
    %8624 = vmatprep.subr.bf16.mxu0 0
    %8625 = vmatpush1.bf16.msra.mxu0 0
    %8626 = vmatprep.subr.bf16.mxu0 0
    %8627 = vmatpush1.bf16.msra.mxu0 0
    %8628 = vmatprep.subr.bf16.mxu0 0
    %8629 = vmatpush1.bf16.msra.mxu0 0
    %8630 = vmatprep.subr.bf16.mxu0 0
    %8631 = vmatpush1.bf16.msra.mxu0 0
    %8632 = vmatprep.subr.bf16.mxu0 0
    %8633 = vmatpush1.bf16.msra.mxu0 0
    %8634 = vmatprep.subr.bf16.mxu0 0
    %8635 = vmatpush1.bf16.msra.mxu0 0
    %8636 = vmatprep.subr.bf16.mxu0 0
    %8637 = vmatpush1.bf16.msra.mxu0 0
    %8638 = vmatprep.subr.bf16.mxu0 0
    %8639 = vmatpush1.bf16.msra.mxu0 0
    %8640 = vmatprep.subr.bf16.mxu0 0
    %8641 = vmatpush1.bf16.msra.mxu0 0
    %8642 = vmatprep.mubr.bf16.mxu0 0
    %8643 = vmatmul.mubr.bf16.gmra.mrb[0].mxu0 %v6169
    %v8644 = vpop.f32.mrb[0].mxu0
    %v8645 = vadd.f32 0.0, %v8644
    %v8646 = vpop.f32.mrb[0].mxu0
    %v8647 = vadd.f32 0.0, %v8646
    %v8648 = vpop.f32.mrb[0].mxu0
    %v8649 = vadd.f32 0.0, %v8648
    %v8650 = vpop.f32.mrb[0].mxu0
    %v8651 = vadd.f32 0.0, %v8650
    %8652 = vdwg.mxu0
    %8653 = vmatprep.subr.bf16.mxu0 0
    %8654 = vmatpush1.bf16.msra.mxu0 %v8597
    %8655 = vmatprep.subr.bf16.mxu0 0
    %8656 = vmatpush1.bf16.msra.mxu0 %v8608
    %8657 = vmatprep.subr.bf16.mxu0 0
    %8658 = vmatpush1.bf16.msra.mxu0 0
    %8659 = vmatprep.subr.bf16.mxu0 0
    %8660 = vmatpush1.bf16.msra.mxu0 0
    %8661 = vmatprep.subr.bf16.mxu0 0
    %8662 = vmatpush1.bf16.msra.mxu0 0
    %8663 = vmatprep.subr.bf16.mxu0 0
    %8664 = vmatpush1.bf16.msra.mxu0 0
    %8665 = vmatprep.subr.bf16.mxu0 0
    %8666 = vmatpush1.bf16.msra.mxu0 0
    %8667 = vmatprep.subr.bf16.mxu0 0
    %8668 = vmatpush1.bf16.msra.mxu0 0
    %8669 = vmatprep.subr.bf16.mxu0 0
    %8670 = vmatpush1.bf16.msra.mxu0 0
    %8671 = vmatprep.subr.bf16.mxu0 0
    %8672 = vmatpush1.bf16.msra.mxu0 0
    %8673 = vmatprep.subr.bf16.mxu0 0
    %8674 = vmatpush1.bf16.msra.mxu0 0
    %8675 = vmatprep.subr.bf16.mxu0 0
    %8676 = vmatpush1.bf16.msra.mxu0 0
    %8677 = vmatprep.subr.bf16.mxu0 0
    %8678 = vmatpush1.bf16.msra.mxu0 0
    %8679 = vmatprep.subr.bf16.mxu0 0
    %8680 = vmatpush1.bf16.msra.mxu0 0
    %8681 = vmatprep.subr.bf16.mxu0 0
    %8682 = vmatpush1.bf16.msra.mxu0 0
    %8683 = vmatprep.subr.bf16.mxu0 0
    %8684 = vmatpush1.bf16.msra.mxu0 0
    %8685 = vmatprep.mubr.bf16.mxu0 0
    %8686 = vmatmul.mubr.bf16.gmra.mrb[0].mxu0 %v6169
    %v8687 = vpop.f32.mrb[0].mxu0
    %v8688 = vadd.f32 0.0, %v8687
    %v8689 = vpop.f32.mrb[0].mxu0
    %v8690 = vpop.f32.mrb[0].mxu0
    %v8691 = vadd.f32 0.0, %v8690
    %v8692 = vpop.f32.mrb[0].mxu0
    %8693 = vdwg.mxu0
    %v8694 = vpack.c.bf16 %v8379, %v8378
    %v8696 = vsel %vm1828, %v8694, 0
    %8698 = vmatprep.subr.bf16.mxu0 %v2117
    %8699 = vmatpush1.bf16.msra.mxu0 %v2116
    %8700 = vmatprep.subr.bf16.mxu0 %v2143
    %8701 = vmatpush1.bf16.msra.mxu0 %v2140
    %8702 = vmatprep.subr.bf16.mxu0 0
    %8703 = vmatpush1.bf16.msra.mxu0 0
    %8704 = vmatprep.subr.bf16.mxu0 0
    %8705 = vmatpush1.bf16.msra.mxu0 0
    %8706 = vmatprep.subr.bf16.mxu0 0
    %8707 = vmatpush1.bf16.msra.mxu0 0
    %8708 = vmatprep.subr.bf16.mxu0 0
    %8709 = vmatpush1.bf16.msra.mxu0 0
    %8710 = vmatprep.subr.bf16.mxu0 0
    %8711 = vmatpush1.bf16.msra.mxu0 0
    %8712 = vmatprep.subr.bf16.mxu0 0
    %8713 = vmatpush1.bf16.msra.mxu0 0
    %8714 = vmatprep.subr.bf16.mxu0 0
    %8715 = vmatpush1.bf16.msra.mxu0 0
    %8716 = vmatprep.subr.bf16.mxu0 0
    %8717 = vmatpush1.bf16.msra.mxu0 0
    %8718 = vmatprep.subr.bf16.mxu0 0
    %8719 = vmatpush1.bf16.msra.mxu0 0
    %8720 = vmatprep.subr.bf16.mxu0 0
    %8721 = vmatpush1.bf16.msra.mxu0 0
    %8722 = vmatprep.subr.bf16.mxu0 0
    %8723 = vmatpush1.bf16.msra.mxu0 0
    %8724 = vmatprep.subr.bf16.mxu0 0
    %8725 = vmatpush1.bf16.msra.mxu0 0
    %8726 = vmatprep.subr.bf16.mxu0 0
    %8727 = vmatpush1.bf16.msra.mxu0 0
    %8728 = vmatprep.subr.bf16.mxu0 0
    %8729 = vmatpush1.bf16.msra.mxu0 0
    %8730 = vmatprep.mubr.bf16.mxu0 0
    %8731 = vmatmul.mubr.bf16.gmra.mrb[0].mxu0 %v8696
    %v8732 = vpop.f32.mrb[0].mxu0
    %v8733 = vadd.f32 0.0, %v8732
    %v8734 = vpop.f32.mrb[0].mxu0
    %v8735 = vadd.f32 0.0, %v8734
    %v8736 = vpop.f32.mrb[0].mxu0
    %v8737 = vadd.f32 0.0, %v8736
    %v8738 = vpop.f32.mrb[0].mxu0
    %v8739 = vadd.f32 0.0, %v8738
    %8740 = vdwg.mxu0
    %8741 = vmatprep.subr.bf16.mxu0 0
    %8742 = vmatpush1.bf16.msra.mxu0 %v2118
    %8743 = vmatprep.subr.bf16.mxu0 0
    %8744 = vmatpush1.bf16.msra.mxu0 %v2146
    %8745 = vmatprep.subr.bf16.mxu0 0
    %8746 = vmatpush1.bf16.msra.mxu0 0
    %8747 = vmatprep.subr.bf16.mxu0 0
    %8748 = vmatpush1.bf16.msra.mxu0 0
    %8749 = vmatprep.subr.bf16.mxu0 0
    %8750 = vmatpush1.bf16.msra.mxu0 0
    %8751 = vmatprep.subr.bf16.mxu0 0
    %8752 = vmatpush1.bf16.msra.mxu0 0
    %8753 = vmatprep.subr.bf16.mxu0 0
    %8754 = vmatpush1.bf16.msra.mxu0 0
    %8755 = vmatprep.subr.bf16.mxu0 0
    %8756 = vmatpush1.bf16.msra.mxu0 0
    %8757 = vmatprep.subr.bf16.mxu0 0
    %8758 = vmatpush1.bf16.msra.mxu0 0
    %8759 = vmatprep.subr.bf16.mxu0 0
    %8760 = vmatpush1.bf16.msra.mxu0 0
    %8761 = vmatprep.subr.bf16.mxu0 0
    %8762 = vmatpush1.bf16.msra.mxu0 0
    %8763 = vmatprep.subr.bf16.mxu0 0
    %8764 = vmatpush1.bf16.msra.mxu0 0
    %8765 = vmatprep.subr.bf16.mxu0 0
    %8766 = vmatpush1.bf16.msra.mxu0 0
    %8767 = vmatprep.subr.bf16.mxu0 0
    %8768 = vmatpush1.bf16.msra.mxu0 0
    %8769 = vmatprep.subr.bf16.mxu0 0
    %8770 = vmatpush1.bf16.msra.mxu0 0
    %8771 = vmatprep.subr.bf16.mxu0 0
    %8772 = vmatpush1.bf16.msra.mxu0 0
    %8773 = vmatprep.mubr.bf16.mxu0 0
    %8774 = vmatmul.mubr.bf16.gmra.mrb[0].mxu0 %v8696
    %v8775 = vpop.f32.mrb[0].mxu0
    %v8776 = vadd.f32 0.0, %v8775
    %v8777 = vpop.f32.mrb[0].mxu0
    %v8778 = vpop.f32.mrb[0].mxu0
    %v8779 = vadd.f32 0.0, %v8778
    %v8780 = vpop.f32.mrb[0].mxu0
    %8781 = vdwg.mxu0
    %v8782 = vmul.f32 %v8645, %v8733
    %v8783 = vmul.f32 %v8647, %v8735
    %v8784 = vmul.f32 %v8688, %v8776
    %v8785 = vmul.f32 %v8649, %v8737
    %v8786 = vmul.f32 %v8651, %v8739
    %v8787 = vmul.f32 %v8691, %v8779
    %v8788 = vadd.f32 %v8782, %v7811
    %v8789 = vadd.f32 %v8783, %v7852
    %v8790 = vadd.f32 %v8784, %v7854
    %v8791 = vadd.f32 %v8785, %v7815
    %v8792 = vadd.f32 %v8786, %v7856
    %v8793 = vadd.f32 %v8787, %v7858
    %v8794 = vld [vmem:[#allocation52] sm:$0xf]
    %v8795 = vld [vmem:[#allocation52 + $0x4] sm:$0xf]
    %v8796 = vld [vmem:[#allocation52 + $0x8] sm:$0xf]
    %v8797 = vld [vmem:[#allocation52 + $0xc] sm:$0xf]
    %v8798 = vld [vmem:[#allocation52 + $0x10] sm:$0xf]
    %v8799 = vld [vmem:[#allocation52 + $0x14] sm:$0xf]
    %v8800 = vld [vmem:[#allocation52 + $0x18] sm:$0xf]
    %v8801 = vld [vmem:[#allocation52 + $0x1c] sm:$0xf]
    %v8802 = vld [vmem:[#allocation52 + $0x20] sm:$0xf]
    %v8803 = vld [vmem:[#allocation52 + $0x24] sm:$0xf]
    %v8804 = vld [vmem:[#allocation52 + $0x28] sm:$0xf]
    %v8805 = vld [vmem:[#allocation52 + $0x2c] sm:$0xf]
    %v8806 = vld [vmem:[#allocation52 + $0x30] sm:$0xf]
    %v8807 = vld [vmem:[#allocation52 + $0x34] sm:$0xf]
    %v8808 = vld [vmem:[#allocation52 + $0x38] sm:$0xf]
    %v8809 = vld [vmem:[#allocation52 + $0x3c] sm:$0xf]
    %v8810 = vld [vmem:[#allocation52 + $0x40] sm:$0xf]
    %v8811 = vld [vmem:[#allocation52 + $0x44] sm:$0xf]
    %v8812 = vld [vmem:[#allocation52 + $0x48] sm:$0xf]
    %v8813 = vld [vmem:[#allocation52 + $0x4c] sm:$0xf]
    %v8814 = vld [vmem:[#allocation52 + $0x50] sm:$0xf]
    %v8815 = vld [vmem:[#allocation52 + $0x54] sm:$0xf]
    %v8816 = vld [vmem:[#allocation52 + $0x58] sm:$0xf]
    %v8817 = vld [vmem:[#allocation52 + $0x5c] sm:$0xf]
    %v8818 = vld [vmem:[#allocation52 + $0x60] sm:$0xf]
    %v8819 = vld [vmem:[#allocation52 + $0x64] sm:$0xf]
    %v8820 = vld [vmem:[#allocation52 + $0x68] sm:$0xf]
    %v8821 = vld [vmem:[#allocation52 + $0x6c] sm:$0xf]
    %v8822 = vld [vmem:[#allocation52 + $0x70] sm:$0xf]
    %v8823 = vld [vmem:[#allocation52 + $0x74] sm:$0xf]
    %v8824 = vld [vmem:[#allocation52 + $0x78] sm:$0xf]
    %v8825 = vld [vmem:[#allocation52 + $0x7c] sm:$0xf]
    %v8826 = vld [vmem:[#allocation52 + $0x80] sm:$0xf]
    %v8827 = vld [vmem:[#allocation52 + $0x84] sm:$0xf]
    %v8828 = vld [vmem:[#allocation52 + $0x88] sm:$0xf]
    %v8829 = vld [vmem:[#allocation52 + $0x8c] sm:$0xf]
    %v8830 = vld [vmem:[#allocation52 + $0x90] sm:$0xf]
    %v8831 = vld [vmem:[#allocation52 + $0x94] sm:$0xf]
    %v8832 = vld [vmem:[#allocation52 + $0x98] sm:$0xf]
    %v8833 = vld [vmem:[#allocation52 + $0x9c] sm:$0xf]
    %v8834 = vld [vmem:[#allocation52 + $0xa0] sm:$0xf]
    %v8835 = vld [vmem:[#allocation52 + $0xa4] sm:$0xf]
    %v8836 = vld [vmem:[#allocation52 + $0xa8] sm:$0xf]
    %v8837 = vld [vmem:[#allocation52 + $0xac] sm:$0xf]
    %v8838 = vld [vmem:[#allocation52 + $0xb0] sm:$0xf]
    %v8839 = vld [vmem:[#allocation52 + $0xb4] sm:$0xf]
    %v8840 = vld [vmem:[#allocation52 + $0xb8] sm:$0xf]
    %v8841 = vld [vmem:[#allocation52 + $0xbc] sm:$0xf]
    %v8842 = vpack.c.bf16 %v8791, %v8788
    %v8843 = vpack.c.bf16 %v8792, %v8789
    %v8844 = vpack.c.bf16 %v8793, %v8790
    %v8845 = vld [vmem:[%s109] sm:$0x1]
    %v8847 = vlaneseq
    %v8848 = vshrl.u32 %v8847, 7
    %v8849 = vsub.s32 0, %v8848
    %v8850 = vrot.slane %v8845, %v8849
    %v8900 = vunpack.c.l.b16 %v8794
    %v8901 = vunpack.c.l.b16 %v8795
    %v8902 = vunpack.c.l.b16 %v8796
    %v8903 = vunpack.c.l.b16 %v8797
    %v8904 = vunpack.c.l.b16 %v8798
    %v8905 = vunpack.c.l.b16 %v8799
    %v8906 = vunpack.c.l.b16 %v8800
    %v8907 = vunpack.c.l.b16 %v8801
    %v8908 = vunpack.c.l.b16 %v8802
    %v8909 = vunpack.c.l.b16 %v8803
    %v8910 = vunpack.c.l.b16 %v8804
    %v8911 = vunpack.c.l.b16 %v8805
    %v8912 = vunpack.c.l.b16 %v8806
    %v8913 = vunpack.c.l.b16 %v8807
    %v8914 = vunpack.c.l.b16 %v8808
    %v8915 = vunpack.c.l.b16 %v8809
    %v8916 = vunpack.c.l.b16 %v8810
    %v8917 = vunpack.c.l.b16 %v8811
    %v8918 = vunpack.c.l.b16 %v8812
    %v8919 = vunpack.c.l.b16 %v8813
    %v8920 = vunpack.c.l.b16 %v8814
    %v8921 = vunpack.c.l.b16 %v8815
    %v8922 = vunpack.c.l.b16 %v8816
    %v8923 = vunpack.c.l.b16 %v8817
    %v8924 = vunpack.c.l.b16 %v8818
    %v8925 = vunpack.c.l.b16 %v8819
    %v8926 = vunpack.c.l.b16 %v8820
    %v8927 = vunpack.c.l.b16 %v8821
    %v8928 = vunpack.c.l.b16 %v8822
    %v8929 = vunpack.c.l.b16 %v8823
    %v8930 = vunpack.c.l.b16 %v8824
    %v8931 = vunpack.c.l.b16 %v8825
    %v8932 = vunpack.c.l.b16 %v8826
    %v8933 = vunpack.c.l.b16 %v8827
    %v8934 = vunpack.c.l.b16 %v8828
    %v8935 = vunpack.c.l.b16 %v8829
    %v8936 = vunpack.c.l.b16 %v8830
    %v8937 = vunpack.c.l.b16 %v8831
    %v8938 = vunpack.c.l.b16 %v8832
    %v8939 = vunpack.c.l.b16 %v8833
    %v8940 = vunpack.c.l.b16 %v8834
    %v8941 = vunpack.c.l.b16 %v8835
    %v8942 = vunpack.c.l.b16 %v8836
    %v8943 = vunpack.c.l.b16 %v8837
    %v8944 = vunpack.c.l.b16 %v8838
    %v8945 = vunpack.c.l.b16 %v8839
    %v8946 = vunpack.c.l.b16 %v8840
    %v8947 = vunpack.c.l.b16 %v8841
    %v8948 = vpack.c.b16 %v8901, %v8900
    %v8949 = vpack.c.b16 %v8903, %v8902
    %v8950 = vpack.c.b16 %v8905, %v8904
    %v8951 = vpack.c.b16 %v8907, %v8906
    %v8952 = vpack.c.b16 %v8909, %v8908
    %v8953 = vpack.c.b16 %v8911, %v8910
    %v8954 = vpack.c.b16 %v8913, %v8912
    %v8955 = vpack.c.b16 %v8915, %v8914
    %v8956 = vpack.c.b16 %v8917, %v8916
    %v8957 = vpack.c.b16 %v8919, %v8918
    %v8958 = vpack.c.b16 %v8921, %v8920
    %v8959 = vpack.c.b16 %v8923, %v8922
    %v8960 = vpack.c.b16 %v8925, %v8924
    %v8961 = vpack.c.b16 %v8927, %v8926
    %v8962 = vpack.c.b16 %v8929, %v8928
    %v8963 = vpack.c.b16 %v8931, %v8930
    %v8964 = vpack.c.b16 %v8933, %v8932
    %v8965 = vpack.c.b16 %v8935, %v8934
    %v8966 = vpack.c.b16 %v8937, %v8936
    %v8967 = vpack.c.b16 %v8939, %v8938
    %v8968 = vpack.c.b16 %v8941, %v8940
    %v8969 = vpack.c.b16 %v8943, %v8942
    %v8970 = vpack.c.b16 %v8945, %v8944
    %v8971 = vpack.c.b16 %v8947, %v8946
    %8996 = vmatprep.subr.bf16.mxu0 0
    %8997 = vmatpush1.bf16.msra.mxu0 %v8948
    %8998 = vmatprep.subr.bf16.mxu0 0
    %8999 = vmatpush1.bf16.msra.mxu0 %v8949
    %9000 = vmatprep.subr.bf16.mxu0 0
    %9001 = vmatpush1.bf16.msra.mxu0 %v8950
    %9002 = vmatprep.subr.bf16.mxu0 0
    %9003 = vmatpush1.bf16.msra.mxu0 %v8951
    %9004 = vmatprep.subr.bf16.mxu0 0
    %9005 = vmatpush1.bf16.msra.mxu0 %v8952
    %9006 = vmatprep.subr.bf16.mxu0 0
    %9007 = vmatpush1.bf16.msra.mxu0 %v8953
    %9008 = vmatprep.subr.bf16.mxu0 0
    %9009 = vmatpush1.bf16.msra.mxu0 %v8954
    %9010 = vmatprep.subr.bf16.mxu0 0
    %9011 = vmatpush1.bf16.msra.mxu0 %v8955
    %9012 = vmatprep.subr.bf16.mxu0 0
    %9013 = vmatpush1.bf16.msra.mxu0 %v8956
    %9014 = vmatprep.subr.bf16.mxu0 0
    %9015 = vmatpush1.bf16.msra.mxu0 %v8957
    %9016 = vmatprep.subr.bf16.mxu0 0
    %9017 = vmatpush1.bf16.msra.mxu0 %v8958
    %9018 = vmatprep.subr.bf16.mxu0 0
    %9019 = vmatpush1.bf16.msra.mxu0 %v8959
    %9020 = vmatprep.subr.bf16.mxu0 0
    %9021 = vmatpush1.bf16.msra.mxu0 %v8960
    %9022 = vmatprep.subr.bf16.mxu0 0
    %9023 = vmatpush1.bf16.msra.mxu0 %v8961
    %9024 = vmatprep.subr.bf16.mxu0 0
    %9025 = vmatpush1.bf16.msra.mxu0 %v8962
    %9026 = vmatprep.subr.bf16.mxu0 0
    %9027 = vmatpush1.bf16.msra.mxu0 %v8963
    %9028 = vmatprep.mubr.bf16.mxu0 %v8843
    %9029 = vmatmul.mubr.bf16.gmra.mrb[0].mxu0 %v8842
    %v9030 = vpop.f32.mrb[0].mxu0
    %v9031 = vadd.f32 %v8850, %v9030
    %v9032 = vpop.f32.mrb[0].mxu0
    %v9033 = vpop.f32.mrb[0].mxu0
    %v9034 = vadd.f32 %v8850, %v9033
    %v9035 = vpop.f32.mrb[0].mxu0
    %9036 = vdwg.mxu0
    %9037 = vmatprep.subr.bf16.mxu0 0
    %9038 = vmatpush1.bf16.msra.mxu0 %v8964
    %9039 = vmatprep.subr.bf16.mxu0 0
    %9040 = vmatpush1.bf16.msra.mxu0 %v8965
    %9041 = vmatprep.subr.bf16.mxu0 0
    %9042 = vmatpush1.bf16.msra.mxu0 %v8966
    %9043 = vmatprep.subr.bf16.mxu0 0
    %9044 = vmatpush1.bf16.msra.mxu0 %v8967
    %9045 = vmatprep.subr.bf16.mxu0 0
    %9046 = vmatpush1.bf16.msra.mxu0 %v8968
    %9047 = vmatprep.subr.bf16.mxu0 0
    %9048 = vmatpush1.bf16.msra.mxu0 %v8969
    %9049 = vmatprep.subr.bf16.mxu0 0
    %9050 = vmatpush1.bf16.msra.mxu0 %v8970
    %9051 = vmatprep.subr.bf16.mxu0 0
    %9052 = vmatpush1.bf16.msra.mxu0 %v8971
    %9053 = vmatprep.subr.bf16.mxu0 0
    %9054 = vmatpush1.bf16.msra.mxu0 0
    %9055 = vmatprep.subr.bf16.mxu0 0
    %9056 = vmatpush1.bf16.msra.mxu0 0
    %9057 = vmatprep.subr.bf16.mxu0 0
    %9058 = vmatpush1.bf16.msra.mxu0 0
    %9059 = vmatprep.subr.bf16.mxu0 0
    %9060 = vmatpush1.bf16.msra.mxu0 0
    %9061 = vmatprep.subr.bf16.mxu0 0
    %9062 = vmatpush1.bf16.msra.mxu0 0
    %9063 = vmatprep.subr.bf16.mxu0 0
    %9064 = vmatpush1.bf16.msra.mxu0 0
    %9065 = vmatprep.subr.bf16.mxu0 0
    %9066 = vmatpush1.bf16.msra.mxu0 0
    %9067 = vmatprep.subr.bf16.mxu0 0
    %9068 = vmatpush1.bf16.msra.mxu0 0
    %9069 = vmatprep.mubr.bf16.mxu0 0
    %9070 = vmatmul.mubr.bf16.gmra.mrb[0].mxu0 %v8844
    %v9071 = vpop.f32.mrb[0].mxu0
    %v9072 = vadd.f32 %v9031, %v9071
    %v9073 = vpop.f32.mrb[0].mxu0
    %v9074 = vpop.f32.mrb[0].mxu0
    %v9075 = vadd.f32 %v9034, %v9074
    %v9076 = vpop.f32.mrb[0].mxu0
    %9077 = vdwg.mxu0
    %v9078 = vmax.f32 %v9072, 0.0
    %v9079 = vmax.f32 %v9075, 0.0
    %v9080 = vadd.f32 %v9078, %v6959
    %v9081 = vadd.f32 %v9079, %v6960
    %v9082 = vld [vmem:[%s115] sm:$0x1]
    %v9083 = vld [vmem:[%s113] sm:$0x1]
    %9084 = vadd.xlane.f32.xlu0 %v9080
    %v9085 = vpop.xlane.xlu0 %9084
    %9086 = vadd.xlane.f32.xlu0 %v9081
    %v9087 = vpop.xlane.xlu0 %9086
    %v9088 = vmul.f32 %v9085, %v2847
    %v9089 = vmul.f32 %v9087, %v2847
    %v9090 = vsub.f32 %v9080, %v9088
    %v9091 = vsub.f32 %v9081, %v9089
    %v9092 = vmul.f32 %v9090, %v9090
    %v9093 = vmul.f32 %v9091, %v9091
    %9094 = vadd.xlane.f32.xlu0 %v9092
    %v9095 = vpop.xlane.xlu0 %9094
    %9096 = vadd.xlane.f32.xlu0 %v9093
    %v9097 = vpop.xlane.xlu0 %9096
    %v9098 = vmul.f32 %v9095, %v2847
    %v9099 = vmul.f32 %v9097, %v2847
    %v9100 = vadd.f32 %v9098, 1e-05
    %v9101 = vadd.f32 %v9099, 1e-05
    %v9102 = vrsqrt.pop %v9100
    %v9103 = vrsqrt.pop %v9101
    %v9104 = vmul.f32 %v9090, %v9102
    %v9105 = vmul.f32 %v9091, %v9103
    %v9107 = vlaneseq
    %v9108 = vshrl.u32 %v9107, 7
    %v9109 = vsub.s32 0, %v9108
    %v9110 = vrot.slane %v9082, %v9109
    %v9112 = vmul.f32 %v9104, %v9110
    %v9113 = vmul.f32 %v9105, %v9110
    %v9115 = vlaneseq
    %v9116 = vshrl.u32 %v9115, 7
    %v9117 = vsub.s32 0, %v9116
    %v9118 = vrot.slane %v9083, %v9117
    %v9120 = vadd.f32 %v9112, %v9118
    %v9121 = vadd.f32 %v9113, %v9118
    %v9122 = vld [vmem:[#allocation4] sm:$0xf]
    %v9123 = vld [vmem:[%s43] sm:$0xff]
    %v9124 = vld [vmem:[%s43 + $0x8] sm:$0xf]
    %v9125 = vld [vmem:[%s43 + $0xc] sm:$0xff]
    %v9126 = vld [vmem:[%s43 + $0x14] sm:$0xf]
    %v9127 = vld [vmem:[%s43 + $0x18] sm:$0xff]
    %v9128 = vld [vmem:[%s43 + $0x20] sm:$0xf]
    %v9129 = vld [vmem:[%s43 + $0x24] sm:$0xff]
    %v9130 = vld [vmem:[%s43 + $0x2c] sm:$0xf]
    %v9131 = vld [vmem:[%s43 + $0x30] sm:$0xff]
    %v9132 = vld [vmem:[%s43 + $0x38] sm:$0xf]
    %v9133 = vld [vmem:[%s43 + $0x3c] sm:$0xff]
    %v9134 = vld [vmem:[%s43 + $0x44] sm:$0xf]
    %v9135 = vld [vmem:[%s43 + $0x48] sm:$0xff]
    %v9136 = vld [vmem:[%s43 + $0x50] sm:$0xf]
    %v9137 = vld [vmem:[%s43 + $0x54] sm:$0xff]
    %v9138 = vld [vmem:[%s43 + $0x5c] sm:$0xf]
    %v9139 = vld [vmem:[%s43 + $0x60] sm:$0xff]
    %v9140 = vld [vmem:[%s43 + $0x68] sm:$0xf]
    %v9141 = vld [vmem:[%s43 + $0x6c] sm:$0xff]
    %v9142 = vld [vmem:[%s43 + $0x74] sm:$0xf]
    %v9143 = vld [vmem:[%s43 + $0x78] sm:$0xff]
    %v9144 = vld [vmem:[%s43 + $0x80] sm:$0xf]
    %v9145 = vld [vmem:[%s43 + $0x84] sm:$0xff]
    %v9146 = vld [vmem:[%s43 + $0x8c] sm:$0xf]
    %v9147 = vld [vmem:[%s43 + $0x90] sm:$0xff]
    %v9148 = vld [vmem:[%s43 + $0x98] sm:$0xf]
    %v9149 = vld [vmem:[%s43 + $0x9c] sm:$0xff]
    %v9150 = vld [vmem:[%s43 + $0xa4] sm:$0xf]
    %v9151 = vld [vmem:[%s43 + $0xa8] sm:$0xff]
    %v9152 = vld [vmem:[%s43 + $0xb0] sm:$0xf]
    %v9153 = vld [vmem:[%s43 + $0xb4] sm:$0xff]
    %v9154 = vld [vmem:[%s43 + $0xbc] sm:$0xf]
    %v9155 = vpack.c.bf16 %v9121, %v9120
    %v9156 = vld [vmem:[%s47] sm:$0x7]
    %v9158 = vlaneseq
    %v9159 = vshrl.u32 %v9158, 7
    %v9160 = vsub.s32 0, %v9159
    %v9161 = vrot.slane %v9156, %v9160
    %v9162 = vlaneseq
    %v9163 = vshrl.u32 %v9162, 7
    %v9164 = vsub.s32 1, %v9163
    %v9165 = vrot.slane %v9156, %v9164
    %v9166 = vlaneseq
    %v9167 = vshrl.u32 %v9166, 7
    %v9168 = vsub.s32 2, %v9167
    %v9169 = vrot.slane %v9156, %v9168
    %v9205 = vunpack.c.l.b16 %v9123
    %v9206 = vunpack.c.h.b16 %v9123
    %v9207 = vunpack.c.l.b16 %v9124
    %v9208 = vunpack.c.l.b16 %v9125
    %v9209 = vunpack.c.h.b16 %v9125
    %v9210 = vunpack.c.l.b16 %v9126
    %v9211 = vunpack.c.l.b16 %v9127
    %v9212 = vunpack.c.h.b16 %v9127
    %v9213 = vunpack.c.l.b16 %v9128
    %v9214 = vunpack.c.l.b16 %v9129
    %v9215 = vunpack.c.h.b16 %v9129
    %v9216 = vunpack.c.l.b16 %v9130
    %v9217 = vunpack.c.l.b16 %v9131
    %v9218 = vunpack.c.h.b16 %v9131
    %v9219 = vunpack.c.l.b16 %v9132
    %v9220 = vunpack.c.l.b16 %v9133
    %v9221 = vunpack.c.h.b16 %v9133
    %v9222 = vunpack.c.l.b16 %v9134
    %v9223 = vunpack.c.l.b16 %v9135
    %v9224 = vunpack.c.h.b16 %v9135
    %v9225 = vunpack.c.l.b16 %v9136
    %v9226 = vunpack.c.l.b16 %v9137
    %v9227 = vunpack.c.h.b16 %v9137
    %v9228 = vunpack.c.l.b16 %v9138
    %v9229 = vunpack.c.l.b16 %v9139
    %v9230 = vunpack.c.h.b16 %v9139
    %v9231 = vunpack.c.l.b16 %v9140
    %v9232 = vunpack.c.l.b16 %v9141
    %v9233 = vunpack.c.h.b16 %v9141
    %v9234 = vunpack.c.l.b16 %v9142
    %v9235 = vunpack.c.l.b16 %v9143
    %v9236 = vunpack.c.h.b16 %v9143
    %v9237 = vunpack.c.l.b16 %v9144
    %v9238 = vunpack.c.l.b16 %v9145
    %v9239 = vunpack.c.h.b16 %v9145
    %v9240 = vunpack.c.l.b16 %v9146
    %v9241 = vunpack.c.l.b16 %v9147
    %v9242 = vunpack.c.h.b16 %v9147
    %v9243 = vunpack.c.l.b16 %v9148
    %v9244 = vunpack.c.l.b16 %v9149
    %v9245 = vunpack.c.h.b16 %v9149
    %v9246 = vunpack.c.l.b16 %v9150
    %v9247 = vunpack.c.l.b16 %v9151
    %v9248 = vunpack.c.h.b16 %v9151
    %v9249 = vunpack.c.l.b16 %v9152
    %v9250 = vunpack.c.l.b16 %v9153
    %v9251 = vunpack.c.h.b16 %v9153
    %v9252 = vunpack.c.l.b16 %v9154
    %v9253 = vpack.c.b16 %v9208, %v9205
    %v9254 = vpack.c.b16 %v9209, %v9206
    %v9255 = vpack.c.b16 %v9210, %v9207
    %v9256 = vpack.c.b16 %v9214, %v9211
    %v9257 = vpack.c.b16 %v9215, %v9212
    %v9258 = vpack.c.b16 %v9216, %v9213
    %v9259 = vpack.c.b16 %v9220, %v9217
    %v9260 = vpack.c.b16 %v9221, %v9218
    %v9261 = vpack.c.b16 %v9222, %v9219
    %v9262 = vpack.c.b16 %v9226, %v9223
    %v9263 = vpack.c.b16 %v9227, %v9224
    %v9264 = vpack.c.b16 %v9228, %v9225
    %v9265 = vpack.c.b16 %v9232, %v9229
    %v9266 = vpack.c.b16 %v9233, %v9230
    %v9267 = vpack.c.b16 %v9234, %v9231
    %v9268 = vpack.c.b16 %v9238, %v9235
    %v9269 = vpack.c.b16 %v9239, %v9236
    %v9270 = vpack.c.b16 %v9240, %v9237
    %v9271 = vpack.c.b16 %v9244, %v9241
    %v9272 = vpack.c.b16 %v9245, %v9242
    %v9273 = vpack.c.b16 %v9246, %v9243
    %v9274 = vpack.c.b16 %v9250, %v9247
    %v9275 = vpack.c.b16 %v9251, %v9248
    %v9276 = vpack.c.b16 %v9252, %v9249
    %9301 = vmatprep.subr.bf16.mxu0 %v9254
    %9302 = vmatpush1.bf16.msra.mxu0 %v9253
    %9303 = vmatprep.subr.bf16.mxu0 %v9257
    %9304 = vmatpush1.bf16.msra.mxu0 %v9256
    %9305 = vmatprep.subr.bf16.mxu0 %v9260
    %9306 = vmatpush1.bf16.msra.mxu0 %v9259
    %9307 = vmatprep.subr.bf16.mxu0 %v9263
    %9308 = vmatpush1.bf16.msra.mxu0 %v9262
    %9309 = vmatprep.subr.bf16.mxu0 %v9266
    %9310 = vmatpush1.bf16.msra.mxu0 %v9265
    %9311 = vmatprep.subr.bf16.mxu0 %v9269
    %9312 = vmatpush1.bf16.msra.mxu0 %v9268
    %9313 = vmatprep.subr.bf16.mxu0 %v9272
    %9314 = vmatpush1.bf16.msra.mxu0 %v9271
    %9315 = vmatprep.subr.bf16.mxu0 %v9275
    %9316 = vmatpush1.bf16.msra.mxu0 %v9274
    %9317 = vmatprep.subr.bf16.mxu0 0
    %9318 = vmatpush1.bf16.msra.mxu0 0
    %9319 = vmatprep.subr.bf16.mxu0 0
    %9320 = vmatpush1.bf16.msra.mxu0 0
    %9321 = vmatprep.subr.bf16.mxu0 0
    %9322 = vmatpush1.bf16.msra.mxu0 0
    %9323 = vmatprep.subr.bf16.mxu0 0
    %9324 = vmatpush1.bf16.msra.mxu0 0
    %9325 = vmatprep.subr.bf16.mxu0 0
    %9326 = vmatpush1.bf16.msra.mxu0 0
    %9327 = vmatprep.subr.bf16.mxu0 0
    %9328 = vmatpush1.bf16.msra.mxu0 0
    %9329 = vmatprep.subr.bf16.mxu0 0
    %9330 = vmatpush1.bf16.msra.mxu0 0
    %9331 = vmatprep.subr.bf16.mxu0 0
    %9332 = vmatpush1.bf16.msra.mxu0 0
    %9333 = vmatprep.mubr.bf16.mxu0 0
    %9334 = vmatmul.mubr.bf16.gmra.mrb[0].mxu0 %v9155
    %v9335 = vpop.f32.mrb[0].mxu0
    %v9336 = vadd.f32 %v9161, %v9335
    %v9337 = vpop.f32.mrb[0].mxu0
    %v9338 = vadd.f32 %v9165, %v9337
    %v9339 = vpop.f32.mrb[0].mxu0
    %v9340 = vadd.f32 %v9161, %v9339
    %v9341 = vpop.f32.mrb[0].mxu0
    %v9342 = vadd.f32 %v9165, %v9341
    %9343 = vdwg.mxu0
    %9344 = vmatprep.subr.bf16.mxu0 0
    %9345 = vmatpush1.bf16.msra.mxu0 %v9255
    %9346 = vmatprep.subr.bf16.mxu0 0
    %9347 = vmatpush1.bf16.msra.mxu0 %v9258
    %9348 = vmatprep.subr.bf16.mxu0 0
    %9349 = vmatpush1.bf16.msra.mxu0 %v9261
    %9350 = vmatprep.subr.bf16.mxu0 0
    %9351 = vmatpush1.bf16.msra.mxu0 %v9264
    %9352 = vmatprep.subr.bf16.mxu0 0
    %9353 = vmatpush1.bf16.msra.mxu0 %v9267
    %9354 = vmatprep.subr.bf16.mxu0 0
    %9355 = vmatpush1.bf16.msra.mxu0 %v9270
    %9356 = vmatprep.subr.bf16.mxu0 0
    %9357 = vmatpush1.bf16.msra.mxu0 %v9273
    %9358 = vmatprep.subr.bf16.mxu0 0
    %9359 = vmatpush1.bf16.msra.mxu0 %v9276
    %9360 = vmatprep.subr.bf16.mxu0 0
    %9361 = vmatpush1.bf16.msra.mxu0 0
    %9362 = vmatprep.subr.bf16.mxu0 0
    %9363 = vmatpush1.bf16.msra.mxu0 0
    %9364 = vmatprep.subr.bf16.mxu0 0
    %9365 = vmatpush1.bf16.msra.mxu0 0
    %9366 = vmatprep.subr.bf16.mxu0 0
    %9367 = vmatpush1.bf16.msra.mxu0 0
    %9368 = vmatprep.subr.bf16.mxu0 0
    %9369 = vmatpush1.bf16.msra.mxu0 0
    %9370 = vmatprep.subr.bf16.mxu0 0
    %9371 = vmatpush1.bf16.msra.mxu0 0
    %9372 = vmatprep.subr.bf16.mxu0 0
    %9373 = vmatpush1.bf16.msra.mxu0 0
    %9374 = vmatprep.subr.bf16.mxu0 0
    %9375 = vmatpush1.bf16.msra.mxu0 0
    %9376 = vmatprep.mubr.bf16.mxu0 0
    %9377 = vmatmul.mubr.bf16.gmra.mrb[0].mxu0 %v9155
    %v9378 = vpop.f32.mrb[0].mxu0
    %v9379 = vadd.f32 %v9169, %v9378
    %v9380 = vpop.f32.mrb[0].mxu0
    %v9381 = vpop.f32.mrb[0].mxu0
    %v9382 = vadd.f32 %v9169, %v9381
    %v9383 = vpop.f32.mrb[0].mxu0
    %9384 = vdwg.mxu0
    %v9385 = vpack.c.bf16 %v9340, %v9336
    %9386 = vmatprep.subr.bf16.mxu0 0
    %9387 = vmatpush1.bf16.msra.mxu0 %v9385
    %9388 = vmatprep.subr.bf16.mxu0 0
    %9389 = vmatpush1.bf16.msra.mxu0 0
    %9390 = vmatprep.subr.bf16.mxu0 0
    %9391 = vmatpush1.bf16.msra.mxu0 0
    %9392 = vmatprep.subr.bf16.mxu0 0
    %9393 = vmatpush1.bf16.msra.mxu0 0
    %9394 = vmatprep.subr.bf16.mxu0 0
    %9395 = vmatpush1.bf16.msra.mxu0 0
    %9396 = vmatprep.subr.bf16.mxu0 0
    %9397 = vmatpush1.bf16.msra.mxu0 0
    %9398 = vmatprep.subr.bf16.mxu0 0
    %9399 = vmatpush1.bf16.msra.mxu0 0
    %9400 = vmatprep.subr.bf16.mxu0 0
    %9401 = vmatpush1.bf16.msra.mxu0 0
    %9402 = vmatprep.subr.bf16.mxu0 0
    %9403 = vmatpush1.bf16.msra.mxu0 0
    %9404 = vmatprep.subr.bf16.mxu0 0
    %9405 = vmatpush1.bf16.msra.mxu0 0
    %9406 = vmatprep.subr.bf16.mxu0 0
    %9407 = vmatpush1.bf16.msra.mxu0 0
    %9408 = vmatprep.subr.bf16.mxu0 0
    %9409 = vmatpush1.bf16.msra.mxu0 0
    %9410 = vmatprep.subr.bf16.mxu0 0
    %9411 = vmatpush1.bf16.msra.mxu0 0
    %9412 = vmatprep.subr.bf16.mxu0 0
    %9413 = vmatpush1.bf16.msra.mxu0 0
    %9414 = vmatprep.subr.bf16.mxu0 0
    %9415 = vmatpush1.bf16.msra.mxu0 0
    %9416 = vmatprep.subr.bf16.mxu0 0
    %9417 = vmatpush1.bf16.msra.mxu0 0
    %9418 = vmatprep.mubr.bf16.mxu0 0
    %9419 = vmatmul.mubr.bf16.gmra.mrb[0].mxu0 %v903
    %v9420 = vpop.f32.mrb[0].mxu0
    %v9421 = vadd.f32 0.0, %v9420
    %v9422 = vpop.f32.mrb[0].mxu0
    %v9423 = vpop.f32.mrb[0].mxu0
    %v9424 = vpop.f32.mrb[0].mxu0
    %9425 = vdwg.mxu0
    %v9426 = vpack.c.bf16 %v9342, %v9338
    %v9428 = vsel %vm781, %v9122, 0
    %9430 = vmatprep.subr.bf16.mxu0 0
    %9431 = vmatpush1.bf16.msra.mxu0 %v9426
    %9432 = vmatprep.subr.bf16.mxu0 0
    %9433 = vmatpush1.bf16.msra.mxu0 0
    %9434 = vmatprep.subr.bf16.mxu0 0
    %9435 = vmatpush1.bf16.msra.mxu0 0
    %9436 = vmatprep.subr.bf16.mxu0 0
    %9437 = vmatpush1.bf16.msra.mxu0 0
    %9438 = vmatprep.subr.bf16.mxu0 0
    %9439 = vmatpush1.bf16.msra.mxu0 0
    %9440 = vmatprep.subr.bf16.mxu0 0
    %9441 = vmatpush1.bf16.msra.mxu0 0
    %9442 = vmatprep.subr.bf16.mxu0 0
    %9443 = vmatpush1.bf16.msra.mxu0 0
    %9444 = vmatprep.subr.bf16.mxu0 0
    %9445 = vmatpush1.bf16.msra.mxu0 0
    %9446 = vmatprep.subr.bf16.mxu0 0
    %9447 = vmatpush1.bf16.msra.mxu0 0
    %9448 = vmatprep.subr.bf16.mxu0 0
    %9449 = vmatpush1.bf16.msra.mxu0 0
    %9450 = vmatprep.subr.bf16.mxu0 0
    %9451 = vmatpush1.bf16.msra.mxu0 0
    %9452 = vmatprep.subr.bf16.mxu0 0
    %9453 = vmatpush1.bf16.msra.mxu0 0
    %9454 = vmatprep.subr.bf16.mxu0 0
    %9455 = vmatpush1.bf16.msra.mxu0 0
    %9456 = vmatprep.subr.bf16.mxu0 0
    %9457 = vmatpush1.bf16.msra.mxu0 0
    %9458 = vmatprep.subr.bf16.mxu0 0
    %9459 = vmatpush1.bf16.msra.mxu0 0
    %9460 = vmatprep.subr.bf16.mxu0 0
    %9461 = vmatpush1.bf16.msra.mxu0 0
    %9462 = vmatprep.mubr.bf16.mxu0 0
    %9463 = vmatmul.mubr.bf16.gmra.mrb[0].mxu0 %v9428
    %v9464 = vpop.f32.mrb[0].mxu0
    %v9465 = vadd.f32 0.0, %v9464
    %v9466 = vpop.f32.mrb[0].mxu0
    %v9467 = vpop.f32.mrb[0].mxu0
    %v9468 = vpop.f32.mrb[0].mxu0
    %9469 = vdwg.mxu0
    %v9470 = vmul.f32 %v9421, %v9465
    %v9471 = vpack.c.bf16 %v9470, %v9470
    %v9488 = vunpack.c.l.b16 %v723
    %v9489 = vunpack.c.l.b16 %v724
    %v9490 = vunpack.c.l.b16 %v725
    %v9491 = vunpack.c.l.b16 %v726
    %v9492 = vunpack.c.l.b16 %v727
    %v9493 = vunpack.c.l.b16 %v728
    %v9494 = vunpack.c.l.b16 %v729
    %v9495 = vunpack.c.l.b16 %v730
    %v9496 = vunpack.c.l.b16 %v731
    %v9497 = vunpack.c.l.b16 %v732
    %v9498 = vunpack.c.l.b16 %v733
    %v9499 = vunpack.c.l.b16 %v734
    %v9500 = vunpack.c.l.b16 %v735
    %v9501 = vunpack.c.l.b16 %v736
    %v9502 = vunpack.c.l.b16 %v737
    %v9503 = vunpack.c.l.b16 %v738
    %v9504 = vpack.c.b16 %v9489, %v9488
    %v9505 = vpack.c.b16 %v9491, %v9490
    %v9506 = vpack.c.b16 %v9493, %v9492
    %v9507 = vpack.c.b16 %v9495, %v9494
    %v9508 = vpack.c.b16 %v9497, %v9496
    %v9509 = vpack.c.b16 %v9499, %v9498
    %v9510 = vpack.c.b16 %v9501, %v9500
    %v9511 = vpack.c.b16 %v9503, %v9502
    %9520 = vmatprep.subr.bf16.mxu0 0
    %9521 = vmatpush1.bf16.msra.mxu0 %v9504
    %9522 = vmatprep.subr.bf16.mxu0 0
    %9523 = vmatpush1.bf16.msra.mxu0 %v9505
    %9524 = vmatprep.subr.bf16.mxu0 0
    %9525 = vmatpush1.bf16.msra.mxu0 %v9506
    %9526 = vmatprep.subr.bf16.mxu0 0
    %9527 = vmatpush1.bf16.msra.mxu0 %v9507
    %9528 = vmatprep.subr.bf16.mxu0 0
    %9529 = vmatpush1.bf16.msra.mxu0 %v9508
    %9530 = vmatprep.subr.bf16.mxu0 0
    %9531 = vmatpush1.bf16.msra.mxu0 %v9509
    %9532 = vmatprep.subr.bf16.mxu0 0
    %9533 = vmatpush1.bf16.msra.mxu0 %v9510
    %9534 = vmatprep.subr.bf16.mxu0 0
    %9535 = vmatpush1.bf16.msra.mxu0 %v9511
    %9536 = vmatprep.subr.bf16.mxu0 0
    %9537 = vmatpush1.bf16.msra.mxu0 0
    %9538 = vmatprep.subr.bf16.mxu0 0
    %9539 = vmatpush1.bf16.msra.mxu0 0
    %9540 = vmatprep.subr.bf16.mxu0 0
    %9541 = vmatpush1.bf16.msra.mxu0 0
    %9542 = vmatprep.subr.bf16.mxu0 0
    %9543 = vmatpush1.bf16.msra.mxu0 0
    %9544 = vmatprep.subr.bf16.mxu0 0
    %9545 = vmatpush1.bf16.msra.mxu0 0
    %9546 = vmatprep.subr.bf16.mxu0 0
    %9547 = vmatpush1.bf16.msra.mxu0 0
    %9548 = vmatprep.subr.bf16.mxu0 0
    %9549 = vmatpush1.bf16.msra.mxu0 0
    %9550 = vmatprep.subr.bf16.mxu0 0
    %9551 = vmatpush1.bf16.msra.mxu0 0
    %9552 = vmatprep.mubr.bf16.mxu0 0
    %9553 = vmatmul.mubr.bf16.gmra.mrb[0].mxu0 %v9471
    %v9554 = vpop.f32.mrb[0].mxu0
    %v9555 = vadd.f32 0.0, %v9554
    %v9556 = vpop.f32.mrb[0].mxu0
    %v9557 = vpop.f32.mrb[0].mxu0
    %v9558 = vpop.f32.mrb[0].mxu0
    %9559 = vdwg.mxu0
    %v9560 = vmul.f32 %v9555, 0.25
    %v9561 = vsel %vm958, %v9560, -inf
    %v9562 = vrot.slane %v9561, 4
    %v9563 = vmax.f32 %v9561, %v9562
    %v9564 = vrot.slane %v9563, 2
    %v9565 = vmax.f32 %v9563, %v9564
    %v9566 = vrot.slane %v9565, 1
    %v9567 = vmax.f32 %v9565, %v9566
    %v9568 = vsub.f32 %v9560, %v9567
    %v9569 = vmul.f32 %v9568, 1.442695
    %v9570 = vpow.pop %v9569
    %v9571 = vsel %vm958, %v9570, 0.0
    %v9572 = vrot.slane %v9571, 4
    %v9573 = vadd.f32 %v9571, %v9572
    %v9574 = vrot.slane %v9573, 2
    %v9575 = vadd.f32 %v9573, %v9574
    %v9576 = vrot.slane %v9575, 1
    %v9577 = vadd.f32 %v9575, %v9576
    %v9578 = vrcp.pop %v9577
    %v9579 = vmul.f32 %v9570, %v9578
    %v9580 = vpack.c.bf16 %v9382, %v9379
    %9581 = vmatprep.subr.bf16.mxu0 0
    %9582 = vmatpush1.bf16.msra.mxu0 %v9580
    %9583 = vmatprep.subr.bf16.mxu0 0
    %9584 = vmatpush1.bf16.msra.mxu0 0
    %9585 = vmatprep.subr.bf16.mxu0 0
    %9586 = vmatpush1.bf16.msra.mxu0 0
    %9587 = vmatprep.subr.bf16.mxu0 0
    %9588 = vmatpush1.bf16.msra.mxu0 0
    %9589 = vmatprep.subr.bf16.mxu0 0
    %9590 = vmatpush1.bf16.msra.mxu0 0
    %9591 = vmatprep.subr.bf16.mxu0 0
    %9592 = vmatpush1.bf16.msra.mxu0 0
    %9593 = vmatprep.subr.bf16.mxu0 0
    %9594 = vmatpush1.bf16.msra.mxu0 0
    %9595 = vmatprep.subr.bf16.mxu0 0
    %9596 = vmatpush1.bf16.msra.mxu0 0
    %9597 = vmatprep.subr.bf16.mxu0 0
    %9598 = vmatpush1.bf16.msra.mxu0 0
    %9599 = vmatprep.subr.bf16.mxu0 0
    %9600 = vmatpush1.bf16.msra.mxu0 0
    %9601 = vmatprep.subr.bf16.mxu0 0
    %9602 = vmatpush1.bf16.msra.mxu0 0
    %9603 = vmatprep.subr.bf16.mxu0 0
    %9604 = vmatpush1.bf16.msra.mxu0 0
    %9605 = vmatprep.subr.bf16.mxu0 0
    %9606 = vmatpush1.bf16.msra.mxu0 0
    %9607 = vmatprep.subr.bf16.mxu0 0
    %9608 = vmatpush1.bf16.msra.mxu0 0
    %9609 = vmatprep.subr.bf16.mxu0 0
    %9610 = vmatpush1.bf16.msra.mxu0 0
    %9611 = vmatprep.subr.bf16.mxu0 0
    %9612 = vmatpush1.bf16.msra.mxu0 0
    %9613 = vmatprep.mubr.bf16.mxu0 0
    %9614 = vmatmul.mubr.bf16.gmra.mrb[0].mxu0 %v9428
    %v9615 = vpop.f32.mrb[0].mxu0
    %v9616 = vadd.f32 0.0, %v9615
    %v9617 = vpop.f32.mrb[0].mxu0
    %v9618 = vpop.f32.mrb[0].mxu0
    %v9619 = vpop.f32.mrb[0].mxu0
    %9620 = vdwg.mxu0
    %v9621 = vpack.c.bf16 %v9579, %v9579
    %v9623 = vsel %vm958, %v9621, 0
    %v9626 = vsel %vm962, %v722, 0
    %9628 = vmatprep.subr.bf16.mxu0 0
    %9629 = vmatpush1.bf16.msra.mxu0 %v9626
    %9630 = vmatprep.subr.bf16.mxu0 0
    %9631 = vmatpush1.bf16.msra.mxu0 0
    %9632 = vmatprep.subr.bf16.mxu0 0
    %9633 = vmatpush1.bf16.msra.mxu0 0
    %9634 = vmatprep.subr.bf16.mxu0 0
    %9635 = vmatpush1.bf16.msra.mxu0 0
    %9636 = vmatprep.subr.bf16.mxu0 0
    %9637 = vmatpush1.bf16.msra.mxu0 0
    %9638 = vmatprep.subr.bf16.mxu0 0
    %9639 = vmatpush1.bf16.msra.mxu0 0
    %9640 = vmatprep.subr.bf16.mxu0 0
    %9641 = vmatpush1.bf16.msra.mxu0 0
    %9642 = vmatprep.subr.bf16.mxu0 0
    %9643 = vmatpush1.bf16.msra.mxu0 0
    %9644 = vmatprep.subr.bf16.mxu0 0
    %9645 = vmatpush1.bf16.msra.mxu0 0
    %9646 = vmatprep.subr.bf16.mxu0 0
    %9647 = vmatpush1.bf16.msra.mxu0 0
    %9648 = vmatprep.subr.bf16.mxu0 0
    %9649 = vmatpush1.bf16.msra.mxu0 0
    %9650 = vmatprep.subr.bf16.mxu0 0
    %9651 = vmatpush1.bf16.msra.mxu0 0
    %9652 = vmatprep.subr.bf16.mxu0 0
    %9653 = vmatpush1.bf16.msra.mxu0 0
    %9654 = vmatprep.subr.bf16.mxu0 0
    %9655 = vmatpush1.bf16.msra.mxu0 0
    %9656 = vmatprep.subr.bf16.mxu0 0
    %9657 = vmatpush1.bf16.msra.mxu0 0
    %9658 = vmatprep.subr.bf16.mxu0 0
    %9659 = vmatpush1.bf16.msra.mxu0 0
    %9660 = vmatprep.mubr.bf16.mxu0 0
    %9661 = vmatmul.mubr.bf16.gmra.mrb[0].mxu0 %v9623
    %v9662 = vpop.f32.mrb[0].mxu0
    %v9663 = vadd.f32 0.0, %v9662
    %v9664 = vpop.f32.mrb[0].mxu0
    %v9665 = vpop.f32.mrb[0].mxu0
    %v9666 = vpop.f32.mrb[0].mxu0
    %9667 = vdwg.mxu0
    %v9668 = vmul.f32 %v9616, %v9663
    %v9669 = vpack.c.bf16 %v9668, %v9668
    %v9671 = vsel %vm958, %v946, 0
    %v9674 = vsel %vm962, %v9669, 0
    %9676 = vmatprep.subr.bf16.mxu0 0
    %9677 = vmatpush1.bf16.msra.mxu0 %v9674
    %9678 = vmatprep.subr.bf16.mxu0 0
    %9679 = vmatpush1.bf16.msra.mxu0 0
    %9680 = vmatprep.subr.bf16.mxu0 0
    %9681 = vmatpush1.bf16.msra.mxu0 0
    %9682 = vmatprep.subr.bf16.mxu0 0
    %9683 = vmatpush1.bf16.msra.mxu0 0
    %9684 = vmatprep.subr.bf16.mxu0 0
    %9685 = vmatpush1.bf16.msra.mxu0 0
    %9686 = vmatprep.subr.bf16.mxu0 0
    %9687 = vmatpush1.bf16.msra.mxu0 0
    %9688 = vmatprep.subr.bf16.mxu0 0
    %9689 = vmatpush1.bf16.msra.mxu0 0
    %9690 = vmatprep.subr.bf16.mxu0 0
    %9691 = vmatpush1.bf16.msra.mxu0 0
    %9692 = vmatprep.subr.bf16.mxu0 0
    %9693 = vmatpush1.bf16.msra.mxu0 0
    %9694 = vmatprep.subr.bf16.mxu0 0
    %9695 = vmatpush1.bf16.msra.mxu0 0
    %9696 = vmatprep.subr.bf16.mxu0 0
    %9697 = vmatpush1.bf16.msra.mxu0 0
    %9698 = vmatprep.subr.bf16.mxu0 0
    %9699 = vmatpush1.bf16.msra.mxu0 0
    %9700 = vmatprep.subr.bf16.mxu0 0
    %9701 = vmatpush1.bf16.msra.mxu0 0
    %9702 = vmatprep.subr.bf16.mxu0 0
    %9703 = vmatpush1.bf16.msra.mxu0 0
    %9704 = vmatprep.subr.bf16.mxu0 0
    %9705 = vmatpush1.bf16.msra.mxu0 0
    %9706 = vmatprep.subr.bf16.mxu0 0
    %9707 = vmatpush1.bf16.msra.mxu0 0
    %9708 = vmatprep.mubr.bf16.mxu0 0
    %9709 = vmatmul.mubr.bf16.gmra.mrb[0].mxu0 %v9671
    %v9710 = vpop.f32.mrb[0].mxu0
    %v9711 = vadd.f32 0.0, %v9710
    %v9712 = vpop.f32.mrb[0].mxu0
    %v9713 = vpop.f32.mrb[0].mxu0
    %v9714 = vadd.f32 0.0, %v9713
    %v9715 = vpop.f32.mrb[0].mxu0
    %9716 = vdwg.mxu0
    %v9717 = vld [vmem:[#allocation16] sm:$0xf]
    %v9718 = vld [vmem:[#allocation16 + $0x4] sm:$0xf]
    %v9719 = vld [vmem:[#allocation16 + $0x8] sm:$0xf]
    %v9720 = vld [vmem:[#allocation16 + $0xc] sm:$0xf]
    %v9721 = vld [vmem:[#allocation16 + $0x10] sm:$0xf]
    %v9722 = vld [vmem:[#allocation16 + $0x14] sm:$0xf]
    %v9723 = vld [vmem:[#allocation16 + $0x18] sm:$0xf]
    %v9724 = vld [vmem:[#allocation16 + $0x1c] sm:$0xf]
    %v9725 = vld [vmem:[#allocation16 + $0x20] sm:$0xf]
    %v9726 = vld [vmem:[#allocation16 + $0x24] sm:$0xf]
    %v9727 = vld [vmem:[#allocation16 + $0x28] sm:$0xf]
    %v9728 = vld [vmem:[#allocation16 + $0x2c] sm:$0xf]
    %v9729 = vld [vmem:[#allocation16 + $0x30] sm:$0xf]
    %v9730 = vld [vmem:[#allocation16 + $0x34] sm:$0xf]
    %v9731 = vld [vmem:[#allocation16 + $0x38] sm:$0xf]
    %v9732 = vld [vmem:[#allocation16 + $0x3c] sm:$0xf]
    %v9733 = vpack.c.bf16 %v9714, %v9711
    %v9750 = vunpack.c.l.b16 %v9717
    %v9751 = vunpack.c.l.b16 %v9718
    %v9752 = vunpack.c.l.b16 %v9719
    %v9753 = vunpack.c.l.b16 %v9720
    %v9754 = vunpack.c.l.b16 %v9721
    %v9755 = vunpack.c.l.b16 %v9722
    %v9756 = vunpack.c.l.b16 %v9723
    %v9757 = vunpack.c.l.b16 %v9724
    %v9758 = vunpack.c.l.b16 %v9725
    %v9759 = vunpack.c.l.b16 %v9726
    %v9760 = vunpack.c.l.b16 %v9727
    %v9761 = vunpack.c.l.b16 %v9728
    %v9762 = vunpack.c.l.b16 %v9729
    %v9763 = vunpack.c.l.b16 %v9730
    %v9764 = vunpack.c.l.b16 %v9731
    %v9765 = vunpack.c.l.b16 %v9732
    %v9766 = vpack.c.b16 %v9751, %v9750
    %v9767 = vpack.c.b16 %v9753, %v9752
    %v9768 = vpack.c.b16 %v9755, %v9754
    %v9769 = vpack.c.b16 %v9757, %v9756
    %v9770 = vpack.c.b16 %v9759, %v9758
    %v9771 = vpack.c.b16 %v9761, %v9760
    %v9772 = vpack.c.b16 %v9763, %v9762
    %v9773 = vpack.c.b16 %v9765, %v9764
    %9782 = vmatprep.subr.bf16.mxu0 0
    %9783 = vmatpush1.bf16.msra.mxu0 %v9766
    %9784 = vmatprep.subr.bf16.mxu0 0
    %9785 = vmatpush1.bf16.msra.mxu0 %v9767
    %9786 = vmatprep.subr.bf16.mxu0 0
    %9787 = vmatpush1.bf16.msra.mxu0 %v9768
    %9788 = vmatprep.subr.bf16.mxu0 0
    %9789 = vmatpush1.bf16.msra.mxu0 %v9769
    %9790 = vmatprep.subr.bf16.mxu0 0
    %9791 = vmatpush1.bf16.msra.mxu0 %v9770
    %9792 = vmatprep.subr.bf16.mxu0 0
    %9793 = vmatpush1.bf16.msra.mxu0 %v9771
    %9794 = vmatprep.subr.bf16.mxu0 0
    %9795 = vmatpush1.bf16.msra.mxu0 %v9772
    %9796 = vmatprep.subr.bf16.mxu0 0
    %9797 = vmatpush1.bf16.msra.mxu0 %v9773
    %9798 = vmatprep.subr.bf16.mxu0 0
    %9799 = vmatpush1.bf16.msra.mxu0 0
    %9800 = vmatprep.subr.bf16.mxu0 0
    %9801 = vmatpush1.bf16.msra.mxu0 0
    %9802 = vmatprep.subr.bf16.mxu0 0
    %9803 = vmatpush1.bf16.msra.mxu0 0
    %9804 = vmatprep.subr.bf16.mxu0 0
    %9805 = vmatpush1.bf16.msra.mxu0 0
    %9806 = vmatprep.subr.bf16.mxu0 0
    %9807 = vmatpush1.bf16.msra.mxu0 0
    %9808 = vmatprep.subr.bf16.mxu0 0
    %9809 = vmatpush1.bf16.msra.mxu0 0
    %9810 = vmatprep.subr.bf16.mxu0 0
    %9811 = vmatpush1.bf16.msra.mxu0 0
    %9812 = vmatprep.subr.bf16.mxu0 0
    %9813 = vmatpush1.bf16.msra.mxu0 0
    %9814 = vmatprep.mubr.bf16.mxu0 0
    %9815 = vmatmul.mubr.bf16.gmra.mrb[0].mxu0 %v9733
    %v9816 = vpop.f32.mrb[0].mxu0
    %v9817 = vadd.f32 0.0, %v9816
    %v9818 = vpop.f32.mrb[0].mxu0
    %v9819 = vpop.f32.mrb[0].mxu0
    %v9820 = vadd.f32 0.0, %v9819
    %v9821 = vpop.f32.mrb[0].mxu0
    %9822 = vdwg.mxu0
    %v9823 = vadd.f32 %v9120, %v9817
    %v9824 = vadd.f32 %v9121, %v9820
    %v9825 = vld [vmem:[#allocation18] sm:$0x1]
    %v9827 = vlaneseq
    %v9828 = vshrl.u32 %v9827, 7
    %v9829 = vsub.s32 0, %v9828
    %v9830 = vrot.slane %v9825, %v9829
    %v9832 = vadd.f32 %v9823, %v9830
    %v9833 = vadd.f32 %v9824, %v9830
    %v9834 = vld [vmem:[%s21] sm:$0xff]
    %v9835 = vld [vmem:[%s21 + $0x8] sm:$0xff]
    %v9836 = vld [vmem:[%s21 + $0x10] sm:$0xff]
    %v9837 = vld [vmem:[%s21 + $0x18] sm:$0xff]
    %v9838 = vld [vmem:[%s21 + $0x20] sm:$0xff]
    %v9839 = vld [vmem:[%s21 + $0x28] sm:$0xff]
    %v9840 = vld [vmem:[%s21 + $0x30] sm:$0xff]
    %v9841 = vld [vmem:[%s21 + $0x38] sm:$0xff]
    %v9842 = vld [vmem:[%s21 + $0x40] sm:$0xff]
    %v9843 = vld [vmem:[%s21 + $0x48] sm:$0xff]
    %v9844 = vld [vmem:[%s21 + $0x50] sm:$0xff]
    %v9845 = vld [vmem:[%s21 + $0x58] sm:$0xff]
    %v9846 = vld [vmem:[%s21 + $0x60] sm:$0xff]
    %v9847 = vld [vmem:[%s21 + $0x68] sm:$0xff]
    %v9848 = vld [vmem:[%s21 + $0x70] sm:$0xff]
    %v9849 = vld [vmem:[%s21 + $0x78] sm:$0xff]
    %v9850 = vpack.c.bf16 %v9833, %v9832
    %v9851 = vld [vmem:[#allocation10] sm:$0x3]
    %v9853 = vlaneseq
    %v9854 = vshrl.u32 %v9853, 7
    %v9855 = vsub.s32 0, %v9854
    %v9856 = vrot.slane %v9851, %v9855
    %v9857 = vlaneseq
    %v9858 = vshrl.u32 %v9857, 7
    %v9859 = vsub.s32 1, %v9858
    %v9860 = vrot.slane %v9851, %v9859
    %v9879 = vunpack.c.l.b16 %v9834
    %v9880 = vunpack.c.h.b16 %v9834
    %v9881 = vunpack.c.l.b16 %v9835
    %v9882 = vunpack.c.h.b16 %v9835
    %v9883 = vunpack.c.l.b16 %v9836
    %v9884 = vunpack.c.h.b16 %v9836
    %v9885 = vunpack.c.l.b16 %v9837
    %v9886 = vunpack.c.h.b16 %v9837
    %v9887 = vunpack.c.l.b16 %v9838
    %v9888 = vunpack.c.h.b16 %v9838
    %v9889 = vunpack.c.l.b16 %v9839
    %v9890 = vunpack.c.h.b16 %v9839
    %v9891 = vunpack.c.l.b16 %v9840
    %v9892 = vunpack.c.h.b16 %v9840
    %v9893 = vunpack.c.l.b16 %v9841
    %v9894 = vunpack.c.h.b16 %v9841
    %v9895 = vunpack.c.l.b16 %v9842
    %v9896 = vunpack.c.h.b16 %v9842
    %v9897 = vunpack.c.l.b16 %v9843
    %v9898 = vunpack.c.h.b16 %v9843
    %v9899 = vunpack.c.l.b16 %v9844
    %v9900 = vunpack.c.h.b16 %v9844
    %v9901 = vunpack.c.l.b16 %v9845
    %v9902 = vunpack.c.h.b16 %v9845
    %v9903 = vunpack.c.l.b16 %v9846
    %v9904 = vunpack.c.h.b16 %v9846
    %v9905 = vunpack.c.l.b16 %v9847
    %v9906 = vunpack.c.h.b16 %v9847
    %v9907 = vunpack.c.l.b16 %v9848
    %v9908 = vunpack.c.h.b16 %v9848
    %v9909 = vunpack.c.l.b16 %v9849
    %v9910 = vunpack.c.h.b16 %v9849
    %v9911 = vpack.c.b16 %v9881, %v9879
    %v9912 = vpack.c.b16 %v9882, %v9880
    %v9913 = vpack.c.b16 %v9885, %v9883
    %v9914 = vpack.c.b16 %v9886, %v9884
    %v9915 = vpack.c.b16 %v9889, %v9887
    %v9916 = vpack.c.b16 %v9890, %v9888
    %v9917 = vpack.c.b16 %v9893, %v9891
    %v9918 = vpack.c.b16 %v9894, %v9892
    %v9919 = vpack.c.b16 %v9897, %v9895
    %v9920 = vpack.c.b16 %v9898, %v9896
    %v9921 = vpack.c.b16 %v9901, %v9899
    %v9922 = vpack.c.b16 %v9902, %v9900
    %v9923 = vpack.c.b16 %v9905, %v9903
    %v9924 = vpack.c.b16 %v9906, %v9904
    %v9925 = vpack.c.b16 %v9909, %v9907
    %v9926 = vpack.c.b16 %v9910, %v9908
    %9943 = vmatprep.subr.bf16.mxu0 %v9912
    %9944 = vmatpush1.bf16.msra.mxu0 %v9911
    %9945 = vmatprep.subr.bf16.mxu0 %v9914
    %9946 = vmatpush1.bf16.msra.mxu0 %v9913
    %9947 = vmatprep.subr.bf16.mxu0 %v9916
    %9948 = vmatpush1.bf16.msra.mxu0 %v9915
    %9949 = vmatprep.subr.bf16.mxu0 %v9918
    %9950 = vmatpush1.bf16.msra.mxu0 %v9917
    %9951 = vmatprep.subr.bf16.mxu0 %v9920
    %9952 = vmatpush1.bf16.msra.mxu0 %v9919
    %9953 = vmatprep.subr.bf16.mxu0 %v9922
    %9954 = vmatpush1.bf16.msra.mxu0 %v9921
    %9955 = vmatprep.subr.bf16.mxu0 %v9924
    %9956 = vmatpush1.bf16.msra.mxu0 %v9923
    %9957 = vmatprep.subr.bf16.mxu0 %v9926
    %9958 = vmatpush1.bf16.msra.mxu0 %v9925
    %9959 = vmatprep.subr.bf16.mxu0 0
    %9960 = vmatpush1.bf16.msra.mxu0 0
    %9961 = vmatprep.subr.bf16.mxu0 0
    %9962 = vmatpush1.bf16.msra.mxu0 0
    %9963 = vmatprep.subr.bf16.mxu0 0
    %9964 = vmatpush1.bf16.msra.mxu0 0
    %9965 = vmatprep.subr.bf16.mxu0 0
    %9966 = vmatpush1.bf16.msra.mxu0 0
    %9967 = vmatprep.subr.bf16.mxu0 0
    %9968 = vmatpush1.bf16.msra.mxu0 0
    %9969 = vmatprep.subr.bf16.mxu0 0
    %9970 = vmatpush1.bf16.msra.mxu0 0
    %9971 = vmatprep.subr.bf16.mxu0 0
    %9972 = vmatpush1.bf16.msra.mxu0 0
    %9973 = vmatprep.subr.bf16.mxu0 0
    %9974 = vmatpush1.bf16.msra.mxu0 0
    %9975 = vmatprep.mubr.bf16.mxu0 0
    %9976 = vmatmul.mubr.bf16.gmra.mrb[0].mxu0 %v9850
    %v9977 = vpop.f32.mrb[0].mxu0
    %v9978 = vadd.f32 %v9856, %v9977
    %v9979 = vpop.f32.mrb[0].mxu0
    %v9980 = vadd.f32 %v9860, %v9979
    %v9981 = vpop.f32.mrb[0].mxu0
    %v9982 = vadd.f32 %v9856, %v9981
    %v9983 = vpop.f32.mrb[0].mxu0
    %v9984 = vadd.f32 %v9860, %v9983
    %9985 = vdwg.mxu0
    %v9986 = vmax.f32 %v9978, 0.0
    %v9987 = vmax.f32 %v9980, 0.0
    %v9988 = vmax.f32 %v9982, 0.0
    %v9989 = vmax.f32 %v9984, 0.0
    %v9990 = vld [vmem:[#allocation7] sm:$0xf]
    %v9991 = vld [vmem:[#allocation7 + $0x4] sm:$0xf]
    %v9992 = vld [vmem:[#allocation7 + $0x8] sm:$0xf]
    %v9993 = vld [vmem:[#allocation7 + $0xc] sm:$0xf]
    %v9994 = vld [vmem:[#allocation7 + $0x10] sm:$0xf]
    %v9995 = vld [vmem:[#allocation7 + $0x14] sm:$0xf]
    %v9996 = vld [vmem:[#allocation7 + $0x18] sm:$0xf]
    %v9997 = vld [vmem:[#allocation7 + $0x1c] sm:$0xf]
    %v9998 = vld [vmem:[#allocation7 + $0x20] sm:$0xf]
    %v9999 = vld [vmem:[#allocation7 + $0x24] sm:$0xf]
    %v10000 = vld [vmem:[#allocation7 + $0x28] sm:$0xf]
    %v10001 = vld [vmem:[#allocation7 + $0x2c] sm:$0xf]
    %v10002 = vld [vmem:[#allocation7 + $0x30] sm:$0xf]
    %v10003 = vld [vmem:[#allocation7 + $0x34] sm:$0xf]
    %v10004 = vld [vmem:[#allocation7 + $0x38] sm:$0xf]
    %v10005 = vld [vmem:[#allocation7 + $0x3c] sm:$0xf]
    %v10006 = vld [vmem:[#allocation7 + $0x40] sm:$0xf]
    %v10007 = vld [vmem:[#allocation7 + $0x44] sm:$0xf]
    %v10008 = vld [vmem:[#allocation7 + $0x48] sm:$0xf]
    %v10009 = vld [vmem:[#allocation7 + $0x4c] sm:$0xf]
    %v10010 = vld [vmem:[#allocation7 + $0x50] sm:$0xf]
    %v10011 = vld [vmem:[#allocation7 + $0x54] sm:$0xf]
    %v10012 = vld [vmem:[#allocation7 + $0x58] sm:$0xf]
    %v10013 = vld [vmem:[#allocation7 + $0x5c] sm:$0xf]
    %v10014 = vld [vmem:[#allocation7 + $0x60] sm:$0xf]
    %v10015 = vld [vmem:[#allocation7 + $0x64] sm:$0xf]
    %v10016 = vld [vmem:[#allocation7 + $0x68] sm:$0xf]
    %v10017 = vld [vmem:[#allocation7 + $0x6c] sm:$0xf]
    %v10018 = vld [vmem:[#allocation7 + $0x70] sm:$0xf]
    %v10019 = vld [vmem:[#allocation7 + $0x74] sm:$0xf]
    %v10020 = vld [vmem:[#allocation7 + $0x78] sm:$0xf]
    %v10021 = vld [vmem:[#allocation7 + $0x7c] sm:$0xf]
    %v10022 = vpack.c.bf16 %v9988, %v9986
    %v10023 = vpack.c.bf16 %v9989, %v9987
    %v10024 = vld [vmem:[#allocation12] sm:$0x1]
    %v10026 = vlaneseq
    %v10027 = vshrl.u32 %v10026, 7
    %v10028 = vsub.s32 0, %v10027
    %v10029 = vrot.slane %v10024, %v10028
    %v10063 = vunpack.c.l.b16 %v9990
    %v10064 = vunpack.c.l.b16 %v9991
    %v10065 = vunpack.c.l.b16 %v9992
    %v10066 = vunpack.c.l.b16 %v9993
    %v10067 = vunpack.c.l.b16 %v9994
    %v10068 = vunpack.c.l.b16 %v9995
    %v10069 = vunpack.c.l.b16 %v9996
    %v10070 = vunpack.c.l.b16 %v9997
    %v10071 = vunpack.c.l.b16 %v9998
    %v10072 = vunpack.c.l.b16 %v9999
    %v10073 = vunpack.c.l.b16 %v10000
    %v10074 = vunpack.c.l.b16 %v10001
    %v10075 = vunpack.c.l.b16 %v10002
    %v10076 = vunpack.c.l.b16 %v10003
    %v10077 = vunpack.c.l.b16 %v10004
    %v10078 = vunpack.c.l.b16 %v10005
    %v10079 = vunpack.c.l.b16 %v10006
    %v10080 = vunpack.c.l.b16 %v10007
    %v10081 = vunpack.c.l.b16 %v10008
    %v10082 = vunpack.c.l.b16 %v10009
    %v10083 = vunpack.c.l.b16 %v10010
    %v10084 = vunpack.c.l.b16 %v10011
    %v10085 = vunpack.c.l.b16 %v10012
    %v10086 = vunpack.c.l.b16 %v10013
    %v10087 = vunpack.c.l.b16 %v10014
    %v10088 = vunpack.c.l.b16 %v10015
    %v10089 = vunpack.c.l.b16 %v10016
    %v10090 = vunpack.c.l.b16 %v10017
    %v10091 = vunpack.c.l.b16 %v10018
    %v10092 = vunpack.c.l.b16 %v10019
    %v10093 = vunpack.c.l.b16 %v10020
    %v10094 = vunpack.c.l.b16 %v10021
    %v10095 = vpack.c.b16 %v10064, %v10063
    %v10096 = vpack.c.b16 %v10066, %v10065
    %v10097 = vpack.c.b16 %v10068, %v10067
    %v10098 = vpack.c.b16 %v10070, %v10069
    %v10099 = vpack.c.b16 %v10072, %v10071
    %v10100 = vpack.c.b16 %v10074, %v10073
    %v10101 = vpack.c.b16 %v10076, %v10075
    %v10102 = vpack.c.b16 %v10078, %v10077
    %v10103 = vpack.c.b16 %v10080, %v10079
    %v10104 = vpack.c.b16 %v10082, %v10081
    %v10105 = vpack.c.b16 %v10084, %v10083
    %v10106 = vpack.c.b16 %v10086, %v10085
    %v10107 = vpack.c.b16 %v10088, %v10087
    %v10108 = vpack.c.b16 %v10090, %v10089
    %v10109 = vpack.c.b16 %v10092, %v10091
    %v10110 = vpack.c.b16 %v10094, %v10093
    %10127 = vmatprep.subr.bf16.mxu0 0
    %10128 = vmatpush1.bf16.msra.mxu0 %v10095
    %10129 = vmatprep.subr.bf16.mxu0 0
    %10130 = vmatpush1.bf16.msra.mxu0 %v10096
    %10131 = vmatprep.subr.bf16.mxu0 0
    %10132 = vmatpush1.bf16.msra.mxu0 %v10097
    %10133 = vmatprep.subr.bf16.mxu0 0
    %10134 = vmatpush1.bf16.msra.mxu0 %v10098
    %10135 = vmatprep.subr.bf16.mxu0 0
    %10136 = vmatpush1.bf16.msra.mxu0 %v10099
    %10137 = vmatprep.subr.bf16.mxu0 0
    %10138 = vmatpush1.bf16.msra.mxu0 %v10100
    %10139 = vmatprep.subr.bf16.mxu0 0
    %10140 = vmatpush1.bf16.msra.mxu0 %v10101
    %10141 = vmatprep.subr.bf16.mxu0 0
    %10142 = vmatpush1.bf16.msra.mxu0 %v10102
    %10143 = vmatprep.subr.bf16.mxu0 0
    %10144 = vmatpush1.bf16.msra.mxu0 %v10103
    %10145 = vmatprep.subr.bf16.mxu0 0
    %10146 = vmatpush1.bf16.msra.mxu0 %v10104
    %10147 = vmatprep.subr.bf16.mxu0 0
    %10148 = vmatpush1.bf16.msra.mxu0 %v10105
    %10149 = vmatprep.subr.bf16.mxu0 0
    %10150 = vmatpush1.bf16.msra.mxu0 %v10106
    %10151 = vmatprep.subr.bf16.mxu0 0
    %10152 = vmatpush1.bf16.msra.mxu0 %v10107
    %10153 = vmatprep.subr.bf16.mxu0 0
    %10154 = vmatpush1.bf16.msra.mxu0 %v10108
    %10155 = vmatprep.subr.bf16.mxu0 0
    %10156 = vmatpush1.bf16.msra.mxu0 %v10109
    %10157 = vmatprep.subr.bf16.mxu0 0
    %10158 = vmatpush1.bf16.msra.mxu0 %v10110
    %10159 = vmatprep.mubr.bf16.mxu0 %v10023
    %10160 = vmatmul.mubr.bf16.gmra.mrb[0].mxu0 %v10022
    %v10161 = vpop.f32.mrb[0].mxu0
    %v10162 = vadd.f32 %v10029, %v10161
    %v10163 = vpop.f32.mrb[0].mxu0
    %v10164 = vpop.f32.mrb[0].mxu0
    %v10165 = vadd.f32 %v10029, %v10164
    %v10166 = vpop.f32.mrb[0].mxu0
    %10167 = vdwg.mxu0
    %v10168 = vmax.f32 %v10162, 0.0
    %v10169 = vmax.f32 %v10165, 0.0
    %v10170 = vld [vmem:[#allocation9] sm:$0xf]
    %v10171 = vld [vmem:[#allocation9 + $0x4] sm:$0xf]
    %v10172 = vld [vmem:[#allocation9 + $0x8] sm:$0xf]
    %v10173 = vld [vmem:[#allocation9 + $0xc] sm:$0xf]
    %v10174 = vld [vmem:[#allocation9 + $0x10] sm:$0xf]
    %v10175 = vld [vmem:[#allocation9 + $0x14] sm:$0xf]
    %v10176 = vld [vmem:[#allocation9 + $0x18] sm:$0xf]
    %v10177 = vld [vmem:[#allocation9 + $0x1c] sm:$0xf]
    %v10178 = vld [vmem:[#allocation9 + $0x20] sm:$0xf]
    %v10179 = vld [vmem:[#allocation9 + $0x24] sm:$0xf]
    %v10180 = vld [vmem:[#allocation9 + $0x28] sm:$0xf]
    %v10181 = vld [vmem:[#allocation9 + $0x2c] sm:$0xf]
    %v10182 = vld [vmem:[#allocation9 + $0x30] sm:$0xf]
    %v10183 = vld [vmem:[#allocation9 + $0x34] sm:$0xf]
    %v10184 = vld [vmem:[#allocation9 + $0x38] sm:$0xf]
    %v10185 = vld [vmem:[#allocation9 + $0x3c] sm:$0xf]
    %v10186 = vpack.c.bf16 %v10169, %v10168
    %v10187 = vld [vmem:[#allocation13] sm:$0x1]
    %v10189 = vlaneseq
    %v10190 = vshrl.u32 %v10189, 7
    %v10191 = vsub.s32 0, %v10190
    %v10192 = vrot.slane %v10187, %v10191
    %v10210 = vunpack.c.l.b16 %v10170
    %v10211 = vunpack.c.l.b16 %v10171
    %v10212 = vunpack.c.l.b16 %v10172
    %v10213 = vunpack.c.l.b16 %v10173
    %v10214 = vunpack.c.l.b16 %v10174
    %v10215 = vunpack.c.l.b16 %v10175
    %v10216 = vunpack.c.l.b16 %v10176
    %v10217 = vunpack.c.l.b16 %v10177
    %v10218 = vunpack.c.l.b16 %v10178
    %v10219 = vunpack.c.l.b16 %v10179
    %v10220 = vunpack.c.l.b16 %v10180
    %v10221 = vunpack.c.l.b16 %v10181
    %v10222 = vunpack.c.l.b16 %v10182
    %v10223 = vunpack.c.l.b16 %v10183
    %v10224 = vunpack.c.l.b16 %v10184
    %v10225 = vunpack.c.l.b16 %v10185
    %v10226 = vpack.c.b16 %v10211, %v10210
    %v10227 = vpack.c.b16 %v10213, %v10212
    %v10228 = vpack.c.b16 %v10215, %v10214
    %v10229 = vpack.c.b16 %v10217, %v10216
    %v10230 = vpack.c.b16 %v10219, %v10218
    %v10231 = vpack.c.b16 %v10221, %v10220
    %v10232 = vpack.c.b16 %v10223, %v10222
    %v10233 = vpack.c.b16 %v10225, %v10224
    %10242 = vmatprep.subr.bf16.mxu0 0
    %10243 = vmatpush1.bf16.msra.mxu0 %v10226
    %10244 = vmatprep.subr.bf16.mxu0 0
    %10245 = vmatpush1.bf16.msra.mxu0 %v10227
    %10246 = vmatprep.subr.bf16.mxu0 0
    %10247 = vmatpush1.bf16.msra.mxu0 %v10228
    %10248 = vmatprep.subr.bf16.mxu0 0
    %10249 = vmatpush1.bf16.msra.mxu0 %v10229
    %10250 = vmatprep.subr.bf16.mxu0 0
    %10251 = vmatpush1.bf16.msra.mxu0 %v10230
    %10252 = vmatprep.subr.bf16.mxu0 0
    %10253 = vmatpush1.bf16.msra.mxu0 %v10231
    %10254 = vmatprep.subr.bf16.mxu0 0
    %10255 = vmatpush1.bf16.msra.mxu0 %v10232
    %10256 = vmatprep.subr.bf16.mxu0 0
    %10257 = vmatpush1.bf16.msra.mxu0 %v10233
    %10258 = vmatprep.subr.bf16.mxu0 0
    %10259 = vmatpush1.bf16.msra.mxu0 0
    %10260 = vmatprep.subr.bf16.mxu0 0
    %10261 = vmatpush1.bf16.msra.mxu0 0
    %10262 = vmatprep.subr.bf16.mxu0 0
    %10263 = vmatpush1.bf16.msra.mxu0 0
    %10264 = vmatprep.subr.bf16.mxu0 0
    %10265 = vmatpush1.bf16.msra.mxu0 0
    %10266 = vmatprep.subr.bf16.mxu0 0
    %10267 = vmatpush1.bf16.msra.mxu0 0
    %10268 = vmatprep.subr.bf16.mxu0 0
    %10269 = vmatpush1.bf16.msra.mxu0 0
    %10270 = vmatprep.subr.bf16.mxu0 0
    %10271 = vmatpush1.bf16.msra.mxu0 0
    %10272 = vmatprep.subr.bf16.mxu0 0
    %10273 = vmatpush1.bf16.msra.mxu0 0
    %10274 = vmatprep.mubr.bf16.mxu0 0
    %10275 = vmatmul.mubr.bf16.gmra.mrb[0].mxu0 %v10186
    %v10276 = vpop.f32.mrb[0].mxu0
    %v10277 = vadd.f32 %v10192, %v10276
    %v10278 = vpop.f32.mrb[0].mxu0
    %v10279 = vpop.f32.mrb[0].mxu0
    %v10280 = vadd.f32 %v10192, %v10279
    %v10281 = vpop.f32.mrb[0].mxu0
    %10282 = vdwg.mxu0
    %10283 = vmax.xlane.f32.xlu0 %v10277
    %v10284 = vpop.xlane.xlu0 %10283
    %10285 = vmax.xlane.f32.xlu0 %v10280
    %v10286 = vpop.xlane.xlu0 %10285
    %v10287 = vsub.f32 %v10277, %v10284
    %v10288 = vsub.f32 %v10280, %v10286
    %v10289 = vmul.f32 %v10287, 1.442695
    %v10290 = vpow.pop %v10289
    %v10291 = vmul.f32 %v10288, 1.442695
    %v10292 = vpow.pop %v10291
    %10293 = vadd.xlane.f32.xlu0 %v10290
    %v10294 = vpop.xlane.xlu0 %10293
    %10295 = vadd.xlane.f32.xlu0 %v10292
    %v10296 = vpop.xlane.xlu0 %10295
    %v10297 = vlog2.pop %v10294
    %v10298 = vmul.f32 %v10297, 0.6931472
    %v10299 = vlog2.pop %v10296
    %v10300 = vmul.f32 %v10299, 0.6931472
    %v10301 = vsub.f32 %v10287, %v10298
    %v10302 = vsub.f32 %v10288, %v10300
    %10303 = vst [vmem:[%s119] sm:$0xff] %v10301
    %10304 = vst [vmem:[%s119 + $0x8] sm:$0xff] %v10302
    // Predicated region
    $region378: #{gap_gnn_forward.1} parent=1 // pred_check
      _
    $region379: #{gap_gnn_forward.1} parent=1 // pred_check_branch
      %10306 = sbr.rel (0) target = $region381
    $region380: #{gap_gnn_forward.1} parent=1 // pred_region
      _
    $region381: #{gap_gnn_forward.1} parent=1 // pred_fallthru
      _
    // Predicated region
    $region382: #{gap_gnn_forward.1} parent=1 // pred_check
      _
    $region383: #{gap_gnn_forward.1} parent=1 // pred_check_branch
      %10308 = sbr.rel (0) target = $region385
    $region384: #{gap_gnn_forward.1} parent=1 // pred_region
      _
    $region385: #{gap_gnn_forward.1} parent=1 // pred_fallthru
      _
    %10309 = vsyncpa [#allocation3], 1
    %10310 = vsyncpa [#allocation5], 1
    %10311 = vsyncpa [#allocation8], 1
    %10312 = vsyncpa [#allocation11], 1
    %10313 = vsyncpa [#allocation14], 1
    %10314 = vsyncpa [#allocation17], 1
    %10315 = vsyncpa [#allocation20], 1
    %10316 = vsyncpa [#allocation23], 1
    %10317 = vsyncpa [#allocation26], 1
    %10318 = vsyncpa [#allocation29], 1
    %10319 = vsyncpa [#allocation32], 1
    %10320 = vsyncpa [#allocation35], 1
    %10321 = vsyncpa [#allocation38], 1
    %10322 = vsyncpa [#allocation41], 1
    %10323 = vsyncpa [#allocation44], 1
    %10324 = vsyncpa [#allocation47], 1
    %10325 = vsyncpa [#allocation50], 1
    %10326 = vsyncpa [#allocation53], 1

</llo_original>
